<compile_context>
chip_gen: v7x
topology: tpu7x:2x2x1
jax: 0.10.0
libtpu: 0.0.40
codegen_flags: <defaults>
</compile_context>

<pallas_src>
import jax
import jax.numpy as jnp
from jax.experimental import pallas as pl
from jax.experimental.pallas import tpu as pltpu

EPS = 1e-3                      # BatchNorm2d eps
MATMUL_DTYPE = jnp.bfloat16     # MXU-native input dtype; accumulation/stats stay f32.


def _make_conv_bn_stats_kernel(tile_h, w_out, w_valid, h_valid, cpad):
    """One grid step = (batch, H-tile): 3x3 conv tile + per-tile BN partial stats."""
    tile_m = tile_h * w_out

    def kernel(x_ref, w_ref, cmask_ref, y_ref, sum_ref, m2_ref):
        # x_ref:     (Hpad+2, Wpad+2, Cin)  whole padded image of this batch (bf16)
        # w_ref:     (3, 3*Cin, Cpad)       per-kh im2col weights (bf16, Cout->128)
        # cmask_ref: (tile_m, 1) f32        static column-validity mask (W lane-pad)
        # y_ref:     (tile_h, Wpad, Cpad)   raw conv output tile (f32)
        # sum_ref:   (1, Cpad) f32          masked per-tile sum
        # m2_ref:    (1, Cpad) f32          masked per-tile centered sum of squares
        t = pl.program_id(1)
        row0 = t * tile_h
        cin = x_ref.shape[-1]

        # 3x3 conv as three K=3*Cin MXU matmuls (im2col fused along kw),
        # accumulated in a traced f32 value (no VMEM scratch / zero-init / RMW).
        acc = None
        for kh in range(3):
            rows = x_ref[pl.ds(row0 + kh, tile_h), :, :]           # (tile_h, Wpad+2, Cin)
            patch = jnp.concatenate(
                [rows[:, kw:kw + w_out, :].reshape(tile_m, cin) for kw in range(3)],
                axis=-1)                                            # (tile_m, 3*Cin)
            part = jnp.dot(patch, w_ref[kh],
                           preferred_element_type=jnp.float32)      # (tile_m, Cpad) f32
            acc = part if acc is None else acc + part

        # Validity mask: ragged last H-tile (dynamic) x right-padded W columns (static).
        valid_h = jnp.minimum(h_valid - row0, tile_h)               # i32 scalar
        ridx = jax.lax.broadcasted_iota(jnp.int32, (tile_m, 1), 0)
        maskf = (ridx < valid_h * w_out).astype(jnp.float32) * cmask_ref[...]
        acc = acc * maskf                                           # zero invalid rows/cols
        y_ref[...] = acc.reshape(tile_h, w_out, cpad)

        # BN partials (training-mode batch stats): masked sum + centered M2 (f32).
        cnt = (valid_h * w_valid).astype(jnp.float32)
        s = jnp.sum(acc, axis=0, keepdims=True)                     # (1, Cpad)
        mu = s * (1.0 / cnt)
        d = (acc - mu) * maskf
        sum_ref[...] = s
        m2_ref[...] = jnp.sum(d * d, axis=0, keepdims=True)

    return kernel


def conv2d_batchnorm(x_nchw, w_oihw, gamma, beta, tile_h=None, max_rows=2048):
    """Forward of Conv2d(64->96, 3x3, s1, p1, bias=False) + BatchNorm2d(96, eps=1e-3),
    normalizing with batch statistics (PyTorch training-mode forward)."""
    n, cin, h, w = x_nchw.shape
    cout, cin_w, kh_sz, kw_sz = w_oihw.shape
    assert (cin_w, kh_sz, kw_sz) == (cin, 3, 3)

    cpad = ((cout + 127) // 128) * 128          # lane-dense output channels (96 -> 128)
    w_out = ((w + 7) // 8) * 8                  # sublane-friendly padded output width

    if tile_h is None:
        tile_h = max(1, min(h, max_rows // w_out))
        if n * pl.cdiv(h, tile_h) < 2 and h > 1:   # keep >= 2 grid steps (v7x megacore)
            tile_h = pl.cdiv(h, 2)
    n_t = pl.cdiv(h, tile_h)
    hpad = n_t * tile_h
    tile_m = tile_h * w_out

    # NCHW -> NHWC; conv zero-pad (1 top/left) + alignment zero-pad (bottom/right).
    # The whole padded image of one batch element stays VMEM-resident for all of
    # its H-tiles (Cin=64 bf16 -> a few hundred KB for Inception 3x3-conv sizes).
    x_nhwc = jnp.transpose(x_nchw, (0, 2, 3, 1))
    xp = jnp.pad(x_nhwc, ((0, 0), (1, hpad - h + 1), (1, w_out - w + 1), (0, 0)))
    xp = xp.astype(MATMUL_DTYPE)

    # (Cout, Cin, 3, 3) -> (kh, kw*Cin + ci, Cout), zero-padded to cpad lanes.
    w_k = jnp.transpose(w_oihw, (2, 3, 1, 0)).reshape(3, 3 * cin, cout)
    w_k = jnp.pad(w_k, ((0, 0), (0, 0), (0, cpad - cout))).astype(MATMUL_DTYPE)

    # Static column-validity mask over the flattened (tile_h * w_out) row axis.
    cmask = jnp.tile((jnp.arange(w_out) < w).astype(jnp.float32), tile_h)
    cmask = cmask.reshape(tile_m, 1)

    kernel = _make_conv_bn_stats_kernel(tile_h, w_out, w, h, cpad)

    y, sums, m2s = pl.pallas_call(
        kernel,
        out_shape=(jax.ShapeDtypeStruct((n, hpad, w_out, cpad), jnp.float32),
                   jax.ShapeDtypeStruct((n, n_t, 1, cpad), jnp.float32),
                   jax.ShapeDtypeStruct((n, n_t, 1, cpad), jnp.float32)),
        grid=(n, n_t),
        in_specs=[
            pl.BlockSpec((None, hpad + 2, w_out + 2, cin), lambda b, t: (b, 0, 0, 0)),
            pl.BlockSpec((3, 3 * cin, cpad), lambda b, t: (0, 0, 0)),
            pl.BlockSpec((tile_m, 1), lambda b, t: (0, 0)),
        ],
        out_specs=(
            pl.BlockSpec((None, tile_h, w_out, cpad), lambda b, t: (b, t, 0, 0)),
            pl.BlockSpec((None, None, 1, cpad), lambda b, t: (b, t, 0, 0)),
            pl.BlockSpec((None, None, 1, cpad), lambda b, t: (b, t, 0, 0)),
        ),
        compiler_params=pltpu.CompilerParams(
            dimension_semantics=("parallel", "parallel")),
    )(xp, w_k, cmask)

    # Chan combine of per-tile (count, sum, centered M2) -> batch mean / biased var.
    total = float(n * h * w)
    sums = sums.reshape(n, n_t, cpad)
    m2s = m2s.reshape(n, n_t, cpad)
    counts = jnp.array([min(h - t * tile_h, tile_h) * w for t in range(n_t)],
                       dtype=jnp.float32)                       # (n_t,)
    mean = jnp.sum(sums, axis=(0, 1)) / total                   # (cpad,)
    tile_mean = sums / counts[None, :, None]
    var = (jnp.sum(m2s, axis=(0, 1))
           + jnp.sum(counts[None, :, None] * (tile_mean - mean) ** 2, axis=(0, 1))) / total

    gamma_p = jnp.pad(gamma.astype(jnp.float32), (0, cpad - cout))
    beta_p = jnp.pad(beta.astype(jnp.float32), (0, cpad - cout))
    inv_std = jax.lax.rsqrt(var + EPS)
    scale = gamma_p * inv_std                                   # (cpad,)
    shift = beta_p - mean * scale

    # Folded BN epilogue in plain JAX: XLA fuses the FMA + slices into the
    # NHWC -> NCHW transpose (one read of y, one write of the final output).
    # TODO(synk): running_mean / running_var buffer updates (momentum=0.1) are a
    # training-time side effect of BatchNorm2d and are not materialized here.
    y_norm = y * scale + shift                                  # (n, hpad, w_out, cpad)
    return jnp.transpose(y_norm[:, :h, :w, :cout], (0, 3, 1, 2))


def _reference(x, w, gamma, beta):
    # Apples-to-apples with the kernel's bf16 MXU inputs / f32 accumulation.
    xb = x.astype(jnp.bfloat16).astype(jnp.float32)
    wb = w.astype(jnp.bfloat16).astype(jnp.float32)
    y = jax.lax.conv_general_dilated(
        xb, wb, window_strides=(1, 1), padding=((1, 1), (1, 1)),
        dimension_numbers=("NCHW", "OIHW", "NCHW"),
        precision=jax.lax.Precision.HIGHEST)
    mean = jnp.mean(y, axis=(0, 2, 3), keepdims=True)
    var = jnp.mean((y - mean) ** 2, axis=(0, 2, 3), keepdims=True)  # biased (training mode)
    return ((y - mean) * jax.lax.rsqrt(var + EPS) * gamma.reshape(1, -1, 1, 1)
            + beta.reshape(1, -1, 1, 1))


if __name__ == "__main__":
    key = jax.random.PRNGKey(0)
    k_x, k_w, k_g, k_b = jax.random.split(key, 4)

    # Shapes from the module: Conv2d(64 -> 96, 3x3) on a 25x25 feature map.
    N, Cin, H, W, Cout = 2, 64, 25, 25, 96
    x = jax.random.normal(k_x, (N, Cin, H, W), dtype=jnp.float32)
    w = 0.05 * jax.random.normal(k_w, (Cout, Cin, 3, 3), dtype=jnp.float32)
    gamma = 1.0 + 0.1 * jax.random.normal(k_g, (Cout,), dtype=jnp.float32)
    beta = 0.1 * jax.random.normal(k_b, (Cout,), dtype=jnp.float32)

    out = jax.block_until_ready(jax.jit(conv2d_batchnorm)(x, w, gamma, beta))
    ref = jax.block_until_ready(_reference(x, w, gamma, beta))

    assert out.shape == (N, Cout, H, W), out.shape
    max_err = float(jnp.max(jnp.abs(out - ref)))
    assert jnp.allclose(out, ref, atol=2e-3, rtol=2e-3), max_err
    print("KERNEL_OK")
</pallas_src>

<mosaic_0001>
module attributes {stable_mosaic.version = 11 : i64} {
  func.func @kernel(%arg0: i32, %arg1: i32, %arg2: memref<1x27x34x64xbf16, #tpu.memory_space<vmem>>, %arg3: memref<3x192x128xbf16, #tpu.memory_space<vmem>>, %arg4: memref<800x1xf32, #tpu.memory_space<vmem>>, %arg5: memref<1x25x32x128xf32, #tpu.memory_space<vmem>>, %arg6: memref<1x1x1x128xf32, #tpu.memory_space<vmem>>, %arg7: memref<1x1x1x128xf32, #tpu.memory_space<vmem>>) attributes {dimension_semantics = [#tpu.dimension_semantics<parallel>, #tpu.dimension_semantics<parallel>], iteration_bounds = array<i64: 2, 1>, scalar_prefetch = 0 : i64, scratch_operands = 0 : i64, tpu.core_type = #tpu.core_type<tc>, window_params = [{transform_indices = @transform_0, window_bounds = array<i64: 1, 27, 34, 64>}, {pipeline_mode = #tpu.pipeline_mode<synchronous>, transform_indices = @transform_1, window_bounds = array<i64: 3, 192, 128>}, {pipeline_mode = #tpu.pipeline_mode<synchronous>, transform_indices = @transform_2, window_bounds = array<i64: 800, 1>}, {transform_indices = @transform_3, window_bounds = array<i64: 1, 25, 32, 128>}, {transform_indices = @transform_4, window_bounds = array<i64: 1, 1, 1, 128>}, {transform_indices = @transform_5, window_bounds = array<i64: 1, 1, 1, 128>}]} {
    %c25_i32 = arith.constant 25 : i32
    %0 = arith.muli %arg1, %c25_i32 : i32
    %c0_i32 = arith.constant 0 : i32
    %1 = arith.addi %0, %c0_i32 : i32
    %c0 = arith.constant 0 : index
    %2 = arith.index_cast %1 : i32 to index
    %c0_0 = arith.constant 0 : index
    %c0_1 = arith.constant 0 : index
    %3 = vector.load %arg2[%c0, %2, %c0_0, %c0_1] : memref<1x27x34x64xbf16, #tpu.memory_space<vmem>>, vector<1x25x34x64xbf16>
    %4 = vector.shape_cast %3 : vector<1x25x34x64xbf16> to vector<25x34x64xbf16>
    %5 = vector.extract_strided_slice %4 {offsets = [0, 0, 0], sizes = [25, 32, 64], strides = [1, 1, 1]} : vector<25x34x64xbf16> to vector<25x32x64xbf16>
    %6 = vector.shape_cast %5 : vector<25x32x64xbf16> to vector<800x64xbf16>
    %7 = vector.extract_strided_slice %4 {offsets = [0, 1, 0], sizes = [25, 32, 64], strides = [1, 1, 1]} : vector<25x34x64xbf16> to vector<25x32x64xbf16>
    %8 = vector.shape_cast %7 : vector<25x32x64xbf16> to vector<800x64xbf16>
    %9 = vector.extract_strided_slice %4 {offsets = [0, 2, 0], sizes = [25, 32, 64], strides = [1, 1, 1]} : vector<25x34x64xbf16> to vector<25x32x64xbf16>
    %10 = vector.shape_cast %9 : vector<25x32x64xbf16> to vector<800x64xbf16>
    %11 = tpu.concatenate %6, %8, %10 in 1 : vector<800x64xbf16>, vector<800x64xbf16>, vector<800x64xbf16> -> vector<800x192xbf16>
    %c0_2 = arith.constant 0 : index
    %c0_3 = arith.constant 0 : index
    %c0_4 = arith.constant 0 : index
    %12 = vector.load %arg3[%c0_2, %c0_3, %c0_4] : memref<3x192x128xbf16, #tpu.memory_space<vmem>>, vector<1x192x128xbf16>
    %13 = vector.shape_cast %12 : vector<1x192x128xbf16> to vector<192x128xbf16>
    %cst = arith.constant dense<0.000000e+00> : vector<800x128xf32>
    %14 = tpu.matmul %11, %13, %cst {dimension_numbers = #tpu.dot_dimension_numbers<[1], [0], [0], [1], [0, 0, 1, 1], [], []>} : vector<800x192xbf16>, vector<192x128xbf16>, vector<800x128xf32> -> vector<800x128xf32>
    %c1_i32 = arith.constant 1 : i32
    %15 = arith.addi %0, %c1_i32 : i32
    %c0_5 = arith.constant 0 : index
    %16 = arith.index_cast %15 : i32 to index
    %c0_6 = arith.constant 0 : index
    %c0_7 = arith.constant 0 : index
    %17 = vector.load %arg2[%c0_5, %16, %c0_6, %c0_7] : memref<1x27x34x64xbf16, #tpu.memory_space<vmem>>, vector<1x25x34x64xbf16>
    %18 = vector.shape_cast %17 : vector<1x25x34x64xbf16> to vector<25x34x64xbf16>
    %19 = vector.extract_strided_slice %18 {offsets = [0, 0, 0], sizes = [25, 32, 64], strides = [1, 1, 1]} : vector<25x34x64xbf16> to vector<25x32x64xbf16>
    %20 = vector.shape_cast %19 : vector<25x32x64xbf16> to vector<800x64xbf16>
    %21 = vector.extract_strided_slice %18 {offsets = [0, 1, 0], sizes = [25, 32, 64], strides = [1, 1, 1]} : vector<25x34x64xbf16> to vector<25x32x64xbf16>
    %22 = vector.shape_cast %21 : vector<25x32x64xbf16> to vector<800x64xbf16>
    %23 = vector.extract_strided_slice %18 {offsets = [0, 2, 0], sizes = [25, 32, 64], strides = [1, 1, 1]} : vector<25x34x64xbf16> to vector<25x32x64xbf16>
    %24 = vector.shape_cast %23 : vector<25x32x64xbf16> to vector<800x64xbf16>
    %25 = tpu.concatenate %20, %22, %24 in 1 : vector<800x64xbf16>, vector<800x64xbf16>, vector<800x64xbf16> -> vector<800x192xbf16>
    %c1 = arith.constant 1 : index
    %c0_8 = arith.constant 0 : index
    %c0_9 = arith.constant 0 : index
    %26 = vector.load %arg3[%c1, %c0_8, %c0_9] : memref<3x192x128xbf16, #tpu.memory_space<vmem>>, vector<1x192x128xbf16>
    %27 = vector.shape_cast %26 : vector<1x192x128xbf16> to vector<192x128xbf16>
    %cst_10 = arith.constant dense<0.000000e+00> : vector<800x128xf32>
    %28 = tpu.matmul %25, %27, %cst_10 {dimension_numbers = #tpu.dot_dimension_numbers<[1], [0], [0], [1], [0, 0, 1, 1], [], []>} : vector<800x192xbf16>, vector<192x128xbf16>, vector<800x128xf32> -> vector<800x128xf32>
    %29 = arith.addf %14, %28 : vector<800x128xf32>
    %c2_i32 = arith.constant 2 : i32
    %30 = arith.addi %0, %c2_i32 : i32
    %c0_11 = arith.constant 0 : index
    %31 = arith.index_cast %30 : i32 to index
    %c0_12 = arith.constant 0 : index
    %c0_13 = arith.constant 0 : index
    %32 = vector.load %arg2[%c0_11, %31, %c0_12, %c0_13] : memref<1x27x34x64xbf16, #tpu.memory_space<vmem>>, vector<1x25x34x64xbf16>
    %33 = vector.shape_cast %32 : vector<1x25x34x64xbf16> to vector<25x34x64xbf16>
    %34 = vector.extract_strided_slice %33 {offsets = [0, 0, 0], sizes = [25, 32, 64], strides = [1, 1, 1]} : vector<25x34x64xbf16> to vector<25x32x64xbf16>
    %35 = vector.shape_cast %34 : vector<25x32x64xbf16> to vector<800x64xbf16>
    %36 = vector.extract_strided_slice %33 {offsets = [0, 1, 0], sizes = [25, 32, 64], strides = [1, 1, 1]} : vector<25x34x64xbf16> to vector<25x32x64xbf16>
    %37 = vector.shape_cast %36 : vector<25x32x64xbf16> to vector<800x64xbf16>
    %38 = vector.extract_strided_slice %33 {offsets = [0, 2, 0], sizes = [25, 32, 64], strides = [1, 1, 1]} : vector<25x34x64xbf16> to vector<25x32x64xbf16>
    %39 = vector.shape_cast %38 : vector<25x32x64xbf16> to vector<800x64xbf16>
    %40 = tpu.concatenate %35, %37, %39 in 1 : vector<800x64xbf16>, vector<800x64xbf16>, vector<800x64xbf16> -> vector<800x192xbf16>
    %c2 = arith.constant 2 : index
    %c0_14 = arith.constant 0 : index
    %c0_15 = arith.constant 0 : index
    %41 = vector.load %arg3[%c2, %c0_14, %c0_15] : memref<3x192x128xbf16, #tpu.memory_space<vmem>>, vector<1x192x128xbf16>
    %42 = vector.shape_cast %41 : vector<1x192x128xbf16> to vector<192x128xbf16>
    %cst_16 = arith.constant dense<0.000000e+00> : vector<800x128xf32>
    %43 = tpu.matmul %40, %42, %cst_16 {dimension_numbers = #tpu.dot_dimension_numbers<[1], [0], [0], [1], [0, 0, 1, 1], [], []>} : vector<800x192xbf16>, vector<192x128xbf16>, vector<800x128xf32> -> vector<800x128xf32>
    %44 = arith.addf %29, %43 : vector<800x128xf32>
    %c25_i32_17 = arith.constant 25 : i32
    %45 = arith.subi %c25_i32_17, %0 : i32
    %c25_i32_18 = arith.constant 25 : i32
    %46 = arith.minsi %45, %c25_i32_18 : i32
    %47 = tpu.iota {dimensions = array<i32: 0>} : vector<800x1xi32>
    %c32_i32 = arith.constant 32 : i32
    %48 = arith.muli %46, %c32_i32 : i32
    %49 = vector.broadcast %48 : i32 to vector<800x1xi32>
    %50 = arith.cmpi slt, %47, %49 : vector<800x1xi32>
    %51 = arith.extui %50 : vector<800x1xi1> to vector<800x1xi32>
    %52 = arith.sitofp %51 : vector<800x1xi32> to vector<800x1xf32>
    %c0_19 = arith.constant 0 : index
    %c0_20 = arith.constant 0 : index
    %53 = vector.load %arg4[%c0_19, %c0_20] : memref<800x1xf32, #tpu.memory_space<vmem>>, vector<800x1xf32>
    %54 = arith.mulf %52, %53 : vector<800x1xf32>
    %55 = vector.broadcast %54 : vector<800x1xf32> to vector<800x128xf32>
    %56 = arith.mulf %44, %55 : vector<800x128xf32>
    %57 = vector.shape_cast %56 : vector<800x128xf32> to vector<25x32x128xf32>
    %c0_21 = arith.constant 0 : index
    %c0_22 = arith.constant 0 : index
    %c0_23 = arith.constant 0 : index
    %c0_24 = arith.constant 0 : index
    %58 = vector.load %arg5[%c0_21, %c0_22, %c0_23, %c0_24] : memref<1x25x32x128xf32, #tpu.memory_space<vmem>>, vector<1x25x32x128xf32>
    %59 = vector.shape_cast %58 : vector<1x25x32x128xf32> to vector<25x32x128xf32>
    %60 = vector.shape_cast %57 : vector<25x32x128xf32> to vector<1x25x32x128xf32>
    tpu.vector_store %arg5[%c0_21, %c0_22, %c0_23, %c0_24], %60 {strides = array<i32>} : memref<1x25x32x128xf32, #tpu.memory_space<vmem>>, vector<1x25x32x128xf32>,
    %c25_i32_25 = arith.constant 25 : i32
    %61 = arith.muli %46, %c25_i32_25 : i32
    %62 = arith.sitofp %61 : i32 to f32
    %cst_26 = arith.constant dense<0.000000e+00> : vector<128xf32>
    %63 = vector.multi_reduction <add>, %56, %cst_26 [0] : vector<800x128xf32> to vector<128xf32>
    %64 = vector.shape_cast %63 : vector<128xf32> to vector<1x128xf32>
    %cst_27 = arith.constant 1.000000e+00 : f32
    %65 = arith.divf %cst_27, %62 : f32
    %66 = vector.broadcast %65 : f32 to vector<1x128xf32>
    %67 = arith.mulf %64, %66 : vector<1x128xf32>
    %68 = vector.broadcast %67 : vector<1x128xf32> to vector<800x128xf32>
    %69 = arith.subf %56, %68 : vector<800x128xf32>
    %70 = vector.broadcast %54 : vector<800x1xf32> to vector<800x128xf32>
    %71 = arith.mulf %69, %70 : vector<800x128xf32>
    %c0_28 = arith.constant 0 : index
    %c0_29 = arith.constant 0 : index
    %c0_30 = arith.constant 0 : index
    %c0_31 = arith.constant 0 : index
    %72 = vector.load %arg6[%c0_28, %c0_29, %c0_30, %c0_31] : memref<1x1x1x128xf32, #tpu.memory_space<vmem>>, vector<1x1x1x128xf32>
    %73 = vector.shape_cast %72 : vector<1x1x1x128xf32> to vector<1x128xf32>
    %74 = vector.shape_cast %64 : vector<1x128xf32> to vector<1x1x1x128xf32>
    tpu.vector_store %arg6[%c0_28, %c0_29, %c0_30, %c0_31], %74 {strides = array<i32>} : memref<1x1x1x128xf32, #tpu.memory_space<vmem>>, vector<1x1x1x128xf32>,
    %75 = arith.mulf %71, %71 : vector<800x128xf32>
    %cst_32 = arith.constant dense<0.000000e+00> : vector<128xf32>
    %76 = vector.multi_reduction <add>, %75, %cst_32 [0] : vector<800x128xf32> to vector<128xf32>
    %77 = vector.shape_cast %76 : vector<128xf32> to vector<1x128xf32>
    %c0_33 = arith.constant 0 : index
    %c0_34 = arith.constant 0 : index
    %c0_35 = arith.constant 0 : index
    %c0_36 = arith.constant 0 : index
    %78 = vector.load %arg7[%c0_33, %c0_34, %c0_35, %c0_36] : memref<1x1x1x128xf32, #tpu.memory_space<vmem>>, vector<1x1x1x128xf32>
    %79 = vector.shape_cast %78 : vector<1x1x1x128xf32> to vector<1x128xf32>
    %80 = vector.shape_cast %77 : vector<1x128xf32> to vector<1x1x1x128xf32>
    tpu.vector_store %arg7[%c0_33, %c0_34, %c0_35, %c0_36], %80 {strides = array<i32>} : memref<1x1x1x128xf32, #tpu.memory_space<vmem>>, vector<1x1x1x128xf32>,
    return
  }
  func.func @transform_0(%arg0: i32, %arg1: i32) -> (i32, i32, i32, i32) {
    %c0_i32 = arith.constant 0 : i32
    %c0_i32_0 = arith.constant 0 : i32
    %c0_i32_1 = arith.constant 0 : i32
    %c0_i32_2 = arith.constant 0 : i32
    return %arg0, %c0_i32, %c0_i32_0, %c0_i32_1 : i32, i32, i32, i32
  }
  func.func @transform_1(%arg0: i32, %arg1: i32) -> (i32, i32, i32) {
    %c0_i32 = arith.constant 0 : i32
    %c0_i32_0 = arith.constant 0 : i32
    %c0_i32_1 = arith.constant 0 : i32
    %c0_i32_2 = arith.constant 0 : i32
    return %c0_i32, %c0_i32_0, %c0_i32_1 : i32, i32, i32
  }
  func.func @transform_2(%arg0: i32, %arg1: i32) -> (i32, i32) {
    %c0_i32 = arith.constant 0 : i32
    %c0_i32_0 = arith.constant 0 : i32
    %c0_i32_1 = arith.constant 0 : i32
    return %c0_i32, %c0_i32_0 : i32, i32
  }
  func.func @transform_3(%arg0: i32, %arg1: i32) -> (i32, i32, i32, i32) {
    %c0_i32 = arith.constant 0 : i32
    %c0_i32_0 = arith.constant 0 : i32
    %c0_i32_1 = arith.constant 0 : i32
    return %arg0, %arg1, %c0_i32, %c0_i32_0 : i32, i32, i32, i32
  }
  func.func @transform_4(%arg0: i32, %arg1: i32) -> (i32, i32, i32, i32) {
    %c0_i32 = arith.constant 0 : i32
    %c0_i32_0 = arith.constant 0 : i32
    %c0_i32_1 = arith.constant 0 : i32
    return %arg0, %arg1, %c0_i32, %c0_i32_0 : i32, i32, i32, i32
  }
  func.func @transform_5(%arg0: i32, %arg1: i32) -> (i32, i32, i32, i32) {
    %c0_i32 = arith.constant 0 : i32
    %c0_i32_0 = arith.constant 0 : i32
    %c0_i32_1 = arith.constant 0 : i32
    return %arg0, %arg1, %c0_i32, %c0_i32_0 : i32, i32, i32, i32
  }
}

</mosaic_0001>

<llo_original>
// kernel: tile.8
$region0: #{tile.8}
  #allocation0 [shape = 's32[1]{0}', space=sflag, size = 0x4, scoped, tag = 'scoped memory for tile.8']
  %s0 = inlined_call_operand.vmem [shape: f32[32], index: 0, kind: input, shape index: {}]
  %s1 = inlined_call_operand.vmem [shape: f32[25,32], index: 1, kind: output, shape index: {}]
  // Predicated region
  $region2: #{tile.8} parent=0 // pred_check
    _
  $region3: #{tile.8} parent=0 // pred_check_branch
    %3 = sbr.rel (0) target = $region5
  $region4: #{tile.8} parent=0 // pred_region
    _
  $region5: #{tile.8} parent=0 // pred_fallthru
    _
  %v4 = vld [vmem:[%s0] ss:$0 sm:$0xff]
  %5 = vst [vmem:[%s1] sm:$0xff] %v4
  %s6 = scalar_lea.vmem %s1, 8
  %7 = vst [vmem:[%s6] sm:$0xff] %v4
  %s8 = scalar_lea.vmem %s1, 16
  %9 = vst [vmem:[%s8] sm:$0xff] %v4
  %s10 = scalar_lea.vmem %s1, 24
  %11 = vst [vmem:[%s10] sm:$0xff] %v4

// kernel: tile.0
$region0: #{tile.0}
  %s0 = inlined_call_operand.vmem [shape: f32[25,32], index: 0, kind: input, shape index: {}]
  %s1 = inlined_call_operand.vmem [shape: f32[800,1], index: 1, kind: output, shape index: {}]
  %v2 = vld [vmem:[%s0] sm:$0xff]
  %vm3 = vcmask 7168
  %4 = vst.msk [vmem:[%s1] sm:$0x1] %vm3, %v2
  %s5 = scalar_lea.vmem %s1, 31
  %6 = vst.msk [vmem:[%s5] sm:$0x2] %vm3, %v2
  %s7 = scalar_lea.vmem %s1, 62
  %8 = vst.msk [vmem:[%s7] sm:$0x4] %vm3, %v2
  %s9 = scalar_lea.vmem %s1, 93
  %10 = vst.msk [vmem:[%s9] sm:$0x8] %vm3, %v2
  %s11 = scalar_lea.vmem %s1, 124
  %12 = vst.msk [vmem:[%s11] sm:$0x10] %vm3, %v2
  %s13 = scalar_lea.vmem %s1, 155
  %14 = vst.msk [vmem:[%s13] sm:$0x20] %vm3, %v2
  %s15 = scalar_lea.vmem %s1, 186
  %16 = vst.msk [vmem:[%s15] sm:$0x40] %vm3, %v2
  %s17 = scalar_lea.vmem %s1, 217
  %18 = vst.msk [vmem:[%s17] sm:$0x80] %vm3, %v2
  %s19 = scalar_lea.vmem %s0, 8
  %v20 = vld [vmem:[%s19] sm:$0xff]
  %vm21 = vcmask 7168
  %s22 = scalar_lea.vmem %s1, 256
  %23 = vst.msk [vmem:[%s22] sm:$0x1] %vm21, %v20
  %s24 = scalar_lea.vmem %s1, 287
  %25 = vst.msk [vmem:[%s24] sm:$0x2] %vm21, %v20
  %s26 = scalar_lea.vmem %s1, 318
  %27 = vst.msk [vmem:[%s26] sm:$0x4] %vm21, %v20
  %s28 = scalar_lea.vmem %s1, 349
  %29 = vst.msk [vmem:[%s28] sm:$0x8] %vm21, %v20
  %s30 = scalar_lea.vmem %s1, 380
  %31 = vst.msk [vmem:[%s30] sm:$0x10] %vm21, %v20
  %s32 = scalar_lea.vmem %s1, 411
  %33 = vst.msk [vmem:[%s32] sm:$0x20] %vm21, %v20
  %s34 = scalar_lea.vmem %s1, 442
  %35 = vst.msk [vmem:[%s34] sm:$0x40] %vm21, %v20
  %s36 = scalar_lea.vmem %s1, 473
  %37 = vst.msk [vmem:[%s36] sm:$0x80] %vm21, %v20
  %s38 = scalar_lea.vmem %s0, 16
  %v39 = vld [vmem:[%s38] sm:$0xff]
  %vm40 = vcmask 7168
  %s41 = scalar_lea.vmem %s1, 512
  %42 = vst.msk [vmem:[%s41] sm:$0x1] %vm40, %v39
  %s43 = scalar_lea.vmem %s1, 543
  %44 = vst.msk [vmem:[%s43] sm:$0x2] %vm40, %v39
  %s45 = scalar_lea.vmem %s1, 574
  %46 = vst.msk [vmem:[%s45] sm:$0x4] %vm40, %v39
  %s47 = scalar_lea.vmem %s1, 605
  %48 = vst.msk [vmem:[%s47] sm:$0x8] %vm40, %v39
  %s49 = scalar_lea.vmem %s1, 636
  %50 = vst.msk [vmem:[%s49] sm:$0x10] %vm40, %v39
  %s51 = scalar_lea.vmem %s1, 667
  %52 = vst.msk [vmem:[%s51] sm:$0x20] %vm40, %v39
  %s53 = scalar_lea.vmem %s1, 698
  %54 = vst.msk [vmem:[%s53] sm:$0x40] %vm40, %v39
  %s55 = scalar_lea.vmem %s1, 729
  %56 = vst.msk [vmem:[%s55] sm:$0x80] %vm40, %v39
  %s57 = scalar_lea.vmem %s0, 24
  %v58 = vld [vmem:[%s57] sm:$0x1]
  %vm59 = vcmask 7168
  %s60 = scalar_lea.vmem %s1, 768
  %61 = vst.msk [vmem:[%s60] sm:$0x1] %vm59, %v58
  %v62 = vld [vmem:[%s0] sm:$0xff]
  %63 = vrot.lane.b32.xlu0 %v62, 127
  %v64 = vpop.permute.xlu0 %63
  %vm65 = vcmask 7168
  %s66 = scalar_lea.vmem %s1, 1
  %67 = vst.msk [vmem:[%s66] sm:$0x1] %vm65, %v64
  %s68 = scalar_lea.vmem %s1, 32
  %69 = vst.msk [vmem:[%s68] sm:$0x2] %vm65, %v64
  %s70 = scalar_lea.vmem %s1, 63
  %71 = vst.msk [vmem:[%s70] sm:$0x4] %vm65, %v64
  %s72 = scalar_lea.vmem %s1, 94
  %73 = vst.msk [vmem:[%s72] sm:$0x8] %vm65, %v64
  %s74 = scalar_lea.vmem %s1, 125
  %75 = vst.msk [vmem:[%s74] sm:$0x10] %vm65, %v64
  %s76 = scalar_lea.vmem %s1, 156
  %77 = vst.msk [vmem:[%s76] sm:$0x20] %vm65, %v64
  %s78 = scalar_lea.vmem %s1, 187
  %79 = vst.msk [vmem:[%s78] sm:$0x40] %vm65, %v64
  %s80 = scalar_lea.vmem %s1, 218
  %81 = vst.msk [vmem:[%s80] sm:$0x80] %vm65, %v64
  %s82 = scalar_lea.vmem %s0, 8
  %v83 = vld [vmem:[%s82] sm:$0xff]
  %84 = vrot.lane.b32.xlu0 %v83, 127
  %v85 = vpop.permute.xlu0 %84
  %vm86 = vcmask 7168
  %s87 = scalar_lea.vmem %s1, 257
  %88 = vst.msk [vmem:[%s87] sm:$0x1] %vm86, %v85
  %s89 = scalar_lea.vmem %s1, 288
  %90 = vst.msk [vmem:[%s89] sm:$0x2] %vm86, %v85
  %s91 = scalar_lea.vmem %s1, 319
  %92 = vst.msk [vmem:[%s91] sm:$0x4] %vm86, %v85
  %s93 = scalar_lea.vmem %s1, 350
  %94 = vst.msk [vmem:[%s93] sm:$0x8] %vm86, %v85
  %s95 = scalar_lea.vmem %s1, 381
  %96 = vst.msk [vmem:[%s95] sm:$0x10] %vm86, %v85
  %s97 = scalar_lea.vmem %s1, 412
  %98 = vst.msk [vmem:[%s97] sm:$0x20] %vm86, %v85
  %s99 = scalar_lea.vmem %s1, 443
  %100 = vst.msk [vmem:[%s99] sm:$0x40] %vm86, %v85
  %s101 = scalar_lea.vmem %s1, 474
  %102 = vst.msk [vmem:[%s101] sm:$0x80] %vm86, %v85
  %s103 = scalar_lea.vmem %s0, 16
  %v104 = vld [vmem:[%s103] sm:$0xff]
  %105 = vrot.lane.b32.xlu0 %v104, 127
  %v106 = vpop.permute.xlu0 %105
  %vm107 = vcmask 7168
  %s108 = scalar_lea.vmem %s1, 513
  %109 = vst.msk [vmem:[%s108] sm:$0x1] %vm107, %v106
  %s110 = scalar_lea.vmem %s1, 544
  %111 = vst.msk [vmem:[%s110] sm:$0x2] %vm107, %v106
  %s112 = scalar_lea.vmem %s1, 575
  %113 = vst.msk [vmem:[%s112] sm:$0x4] %vm107, %v106
  %s114 = scalar_lea.vmem %s1, 606
  %115 = vst.msk [vmem:[%s114] sm:$0x8] %vm107, %v106
  %s116 = scalar_lea.vmem %s1, 637
  %117 = vst.msk [vmem:[%s116] sm:$0x10] %vm107, %v106
  %s118 = scalar_lea.vmem %s1, 668
  %119 = vst.msk [vmem:[%s118] sm:$0x20] %vm107, %v106
  %s120 = scalar_lea.vmem %s1, 699
  %121 = vst.msk [vmem:[%s120] sm:$0x40] %vm107, %v106
  %s122 = scalar_lea.vmem %s1, 730
  %123 = vst.msk [vmem:[%s122] sm:$0x80] %vm107, %v106
  %s124 = scalar_lea.vmem %s0, 24
  %v125 = vld [vmem:[%s124] sm:$0x1]
  %126 = vrot.lane.b32.xlu0 %v125, 127
  %v127 = vpop.permute.xlu0 %126
  %vm128 = vcmask 7168
  %s129 = scalar_lea.vmem %s1, 769
  %130 = vst.msk [vmem:[%s129] sm:$0x1] %vm128, %v127
  %v131 = vld [vmem:[%s0] sm:$0xff]
  %132 = vrot.lane.b32.xlu0 %v131, 126
  %v133 = vpop.permute.xlu0 %132
  %vm134 = vcmask 7168
  %s135 = scalar_lea.vmem %s1, 2
  %136 = vst.msk [vmem:[%s135] sm:$0x1] %vm134, %v133
  %s137 = scalar_lea.vmem %s1, 33
  %138 = vst.msk [vmem:[%s137] sm:$0x2] %vm134, %v133
  %s139 = scalar_lea.vmem %s1, 64
  %140 = vst.msk [vmem:[%s139] sm:$0x4] %vm134, %v133
  %s141 = scalar_lea.vmem %s1, 95
  %142 = vst.msk [vmem:[%s141] sm:$0x8] %vm134, %v133
  %s143 = scalar_lea.vmem %s1, 126
  %144 = vst.msk [vmem:[%s143] sm:$0x10] %vm134, %v133
  %s145 = scalar_lea.vmem %s1, 157
  %146 = vst.msk [vmem:[%s145] sm:$0x20] %vm134, %v133
  %s147 = scalar_lea.vmem %s1, 188
  %148 = vst.msk [vmem:[%s147] sm:$0x40] %vm134, %v133
  %s149 = scalar_lea.vmem %s1, 219
  %150 = vst.msk [vmem:[%s149] sm:$0x80] %vm134, %v133
  %s151 = scalar_lea.vmem %s0, 8
  %v152 = vld [vmem:[%s151] sm:$0xff]
  %153 = vrot.lane.b32.xlu0 %v152, 126
  %v154 = vpop.permute.xlu0 %153
  %vm155 = vcmask 7168
  %s156 = scalar_lea.vmem %s1, 258
  %157 = vst.msk [vmem:[%s156] sm:$0x1] %vm155, %v154
  %s158 = scalar_lea.vmem %s1, 289
  %159 = vst.msk [vmem:[%s158] sm:$0x2] %vm155, %v154
  %s160 = scalar_lea.vmem %s1, 320
  %161 = vst.msk [vmem:[%s160] sm:$0x4] %vm155, %v154
  %s162 = scalar_lea.vmem %s1, 351
  %163 = vst.msk [vmem:[%s162] sm:$0x8] %vm155, %v154
  %s164 = scalar_lea.vmem %s1, 382
  %165 = vst.msk [vmem:[%s164] sm:$0x10] %vm155, %v154
  %s166 = scalar_lea.vmem %s1, 413
  %167 = vst.msk [vmem:[%s166] sm:$0x20] %vm155, %v154
  %s168 = scalar_lea.vmem %s1, 444
  %169 = vst.msk [vmem:[%s168] sm:$0x40] %vm155, %v154
  %s170 = scalar_lea.vmem %s1, 475
  %171 = vst.msk [vmem:[%s170] sm:$0x80] %vm155, %v154
  %s172 = scalar_lea.vmem %s0, 16
  %v173 = vld [vmem:[%s172] sm:$0xff]
  %174 = vrot.lane.b32.xlu0 %v173, 126
  %v175 = vpop.permute.xlu0 %174
  %vm176 = vcmask 7168
  %s177 = scalar_lea.vmem %s1, 514
  %178 = vst.msk [vmem:[%s177] sm:$0x1] %vm176, %v175
  %s179 = scalar_lea.vmem %s1, 545
  %180 = vst.msk [vmem:[%s179] sm:$0x2] %vm176, %v175
  %s181 = scalar_lea.vmem %s1, 576
  %182 = vst.msk [vmem:[%s181] sm:$0x4] %vm176, %v175
  %s183 = scalar_lea.vmem %s1, 607
  %184 = vst.msk [vmem:[%s183] sm:$0x8] %vm176, %v175
  %s185 = scalar_lea.vmem %s1, 638
  %186 = vst.msk [vmem:[%s185] sm:$0x10] %vm176, %v175
  %s187 = scalar_lea.vmem %s1, 669
  %188 = vst.msk [vmem:[%s187] sm:$0x20] %vm176, %v175
  %s189 = scalar_lea.vmem %s1, 700
  %190 = vst.msk [vmem:[%s189] sm:$0x40] %vm176, %v175
  %s191 = scalar_lea.vmem %s1, 731
  %192 = vst.msk [vmem:[%s191] sm:$0x80] %vm176, %v175
  %s193 = scalar_lea.vmem %s0, 24
  %v194 = vld [vmem:[%s193] sm:$0x1]
  %195 = vrot.lane.b32.xlu0 %v194, 126
  %v196 = vpop.permute.xlu0 %195
  %vm197 = vcmask 7168
  %s198 = scalar_lea.vmem %s1, 770
  %199 = vst.msk [vmem:[%s198] sm:$0x1] %vm197, %v196
  %v200 = vld [vmem:[%s0] sm:$0xff]
  %201 = vrot.lane.b32.xlu0 %v200, 125
  %v202 = vpop.permute.xlu0 %201
  %vm203 = vcmask 7168
  %s204 = scalar_lea.vmem %s1, 3
  %205 = vst.msk [vmem:[%s204] sm:$0x1] %vm203, %v202
  %s206 = scalar_lea.vmem %s1, 34
  %207 = vst.msk [vmem:[%s206] sm:$0x2] %vm203, %v202
  %s208 = scalar_lea.vmem %s1, 65
  %209 = vst.msk [vmem:[%s208] sm:$0x4] %vm203, %v202
  %s210 = scalar_lea.vmem %s1, 96
  %211 = vst.msk [vmem:[%s210] sm:$0x8] %vm203, %v202
  %s212 = scalar_lea.vmem %s1, 127
  %213 = vst.msk [vmem:[%s212] sm:$0x10] %vm203, %v202
  %s214 = scalar_lea.vmem %s1, 158
  %215 = vst.msk [vmem:[%s214] sm:$0x20] %vm203, %v202
  %s216 = scalar_lea.vmem %s1, 189
  %217 = vst.msk [vmem:[%s216] sm:$0x40] %vm203, %v202
  %s218 = scalar_lea.vmem %s1, 220
  %219 = vst.msk [vmem:[%s218] sm:$0x80] %vm203, %v202
  %s220 = scalar_lea.vmem %s0, 8
  %v221 = vld [vmem:[%s220] sm:$0xff]
  %222 = vrot.lane.b32.xlu0 %v221, 125
  %v223 = vpop.permute.xlu0 %222
  %vm224 = vcmask 7168
  %s225 = scalar_lea.vmem %s1, 259
  %226 = vst.msk [vmem:[%s225] sm:$0x1] %vm224, %v223
  %s227 = scalar_lea.vmem %s1, 290
  %228 = vst.msk [vmem:[%s227] sm:$0x2] %vm224, %v223
  %s229 = scalar_lea.vmem %s1, 321
  %230 = vst.msk [vmem:[%s229] sm:$0x4] %vm224, %v223
  %s231 = scalar_lea.vmem %s1, 352
  %232 = vst.msk [vmem:[%s231] sm:$0x8] %vm224, %v223
  %s233 = scalar_lea.vmem %s1, 383
  %234 = vst.msk [vmem:[%s233] sm:$0x10] %vm224, %v223
  %s235 = scalar_lea.vmem %s1, 414
  %236 = vst.msk [vmem:[%s235] sm:$0x20] %vm224, %v223
  %s237 = scalar_lea.vmem %s1, 445
  %238 = vst.msk [vmem:[%s237] sm:$0x40] %vm224, %v223
  %s239 = scalar_lea.vmem %s1, 476
  %240 = vst.msk [vmem:[%s239] sm:$0x80] %vm224, %v223
  %s241 = scalar_lea.vmem %s0, 16
  %v242 = vld [vmem:[%s241] sm:$0xff]
  %243 = vrot.lane.b32.xlu0 %v242, 125
  %v244 = vpop.permute.xlu0 %243
  %vm245 = vcmask 7168
  %s246 = scalar_lea.vmem %s1, 515
  %247 = vst.msk [vmem:[%s246] sm:$0x1] %vm245, %v244
  %s248 = scalar_lea.vmem %s1, 546
  %249 = vst.msk [vmem:[%s248] sm:$0x2] %vm245, %v244
  %s250 = scalar_lea.vmem %s1, 577
  %251 = vst.msk [vmem:[%s250] sm:$0x4] %vm245, %v244
  %s252 = scalar_lea.vmem %s1, 608
  %253 = vst.msk [vmem:[%s252] sm:$0x8] %vm245, %v244
  %s254 = scalar_lea.vmem %s1, 639
  %255 = vst.msk [vmem:[%s254] sm:$0x10] %vm245, %v244
  %s256 = scalar_lea.vmem %s1, 670
  %257 = vst.msk [vmem:[%s256] sm:$0x20] %vm245, %v244
  %s258 = scalar_lea.vmem %s1, 701
  %259 = vst.msk [vmem:[%s258] sm:$0x40] %vm245, %v244
  %s260 = scalar_lea.vmem %s1, 732
  %261 = vst.msk [vmem:[%s260] sm:$0x80] %vm245, %v244
  %s262 = scalar_lea.vmem %s0, 24
  %v263 = vld [vmem:[%s262] sm:$0x1]
  %264 = vrot.lane.b32.xlu0 %v263, 125
  %v265 = vpop.permute.xlu0 %264
  %vm266 = vcmask 7168
  %s267 = scalar_lea.vmem %s1, 771
  %268 = vst.msk [vmem:[%s267] sm:$0x1] %vm266, %v265
  %v269 = vld [vmem:[%s0] sm:$0xff]
  %270 = vrot.lane.b32.xlu0 %v269, 124
  %v271 = vpop.permute.xlu0 %270
  %vm272 = vcmask 7168
  %s273 = scalar_lea.vmem %s1, 4
  %274 = vst.msk [vmem:[%s273] sm:$0x1] %vm272, %v271
  %s275 = scalar_lea.vmem %s1, 35
  %276 = vst.msk [vmem:[%s275] sm:$0x2] %vm272, %v271
  %s277 = scalar_lea.vmem %s1, 66
  %278 = vst.msk [vmem:[%s277] sm:$0x4] %vm272, %v271
  %s279 = scalar_lea.vmem %s1, 97
  %280 = vst.msk [vmem:[%s279] sm:$0x8] %vm272, %v271
  %s281 = scalar_lea.vmem %s1, 128
  %282 = vst.msk [vmem:[%s281] sm:$0x10] %vm272, %v271
  %s283 = scalar_lea.vmem %s1, 159
  %284 = vst.msk [vmem:[%s283] sm:$0x20] %vm272, %v271
  %s285 = scalar_lea.vmem %s1, 190
  %286 = vst.msk [vmem:[%s285] sm:$0x40] %vm272, %v271
  %s287 = scalar_lea.vmem %s1, 221
  %288 = vst.msk [vmem:[%s287] sm:$0x80] %vm272, %v271
  %s289 = scalar_lea.vmem %s0, 8
  %v290 = vld [vmem:[%s289] sm:$0xff]
  %291 = vrot.lane.b32.xlu0 %v290, 124
  %v292 = vpop.permute.xlu0 %291
  %vm293 = vcmask 7168
  %s294 = scalar_lea.vmem %s1, 260
  %295 = vst.msk [vmem:[%s294] sm:$0x1] %vm293, %v292
  %s296 = scalar_lea.vmem %s1, 291
  %297 = vst.msk [vmem:[%s296] sm:$0x2] %vm293, %v292
  %s298 = scalar_lea.vmem %s1, 322
  %299 = vst.msk [vmem:[%s298] sm:$0x4] %vm293, %v292
  %s300 = scalar_lea.vmem %s1, 353
  %301 = vst.msk [vmem:[%s300] sm:$0x8] %vm293, %v292
  %s302 = scalar_lea.vmem %s1, 384
  %303 = vst.msk [vmem:[%s302] sm:$0x10] %vm293, %v292
  %s304 = scalar_lea.vmem %s1, 415
  %305 = vst.msk [vmem:[%s304] sm:$0x20] %vm293, %v292
  %s306 = scalar_lea.vmem %s1, 446
  %307 = vst.msk [vmem:[%s306] sm:$0x40] %vm293, %v292
  %s308 = scalar_lea.vmem %s1, 477
  %309 = vst.msk [vmem:[%s308] sm:$0x80] %vm293, %v292
  %s310 = scalar_lea.vmem %s0, 16
  %v311 = vld [vmem:[%s310] sm:$0xff]
  %312 = vrot.lane.b32.xlu0 %v311, 124
  %v313 = vpop.permute.xlu0 %312
  %vm314 = vcmask 7168
  %s315 = scalar_lea.vmem %s1, 516
  %316 = vst.msk [vmem:[%s315] sm:$0x1] %vm314, %v313
  %s317 = scalar_lea.vmem %s1, 547
  %318 = vst.msk [vmem:[%s317] sm:$0x2] %vm314, %v313
  %s319 = scalar_lea.vmem %s1, 578
  %320 = vst.msk [vmem:[%s319] sm:$0x4] %vm314, %v313
  %s321 = scalar_lea.vmem %s1, 609
  %322 = vst.msk [vmem:[%s321] sm:$0x8] %vm314, %v313
  %s323 = scalar_lea.vmem %s1, 640
  %324 = vst.msk [vmem:[%s323] sm:$0x10] %vm314, %v313
  %s325 = scalar_lea.vmem %s1, 671
  %326 = vst.msk [vmem:[%s325] sm:$0x20] %vm314, %v313
  %s327 = scalar_lea.vmem %s1, 702
  %328 = vst.msk [vmem:[%s327] sm:$0x40] %vm314, %v313
  %s329 = scalar_lea.vmem %s1, 733
  %330 = vst.msk [vmem:[%s329] sm:$0x80] %vm314, %v313
  %s331 = scalar_lea.vmem %s0, 24
  %v332 = vld [vmem:[%s331] sm:$0x1]
  %333 = vrot.lane.b32.xlu0 %v332, 124
  %v334 = vpop.permute.xlu0 %333
  %vm335 = vcmask 7168
  %s336 = scalar_lea.vmem %s1, 772
  %337 = vst.msk [vmem:[%s336] sm:$0x1] %vm335, %v334
  %v338 = vld [vmem:[%s0] sm:$0xff]
  %339 = vrot.lane.b32.xlu0 %v338, 123
  %v340 = vpop.permute.xlu0 %339
  %vm341 = vcmask 7168
  %s342 = scalar_lea.vmem %s1, 5
  %343 = vst.msk [vmem:[%s342] sm:$0x1] %vm341, %v340
  %s344 = scalar_lea.vmem %s1, 36
  %345 = vst.msk [vmem:[%s344] sm:$0x2] %vm341, %v340
  %s346 = scalar_lea.vmem %s1, 67
  %347 = vst.msk [vmem:[%s346] sm:$0x4] %vm341, %v340
  %s348 = scalar_lea.vmem %s1, 98
  %349 = vst.msk [vmem:[%s348] sm:$0x8] %vm341, %v340
  %s350 = scalar_lea.vmem %s1, 129
  %351 = vst.msk [vmem:[%s350] sm:$0x10] %vm341, %v340
  %s352 = scalar_lea.vmem %s1, 160
  %353 = vst.msk [vmem:[%s352] sm:$0x20] %vm341, %v340
  %s354 = scalar_lea.vmem %s1, 191
  %355 = vst.msk [vmem:[%s354] sm:$0x40] %vm341, %v340
  %s356 = scalar_lea.vmem %s1, 222
  %357 = vst.msk [vmem:[%s356] sm:$0x80] %vm341, %v340
  %s358 = scalar_lea.vmem %s0, 8
  %v359 = vld [vmem:[%s358] sm:$0xff]
  %360 = vrot.lane.b32.xlu0 %v359, 123
  %v361 = vpop.permute.xlu0 %360
  %vm362 = vcmask 7168
  %s363 = scalar_lea.vmem %s1, 261
  %364 = vst.msk [vmem:[%s363] sm:$0x1] %vm362, %v361
  %s365 = scalar_lea.vmem %s1, 292
  %366 = vst.msk [vmem:[%s365] sm:$0x2] %vm362, %v361
  %s367 = scalar_lea.vmem %s1, 323
  %368 = vst.msk [vmem:[%s367] sm:$0x4] %vm362, %v361
  %s369 = scalar_lea.vmem %s1, 354
  %370 = vst.msk [vmem:[%s369] sm:$0x8] %vm362, %v361
  %s371 = scalar_lea.vmem %s1, 385
  %372 = vst.msk [vmem:[%s371] sm:$0x10] %vm362, %v361
  %s373 = scalar_lea.vmem %s1, 416
  %374 = vst.msk [vmem:[%s373] sm:$0x20] %vm362, %v361
  %s375 = scalar_lea.vmem %s1, 447
  %376 = vst.msk [vmem:[%s375] sm:$0x40] %vm362, %v361
  %s377 = scalar_lea.vmem %s1, 478
  %378 = vst.msk [vmem:[%s377] sm:$0x80] %vm362, %v361
  %s379 = scalar_lea.vmem %s0, 16
  %v380 = vld [vmem:[%s379] sm:$0xff]
  %381 = vrot.lane.b32.xlu0 %v380, 123
  %v382 = vpop.permute.xlu0 %381
  %vm383 = vcmask 7168
  %s384 = scalar_lea.vmem %s1, 517
  %385 = vst.msk [vmem:[%s384] sm:$0x1] %vm383, %v382
  %s386 = scalar_lea.vmem %s1, 548
  %387 = vst.msk [vmem:[%s386] sm:$0x2] %vm383, %v382
  %s388 = scalar_lea.vmem %s1, 579
  %389 = vst.msk [vmem:[%s388] sm:$0x4] %vm383, %v382
  %s390 = scalar_lea.vmem %s1, 610
  %391 = vst.msk [vmem:[%s390] sm:$0x8] %vm383, %v382
  %s392 = scalar_lea.vmem %s1, 641
  %393 = vst.msk [vmem:[%s392] sm:$0x10] %vm383, %v382
  %s394 = scalar_lea.vmem %s1, 672
  %395 = vst.msk [vmem:[%s394] sm:$0x20] %vm383, %v382
  %s396 = scalar_lea.vmem %s1, 703
  %397 = vst.msk [vmem:[%s396] sm:$0x40] %vm383, %v382
  %s398 = scalar_lea.vmem %s1, 734
  %399 = vst.msk [vmem:[%s398] sm:$0x80] %vm383, %v382
  %s400 = scalar_lea.vmem %s0, 24
  %v401 = vld [vmem:[%s400] sm:$0x1]
  %402 = vrot.lane.b32.xlu0 %v401, 123
  %v403 = vpop.permute.xlu0 %402
  %vm404 = vcmask 7168
  %s405 = scalar_lea.vmem %s1, 773
  %406 = vst.msk [vmem:[%s405] sm:$0x1] %vm404, %v403
  %v407 = vld [vmem:[%s0] sm:$0xff]
  %408 = vrot.lane.b32.xlu0 %v407, 122
  %v409 = vpop.permute.xlu0 %408
  %vm410 = vcmask 7168
  %s411 = scalar_lea.vmem %s1, 6
  %412 = vst.msk [vmem:[%s411] sm:$0x1] %vm410, %v409
  %s413 = scalar_lea.vmem %s1, 37
  %414 = vst.msk [vmem:[%s413] sm:$0x2] %vm410, %v409
  %s415 = scalar_lea.vmem %s1, 68
  %416 = vst.msk [vmem:[%s415] sm:$0x4] %vm410, %v409
  %s417 = scalar_lea.vmem %s1, 99
  %418 = vst.msk [vmem:[%s417] sm:$0x8] %vm410, %v409
  %s419 = scalar_lea.vmem %s1, 130
  %420 = vst.msk [vmem:[%s419] sm:$0x10] %vm410, %v409
  %s421 = scalar_lea.vmem %s1, 161
  %422 = vst.msk [vmem:[%s421] sm:$0x20] %vm410, %v409
  %s423 = scalar_lea.vmem %s1, 192
  %424 = vst.msk [vmem:[%s423] sm:$0x40] %vm410, %v409
  %s425 = scalar_lea.vmem %s1, 223
  %426 = vst.msk [vmem:[%s425] sm:$0x80] %vm410, %v409
  %s427 = scalar_lea.vmem %s0, 8
  %v428 = vld [vmem:[%s427] sm:$0xff]
  %429 = vrot.lane.b32.xlu0 %v428, 122
  %v430 = vpop.permute.xlu0 %429
  %vm431 = vcmask 7168
  %s432 = scalar_lea.vmem %s1, 262
  %433 = vst.msk [vmem:[%s432] sm:$0x1] %vm431, %v430
  %s434 = scalar_lea.vmem %s1, 293
  %435 = vst.msk [vmem:[%s434] sm:$0x2] %vm431, %v430
  %s436 = scalar_lea.vmem %s1, 324
  %437 = vst.msk [vmem:[%s436] sm:$0x4] %vm431, %v430
  %s438 = scalar_lea.vmem %s1, 355
  %439 = vst.msk [vmem:[%s438] sm:$0x8] %vm431, %v430
  %s440 = scalar_lea.vmem %s1, 386
  %441 = vst.msk [vmem:[%s440] sm:$0x10] %vm431, %v430
  %s442 = scalar_lea.vmem %s1, 417
  %443 = vst.msk [vmem:[%s442] sm:$0x20] %vm431, %v430
  %s444 = scalar_lea.vmem %s1, 448
  %445 = vst.msk [vmem:[%s444] sm:$0x40] %vm431, %v430
  %s446 = scalar_lea.vmem %s1, 479
  %447 = vst.msk [vmem:[%s446] sm:$0x80] %vm431, %v430
  %s448 = scalar_lea.vmem %s0, 16
  %v449 = vld [vmem:[%s448] sm:$0xff]
  %450 = vrot.lane.b32.xlu0 %v449, 122
  %v451 = vpop.permute.xlu0 %450
  %vm452 = vcmask 7168
  %s453 = scalar_lea.vmem %s1, 518
  %454 = vst.msk [vmem:[%s453] sm:$0x1] %vm452, %v451
  %s455 = scalar_lea.vmem %s1, 549
  %456 = vst.msk [vmem:[%s455] sm:$0x2] %vm452, %v451
  %s457 = scalar_lea.vmem %s1, 580
  %458 = vst.msk [vmem:[%s457] sm:$0x4] %vm452, %v451
  %s459 = scalar_lea.vmem %s1, 611
  %460 = vst.msk [vmem:[%s459] sm:$0x8] %vm452, %v451
  %s461 = scalar_lea.vmem %s1, 642
  %462 = vst.msk [vmem:[%s461] sm:$0x10] %vm452, %v451
  %s463 = scalar_lea.vmem %s1, 673
  %464 = vst.msk [vmem:[%s463] sm:$0x20] %vm452, %v451
  %s465 = scalar_lea.vmem %s1, 704
  %466 = vst.msk [vmem:[%s465] sm:$0x40] %vm452, %v451
  %s467 = scalar_lea.vmem %s1, 735
  %468 = vst.msk [vmem:[%s467] sm:$0x80] %vm452, %v451
  %s469 = scalar_lea.vmem %s0, 24
  %v470 = vld [vmem:[%s469] sm:$0x1]
  %471 = vrot.lane.b32.xlu0 %v470, 122
  %v472 = vpop.permute.xlu0 %471
  %vm473 = vcmask 7168
  %s474 = scalar_lea.vmem %s1, 774
  %475 = vst.msk [vmem:[%s474] sm:$0x1] %vm473, %v472
  %v476 = vld [vmem:[%s0] sm:$0xff]
  %477 = vrot.lane.b32.xlu0 %v476, 121
  %v478 = vpop.permute.xlu0 %477
  %vm479 = vcmask 7168
  %s480 = scalar_lea.vmem %s1, 7
  %481 = vst.msk [vmem:[%s480] sm:$0x1] %vm479, %v478
  %s482 = scalar_lea.vmem %s1, 38
  %483 = vst.msk [vmem:[%s482] sm:$0x2] %vm479, %v478
  %s484 = scalar_lea.vmem %s1, 69
  %485 = vst.msk [vmem:[%s484] sm:$0x4] %vm479, %v478
  %s486 = scalar_lea.vmem %s1, 100
  %487 = vst.msk [vmem:[%s486] sm:$0x8] %vm479, %v478
  %s488 = scalar_lea.vmem %s1, 131
  %489 = vst.msk [vmem:[%s488] sm:$0x10] %vm479, %v478
  %s490 = scalar_lea.vmem %s1, 162
  %491 = vst.msk [vmem:[%s490] sm:$0x20] %vm479, %v478
  %s492 = scalar_lea.vmem %s1, 193
  %493 = vst.msk [vmem:[%s492] sm:$0x40] %vm479, %v478
  %s494 = scalar_lea.vmem %s1, 224
  %495 = vst.msk [vmem:[%s494] sm:$0x80] %vm479, %v478
  %s496 = scalar_lea.vmem %s0, 8
  %v497 = vld [vmem:[%s496] sm:$0xff]
  %498 = vrot.lane.b32.xlu0 %v497, 121
  %v499 = vpop.permute.xlu0 %498
  %vm500 = vcmask 7168
  %s501 = scalar_lea.vmem %s1, 263
  %502 = vst.msk [vmem:[%s501] sm:$0x1] %vm500, %v499
  %s503 = scalar_lea.vmem %s1, 294
  %504 = vst.msk [vmem:[%s503] sm:$0x2] %vm500, %v499
  %s505 = scalar_lea.vmem %s1, 325
  %506 = vst.msk [vmem:[%s505] sm:$0x4] %vm500, %v499
  %s507 = scalar_lea.vmem %s1, 356
  %508 = vst.msk [vmem:[%s507] sm:$0x8] %vm500, %v499
  %s509 = scalar_lea.vmem %s1, 387
  %510 = vst.msk [vmem:[%s509] sm:$0x10] %vm500, %v499
  %s511 = scalar_lea.vmem %s1, 418
  %512 = vst.msk [vmem:[%s511] sm:$0x20] %vm500, %v499
  %s513 = scalar_lea.vmem %s1, 449
  %514 = vst.msk [vmem:[%s513] sm:$0x40] %vm500, %v499
  %s515 = scalar_lea.vmem %s1, 480
  %516 = vst.msk [vmem:[%s515] sm:$0x80] %vm500, %v499
  %s517 = scalar_lea.vmem %s0, 16
  %v518 = vld [vmem:[%s517] sm:$0xff]
  %519 = vrot.lane.b32.xlu0 %v518, 121
  %v520 = vpop.permute.xlu0 %519
  %vm521 = vcmask 7168
  %s522 = scalar_lea.vmem %s1, 519
  %523 = vst.msk [vmem:[%s522] sm:$0x1] %vm521, %v520
  %s524 = scalar_lea.vmem %s1, 550
  %525 = vst.msk [vmem:[%s524] sm:$0x2] %vm521, %v520
  %s526 = scalar_lea.vmem %s1, 581
  %527 = vst.msk [vmem:[%s526] sm:$0x4] %vm521, %v520
  %s528 = scalar_lea.vmem %s1, 612
  %529 = vst.msk [vmem:[%s528] sm:$0x8] %vm521, %v520
  %s530 = scalar_lea.vmem %s1, 643
  %531 = vst.msk [vmem:[%s530] sm:$0x10] %vm521, %v520
  %s532 = scalar_lea.vmem %s1, 674
  %533 = vst.msk [vmem:[%s532] sm:$0x20] %vm521, %v520
  %s534 = scalar_lea.vmem %s1, 705
  %535 = vst.msk [vmem:[%s534] sm:$0x40] %vm521, %v520
  %s536 = scalar_lea.vmem %s1, 736
  %537 = vst.msk [vmem:[%s536] sm:$0x80] %vm521, %v520
  %s538 = scalar_lea.vmem %s0, 24
  %v539 = vld [vmem:[%s538] sm:$0x1]
  %540 = vrot.lane.b32.xlu0 %v539, 121
  %v541 = vpop.permute.xlu0 %540
  %vm542 = vcmask 7168
  %s543 = scalar_lea.vmem %s1, 775
  %544 = vst.msk [vmem:[%s543] sm:$0x1] %vm542, %v541
  %v545 = vld [vmem:[%s0] sm:$0xff]
  %546 = vrot.lane.b32.xlu0 %v545, 120
  %v547 = vpop.permute.xlu0 %546
  %vm548 = vcmask 7168
  %s549 = scalar_lea.vmem %s1, 8
  %550 = vst.msk [vmem:[%s549] sm:$0x1] %vm548, %v547
  %s551 = scalar_lea.vmem %s1, 39
  %552 = vst.msk [vmem:[%s551] sm:$0x2] %vm548, %v547
  %s553 = scalar_lea.vmem %s1, 70
  %554 = vst.msk [vmem:[%s553] sm:$0x4] %vm548, %v547
  %s555 = scalar_lea.vmem %s1, 101
  %556 = vst.msk [vmem:[%s555] sm:$0x8] %vm548, %v547
  %s557 = scalar_lea.vmem %s1, 132
  %558 = vst.msk [vmem:[%s557] sm:$0x10] %vm548, %v547
  %s559 = scalar_lea.vmem %s1, 163
  %560 = vst.msk [vmem:[%s559] sm:$0x20] %vm548, %v547
  %s561 = scalar_lea.vmem %s1, 194
  %562 = vst.msk [vmem:[%s561] sm:$0x40] %vm548, %v547
  %s563 = scalar_lea.vmem %s1, 225
  %564 = vst.msk [vmem:[%s563] sm:$0x80] %vm548, %v547
  %s565 = scalar_lea.vmem %s0, 8
  %v566 = vld [vmem:[%s565] sm:$0xff]
  %567 = vrot.lane.b32.xlu0 %v566, 120
  %v568 = vpop.permute.xlu0 %567
  %vm569 = vcmask 7168
  %s570 = scalar_lea.vmem %s1, 264
  %571 = vst.msk [vmem:[%s570] sm:$0x1] %vm569, %v568
  %s572 = scalar_lea.vmem %s1, 295
  %573 = vst.msk [vmem:[%s572] sm:$0x2] %vm569, %v568
  %s574 = scalar_lea.vmem %s1, 326
  %575 = vst.msk [vmem:[%s574] sm:$0x4] %vm569, %v568
  %s576 = scalar_lea.vmem %s1, 357
  %577 = vst.msk [vmem:[%s576] sm:$0x8] %vm569, %v568
  %s578 = scalar_lea.vmem %s1, 388
  %579 = vst.msk [vmem:[%s578] sm:$0x10] %vm569, %v568
  %s580 = scalar_lea.vmem %s1, 419
  %581 = vst.msk [vmem:[%s580] sm:$0x20] %vm569, %v568
  %s582 = scalar_lea.vmem %s1, 450
  %583 = vst.msk [vmem:[%s582] sm:$0x40] %vm569, %v568
  %s584 = scalar_lea.vmem %s1, 481
  %585 = vst.msk [vmem:[%s584] sm:$0x80] %vm569, %v568
  %s586 = scalar_lea.vmem %s0, 16
  %v587 = vld [vmem:[%s586] sm:$0xff]
  %588 = vrot.lane.b32.xlu0 %v587, 120
  %v589 = vpop.permute.xlu0 %588
  %vm590 = vcmask 7168
  %s591 = scalar_lea.vmem %s1, 520
  %592 = vst.msk [vmem:[%s591] sm:$0x1] %vm590, %v589
  %s593 = scalar_lea.vmem %s1, 551
  %594 = vst.msk [vmem:[%s593] sm:$0x2] %vm590, %v589
  %s595 = scalar_lea.vmem %s1, 582
  %596 = vst.msk [vmem:[%s595] sm:$0x4] %vm590, %v589
  %s597 = scalar_lea.vmem %s1, 613
  %598 = vst.msk [vmem:[%s597] sm:$0x8] %vm590, %v589
  %s599 = scalar_lea.vmem %s1, 644
  %600 = vst.msk [vmem:[%s599] sm:$0x10] %vm590, %v589
  %s601 = scalar_lea.vmem %s1, 675
  %602 = vst.msk [vmem:[%s601] sm:$0x20] %vm590, %v589
  %s603 = scalar_lea.vmem %s1, 706
  %604 = vst.msk [vmem:[%s603] sm:$0x40] %vm590, %v589
  %s605 = scalar_lea.vmem %s1, 737
  %606 = vst.msk [vmem:[%s605] sm:$0x80] %vm590, %v589
  %s607 = scalar_lea.vmem %s0, 24
  %v608 = vld [vmem:[%s607] sm:$0x1]
  %609 = vrot.lane.b32.xlu0 %v608, 120
  %v610 = vpop.permute.xlu0 %609
  %vm611 = vcmask 7168
  %s612 = scalar_lea.vmem %s1, 776
  %613 = vst.msk [vmem:[%s612] sm:$0x1] %vm611, %v610
  %v614 = vld [vmem:[%s0] sm:$0xff]
  %615 = vrot.lane.b32.xlu0 %v614, 119
  %v616 = vpop.permute.xlu0 %615
  %vm617 = vcmask 7168
  %s618 = scalar_lea.vmem %s1, 9
  %619 = vst.msk [vmem:[%s618] sm:$0x1] %vm617, %v616
  %s620 = scalar_lea.vmem %s1, 40
  %621 = vst.msk [vmem:[%s620] sm:$0x2] %vm617, %v616
  %s622 = scalar_lea.vmem %s1, 71
  %623 = vst.msk [vmem:[%s622] sm:$0x4] %vm617, %v616
  %s624 = scalar_lea.vmem %s1, 102
  %625 = vst.msk [vmem:[%s624] sm:$0x8] %vm617, %v616
  %s626 = scalar_lea.vmem %s1, 133
  %627 = vst.msk [vmem:[%s626] sm:$0x10] %vm617, %v616
  %s628 = scalar_lea.vmem %s1, 164
  %629 = vst.msk [vmem:[%s628] sm:$0x20] %vm617, %v616
  %s630 = scalar_lea.vmem %s1, 195
  %631 = vst.msk [vmem:[%s630] sm:$0x40] %vm617, %v616
  %s632 = scalar_lea.vmem %s1, 226
  %633 = vst.msk [vmem:[%s632] sm:$0x80] %vm617, %v616
  %s634 = scalar_lea.vmem %s0, 8
  %v635 = vld [vmem:[%s634] sm:$0xff]
  %636 = vrot.lane.b32.xlu0 %v635, 119
  %v637 = vpop.permute.xlu0 %636
  %vm638 = vcmask 7168
  %s639 = scalar_lea.vmem %s1, 265
  %640 = vst.msk [vmem:[%s639] sm:$0x1] %vm638, %v637
  %s641 = scalar_lea.vmem %s1, 296
  %642 = vst.msk [vmem:[%s641] sm:$0x2] %vm638, %v637
  %s643 = scalar_lea.vmem %s1, 327
  %644 = vst.msk [vmem:[%s643] sm:$0x4] %vm638, %v637
  %s645 = scalar_lea.vmem %s1, 358
  %646 = vst.msk [vmem:[%s645] sm:$0x8] %vm638, %v637
  %s647 = scalar_lea.vmem %s1, 389
  %648 = vst.msk [vmem:[%s647] sm:$0x10] %vm638, %v637
  %s649 = scalar_lea.vmem %s1, 420
  %650 = vst.msk [vmem:[%s649] sm:$0x20] %vm638, %v637
  %s651 = scalar_lea.vmem %s1, 451
  %652 = vst.msk [vmem:[%s651] sm:$0x40] %vm638, %v637
  %s653 = scalar_lea.vmem %s1, 482
  %654 = vst.msk [vmem:[%s653] sm:$0x80] %vm638, %v637
  %s655 = scalar_lea.vmem %s0, 16
  %v656 = vld [vmem:[%s655] sm:$0xff]
  %657 = vrot.lane.b32.xlu0 %v656, 119
  %v658 = vpop.permute.xlu0 %657
  %vm659 = vcmask 7168
  %s660 = scalar_lea.vmem %s1, 521
  %661 = vst.msk [vmem:[%s660] sm:$0x1] %vm659, %v658
  %s662 = scalar_lea.vmem %s1, 552
  %663 = vst.msk [vmem:[%s662] sm:$0x2] %vm659, %v658
  %s664 = scalar_lea.vmem %s1, 583
  %665 = vst.msk [vmem:[%s664] sm:$0x4] %vm659, %v658
  %s666 = scalar_lea.vmem %s1, 614
  %667 = vst.msk [vmem:[%s666] sm:$0x8] %vm659, %v658
  %s668 = scalar_lea.vmem %s1, 645
  %669 = vst.msk [vmem:[%s668] sm:$0x10] %vm659, %v658
  %s670 = scalar_lea.vmem %s1, 676
  %671 = vst.msk [vmem:[%s670] sm:$0x20] %vm659, %v658
  %s672 = scalar_lea.vmem %s1, 707
  %673 = vst.msk [vmem:[%s672] sm:$0x40] %vm659, %v658
  %s674 = scalar_lea.vmem %s1, 738
  %675 = vst.msk [vmem:[%s674] sm:$0x80] %vm659, %v658
  %s676 = scalar_lea.vmem %s0, 24
  %v677 = vld [vmem:[%s676] sm:$0x1]
  %678 = vrot.lane.b32.xlu0 %v677, 119
  %v679 = vpop.permute.xlu0 %678
  %vm680 = vcmask 7168
  %s681 = scalar_lea.vmem %s1, 777
  %682 = vst.msk [vmem:[%s681] sm:$0x1] %vm680, %v679
  %v683 = vld [vmem:[%s0] sm:$0xff]
  %684 = vrot.lane.b32.xlu0 %v683, 118
  %v685 = vpop.permute.xlu0 %684
  %vm686 = vcmask 7168
  %s687 = scalar_lea.vmem %s1, 10
  %688 = vst.msk [vmem:[%s687] sm:$0x1] %vm686, %v685
  %s689 = scalar_lea.vmem %s1, 41
  %690 = vst.msk [vmem:[%s689] sm:$0x2] %vm686, %v685
  %s691 = scalar_lea.vmem %s1, 72
  %692 = vst.msk [vmem:[%s691] sm:$0x4] %vm686, %v685
  %s693 = scalar_lea.vmem %s1, 103
  %694 = vst.msk [vmem:[%s693] sm:$0x8] %vm686, %v685
  %s695 = scalar_lea.vmem %s1, 134
  %696 = vst.msk [vmem:[%s695] sm:$0x10] %vm686, %v685
  %s697 = scalar_lea.vmem %s1, 165
  %698 = vst.msk [vmem:[%s697] sm:$0x20] %vm686, %v685
  %s699 = scalar_lea.vmem %s1, 196
  %700 = vst.msk [vmem:[%s699] sm:$0x40] %vm686, %v685
  %s701 = scalar_lea.vmem %s1, 227
  %702 = vst.msk [vmem:[%s701] sm:$0x80] %vm686, %v685
  %s703 = scalar_lea.vmem %s0, 8
  %v704 = vld [vmem:[%s703] sm:$0xff]
  %705 = vrot.lane.b32.xlu0 %v704, 118
  %v706 = vpop.permute.xlu0 %705
  %vm707 = vcmask 7168
  %s708 = scalar_lea.vmem %s1, 266
  %709 = vst.msk [vmem:[%s708] sm:$0x1] %vm707, %v706
  %s710 = scalar_lea.vmem %s1, 297
  %711 = vst.msk [vmem:[%s710] sm:$0x2] %vm707, %v706
  %s712 = scalar_lea.vmem %s1, 328
  %713 = vst.msk [vmem:[%s712] sm:$0x4] %vm707, %v706
  %s714 = scalar_lea.vmem %s1, 359
  %715 = vst.msk [vmem:[%s714] sm:$0x8] %vm707, %v706
  %s716 = scalar_lea.vmem %s1, 390
  %717 = vst.msk [vmem:[%s716] sm:$0x10] %vm707, %v706
  %s718 = scalar_lea.vmem %s1, 421
  %719 = vst.msk [vmem:[%s718] sm:$0x20] %vm707, %v706
  %s720 = scalar_lea.vmem %s1, 452
  %721 = vst.msk [vmem:[%s720] sm:$0x40] %vm707, %v706
  %s722 = scalar_lea.vmem %s1, 483
  %723 = vst.msk [vmem:[%s722] sm:$0x80] %vm707, %v706
  %s724 = scalar_lea.vmem %s0, 16
  %v725 = vld [vmem:[%s724] sm:$0xff]
  %726 = vrot.lane.b32.xlu0 %v725, 118
  %v727 = vpop.permute.xlu0 %726
  %vm728 = vcmask 7168
  %s729 = scalar_lea.vmem %s1, 522
  %730 = vst.msk [vmem:[%s729] sm:$0x1] %vm728, %v727
  %s731 = scalar_lea.vmem %s1, 553
  %732 = vst.msk [vmem:[%s731] sm:$0x2] %vm728, %v727
  %s733 = scalar_lea.vmem %s1, 584
  %734 = vst.msk [vmem:[%s733] sm:$0x4] %vm728, %v727
  %s735 = scalar_lea.vmem %s1, 615
  %736 = vst.msk [vmem:[%s735] sm:$0x8] %vm728, %v727
  %s737 = scalar_lea.vmem %s1, 646
  %738 = vst.msk [vmem:[%s737] sm:$0x10] %vm728, %v727
  %s739 = scalar_lea.vmem %s1, 677
  %740 = vst.msk [vmem:[%s739] sm:$0x20] %vm728, %v727
  %s741 = scalar_lea.vmem %s1, 708
  %742 = vst.msk [vmem:[%s741] sm:$0x40] %vm728, %v727
  %s743 = scalar_lea.vmem %s1, 739
  %744 = vst.msk [vmem:[%s743] sm:$0x80] %vm728, %v727
  %s745 = scalar_lea.vmem %s0, 24
  %v746 = vld [vmem:[%s745] sm:$0x1]
  %747 = vrot.lane.b32.xlu0 %v746, 118
  %v748 = vpop.permute.xlu0 %747
  %vm749 = vcmask 7168
  %s750 = scalar_lea.vmem %s1, 778
  %751 = vst.msk [vmem:[%s750] sm:$0x1] %vm749, %v748
  %v752 = vld [vmem:[%s0] sm:$0xff]
  %753 = vrot.lane.b32.xlu0 %v752, 117
  %v754 = vpop.permute.xlu0 %753
  %vm755 = vcmask 7168
  %s756 = scalar_lea.vmem %s1, 11
  %757 = vst.msk [vmem:[%s756] sm:$0x1] %vm755, %v754
  %s758 = scalar_lea.vmem %s1, 42
  %759 = vst.msk [vmem:[%s758] sm:$0x2] %vm755, %v754
  %s760 = scalar_lea.vmem %s1, 73
  %761 = vst.msk [vmem:[%s760] sm:$0x4] %vm755, %v754
  %s762 = scalar_lea.vmem %s1, 104
  %763 = vst.msk [vmem:[%s762] sm:$0x8] %vm755, %v754
  %s764 = scalar_lea.vmem %s1, 135
  %765 = vst.msk [vmem:[%s764] sm:$0x10] %vm755, %v754
  %s766 = scalar_lea.vmem %s1, 166
  %767 = vst.msk [vmem:[%s766] sm:$0x20] %vm755, %v754
  %s768 = scalar_lea.vmem %s1, 197
  %769 = vst.msk [vmem:[%s768] sm:$0x40] %vm755, %v754
  %s770 = scalar_lea.vmem %s1, 228
  %771 = vst.msk [vmem:[%s770] sm:$0x80] %vm755, %v754
  %s772 = scalar_lea.vmem %s0, 8
  %v773 = vld [vmem:[%s772] sm:$0xff]
  %774 = vrot.lane.b32.xlu0 %v773, 117
  %v775 = vpop.permute.xlu0 %774
  %vm776 = vcmask 7168
  %s777 = scalar_lea.vmem %s1, 267
  %778 = vst.msk [vmem:[%s777] sm:$0x1] %vm776, %v775
  %s779 = scalar_lea.vmem %s1, 298
  %780 = vst.msk [vmem:[%s779] sm:$0x2] %vm776, %v775
  %s781 = scalar_lea.vmem %s1, 329
  %782 = vst.msk [vmem:[%s781] sm:$0x4] %vm776, %v775
  %s783 = scalar_lea.vmem %s1, 360
  %784 = vst.msk [vmem:[%s783] sm:$0x8] %vm776, %v775
  %s785 = scalar_lea.vmem %s1, 391
  %786 = vst.msk [vmem:[%s785] sm:$0x10] %vm776, %v775
  %s787 = scalar_lea.vmem %s1, 422
  %788 = vst.msk [vmem:[%s787] sm:$0x20] %vm776, %v775
  %s789 = scalar_lea.vmem %s1, 453
  %790 = vst.msk [vmem:[%s789] sm:$0x40] %vm776, %v775
  %s791 = scalar_lea.vmem %s1, 484
  %792 = vst.msk [vmem:[%s791] sm:$0x80] %vm776, %v775
  %s793 = scalar_lea.vmem %s0, 16
  %v794 = vld [vmem:[%s793] sm:$0xff]
  %795 = vrot.lane.b32.xlu0 %v794, 117
  %v796 = vpop.permute.xlu0 %795
  %vm797 = vcmask 7168
  %s798 = scalar_lea.vmem %s1, 523
  %799 = vst.msk [vmem:[%s798] sm:$0x1] %vm797, %v796
  %s800 = scalar_lea.vmem %s1, 554
  %801 = vst.msk [vmem:[%s800] sm:$0x2] %vm797, %v796
  %s802 = scalar_lea.vmem %s1, 585
  %803 = vst.msk [vmem:[%s802] sm:$0x4] %vm797, %v796
  %s804 = scalar_lea.vmem %s1, 616
  %805 = vst.msk [vmem:[%s804] sm:$0x8] %vm797, %v796
  %s806 = scalar_lea.vmem %s1, 647
  %807 = vst.msk [vmem:[%s806] sm:$0x10] %vm797, %v796
  %s808 = scalar_lea.vmem %s1, 678
  %809 = vst.msk [vmem:[%s808] sm:$0x20] %vm797, %v796
  %s810 = scalar_lea.vmem %s1, 709
  %811 = vst.msk [vmem:[%s810] sm:$0x40] %vm797, %v796
  %s812 = scalar_lea.vmem %s1, 740
  %813 = vst.msk [vmem:[%s812] sm:$0x80] %vm797, %v796
  %s814 = scalar_lea.vmem %s0, 24
  %v815 = vld [vmem:[%s814] sm:$0x1]
  %816 = vrot.lane.b32.xlu0 %v815, 117
  %v817 = vpop.permute.xlu0 %816
  %vm818 = vcmask 7168
  %s819 = scalar_lea.vmem %s1, 779
  %820 = vst.msk [vmem:[%s819] sm:$0x1] %vm818, %v817
  %v821 = vld [vmem:[%s0] sm:$0xff]
  %822 = vrot.lane.b32.xlu0 %v821, 116
  %v823 = vpop.permute.xlu0 %822
  %vm824 = vcmask 7168
  %s825 = scalar_lea.vmem %s1, 12
  %826 = vst.msk [vmem:[%s825] sm:$0x1] %vm824, %v823
  %s827 = scalar_lea.vmem %s1, 43
  %828 = vst.msk [vmem:[%s827] sm:$0x2] %vm824, %v823
  %s829 = scalar_lea.vmem %s1, 74
  %830 = vst.msk [vmem:[%s829] sm:$0x4] %vm824, %v823
  %s831 = scalar_lea.vmem %s1, 105
  %832 = vst.msk [vmem:[%s831] sm:$0x8] %vm824, %v823
  %s833 = scalar_lea.vmem %s1, 136
  %834 = vst.msk [vmem:[%s833] sm:$0x10] %vm824, %v823
  %s835 = scalar_lea.vmem %s1, 167
  %836 = vst.msk [vmem:[%s835] sm:$0x20] %vm824, %v823
  %s837 = scalar_lea.vmem %s1, 198
  %838 = vst.msk [vmem:[%s837] sm:$0x40] %vm824, %v823
  %s839 = scalar_lea.vmem %s1, 229
  %840 = vst.msk [vmem:[%s839] sm:$0x80] %vm824, %v823
  %s841 = scalar_lea.vmem %s0, 8
  %v842 = vld [vmem:[%s841] sm:$0xff]
  %843 = vrot.lane.b32.xlu0 %v842, 116
  %v844 = vpop.permute.xlu0 %843
  %vm845 = vcmask 7168
  %s846 = scalar_lea.vmem %s1, 268
  %847 = vst.msk [vmem:[%s846] sm:$0x1] %vm845, %v844
  %s848 = scalar_lea.vmem %s1, 299
  %849 = vst.msk [vmem:[%s848] sm:$0x2] %vm845, %v844
  %s850 = scalar_lea.vmem %s1, 330
  %851 = vst.msk [vmem:[%s850] sm:$0x4] %vm845, %v844
  %s852 = scalar_lea.vmem %s1, 361
  %853 = vst.msk [vmem:[%s852] sm:$0x8] %vm845, %v844
  %s854 = scalar_lea.vmem %s1, 392
  %855 = vst.msk [vmem:[%s854] sm:$0x10] %vm845, %v844
  %s856 = scalar_lea.vmem %s1, 423
  %857 = vst.msk [vmem:[%s856] sm:$0x20] %vm845, %v844
  %s858 = scalar_lea.vmem %s1, 454
  %859 = vst.msk [vmem:[%s858] sm:$0x40] %vm845, %v844
  %s860 = scalar_lea.vmem %s1, 485
  %861 = vst.msk [vmem:[%s860] sm:$0x80] %vm845, %v844
  %s862 = scalar_lea.vmem %s0, 16
  %v863 = vld [vmem:[%s862] sm:$0xff]
  %864 = vrot.lane.b32.xlu0 %v863, 116
  %v865 = vpop.permute.xlu0 %864
  %vm866 = vcmask 7168
  %s867 = scalar_lea.vmem %s1, 524
  %868 = vst.msk [vmem:[%s867] sm:$0x1] %vm866, %v865
  %s869 = scalar_lea.vmem %s1, 555
  %870 = vst.msk [vmem:[%s869] sm:$0x2] %vm866, %v865
  %s871 = scalar_lea.vmem %s1, 586
  %872 = vst.msk [vmem:[%s871] sm:$0x4] %vm866, %v865
  %s873 = scalar_lea.vmem %s1, 617
  %874 = vst.msk [vmem:[%s873] sm:$0x8] %vm866, %v865
  %s875 = scalar_lea.vmem %s1, 648
  %876 = vst.msk [vmem:[%s875] sm:$0x10] %vm866, %v865
  %s877 = scalar_lea.vmem %s1, 679
  %878 = vst.msk [vmem:[%s877] sm:$0x20] %vm866, %v865
  %s879 = scalar_lea.vmem %s1, 710
  %880 = vst.msk [vmem:[%s879] sm:$0x40] %vm866, %v865
  %s881 = scalar_lea.vmem %s1, 741
  %882 = vst.msk [vmem:[%s881] sm:$0x80] %vm866, %v865
  %s883 = scalar_lea.vmem %s0, 24
  %v884 = vld [vmem:[%s883] sm:$0x1]
  %885 = vrot.lane.b32.xlu0 %v884, 116
  %v886 = vpop.permute.xlu0 %885
  %vm887 = vcmask 7168
  %s888 = scalar_lea.vmem %s1, 780
  %889 = vst.msk [vmem:[%s888] sm:$0x1] %vm887, %v886
  %v890 = vld [vmem:[%s0] sm:$0xff]
  %891 = vrot.lane.b32.xlu0 %v890, 115
  %v892 = vpop.permute.xlu0 %891
  %vm893 = vcmask 7168
  %s894 = scalar_lea.vmem %s1, 13
  %895 = vst.msk [vmem:[%s894] sm:$0x1] %vm893, %v892
  %s896 = scalar_lea.vmem %s1, 44
  %897 = vst.msk [vmem:[%s896] sm:$0x2] %vm893, %v892
  %s898 = scalar_lea.vmem %s1, 75
  %899 = vst.msk [vmem:[%s898] sm:$0x4] %vm893, %v892
  %s900 = scalar_lea.vmem %s1, 106
  %901 = vst.msk [vmem:[%s900] sm:$0x8] %vm893, %v892
  %s902 = scalar_lea.vmem %s1, 137
  %903 = vst.msk [vmem:[%s902] sm:$0x10] %vm893, %v892
  %s904 = scalar_lea.vmem %s1, 168
  %905 = vst.msk [vmem:[%s904] sm:$0x20] %vm893, %v892
  %s906 = scalar_lea.vmem %s1, 199
  %907 = vst.msk [vmem:[%s906] sm:$0x40] %vm893, %v892
  %s908 = scalar_lea.vmem %s1, 230
  %909 = vst.msk [vmem:[%s908] sm:$0x80] %vm893, %v892
  %s910 = scalar_lea.vmem %s0, 8
  %v911 = vld [vmem:[%s910] sm:$0xff]
  %912 = vrot.lane.b32.xlu0 %v911, 115
  %v913 = vpop.permute.xlu0 %912
  %vm914 = vcmask 7168
  %s915 = scalar_lea.vmem %s1, 269
  %916 = vst.msk [vmem:[%s915] sm:$0x1] %vm914, %v913
  %s917 = scalar_lea.vmem %s1, 300
  %918 = vst.msk [vmem:[%s917] sm:$0x2] %vm914, %v913
  %s919 = scalar_lea.vmem %s1, 331
  %920 = vst.msk [vmem:[%s919] sm:$0x4] %vm914, %v913
  %s921 = scalar_lea.vmem %s1, 362
  %922 = vst.msk [vmem:[%s921] sm:$0x8] %vm914, %v913
  %s923 = scalar_lea.vmem %s1, 393
  %924 = vst.msk [vmem:[%s923] sm:$0x10] %vm914, %v913
  %s925 = scalar_lea.vmem %s1, 424
  %926 = vst.msk [vmem:[%s925] sm:$0x20] %vm914, %v913
  %s927 = scalar_lea.vmem %s1, 455
  %928 = vst.msk [vmem:[%s927] sm:$0x40] %vm914, %v913
  %s929 = scalar_lea.vmem %s1, 486
  %930 = vst.msk [vmem:[%s929] sm:$0x80] %vm914, %v913
  %s931 = scalar_lea.vmem %s0, 16
  %v932 = vld [vmem:[%s931] sm:$0xff]
  %933 = vrot.lane.b32.xlu0 %v932, 115
  %v934 = vpop.permute.xlu0 %933
  %vm935 = vcmask 7168
  %s936 = scalar_lea.vmem %s1, 525
  %937 = vst.msk [vmem:[%s936] sm:$0x1] %vm935, %v934
  %s938 = scalar_lea.vmem %s1, 556
  %939 = vst.msk [vmem:[%s938] sm:$0x2] %vm935, %v934
  %s940 = scalar_lea.vmem %s1, 587
  %941 = vst.msk [vmem:[%s940] sm:$0x4] %vm935, %v934
  %s942 = scalar_lea.vmem %s1, 618
  %943 = vst.msk [vmem:[%s942] sm:$0x8] %vm935, %v934
  %s944 = scalar_lea.vmem %s1, 649
  %945 = vst.msk [vmem:[%s944] sm:$0x10] %vm935, %v934
  %s946 = scalar_lea.vmem %s1, 680
  %947 = vst.msk [vmem:[%s946] sm:$0x20] %vm935, %v934
  %s948 = scalar_lea.vmem %s1, 711
  %949 = vst.msk [vmem:[%s948] sm:$0x40] %vm935, %v934
  %s950 = scalar_lea.vmem %s1, 742
  %951 = vst.msk [vmem:[%s950] sm:$0x80] %vm935, %v934
  %s952 = scalar_lea.vmem %s0, 24
  %v953 = vld [vmem:[%s952] sm:$0x1]
  %954 = vrot.lane.b32.xlu0 %v953, 115
  %v955 = vpop.permute.xlu0 %954
  %vm956 = vcmask 7168
  %s957 = scalar_lea.vmem %s1, 781
  %958 = vst.msk [vmem:[%s957] sm:$0x1] %vm956, %v955
  %v959 = vld [vmem:[%s0] sm:$0xff]
  %960 = vrot.lane.b32.xlu0 %v959, 114
  %v961 = vpop.permute.xlu0 %960
  %vm962 = vcmask 7168
  %s963 = scalar_lea.vmem %s1, 14
  %964 = vst.msk [vmem:[%s963] sm:$0x1] %vm962, %v961
  %s965 = scalar_lea.vmem %s1, 45
  %966 = vst.msk [vmem:[%s965] sm:$0x2] %vm962, %v961
  %s967 = scalar_lea.vmem %s1, 76
  %968 = vst.msk [vmem:[%s967] sm:$0x4] %vm962, %v961
  %s969 = scalar_lea.vmem %s1, 107
  %970 = vst.msk [vmem:[%s969] sm:$0x8] %vm962, %v961
  %s971 = scalar_lea.vmem %s1, 138
  %972 = vst.msk [vmem:[%s971] sm:$0x10] %vm962, %v961
  %s973 = scalar_lea.vmem %s1, 169
  %974 = vst.msk [vmem:[%s973] sm:$0x20] %vm962, %v961
  %s975 = scalar_lea.vmem %s1, 200
  %976 = vst.msk [vmem:[%s975] sm:$0x40] %vm962, %v961
  %s977 = scalar_lea.vmem %s1, 231
  %978 = vst.msk [vmem:[%s977] sm:$0x80] %vm962, %v961
  %s979 = scalar_lea.vmem %s0, 8
  %v980 = vld [vmem:[%s979] sm:$0xff]
  %981 = vrot.lane.b32.xlu0 %v980, 114
  %v982 = vpop.permute.xlu0 %981
  %vm983 = vcmask 7168
  %s984 = scalar_lea.vmem %s1, 270
  %985 = vst.msk [vmem:[%s984] sm:$0x1] %vm983, %v982
  %s986 = scalar_lea.vmem %s1, 301
  %987 = vst.msk [vmem:[%s986] sm:$0x2] %vm983, %v982
  %s988 = scalar_lea.vmem %s1, 332
  %989 = vst.msk [vmem:[%s988] sm:$0x4] %vm983, %v982
  %s990 = scalar_lea.vmem %s1, 363
  %991 = vst.msk [vmem:[%s990] sm:$0x8] %vm983, %v982
  %s992 = scalar_lea.vmem %s1, 394
  %993 = vst.msk [vmem:[%s992] sm:$0x10] %vm983, %v982
  %s994 = scalar_lea.vmem %s1, 425
  %995 = vst.msk [vmem:[%s994] sm:$0x20] %vm983, %v982
  %s996 = scalar_lea.vmem %s1, 456
  %997 = vst.msk [vmem:[%s996] sm:$0x40] %vm983, %v982
  %s998 = scalar_lea.vmem %s1, 487
  %999 = vst.msk [vmem:[%s998] sm:$0x80] %vm983, %v982
  %s1000 = scalar_lea.vmem %s0, 16
  %v1001 = vld [vmem:[%s1000] sm:$0xff]
  %1002 = vrot.lane.b32.xlu0 %v1001, 114
  %v1003 = vpop.permute.xlu0 %1002
  %vm1004 = vcmask 7168
  %s1005 = scalar_lea.vmem %s1, 526
  %1006 = vst.msk [vmem:[%s1005] sm:$0x1] %vm1004, %v1003
  %s1007 = scalar_lea.vmem %s1, 557
  %1008 = vst.msk [vmem:[%s1007] sm:$0x2] %vm1004, %v1003
  %s1009 = scalar_lea.vmem %s1, 588
  %1010 = vst.msk [vmem:[%s1009] sm:$0x4] %vm1004, %v1003
  %s1011 = scalar_lea.vmem %s1, 619
  %1012 = vst.msk [vmem:[%s1011] sm:$0x8] %vm1004, %v1003
  %s1013 = scalar_lea.vmem %s1, 650
  %1014 = vst.msk [vmem:[%s1013] sm:$0x10] %vm1004, %v1003
  %s1015 = scalar_lea.vmem %s1, 681
  %1016 = vst.msk [vmem:[%s1015] sm:$0x20] %vm1004, %v1003
  %s1017 = scalar_lea.vmem %s1, 712
  %1018 = vst.msk [vmem:[%s1017] sm:$0x40] %vm1004, %v1003
  %s1019 = scalar_lea.vmem %s1, 743
  %1020 = vst.msk [vmem:[%s1019] sm:$0x80] %vm1004, %v1003
  %s1021 = scalar_lea.vmem %s0, 24
  %v1022 = vld [vmem:[%s1021] sm:$0x1]
  %1023 = vrot.lane.b32.xlu0 %v1022, 114
  %v1024 = vpop.permute.xlu0 %1023
  %vm1025 = vcmask 7168
  %s1026 = scalar_lea.vmem %s1, 782
  %1027 = vst.msk [vmem:[%s1026] sm:$0x1] %vm1025, %v1024
  %v1028 = vld [vmem:[%s0] sm:$0xff]
  %1029 = vrot.lane.b32.xlu0 %v1028, 113
  %v1030 = vpop.permute.xlu0 %1029
  %vm1031 = vcmask 7168
  %s1032 = scalar_lea.vmem %s1, 15
  %1033 = vst.msk [vmem:[%s1032] sm:$0x1] %vm1031, %v1030
  %s1034 = scalar_lea.vmem %s1, 46
  %1035 = vst.msk [vmem:[%s1034] sm:$0x2] %vm1031, %v1030
  %s1036 = scalar_lea.vmem %s1, 77
  %1037 = vst.msk [vmem:[%s1036] sm:$0x4] %vm1031, %v1030
  %s1038 = scalar_lea.vmem %s1, 108
  %1039 = vst.msk [vmem:[%s1038] sm:$0x8] %vm1031, %v1030
  %s1040 = scalar_lea.vmem %s1, 139
  %1041 = vst.msk [vmem:[%s1040] sm:$0x10] %vm1031, %v1030
  %s1042 = scalar_lea.vmem %s1, 170
  %1043 = vst.msk [vmem:[%s1042] sm:$0x20] %vm1031, %v1030
  %s1044 = scalar_lea.vmem %s1, 201
  %1045 = vst.msk [vmem:[%s1044] sm:$0x40] %vm1031, %v1030
  %s1046 = scalar_lea.vmem %s1, 232
  %1047 = vst.msk [vmem:[%s1046] sm:$0x80] %vm1031, %v1030
  %s1048 = scalar_lea.vmem %s0, 8
  %v1049 = vld [vmem:[%s1048] sm:$0xff]
  %1050 = vrot.lane.b32.xlu0 %v1049, 113
  %v1051 = vpop.permute.xlu0 %1050
  %vm1052 = vcmask 7168
  %s1053 = scalar_lea.vmem %s1, 271
  %1054 = vst.msk [vmem:[%s1053] sm:$0x1] %vm1052, %v1051
  %s1055 = scalar_lea.vmem %s1, 302
  %1056 = vst.msk [vmem:[%s1055] sm:$0x2] %vm1052, %v1051
  %s1057 = scalar_lea.vmem %s1, 333
  %1058 = vst.msk [vmem:[%s1057] sm:$0x4] %vm1052, %v1051
  %s1059 = scalar_lea.vmem %s1, 364
  %1060 = vst.msk [vmem:[%s1059] sm:$0x8] %vm1052, %v1051
  %s1061 = scalar_lea.vmem %s1, 395
  %1062 = vst.msk [vmem:[%s1061] sm:$0x10] %vm1052, %v1051
  %s1063 = scalar_lea.vmem %s1, 426
  %1064 = vst.msk [vmem:[%s1063] sm:$0x20] %vm1052, %v1051
  %s1065 = scalar_lea.vmem %s1, 457
  %1066 = vst.msk [vmem:[%s1065] sm:$0x40] %vm1052, %v1051
  %s1067 = scalar_lea.vmem %s1, 488
  %1068 = vst.msk [vmem:[%s1067] sm:$0x80] %vm1052, %v1051
  %s1069 = scalar_lea.vmem %s0, 16
  %v1070 = vld [vmem:[%s1069] sm:$0xff]
  %1071 = vrot.lane.b32.xlu0 %v1070, 113
  %v1072 = vpop.permute.xlu0 %1071
  %vm1073 = vcmask 7168
  %s1074 = scalar_lea.vmem %s1, 527
  %1075 = vst.msk [vmem:[%s1074] sm:$0x1] %vm1073, %v1072
  %s1076 = scalar_lea.vmem %s1, 558
  %1077 = vst.msk [vmem:[%s1076] sm:$0x2] %vm1073, %v1072
  %s1078 = scalar_lea.vmem %s1, 589
  %1079 = vst.msk [vmem:[%s1078] sm:$0x4] %vm1073, %v1072
  %s1080 = scalar_lea.vmem %s1, 620
  %1081 = vst.msk [vmem:[%s1080] sm:$0x8] %vm1073, %v1072
  %s1082 = scalar_lea.vmem %s1, 651
  %1083 = vst.msk [vmem:[%s1082] sm:$0x10] %vm1073, %v1072
  %s1084 = scalar_lea.vmem %s1, 682
  %1085 = vst.msk [vmem:[%s1084] sm:$0x20] %vm1073, %v1072
  %s1086 = scalar_lea.vmem %s1, 713
  %1087 = vst.msk [vmem:[%s1086] sm:$0x40] %vm1073, %v1072
  %s1088 = scalar_lea.vmem %s1, 744
  %1089 = vst.msk [vmem:[%s1088] sm:$0x80] %vm1073, %v1072
  %s1090 = scalar_lea.vmem %s0, 24
  %v1091 = vld [vmem:[%s1090] sm:$0x1]
  %1092 = vrot.lane.b32.xlu0 %v1091, 113
  %v1093 = vpop.permute.xlu0 %1092
  %vm1094 = vcmask 7168
  %s1095 = scalar_lea.vmem %s1, 783
  %1096 = vst.msk [vmem:[%s1095] sm:$0x1] %vm1094, %v1093
  %v1097 = vld [vmem:[%s0] sm:$0xff]
  %1098 = vrot.lane.b32.xlu0 %v1097, 112
  %v1099 = vpop.permute.xlu0 %1098
  %vm1100 = vcmask 7168
  %s1101 = scalar_lea.vmem %s1, 16
  %1102 = vst.msk [vmem:[%s1101] sm:$0x1] %vm1100, %v1099
  %s1103 = scalar_lea.vmem %s1, 47
  %1104 = vst.msk [vmem:[%s1103] sm:$0x2] %vm1100, %v1099
  %s1105 = scalar_lea.vmem %s1, 78
  %1106 = vst.msk [vmem:[%s1105] sm:$0x4] %vm1100, %v1099
  %s1107 = scalar_lea.vmem %s1, 109
  %1108 = vst.msk [vmem:[%s1107] sm:$0x8] %vm1100, %v1099
  %s1109 = scalar_lea.vmem %s1, 140
  %1110 = vst.msk [vmem:[%s1109] sm:$0x10] %vm1100, %v1099
  %s1111 = scalar_lea.vmem %s1, 171
  %1112 = vst.msk [vmem:[%s1111] sm:$0x20] %vm1100, %v1099
  %s1113 = scalar_lea.vmem %s1, 202
  %1114 = vst.msk [vmem:[%s1113] sm:$0x40] %vm1100, %v1099
  %s1115 = scalar_lea.vmem %s1, 233
  %1116 = vst.msk [vmem:[%s1115] sm:$0x80] %vm1100, %v1099
  %s1117 = scalar_lea.vmem %s0, 8
  %v1118 = vld [vmem:[%s1117] sm:$0xff]
  %1119 = vrot.lane.b32.xlu0 %v1118, 112
  %v1120 = vpop.permute.xlu0 %1119
  %vm1121 = vcmask 7168
  %s1122 = scalar_lea.vmem %s1, 272
  %1123 = vst.msk [vmem:[%s1122] sm:$0x1] %vm1121, %v1120
  %s1124 = scalar_lea.vmem %s1, 303
  %1125 = vst.msk [vmem:[%s1124] sm:$0x2] %vm1121, %v1120
  %s1126 = scalar_lea.vmem %s1, 334
  %1127 = vst.msk [vmem:[%s1126] sm:$0x4] %vm1121, %v1120
  %s1128 = scalar_lea.vmem %s1, 365
  %1129 = vst.msk [vmem:[%s1128] sm:$0x8] %vm1121, %v1120
  %s1130 = scalar_lea.vmem %s1, 396
  %1131 = vst.msk [vmem:[%s1130] sm:$0x10] %vm1121, %v1120
  %s1132 = scalar_lea.vmem %s1, 427
  %1133 = vst.msk [vmem:[%s1132] sm:$0x20] %vm1121, %v1120
  %s1134 = scalar_lea.vmem %s1, 458
  %1135 = vst.msk [vmem:[%s1134] sm:$0x40] %vm1121, %v1120
  %s1136 = scalar_lea.vmem %s1, 489
  %1137 = vst.msk [vmem:[%s1136] sm:$0x80] %vm1121, %v1120
  %s1138 = scalar_lea.vmem %s0, 16
  %v1139 = vld [vmem:[%s1138] sm:$0xff]
  %1140 = vrot.lane.b32.xlu0 %v1139, 112
  %v1141 = vpop.permute.xlu0 %1140
  %vm1142 = vcmask 7168
  %s1143 = scalar_lea.vmem %s1, 528
  %1144 = vst.msk [vmem:[%s1143] sm:$0x1] %vm1142, %v1141
  %s1145 = scalar_lea.vmem %s1, 559
  %1146 = vst.msk [vmem:[%s1145] sm:$0x2] %vm1142, %v1141
  %s1147 = scalar_lea.vmem %s1, 590
  %1148 = vst.msk [vmem:[%s1147] sm:$0x4] %vm1142, %v1141
  %s1149 = scalar_lea.vmem %s1, 621
  %1150 = vst.msk [vmem:[%s1149] sm:$0x8] %vm1142, %v1141
  %s1151 = scalar_lea.vmem %s1, 652
  %1152 = vst.msk [vmem:[%s1151] sm:$0x10] %vm1142, %v1141
  %s1153 = scalar_lea.vmem %s1, 683
  %1154 = vst.msk [vmem:[%s1153] sm:$0x20] %vm1142, %v1141
  %s1155 = scalar_lea.vmem %s1, 714
  %1156 = vst.msk [vmem:[%s1155] sm:$0x40] %vm1142, %v1141
  %s1157 = scalar_lea.vmem %s1, 745
  %1158 = vst.msk [vmem:[%s1157] sm:$0x80] %vm1142, %v1141
  %s1159 = scalar_lea.vmem %s0, 24
  %v1160 = vld [vmem:[%s1159] sm:$0x1]
  %1161 = vrot.lane.b32.xlu0 %v1160, 112
  %v1162 = vpop.permute.xlu0 %1161
  %vm1163 = vcmask 7168
  %s1164 = scalar_lea.vmem %s1, 784
  %1165 = vst.msk [vmem:[%s1164] sm:$0x1] %vm1163, %v1162
  %v1166 = vld [vmem:[%s0] sm:$0xff]
  %1167 = vrot.lane.b32.xlu0 %v1166, 111
  %v1168 = vpop.permute.xlu0 %1167
  %vm1169 = vcmask 7168
  %s1170 = scalar_lea.vmem %s1, 17
  %1171 = vst.msk [vmem:[%s1170] sm:$0x1] %vm1169, %v1168
  %s1172 = scalar_lea.vmem %s1, 48
  %1173 = vst.msk [vmem:[%s1172] sm:$0x2] %vm1169, %v1168
  %s1174 = scalar_lea.vmem %s1, 79
  %1175 = vst.msk [vmem:[%s1174] sm:$0x4] %vm1169, %v1168
  %s1176 = scalar_lea.vmem %s1, 110
  %1177 = vst.msk [vmem:[%s1176] sm:$0x8] %vm1169, %v1168
  %s1178 = scalar_lea.vmem %s1, 141
  %1179 = vst.msk [vmem:[%s1178] sm:$0x10] %vm1169, %v1168
  %s1180 = scalar_lea.vmem %s1, 172
  %1181 = vst.msk [vmem:[%s1180] sm:$0x20] %vm1169, %v1168
  %s1182 = scalar_lea.vmem %s1, 203
  %1183 = vst.msk [vmem:[%s1182] sm:$0x40] %vm1169, %v1168
  %s1184 = scalar_lea.vmem %s1, 234
  %1185 = vst.msk [vmem:[%s1184] sm:$0x80] %vm1169, %v1168
  %s1186 = scalar_lea.vmem %s0, 8
  %v1187 = vld [vmem:[%s1186] sm:$0xff]
  %1188 = vrot.lane.b32.xlu0 %v1187, 111
  %v1189 = vpop.permute.xlu0 %1188
  %vm1190 = vcmask 7168
  %s1191 = scalar_lea.vmem %s1, 273
  %1192 = vst.msk [vmem:[%s1191] sm:$0x1] %vm1190, %v1189
  %s1193 = scalar_lea.vmem %s1, 304
  %1194 = vst.msk [vmem:[%s1193] sm:$0x2] %vm1190, %v1189
  %s1195 = scalar_lea.vmem %s1, 335
  %1196 = vst.msk [vmem:[%s1195] sm:$0x4] %vm1190, %v1189
  %s1197 = scalar_lea.vmem %s1, 366
  %1198 = vst.msk [vmem:[%s1197] sm:$0x8] %vm1190, %v1189
  %s1199 = scalar_lea.vmem %s1, 397
  %1200 = vst.msk [vmem:[%s1199] sm:$0x10] %vm1190, %v1189
  %s1201 = scalar_lea.vmem %s1, 428
  %1202 = vst.msk [vmem:[%s1201] sm:$0x20] %vm1190, %v1189
  %s1203 = scalar_lea.vmem %s1, 459
  %1204 = vst.msk [vmem:[%s1203] sm:$0x40] %vm1190, %v1189
  %s1205 = scalar_lea.vmem %s1, 490
  %1206 = vst.msk [vmem:[%s1205] sm:$0x80] %vm1190, %v1189
  %s1207 = scalar_lea.vmem %s0, 16
  %v1208 = vld [vmem:[%s1207] sm:$0xff]
  %1209 = vrot.lane.b32.xlu0 %v1208, 111
  %v1210 = vpop.permute.xlu0 %1209
  %vm1211 = vcmask 7168
  %s1212 = scalar_lea.vmem %s1, 529
  %1213 = vst.msk [vmem:[%s1212] sm:$0x1] %vm1211, %v1210
  %s1214 = scalar_lea.vmem %s1, 560
  %1215 = vst.msk [vmem:[%s1214] sm:$0x2] %vm1211, %v1210
  %s1216 = scalar_lea.vmem %s1, 591
  %1217 = vst.msk [vmem:[%s1216] sm:$0x4] %vm1211, %v1210
  %s1218 = scalar_lea.vmem %s1, 622
  %1219 = vst.msk [vmem:[%s1218] sm:$0x8] %vm1211, %v1210
  %s1220 = scalar_lea.vmem %s1, 653
  %1221 = vst.msk [vmem:[%s1220] sm:$0x10] %vm1211, %v1210
  %s1222 = scalar_lea.vmem %s1, 684
  %1223 = vst.msk [vmem:[%s1222] sm:$0x20] %vm1211, %v1210
  %s1224 = scalar_lea.vmem %s1, 715
  %1225 = vst.msk [vmem:[%s1224] sm:$0x40] %vm1211, %v1210
  %s1226 = scalar_lea.vmem %s1, 746
  %1227 = vst.msk [vmem:[%s1226] sm:$0x80] %vm1211, %v1210
  %s1228 = scalar_lea.vmem %s0, 24
  %v1229 = vld [vmem:[%s1228] sm:$0x1]
  %1230 = vrot.lane.b32.xlu0 %v1229, 111
  %v1231 = vpop.permute.xlu0 %1230
  %vm1232 = vcmask 7168
  %s1233 = scalar_lea.vmem %s1, 785
  %1234 = vst.msk [vmem:[%s1233] sm:$0x1] %vm1232, %v1231
  %v1235 = vld [vmem:[%s0] sm:$0xff]
  %1236 = vrot.lane.b32.xlu0 %v1235, 110
  %v1237 = vpop.permute.xlu0 %1236
  %vm1238 = vcmask 7168
  %s1239 = scalar_lea.vmem %s1, 18
  %1240 = vst.msk [vmem:[%s1239] sm:$0x1] %vm1238, %v1237
  %s1241 = scalar_lea.vmem %s1, 49
  %1242 = vst.msk [vmem:[%s1241] sm:$0x2] %vm1238, %v1237
  %s1243 = scalar_lea.vmem %s1, 80
  %1244 = vst.msk [vmem:[%s1243] sm:$0x4] %vm1238, %v1237
  %s1245 = scalar_lea.vmem %s1, 111
  %1246 = vst.msk [vmem:[%s1245] sm:$0x8] %vm1238, %v1237
  %s1247 = scalar_lea.vmem %s1, 142
  %1248 = vst.msk [vmem:[%s1247] sm:$0x10] %vm1238, %v1237
  %s1249 = scalar_lea.vmem %s1, 173
  %1250 = vst.msk [vmem:[%s1249] sm:$0x20] %vm1238, %v1237
  %s1251 = scalar_lea.vmem %s1, 204
  %1252 = vst.msk [vmem:[%s1251] sm:$0x40] %vm1238, %v1237
  %s1253 = scalar_lea.vmem %s1, 235
  %1254 = vst.msk [vmem:[%s1253] sm:$0x80] %vm1238, %v1237
  %s1255 = scalar_lea.vmem %s0, 8
  %v1256 = vld [vmem:[%s1255] sm:$0xff]
  %1257 = vrot.lane.b32.xlu0 %v1256, 110
  %v1258 = vpop.permute.xlu0 %1257
  %vm1259 = vcmask 7168
  %s1260 = scalar_lea.vmem %s1, 274
  %1261 = vst.msk [vmem:[%s1260] sm:$0x1] %vm1259, %v1258
  %s1262 = scalar_lea.vmem %s1, 305
  %1263 = vst.msk [vmem:[%s1262] sm:$0x2] %vm1259, %v1258
  %s1264 = scalar_lea.vmem %s1, 336
  %1265 = vst.msk [vmem:[%s1264] sm:$0x4] %vm1259, %v1258
  %s1266 = scalar_lea.vmem %s1, 367
  %1267 = vst.msk [vmem:[%s1266] sm:$0x8] %vm1259, %v1258
  %s1268 = scalar_lea.vmem %s1, 398
  %1269 = vst.msk [vmem:[%s1268] sm:$0x10] %vm1259, %v1258
  %s1270 = scalar_lea.vmem %s1, 429
  %1271 = vst.msk [vmem:[%s1270] sm:$0x20] %vm1259, %v1258
  %s1272 = scalar_lea.vmem %s1, 460
  %1273 = vst.msk [vmem:[%s1272] sm:$0x40] %vm1259, %v1258
  %s1274 = scalar_lea.vmem %s1, 491
  %1275 = vst.msk [vmem:[%s1274] sm:$0x80] %vm1259, %v1258
  %s1276 = scalar_lea.vmem %s0, 16
  %v1277 = vld [vmem:[%s1276] sm:$0xff]
  %1278 = vrot.lane.b32.xlu0 %v1277, 110
  %v1279 = vpop.permute.xlu0 %1278
  %vm1280 = vcmask 7168
  %s1281 = scalar_lea.vmem %s1, 530
  %1282 = vst.msk [vmem:[%s1281] sm:$0x1] %vm1280, %v1279
  %s1283 = scalar_lea.vmem %s1, 561
  %1284 = vst.msk [vmem:[%s1283] sm:$0x2] %vm1280, %v1279
  %s1285 = scalar_lea.vmem %s1, 592
  %1286 = vst.msk [vmem:[%s1285] sm:$0x4] %vm1280, %v1279
  %s1287 = scalar_lea.vmem %s1, 623
  %1288 = vst.msk [vmem:[%s1287] sm:$0x8] %vm1280, %v1279
  %s1289 = scalar_lea.vmem %s1, 654
  %1290 = vst.msk [vmem:[%s1289] sm:$0x10] %vm1280, %v1279
  %s1291 = scalar_lea.vmem %s1, 685
  %1292 = vst.msk [vmem:[%s1291] sm:$0x20] %vm1280, %v1279
  %s1293 = scalar_lea.vmem %s1, 716
  %1294 = vst.msk [vmem:[%s1293] sm:$0x40] %vm1280, %v1279
  %s1295 = scalar_lea.vmem %s1, 747
  %1296 = vst.msk [vmem:[%s1295] sm:$0x80] %vm1280, %v1279
  %s1297 = scalar_lea.vmem %s0, 24
  %v1298 = vld [vmem:[%s1297] sm:$0x1]
  %1299 = vrot.lane.b32.xlu0 %v1298, 110
  %v1300 = vpop.permute.xlu0 %1299
  %vm1301 = vcmask 7168
  %s1302 = scalar_lea.vmem %s1, 786
  %1303 = vst.msk [vmem:[%s1302] sm:$0x1] %vm1301, %v1300
  %v1304 = vld [vmem:[%s0] sm:$0xff]
  %1305 = vrot.lane.b32.xlu0 %v1304, 109
  %v1306 = vpop.permute.xlu0 %1305
  %vm1307 = vcmask 7168
  %s1308 = scalar_lea.vmem %s1, 19
  %1309 = vst.msk [vmem:[%s1308] sm:$0x1] %vm1307, %v1306
  %s1310 = scalar_lea.vmem %s1, 50
  %1311 = vst.msk [vmem:[%s1310] sm:$0x2] %vm1307, %v1306
  %s1312 = scalar_lea.vmem %s1, 81
  %1313 = vst.msk [vmem:[%s1312] sm:$0x4] %vm1307, %v1306
  %s1314 = scalar_lea.vmem %s1, 112
  %1315 = vst.msk [vmem:[%s1314] sm:$0x8] %vm1307, %v1306
  %s1316 = scalar_lea.vmem %s1, 143
  %1317 = vst.msk [vmem:[%s1316] sm:$0x10] %vm1307, %v1306
  %s1318 = scalar_lea.vmem %s1, 174
  %1319 = vst.msk [vmem:[%s1318] sm:$0x20] %vm1307, %v1306
  %s1320 = scalar_lea.vmem %s1, 205
  %1321 = vst.msk [vmem:[%s1320] sm:$0x40] %vm1307, %v1306
  %s1322 = scalar_lea.vmem %s1, 236
  %1323 = vst.msk [vmem:[%s1322] sm:$0x80] %vm1307, %v1306
  %s1324 = scalar_lea.vmem %s0, 8
  %v1325 = vld [vmem:[%s1324] sm:$0xff]
  %1326 = vrot.lane.b32.xlu0 %v1325, 109
  %v1327 = vpop.permute.xlu0 %1326
  %vm1328 = vcmask 7168
  %s1329 = scalar_lea.vmem %s1, 275
  %1330 = vst.msk [vmem:[%s1329] sm:$0x1] %vm1328, %v1327
  %s1331 = scalar_lea.vmem %s1, 306
  %1332 = vst.msk [vmem:[%s1331] sm:$0x2] %vm1328, %v1327
  %s1333 = scalar_lea.vmem %s1, 337
  %1334 = vst.msk [vmem:[%s1333] sm:$0x4] %vm1328, %v1327
  %s1335 = scalar_lea.vmem %s1, 368
  %1336 = vst.msk [vmem:[%s1335] sm:$0x8] %vm1328, %v1327
  %s1337 = scalar_lea.vmem %s1, 399
  %1338 = vst.msk [vmem:[%s1337] sm:$0x10] %vm1328, %v1327
  %s1339 = scalar_lea.vmem %s1, 430
  %1340 = vst.msk [vmem:[%s1339] sm:$0x20] %vm1328, %v1327
  %s1341 = scalar_lea.vmem %s1, 461
  %1342 = vst.msk [vmem:[%s1341] sm:$0x40] %vm1328, %v1327
  %s1343 = scalar_lea.vmem %s1, 492
  %1344 = vst.msk [vmem:[%s1343] sm:$0x80] %vm1328, %v1327
  %s1345 = scalar_lea.vmem %s0, 16
  %v1346 = vld [vmem:[%s1345] sm:$0xff]
  %1347 = vrot.lane.b32.xlu0 %v1346, 109
  %v1348 = vpop.permute.xlu0 %1347
  %vm1349 = vcmask 7168
  %s1350 = scalar_lea.vmem %s1, 531
  %1351 = vst.msk [vmem:[%s1350] sm:$0x1] %vm1349, %v1348
  %s1352 = scalar_lea.vmem %s1, 562
  %1353 = vst.msk [vmem:[%s1352] sm:$0x2] %vm1349, %v1348
  %s1354 = scalar_lea.vmem %s1, 593
  %1355 = vst.msk [vmem:[%s1354] sm:$0x4] %vm1349, %v1348
  %s1356 = scalar_lea.vmem %s1, 624
  %1357 = vst.msk [vmem:[%s1356] sm:$0x8] %vm1349, %v1348
  %s1358 = scalar_lea.vmem %s1, 655
  %1359 = vst.msk [vmem:[%s1358] sm:$0x10] %vm1349, %v1348
  %s1360 = scalar_lea.vmem %s1, 686
  %1361 = vst.msk [vmem:[%s1360] sm:$0x20] %vm1349, %v1348
  %s1362 = scalar_lea.vmem %s1, 717
  %1363 = vst.msk [vmem:[%s1362] sm:$0x40] %vm1349, %v1348
  %s1364 = scalar_lea.vmem %s1, 748
  %1365 = vst.msk [vmem:[%s1364] sm:$0x80] %vm1349, %v1348
  %s1366 = scalar_lea.vmem %s0, 24
  %v1367 = vld [vmem:[%s1366] sm:$0x1]
  %1368 = vrot.lane.b32.xlu0 %v1367, 109
  %v1369 = vpop.permute.xlu0 %1368
  %vm1370 = vcmask 7168
  %s1371 = scalar_lea.vmem %s1, 787
  %1372 = vst.msk [vmem:[%s1371] sm:$0x1] %vm1370, %v1369
  %v1373 = vld [vmem:[%s0] sm:$0xff]
  %1374 = vrot.lane.b32.xlu0 %v1373, 108
  %v1375 = vpop.permute.xlu0 %1374
  %vm1376 = vcmask 7168
  %s1377 = scalar_lea.vmem %s1, 20
  %1378 = vst.msk [vmem:[%s1377] sm:$0x1] %vm1376, %v1375
  %s1379 = scalar_lea.vmem %s1, 51
  %1380 = vst.msk [vmem:[%s1379] sm:$0x2] %vm1376, %v1375
  %s1381 = scalar_lea.vmem %s1, 82
  %1382 = vst.msk [vmem:[%s1381] sm:$0x4] %vm1376, %v1375
  %s1383 = scalar_lea.vmem %s1, 113
  %1384 = vst.msk [vmem:[%s1383] sm:$0x8] %vm1376, %v1375
  %s1385 = scalar_lea.vmem %s1, 144
  %1386 = vst.msk [vmem:[%s1385] sm:$0x10] %vm1376, %v1375
  %s1387 = scalar_lea.vmem %s1, 175
  %1388 = vst.msk [vmem:[%s1387] sm:$0x20] %vm1376, %v1375
  %s1389 = scalar_lea.vmem %s1, 206
  %1390 = vst.msk [vmem:[%s1389] sm:$0x40] %vm1376, %v1375
  %s1391 = scalar_lea.vmem %s1, 237
  %1392 = vst.msk [vmem:[%s1391] sm:$0x80] %vm1376, %v1375
  %s1393 = scalar_lea.vmem %s0, 8
  %v1394 = vld [vmem:[%s1393] sm:$0xff]
  %1395 = vrot.lane.b32.xlu0 %v1394, 108
  %v1396 = vpop.permute.xlu0 %1395
  %vm1397 = vcmask 7168
  %s1398 = scalar_lea.vmem %s1, 276
  %1399 = vst.msk [vmem:[%s1398] sm:$0x1] %vm1397, %v1396
  %s1400 = scalar_lea.vmem %s1, 307
  %1401 = vst.msk [vmem:[%s1400] sm:$0x2] %vm1397, %v1396
  %s1402 = scalar_lea.vmem %s1, 338
  %1403 = vst.msk [vmem:[%s1402] sm:$0x4] %vm1397, %v1396
  %s1404 = scalar_lea.vmem %s1, 369
  %1405 = vst.msk [vmem:[%s1404] sm:$0x8] %vm1397, %v1396
  %s1406 = scalar_lea.vmem %s1, 400
  %1407 = vst.msk [vmem:[%s1406] sm:$0x10] %vm1397, %v1396
  %s1408 = scalar_lea.vmem %s1, 431
  %1409 = vst.msk [vmem:[%s1408] sm:$0x20] %vm1397, %v1396
  %s1410 = scalar_lea.vmem %s1, 462
  %1411 = vst.msk [vmem:[%s1410] sm:$0x40] %vm1397, %v1396
  %s1412 = scalar_lea.vmem %s1, 493
  %1413 = vst.msk [vmem:[%s1412] sm:$0x80] %vm1397, %v1396
  %s1414 = scalar_lea.vmem %s0, 16
  %v1415 = vld [vmem:[%s1414] sm:$0xff]
  %1416 = vrot.lane.b32.xlu0 %v1415, 108
  %v1417 = vpop.permute.xlu0 %1416
  %vm1418 = vcmask 7168
  %s1419 = scalar_lea.vmem %s1, 532
  %1420 = vst.msk [vmem:[%s1419] sm:$0x1] %vm1418, %v1417
  %s1421 = scalar_lea.vmem %s1, 563
  %1422 = vst.msk [vmem:[%s1421] sm:$0x2] %vm1418, %v1417
  %s1423 = scalar_lea.vmem %s1, 594
  %1424 = vst.msk [vmem:[%s1423] sm:$0x4] %vm1418, %v1417
  %s1425 = scalar_lea.vmem %s1, 625
  %1426 = vst.msk [vmem:[%s1425] sm:$0x8] %vm1418, %v1417
  %s1427 = scalar_lea.vmem %s1, 656
  %1428 = vst.msk [vmem:[%s1427] sm:$0x10] %vm1418, %v1417
  %s1429 = scalar_lea.vmem %s1, 687
  %1430 = vst.msk [vmem:[%s1429] sm:$0x20] %vm1418, %v1417
  %s1431 = scalar_lea.vmem %s1, 718
  %1432 = vst.msk [vmem:[%s1431] sm:$0x40] %vm1418, %v1417
  %s1433 = scalar_lea.vmem %s1, 749
  %1434 = vst.msk [vmem:[%s1433] sm:$0x80] %vm1418, %v1417
  %s1435 = scalar_lea.vmem %s0, 24
  %v1436 = vld [vmem:[%s1435] sm:$0x1]
  %1437 = vrot.lane.b32.xlu0 %v1436, 108
  %v1438 = vpop.permute.xlu0 %1437
  %vm1439 = vcmask 7168
  %s1440 = scalar_lea.vmem %s1, 788
  %1441 = vst.msk [vmem:[%s1440] sm:$0x1] %vm1439, %v1438
  %v1442 = vld [vmem:[%s0] sm:$0xff]
  %1443 = vrot.lane.b32.xlu0 %v1442, 107
  %v1444 = vpop.permute.xlu0 %1443
  %vm1445 = vcmask 7168
  %s1446 = scalar_lea.vmem %s1, 21
  %1447 = vst.msk [vmem:[%s1446] sm:$0x1] %vm1445, %v1444
  %s1448 = scalar_lea.vmem %s1, 52
  %1449 = vst.msk [vmem:[%s1448] sm:$0x2] %vm1445, %v1444
  %s1450 = scalar_lea.vmem %s1, 83
  %1451 = vst.msk [vmem:[%s1450] sm:$0x4] %vm1445, %v1444
  %s1452 = scalar_lea.vmem %s1, 114
  %1453 = vst.msk [vmem:[%s1452] sm:$0x8] %vm1445, %v1444
  %s1454 = scalar_lea.vmem %s1, 145
  %1455 = vst.msk [vmem:[%s1454] sm:$0x10] %vm1445, %v1444
  %s1456 = scalar_lea.vmem %s1, 176
  %1457 = vst.msk [vmem:[%s1456] sm:$0x20] %vm1445, %v1444
  %s1458 = scalar_lea.vmem %s1, 207
  %1459 = vst.msk [vmem:[%s1458] sm:$0x40] %vm1445, %v1444
  %s1460 = scalar_lea.vmem %s1, 238
  %1461 = vst.msk [vmem:[%s1460] sm:$0x80] %vm1445, %v1444
  %s1462 = scalar_lea.vmem %s0, 8
  %v1463 = vld [vmem:[%s1462] sm:$0xff]
  %1464 = vrot.lane.b32.xlu0 %v1463, 107
  %v1465 = vpop.permute.xlu0 %1464
  %vm1466 = vcmask 7168
  %s1467 = scalar_lea.vmem %s1, 277
  %1468 = vst.msk [vmem:[%s1467] sm:$0x1] %vm1466, %v1465
  %s1469 = scalar_lea.vmem %s1, 308
  %1470 = vst.msk [vmem:[%s1469] sm:$0x2] %vm1466, %v1465
  %s1471 = scalar_lea.vmem %s1, 339
  %1472 = vst.msk [vmem:[%s1471] sm:$0x4] %vm1466, %v1465
  %s1473 = scalar_lea.vmem %s1, 370
  %1474 = vst.msk [vmem:[%s1473] sm:$0x8] %vm1466, %v1465
  %s1475 = scalar_lea.vmem %s1, 401
  %1476 = vst.msk [vmem:[%s1475] sm:$0x10] %vm1466, %v1465
  %s1477 = scalar_lea.vmem %s1, 432
  %1478 = vst.msk [vmem:[%s1477] sm:$0x20] %vm1466, %v1465
  %s1479 = scalar_lea.vmem %s1, 463
  %1480 = vst.msk [vmem:[%s1479] sm:$0x40] %vm1466, %v1465
  %s1481 = scalar_lea.vmem %s1, 494
  %1482 = vst.msk [vmem:[%s1481] sm:$0x80] %vm1466, %v1465
  %s1483 = scalar_lea.vmem %s0, 16
  %v1484 = vld [vmem:[%s1483] sm:$0xff]
  %1485 = vrot.lane.b32.xlu0 %v1484, 107
  %v1486 = vpop.permute.xlu0 %1485
  %vm1487 = vcmask 7168
  %s1488 = scalar_lea.vmem %s1, 533
  %1489 = vst.msk [vmem:[%s1488] sm:$0x1] %vm1487, %v1486
  %s1490 = scalar_lea.vmem %s1, 564
  %1491 = vst.msk [vmem:[%s1490] sm:$0x2] %vm1487, %v1486
  %s1492 = scalar_lea.vmem %s1, 595
  %1493 = vst.msk [vmem:[%s1492] sm:$0x4] %vm1487, %v1486
  %s1494 = scalar_lea.vmem %s1, 626
  %1495 = vst.msk [vmem:[%s1494] sm:$0x8] %vm1487, %v1486
  %s1496 = scalar_lea.vmem %s1, 657
  %1497 = vst.msk [vmem:[%s1496] sm:$0x10] %vm1487, %v1486
  %s1498 = scalar_lea.vmem %s1, 688
  %1499 = vst.msk [vmem:[%s1498] sm:$0x20] %vm1487, %v1486
  %s1500 = scalar_lea.vmem %s1, 719
  %1501 = vst.msk [vmem:[%s1500] sm:$0x40] %vm1487, %v1486
  %s1502 = scalar_lea.vmem %s1, 750
  %1503 = vst.msk [vmem:[%s1502] sm:$0x80] %vm1487, %v1486
  %s1504 = scalar_lea.vmem %s0, 24
  %v1505 = vld [vmem:[%s1504] sm:$0x1]
  %1506 = vrot.lane.b32.xlu0 %v1505, 107
  %v1507 = vpop.permute.xlu0 %1506
  %vm1508 = vcmask 7168
  %s1509 = scalar_lea.vmem %s1, 789
  %1510 = vst.msk [vmem:[%s1509] sm:$0x1] %vm1508, %v1507
  %v1511 = vld [vmem:[%s0] sm:$0xff]
  %1512 = vrot.lane.b32.xlu0 %v1511, 106
  %v1513 = vpop.permute.xlu0 %1512
  %vm1514 = vcmask 7168
  %s1515 = scalar_lea.vmem %s1, 22
  %1516 = vst.msk [vmem:[%s1515] sm:$0x1] %vm1514, %v1513
  %s1517 = scalar_lea.vmem %s1, 53
  %1518 = vst.msk [vmem:[%s1517] sm:$0x2] %vm1514, %v1513
  %s1519 = scalar_lea.vmem %s1, 84
  %1520 = vst.msk [vmem:[%s1519] sm:$0x4] %vm1514, %v1513
  %s1521 = scalar_lea.vmem %s1, 115
  %1522 = vst.msk [vmem:[%s1521] sm:$0x8] %vm1514, %v1513
  %s1523 = scalar_lea.vmem %s1, 146
  %1524 = vst.msk [vmem:[%s1523] sm:$0x10] %vm1514, %v1513
  %s1525 = scalar_lea.vmem %s1, 177
  %1526 = vst.msk [vmem:[%s1525] sm:$0x20] %vm1514, %v1513
  %s1527 = scalar_lea.vmem %s1, 208
  %1528 = vst.msk [vmem:[%s1527] sm:$0x40] %vm1514, %v1513
  %s1529 = scalar_lea.vmem %s1, 239
  %1530 = vst.msk [vmem:[%s1529] sm:$0x80] %vm1514, %v1513
  %s1531 = scalar_lea.vmem %s0, 8
  %v1532 = vld [vmem:[%s1531] sm:$0xff]
  %1533 = vrot.lane.b32.xlu0 %v1532, 106
  %v1534 = vpop.permute.xlu0 %1533
  %vm1535 = vcmask 7168
  %s1536 = scalar_lea.vmem %s1, 278
  %1537 = vst.msk [vmem:[%s1536] sm:$0x1] %vm1535, %v1534
  %s1538 = scalar_lea.vmem %s1, 309
  %1539 = vst.msk [vmem:[%s1538] sm:$0x2] %vm1535, %v1534
  %s1540 = scalar_lea.vmem %s1, 340
  %1541 = vst.msk [vmem:[%s1540] sm:$0x4] %vm1535, %v1534
  %s1542 = scalar_lea.vmem %s1, 371
  %1543 = vst.msk [vmem:[%s1542] sm:$0x8] %vm1535, %v1534
  %s1544 = scalar_lea.vmem %s1, 402
  %1545 = vst.msk [vmem:[%s1544] sm:$0x10] %vm1535, %v1534
  %s1546 = scalar_lea.vmem %s1, 433
  %1547 = vst.msk [vmem:[%s1546] sm:$0x20] %vm1535, %v1534
  %s1548 = scalar_lea.vmem %s1, 464
  %1549 = vst.msk [vmem:[%s1548] sm:$0x40] %vm1535, %v1534
  %s1550 = scalar_lea.vmem %s1, 495
  %1551 = vst.msk [vmem:[%s1550] sm:$0x80] %vm1535, %v1534
  %s1552 = scalar_lea.vmem %s0, 16
  %v1553 = vld [vmem:[%s1552] sm:$0xff]
  %1554 = vrot.lane.b32.xlu0 %v1553, 106
  %v1555 = vpop.permute.xlu0 %1554
  %vm1556 = vcmask 7168
  %s1557 = scalar_lea.vmem %s1, 534
  %1558 = vst.msk [vmem:[%s1557] sm:$0x1] %vm1556, %v1555
  %s1559 = scalar_lea.vmem %s1, 565
  %1560 = vst.msk [vmem:[%s1559] sm:$0x2] %vm1556, %v1555
  %s1561 = scalar_lea.vmem %s1, 596
  %1562 = vst.msk [vmem:[%s1561] sm:$0x4] %vm1556, %v1555
  %s1563 = scalar_lea.vmem %s1, 627
  %1564 = vst.msk [vmem:[%s1563] sm:$0x8] %vm1556, %v1555
  %s1565 = scalar_lea.vmem %s1, 658
  %1566 = vst.msk [vmem:[%s1565] sm:$0x10] %vm1556, %v1555
  %s1567 = scalar_lea.vmem %s1, 689
  %1568 = vst.msk [vmem:[%s1567] sm:$0x20] %vm1556, %v1555
  %s1569 = scalar_lea.vmem %s1, 720
  %1570 = vst.msk [vmem:[%s1569] sm:$0x40] %vm1556, %v1555
  %s1571 = scalar_lea.vmem %s1, 751
  %1572 = vst.msk [vmem:[%s1571] sm:$0x80] %vm1556, %v1555
  %s1573 = scalar_lea.vmem %s0, 24
  %v1574 = vld [vmem:[%s1573] sm:$0x1]
  %1575 = vrot.lane.b32.xlu0 %v1574, 106
  %v1576 = vpop.permute.xlu0 %1575
  %vm1577 = vcmask 7168
  %s1578 = scalar_lea.vmem %s1, 790
  %1579 = vst.msk [vmem:[%s1578] sm:$0x1] %vm1577, %v1576
  %v1580 = vld [vmem:[%s0] sm:$0xff]
  %1581 = vrot.lane.b32.xlu0 %v1580, 105
  %v1582 = vpop.permute.xlu0 %1581
  %vm1583 = vcmask 7168
  %s1584 = scalar_lea.vmem %s1, 23
  %1585 = vst.msk [vmem:[%s1584] sm:$0x1] %vm1583, %v1582
  %s1586 = scalar_lea.vmem %s1, 54
  %1587 = vst.msk [vmem:[%s1586] sm:$0x2] %vm1583, %v1582
  %s1588 = scalar_lea.vmem %s1, 85
  %1589 = vst.msk [vmem:[%s1588] sm:$0x4] %vm1583, %v1582
  %s1590 = scalar_lea.vmem %s1, 116
  %1591 = vst.msk [vmem:[%s1590] sm:$0x8] %vm1583, %v1582
  %s1592 = scalar_lea.vmem %s1, 147
  %1593 = vst.msk [vmem:[%s1592] sm:$0x10] %vm1583, %v1582
  %s1594 = scalar_lea.vmem %s1, 178
  %1595 = vst.msk [vmem:[%s1594] sm:$0x20] %vm1583, %v1582
  %s1596 = scalar_lea.vmem %s1, 209
  %1597 = vst.msk [vmem:[%s1596] sm:$0x40] %vm1583, %v1582
  %s1598 = scalar_lea.vmem %s1, 240
  %1599 = vst.msk [vmem:[%s1598] sm:$0x80] %vm1583, %v1582
  %s1600 = scalar_lea.vmem %s0, 8
  %v1601 = vld [vmem:[%s1600] sm:$0xff]
  %1602 = vrot.lane.b32.xlu0 %v1601, 105
  %v1603 = vpop.permute.xlu0 %1602
  %vm1604 = vcmask 7168
  %s1605 = scalar_lea.vmem %s1, 279
  %1606 = vst.msk [vmem:[%s1605] sm:$0x1] %vm1604, %v1603
  %s1607 = scalar_lea.vmem %s1, 310
  %1608 = vst.msk [vmem:[%s1607] sm:$0x2] %vm1604, %v1603
  %s1609 = scalar_lea.vmem %s1, 341
  %1610 = vst.msk [vmem:[%s1609] sm:$0x4] %vm1604, %v1603
  %s1611 = scalar_lea.vmem %s1, 372
  %1612 = vst.msk [vmem:[%s1611] sm:$0x8] %vm1604, %v1603
  %s1613 = scalar_lea.vmem %s1, 403
  %1614 = vst.msk [vmem:[%s1613] sm:$0x10] %vm1604, %v1603
  %s1615 = scalar_lea.vmem %s1, 434
  %1616 = vst.msk [vmem:[%s1615] sm:$0x20] %vm1604, %v1603
  %s1617 = scalar_lea.vmem %s1, 465
  %1618 = vst.msk [vmem:[%s1617] sm:$0x40] %vm1604, %v1603
  %s1619 = scalar_lea.vmem %s1, 496
  %1620 = vst.msk [vmem:[%s1619] sm:$0x80] %vm1604, %v1603
  %s1621 = scalar_lea.vmem %s0, 16
  %v1622 = vld [vmem:[%s1621] sm:$0xff]
  %1623 = vrot.lane.b32.xlu0 %v1622, 105
  %v1624 = vpop.permute.xlu0 %1623
  %vm1625 = vcmask 7168
  %s1626 = scalar_lea.vmem %s1, 535
  %1627 = vst.msk [vmem:[%s1626] sm:$0x1] %vm1625, %v1624
  %s1628 = scalar_lea.vmem %s1, 566
  %1629 = vst.msk [vmem:[%s1628] sm:$0x2] %vm1625, %v1624
  %s1630 = scalar_lea.vmem %s1, 597
  %1631 = vst.msk [vmem:[%s1630] sm:$0x4] %vm1625, %v1624
  %s1632 = scalar_lea.vmem %s1, 628
  %1633 = vst.msk [vmem:[%s1632] sm:$0x8] %vm1625, %v1624
  %s1634 = scalar_lea.vmem %s1, 659
  %1635 = vst.msk [vmem:[%s1634] sm:$0x10] %vm1625, %v1624
  %s1636 = scalar_lea.vmem %s1, 690
  %1637 = vst.msk [vmem:[%s1636] sm:$0x20] %vm1625, %v1624
  %s1638 = scalar_lea.vmem %s1, 721
  %1639 = vst.msk [vmem:[%s1638] sm:$0x40] %vm1625, %v1624
  %s1640 = scalar_lea.vmem %s1, 752
  %1641 = vst.msk [vmem:[%s1640] sm:$0x80] %vm1625, %v1624
  %s1642 = scalar_lea.vmem %s0, 24
  %v1643 = vld [vmem:[%s1642] sm:$0x1]
  %1644 = vrot.lane.b32.xlu0 %v1643, 105
  %v1645 = vpop.permute.xlu0 %1644
  %vm1646 = vcmask 7168
  %s1647 = scalar_lea.vmem %s1, 791
  %1648 = vst.msk [vmem:[%s1647] sm:$0x1] %vm1646, %v1645
  %v1649 = vld [vmem:[%s0] sm:$0xff]
  %1650 = vrot.lane.b32.xlu0 %v1649, 104
  %v1651 = vpop.permute.xlu0 %1650
  %vm1652 = vcmask 7168
  %s1653 = scalar_lea.vmem %s1, 24
  %1654 = vst.msk [vmem:[%s1653] sm:$0x1] %vm1652, %v1651
  %s1655 = scalar_lea.vmem %s1, 55
  %1656 = vst.msk [vmem:[%s1655] sm:$0x2] %vm1652, %v1651
  %s1657 = scalar_lea.vmem %s1, 86
  %1658 = vst.msk [vmem:[%s1657] sm:$0x4] %vm1652, %v1651
  %s1659 = scalar_lea.vmem %s1, 117
  %1660 = vst.msk [vmem:[%s1659] sm:$0x8] %vm1652, %v1651
  %s1661 = scalar_lea.vmem %s1, 148
  %1662 = vst.msk [vmem:[%s1661] sm:$0x10] %vm1652, %v1651
  %s1663 = scalar_lea.vmem %s1, 179
  %1664 = vst.msk [vmem:[%s1663] sm:$0x20] %vm1652, %v1651
  %s1665 = scalar_lea.vmem %s1, 210
  %1666 = vst.msk [vmem:[%s1665] sm:$0x40] %vm1652, %v1651
  %s1667 = scalar_lea.vmem %s1, 241
  %1668 = vst.msk [vmem:[%s1667] sm:$0x80] %vm1652, %v1651
  %s1669 = scalar_lea.vmem %s0, 8
  %v1670 = vld [vmem:[%s1669] sm:$0xff]
  %1671 = vrot.lane.b32.xlu0 %v1670, 104
  %v1672 = vpop.permute.xlu0 %1671
  %vm1673 = vcmask 7168
  %s1674 = scalar_lea.vmem %s1, 280
  %1675 = vst.msk [vmem:[%s1674] sm:$0x1] %vm1673, %v1672
  %s1676 = scalar_lea.vmem %s1, 311
  %1677 = vst.msk [vmem:[%s1676] sm:$0x2] %vm1673, %v1672
  %s1678 = scalar_lea.vmem %s1, 342
  %1679 = vst.msk [vmem:[%s1678] sm:$0x4] %vm1673, %v1672
  %s1680 = scalar_lea.vmem %s1, 373
  %1681 = vst.msk [vmem:[%s1680] sm:$0x8] %vm1673, %v1672
  %s1682 = scalar_lea.vmem %s1, 404
  %1683 = vst.msk [vmem:[%s1682] sm:$0x10] %vm1673, %v1672
  %s1684 = scalar_lea.vmem %s1, 435
  %1685 = vst.msk [vmem:[%s1684] sm:$0x20] %vm1673, %v1672
  %s1686 = scalar_lea.vmem %s1, 466
  %1687 = vst.msk [vmem:[%s1686] sm:$0x40] %vm1673, %v1672
  %s1688 = scalar_lea.vmem %s1, 497
  %1689 = vst.msk [vmem:[%s1688] sm:$0x80] %vm1673, %v1672
  %s1690 = scalar_lea.vmem %s0, 16
  %v1691 = vld [vmem:[%s1690] sm:$0xff]
  %1692 = vrot.lane.b32.xlu0 %v1691, 104
  %v1693 = vpop.permute.xlu0 %1692
  %vm1694 = vcmask 7168
  %s1695 = scalar_lea.vmem %s1, 536
  %1696 = vst.msk [vmem:[%s1695] sm:$0x1] %vm1694, %v1693
  %s1697 = scalar_lea.vmem %s1, 567
  %1698 = vst.msk [vmem:[%s1697] sm:$0x2] %vm1694, %v1693
  %s1699 = scalar_lea.vmem %s1, 598
  %1700 = vst.msk [vmem:[%s1699] sm:$0x4] %vm1694, %v1693
  %s1701 = scalar_lea.vmem %s1, 629
  %1702 = vst.msk [vmem:[%s1701] sm:$0x8] %vm1694, %v1693
  %s1703 = scalar_lea.vmem %s1, 660
  %1704 = vst.msk [vmem:[%s1703] sm:$0x10] %vm1694, %v1693
  %s1705 = scalar_lea.vmem %s1, 691
  %1706 = vst.msk [vmem:[%s1705] sm:$0x20] %vm1694, %v1693
  %s1707 = scalar_lea.vmem %s1, 722
  %1708 = vst.msk [vmem:[%s1707] sm:$0x40] %vm1694, %v1693
  %s1709 = scalar_lea.vmem %s1, 753
  %1710 = vst.msk [vmem:[%s1709] sm:$0x80] %vm1694, %v1693
  %s1711 = scalar_lea.vmem %s0, 24
  %v1712 = vld [vmem:[%s1711] sm:$0x1]
  %1713 = vrot.lane.b32.xlu0 %v1712, 104
  %v1714 = vpop.permute.xlu0 %1713
  %vm1715 = vcmask 7168
  %s1716 = scalar_lea.vmem %s1, 792
  %1717 = vst.msk [vmem:[%s1716] sm:$0x1] %vm1715, %v1714
  %v1718 = vld [vmem:[%s0] sm:$0xff]
  %1719 = vrot.lane.b32.xlu0 %v1718, 103
  %v1720 = vpop.permute.xlu0 %1719
  %vm1721 = vcmask 7168
  %s1722 = scalar_lea.vmem %s1, 25
  %1723 = vst.msk [vmem:[%s1722] sm:$0x1] %vm1721, %v1720
  %s1724 = scalar_lea.vmem %s1, 56
  %1725 = vst.msk [vmem:[%s1724] sm:$0x2] %vm1721, %v1720
  %s1726 = scalar_lea.vmem %s1, 87
  %1727 = vst.msk [vmem:[%s1726] sm:$0x4] %vm1721, %v1720
  %s1728 = scalar_lea.vmem %s1, 118
  %1729 = vst.msk [vmem:[%s1728] sm:$0x8] %vm1721, %v1720
  %s1730 = scalar_lea.vmem %s1, 149
  %1731 = vst.msk [vmem:[%s1730] sm:$0x10] %vm1721, %v1720
  %s1732 = scalar_lea.vmem %s1, 180
  %1733 = vst.msk [vmem:[%s1732] sm:$0x20] %vm1721, %v1720
  %s1734 = scalar_lea.vmem %s1, 211
  %1735 = vst.msk [vmem:[%s1734] sm:$0x40] %vm1721, %v1720
  %s1736 = scalar_lea.vmem %s1, 242
  %1737 = vst.msk [vmem:[%s1736] sm:$0x80] %vm1721, %v1720
  %s1738 = scalar_lea.vmem %s0, 8
  %v1739 = vld [vmem:[%s1738] sm:$0xff]
  %1740 = vrot.lane.b32.xlu0 %v1739, 103
  %v1741 = vpop.permute.xlu0 %1740
  %vm1742 = vcmask 7168
  %s1743 = scalar_lea.vmem %s1, 281
  %1744 = vst.msk [vmem:[%s1743] sm:$0x1] %vm1742, %v1741
  %s1745 = scalar_lea.vmem %s1, 312
  %1746 = vst.msk [vmem:[%s1745] sm:$0x2] %vm1742, %v1741
  %s1747 = scalar_lea.vmem %s1, 343
  %1748 = vst.msk [vmem:[%s1747] sm:$0x4] %vm1742, %v1741
  %s1749 = scalar_lea.vmem %s1, 374
  %1750 = vst.msk [vmem:[%s1749] sm:$0x8] %vm1742, %v1741
  %s1751 = scalar_lea.vmem %s1, 405
  %1752 = vst.msk [vmem:[%s1751] sm:$0x10] %vm1742, %v1741
  %s1753 = scalar_lea.vmem %s1, 436
  %1754 = vst.msk [vmem:[%s1753] sm:$0x20] %vm1742, %v1741
  %s1755 = scalar_lea.vmem %s1, 467
  %1756 = vst.msk [vmem:[%s1755] sm:$0x40] %vm1742, %v1741
  %s1757 = scalar_lea.vmem %s1, 498
  %1758 = vst.msk [vmem:[%s1757] sm:$0x80] %vm1742, %v1741
  %s1759 = scalar_lea.vmem %s0, 16
  %v1760 = vld [vmem:[%s1759] sm:$0xff]
  %1761 = vrot.lane.b32.xlu0 %v1760, 103
  %v1762 = vpop.permute.xlu0 %1761
  %vm1763 = vcmask 7168
  %s1764 = scalar_lea.vmem %s1, 537
  %1765 = vst.msk [vmem:[%s1764] sm:$0x1] %vm1763, %v1762
  %s1766 = scalar_lea.vmem %s1, 568
  %1767 = vst.msk [vmem:[%s1766] sm:$0x2] %vm1763, %v1762
  %s1768 = scalar_lea.vmem %s1, 599
  %1769 = vst.msk [vmem:[%s1768] sm:$0x4] %vm1763, %v1762
  %s1770 = scalar_lea.vmem %s1, 630
  %1771 = vst.msk [vmem:[%s1770] sm:$0x8] %vm1763, %v1762
  %s1772 = scalar_lea.vmem %s1, 661
  %1773 = vst.msk [vmem:[%s1772] sm:$0x10] %vm1763, %v1762
  %s1774 = scalar_lea.vmem %s1, 692
  %1775 = vst.msk [vmem:[%s1774] sm:$0x20] %vm1763, %v1762
  %s1776 = scalar_lea.vmem %s1, 723
  %1777 = vst.msk [vmem:[%s1776] sm:$0x40] %vm1763, %v1762
  %s1778 = scalar_lea.vmem %s1, 754
  %1779 = vst.msk [vmem:[%s1778] sm:$0x80] %vm1763, %v1762
  %s1780 = scalar_lea.vmem %s0, 24
  %v1781 = vld [vmem:[%s1780] sm:$0x1]
  %1782 = vrot.lane.b32.xlu0 %v1781, 103
  %v1783 = vpop.permute.xlu0 %1782
  %vm1784 = vcmask 7168
  %s1785 = scalar_lea.vmem %s1, 793
  %1786 = vst.msk [vmem:[%s1785] sm:$0x1] %vm1784, %v1783
  %v1787 = vld [vmem:[%s0] sm:$0xff]
  %1788 = vrot.lane.b32.xlu0 %v1787, 102
  %v1789 = vpop.permute.xlu0 %1788
  %vm1790 = vcmask 7168
  %s1791 = scalar_lea.vmem %s1, 26
  %1792 = vst.msk [vmem:[%s1791] sm:$0x1] %vm1790, %v1789
  %s1793 = scalar_lea.vmem %s1, 57
  %1794 = vst.msk [vmem:[%s1793] sm:$0x2] %vm1790, %v1789
  %s1795 = scalar_lea.vmem %s1, 88
  %1796 = vst.msk [vmem:[%s1795] sm:$0x4] %vm1790, %v1789
  %s1797 = scalar_lea.vmem %s1, 119
  %1798 = vst.msk [vmem:[%s1797] sm:$0x8] %vm1790, %v1789
  %s1799 = scalar_lea.vmem %s1, 150
  %1800 = vst.msk [vmem:[%s1799] sm:$0x10] %vm1790, %v1789
  %s1801 = scalar_lea.vmem %s1, 181
  %1802 = vst.msk [vmem:[%s1801] sm:$0x20] %vm1790, %v1789
  %s1803 = scalar_lea.vmem %s1, 212
  %1804 = vst.msk [vmem:[%s1803] sm:$0x40] %vm1790, %v1789
  %s1805 = scalar_lea.vmem %s1, 243
  %1806 = vst.msk [vmem:[%s1805] sm:$0x80] %vm1790, %v1789
  %s1807 = scalar_lea.vmem %s0, 8
  %v1808 = vld [vmem:[%s1807] sm:$0xff]
  %1809 = vrot.lane.b32.xlu0 %v1808, 102
  %v1810 = vpop.permute.xlu0 %1809
  %vm1811 = vcmask 7168
  %s1812 = scalar_lea.vmem %s1, 282
  %1813 = vst.msk [vmem:[%s1812] sm:$0x1] %vm1811, %v1810
  %s1814 = scalar_lea.vmem %s1, 313
  %1815 = vst.msk [vmem:[%s1814] sm:$0x2] %vm1811, %v1810
  %s1816 = scalar_lea.vmem %s1, 344
  %1817 = vst.msk [vmem:[%s1816] sm:$0x4] %vm1811, %v1810
  %s1818 = scalar_lea.vmem %s1, 375
  %1819 = vst.msk [vmem:[%s1818] sm:$0x8] %vm1811, %v1810
  %s1820 = scalar_lea.vmem %s1, 406
  %1821 = vst.msk [vmem:[%s1820] sm:$0x10] %vm1811, %v1810
  %s1822 = scalar_lea.vmem %s1, 437
  %1823 = vst.msk [vmem:[%s1822] sm:$0x20] %vm1811, %v1810
  %s1824 = scalar_lea.vmem %s1, 468
  %1825 = vst.msk [vmem:[%s1824] sm:$0x40] %vm1811, %v1810
  %s1826 = scalar_lea.vmem %s1, 499
  %1827 = vst.msk [vmem:[%s1826] sm:$0x80] %vm1811, %v1810
  %s1828 = scalar_lea.vmem %s0, 16
  %v1829 = vld [vmem:[%s1828] sm:$0xff]
  %1830 = vrot.lane.b32.xlu0 %v1829, 102
  %v1831 = vpop.permute.xlu0 %1830
  %vm1832 = vcmask 7168
  %s1833 = scalar_lea.vmem %s1, 538
  %1834 = vst.msk [vmem:[%s1833] sm:$0x1] %vm1832, %v1831
  %s1835 = scalar_lea.vmem %s1, 569
  %1836 = vst.msk [vmem:[%s1835] sm:$0x2] %vm1832, %v1831
  %s1837 = scalar_lea.vmem %s1, 600
  %1838 = vst.msk [vmem:[%s1837] sm:$0x4] %vm1832, %v1831
  %s1839 = scalar_lea.vmem %s1, 631
  %1840 = vst.msk [vmem:[%s1839] sm:$0x8] %vm1832, %v1831
  %s1841 = scalar_lea.vmem %s1, 662
  %1842 = vst.msk [vmem:[%s1841] sm:$0x10] %vm1832, %v1831
  %s1843 = scalar_lea.vmem %s1, 693
  %1844 = vst.msk [vmem:[%s1843] sm:$0x20] %vm1832, %v1831
  %s1845 = scalar_lea.vmem %s1, 724
  %1846 = vst.msk [vmem:[%s1845] sm:$0x40] %vm1832, %v1831
  %s1847 = scalar_lea.vmem %s1, 755
  %1848 = vst.msk [vmem:[%s1847] sm:$0x80] %vm1832, %v1831
  %s1849 = scalar_lea.vmem %s0, 24
  %v1850 = vld [vmem:[%s1849] sm:$0x1]
  %1851 = vrot.lane.b32.xlu0 %v1850, 102
  %v1852 = vpop.permute.xlu0 %1851
  %vm1853 = vcmask 7168
  %s1854 = scalar_lea.vmem %s1, 794
  %1855 = vst.msk [vmem:[%s1854] sm:$0x1] %vm1853, %v1852
  %v1856 = vld [vmem:[%s0] sm:$0xff]
  %1857 = vrot.lane.b32.xlu0 %v1856, 101
  %v1858 = vpop.permute.xlu0 %1857
  %vm1859 = vcmask 7168
  %s1860 = scalar_lea.vmem %s1, 27
  %1861 = vst.msk [vmem:[%s1860] sm:$0x1] %vm1859, %v1858
  %s1862 = scalar_lea.vmem %s1, 58
  %1863 = vst.msk [vmem:[%s1862] sm:$0x2] %vm1859, %v1858
  %s1864 = scalar_lea.vmem %s1, 89
  %1865 = vst.msk [vmem:[%s1864] sm:$0x4] %vm1859, %v1858
  %s1866 = scalar_lea.vmem %s1, 120
  %1867 = vst.msk [vmem:[%s1866] sm:$0x8] %vm1859, %v1858
  %s1868 = scalar_lea.vmem %s1, 151
  %1869 = vst.msk [vmem:[%s1868] sm:$0x10] %vm1859, %v1858
  %s1870 = scalar_lea.vmem %s1, 182
  %1871 = vst.msk [vmem:[%s1870] sm:$0x20] %vm1859, %v1858
  %s1872 = scalar_lea.vmem %s1, 213
  %1873 = vst.msk [vmem:[%s1872] sm:$0x40] %vm1859, %v1858
  %s1874 = scalar_lea.vmem %s1, 244
  %1875 = vst.msk [vmem:[%s1874] sm:$0x80] %vm1859, %v1858
  %s1876 = scalar_lea.vmem %s0, 8
  %v1877 = vld [vmem:[%s1876] sm:$0xff]
  %1878 = vrot.lane.b32.xlu0 %v1877, 101
  %v1879 = vpop.permute.xlu0 %1878
  %vm1880 = vcmask 7168
  %s1881 = scalar_lea.vmem %s1, 283
  %1882 = vst.msk [vmem:[%s1881] sm:$0x1] %vm1880, %v1879
  %s1883 = scalar_lea.vmem %s1, 314
  %1884 = vst.msk [vmem:[%s1883] sm:$0x2] %vm1880, %v1879
  %s1885 = scalar_lea.vmem %s1, 345
  %1886 = vst.msk [vmem:[%s1885] sm:$0x4] %vm1880, %v1879
  %s1887 = scalar_lea.vmem %s1, 376
  %1888 = vst.msk [vmem:[%s1887] sm:$0x8] %vm1880, %v1879
  %s1889 = scalar_lea.vmem %s1, 407
  %1890 = vst.msk [vmem:[%s1889] sm:$0x10] %vm1880, %v1879
  %s1891 = scalar_lea.vmem %s1, 438
  %1892 = vst.msk [vmem:[%s1891] sm:$0x20] %vm1880, %v1879
  %s1893 = scalar_lea.vmem %s1, 469
  %1894 = vst.msk [vmem:[%s1893] sm:$0x40] %vm1880, %v1879
  %s1895 = scalar_lea.vmem %s1, 500
  %1896 = vst.msk [vmem:[%s1895] sm:$0x80] %vm1880, %v1879
  %s1897 = scalar_lea.vmem %s0, 16
  %v1898 = vld [vmem:[%s1897] sm:$0xff]
  %1899 = vrot.lane.b32.xlu0 %v1898, 101
  %v1900 = vpop.permute.xlu0 %1899
  %vm1901 = vcmask 7168
  %s1902 = scalar_lea.vmem %s1, 539
  %1903 = vst.msk [vmem:[%s1902] sm:$0x1] %vm1901, %v1900
  %s1904 = scalar_lea.vmem %s1, 570
  %1905 = vst.msk [vmem:[%s1904] sm:$0x2] %vm1901, %v1900
  %s1906 = scalar_lea.vmem %s1, 601
  %1907 = vst.msk [vmem:[%s1906] sm:$0x4] %vm1901, %v1900
  %s1908 = scalar_lea.vmem %s1, 632
  %1909 = vst.msk [vmem:[%s1908] sm:$0x8] %vm1901, %v1900
  %s1910 = scalar_lea.vmem %s1, 663
  %1911 = vst.msk [vmem:[%s1910] sm:$0x10] %vm1901, %v1900
  %s1912 = scalar_lea.vmem %s1, 694
  %1913 = vst.msk [vmem:[%s1912] sm:$0x20] %vm1901, %v1900
  %s1914 = scalar_lea.vmem %s1, 725
  %1915 = vst.msk [vmem:[%s1914] sm:$0x40] %vm1901, %v1900
  %s1916 = scalar_lea.vmem %s1, 756
  %1917 = vst.msk [vmem:[%s1916] sm:$0x80] %vm1901, %v1900
  %s1918 = scalar_lea.vmem %s0, 24
  %v1919 = vld [vmem:[%s1918] sm:$0x1]
  %1920 = vrot.lane.b32.xlu0 %v1919, 101
  %v1921 = vpop.permute.xlu0 %1920
  %vm1922 = vcmask 7168
  %s1923 = scalar_lea.vmem %s1, 795
  %1924 = vst.msk [vmem:[%s1923] sm:$0x1] %vm1922, %v1921
  %v1925 = vld [vmem:[%s0] sm:$0xff]
  %1926 = vrot.lane.b32.xlu0 %v1925, 100
  %v1927 = vpop.permute.xlu0 %1926
  %vm1928 = vcmask 7168
  %s1929 = scalar_lea.vmem %s1, 28
  %1930 = vst.msk [vmem:[%s1929] sm:$0x1] %vm1928, %v1927
  %s1931 = scalar_lea.vmem %s1, 59
  %1932 = vst.msk [vmem:[%s1931] sm:$0x2] %vm1928, %v1927
  %s1933 = scalar_lea.vmem %s1, 90
  %1934 = vst.msk [vmem:[%s1933] sm:$0x4] %vm1928, %v1927
  %s1935 = scalar_lea.vmem %s1, 121
  %1936 = vst.msk [vmem:[%s1935] sm:$0x8] %vm1928, %v1927
  %s1937 = scalar_lea.vmem %s1, 152
  %1938 = vst.msk [vmem:[%s1937] sm:$0x10] %vm1928, %v1927
  %s1939 = scalar_lea.vmem %s1, 183
  %1940 = vst.msk [vmem:[%s1939] sm:$0x20] %vm1928, %v1927
  %s1941 = scalar_lea.vmem %s1, 214
  %1942 = vst.msk [vmem:[%s1941] sm:$0x40] %vm1928, %v1927
  %s1943 = scalar_lea.vmem %s1, 245
  %1944 = vst.msk [vmem:[%s1943] sm:$0x80] %vm1928, %v1927
  %s1945 = scalar_lea.vmem %s0, 8
  %v1946 = vld [vmem:[%s1945] sm:$0xff]
  %1947 = vrot.lane.b32.xlu0 %v1946, 100
  %v1948 = vpop.permute.xlu0 %1947
  %vm1949 = vcmask 7168
  %s1950 = scalar_lea.vmem %s1, 284
  %1951 = vst.msk [vmem:[%s1950] sm:$0x1] %vm1949, %v1948
  %s1952 = scalar_lea.vmem %s1, 315
  %1953 = vst.msk [vmem:[%s1952] sm:$0x2] %vm1949, %v1948
  %s1954 = scalar_lea.vmem %s1, 346
  %1955 = vst.msk [vmem:[%s1954] sm:$0x4] %vm1949, %v1948
  %s1956 = scalar_lea.vmem %s1, 377
  %1957 = vst.msk [vmem:[%s1956] sm:$0x8] %vm1949, %v1948
  %s1958 = scalar_lea.vmem %s1, 408
  %1959 = vst.msk [vmem:[%s1958] sm:$0x10] %vm1949, %v1948
  %s1960 = scalar_lea.vmem %s1, 439
  %1961 = vst.msk [vmem:[%s1960] sm:$0x20] %vm1949, %v1948
  %s1962 = scalar_lea.vmem %s1, 470
  %1963 = vst.msk [vmem:[%s1962] sm:$0x40] %vm1949, %v1948
  %s1964 = scalar_lea.vmem %s1, 501
  %1965 = vst.msk [vmem:[%s1964] sm:$0x80] %vm1949, %v1948
  %s1966 = scalar_lea.vmem %s0, 16
  %v1967 = vld [vmem:[%s1966] sm:$0xff]
  %1968 = vrot.lane.b32.xlu0 %v1967, 100
  %v1969 = vpop.permute.xlu0 %1968
  %vm1970 = vcmask 7168
  %s1971 = scalar_lea.vmem %s1, 540
  %1972 = vst.msk [vmem:[%s1971] sm:$0x1] %vm1970, %v1969
  %s1973 = scalar_lea.vmem %s1, 571
  %1974 = vst.msk [vmem:[%s1973] sm:$0x2] %vm1970, %v1969
  %s1975 = scalar_lea.vmem %s1, 602
  %1976 = vst.msk [vmem:[%s1975] sm:$0x4] %vm1970, %v1969
  %s1977 = scalar_lea.vmem %s1, 633
  %1978 = vst.msk [vmem:[%s1977] sm:$0x8] %vm1970, %v1969
  %s1979 = scalar_lea.vmem %s1, 664
  %1980 = vst.msk [vmem:[%s1979] sm:$0x10] %vm1970, %v1969
  %s1981 = scalar_lea.vmem %s1, 695
  %1982 = vst.msk [vmem:[%s1981] sm:$0x20] %vm1970, %v1969
  %s1983 = scalar_lea.vmem %s1, 726
  %1984 = vst.msk [vmem:[%s1983] sm:$0x40] %vm1970, %v1969
  %s1985 = scalar_lea.vmem %s1, 757
  %1986 = vst.msk [vmem:[%s1985] sm:$0x80] %vm1970, %v1969
  %s1987 = scalar_lea.vmem %s0, 24
  %v1988 = vld [vmem:[%s1987] sm:$0x1]
  %1989 = vrot.lane.b32.xlu0 %v1988, 100
  %v1990 = vpop.permute.xlu0 %1989
  %vm1991 = vcmask 7168
  %s1992 = scalar_lea.vmem %s1, 796
  %1993 = vst.msk [vmem:[%s1992] sm:$0x1] %vm1991, %v1990
  %v1994 = vld [vmem:[%s0] sm:$0xff]
  %1995 = vrot.lane.b32.xlu0 %v1994, 99
  %v1996 = vpop.permute.xlu0 %1995
  %vm1997 = vcmask 7168
  %s1998 = scalar_lea.vmem %s1, 29
  %1999 = vst.msk [vmem:[%s1998] sm:$0x1] %vm1997, %v1996
  %s2000 = scalar_lea.vmem %s1, 60
  %2001 = vst.msk [vmem:[%s2000] sm:$0x2] %vm1997, %v1996
  %s2002 = scalar_lea.vmem %s1, 91
  %2003 = vst.msk [vmem:[%s2002] sm:$0x4] %vm1997, %v1996
  %s2004 = scalar_lea.vmem %s1, 122
  %2005 = vst.msk [vmem:[%s2004] sm:$0x8] %vm1997, %v1996
  %s2006 = scalar_lea.vmem %s1, 153
  %2007 = vst.msk [vmem:[%s2006] sm:$0x10] %vm1997, %v1996
  %s2008 = scalar_lea.vmem %s1, 184
  %2009 = vst.msk [vmem:[%s2008] sm:$0x20] %vm1997, %v1996
  %s2010 = scalar_lea.vmem %s1, 215
  %2011 = vst.msk [vmem:[%s2010] sm:$0x40] %vm1997, %v1996
  %s2012 = scalar_lea.vmem %s1, 246
  %2013 = vst.msk [vmem:[%s2012] sm:$0x80] %vm1997, %v1996
  %s2014 = scalar_lea.vmem %s0, 8
  %v2015 = vld [vmem:[%s2014] sm:$0xff]
  %2016 = vrot.lane.b32.xlu0 %v2015, 99
  %v2017 = vpop.permute.xlu0 %2016
  %vm2018 = vcmask 7168
  %s2019 = scalar_lea.vmem %s1, 285
  %2020 = vst.msk [vmem:[%s2019] sm:$0x1] %vm2018, %v2017
  %s2021 = scalar_lea.vmem %s1, 316
  %2022 = vst.msk [vmem:[%s2021] sm:$0x2] %vm2018, %v2017
  %s2023 = scalar_lea.vmem %s1, 347
  %2024 = vst.msk [vmem:[%s2023] sm:$0x4] %vm2018, %v2017
  %s2025 = scalar_lea.vmem %s1, 378
  %2026 = vst.msk [vmem:[%s2025] sm:$0x8] %vm2018, %v2017
  %s2027 = scalar_lea.vmem %s1, 409
  %2028 = vst.msk [vmem:[%s2027] sm:$0x10] %vm2018, %v2017
  %s2029 = scalar_lea.vmem %s1, 440
  %2030 = vst.msk [vmem:[%s2029] sm:$0x20] %vm2018, %v2017
  %s2031 = scalar_lea.vmem %s1, 471
  %2032 = vst.msk [vmem:[%s2031] sm:$0x40] %vm2018, %v2017
  %s2033 = scalar_lea.vmem %s1, 502
  %2034 = vst.msk [vmem:[%s2033] sm:$0x80] %vm2018, %v2017
  %s2035 = scalar_lea.vmem %s0, 16
  %v2036 = vld [vmem:[%s2035] sm:$0xff]
  %2037 = vrot.lane.b32.xlu0 %v2036, 99
  %v2038 = vpop.permute.xlu0 %2037
  %vm2039 = vcmask 7168
  %s2040 = scalar_lea.vmem %s1, 541
  %2041 = vst.msk [vmem:[%s2040] sm:$0x1] %vm2039, %v2038
  %s2042 = scalar_lea.vmem %s1, 572
  %2043 = vst.msk [vmem:[%s2042] sm:$0x2] %vm2039, %v2038
  %s2044 = scalar_lea.vmem %s1, 603
  %2045 = vst.msk [vmem:[%s2044] sm:$0x4] %vm2039, %v2038
  %s2046 = scalar_lea.vmem %s1, 634
  %2047 = vst.msk [vmem:[%s2046] sm:$0x8] %vm2039, %v2038
  %s2048 = scalar_lea.vmem %s1, 665
  %2049 = vst.msk [vmem:[%s2048] sm:$0x10] %vm2039, %v2038
  %s2050 = scalar_lea.vmem %s1, 696
  %2051 = vst.msk [vmem:[%s2050] sm:$0x20] %vm2039, %v2038
  %s2052 = scalar_lea.vmem %s1, 727
  %2053 = vst.msk [vmem:[%s2052] sm:$0x40] %vm2039, %v2038
  %s2054 = scalar_lea.vmem %s1, 758
  %2055 = vst.msk [vmem:[%s2054] sm:$0x80] %vm2039, %v2038
  %s2056 = scalar_lea.vmem %s0, 24
  %v2057 = vld [vmem:[%s2056] sm:$0x1]
  %2058 = vrot.lane.b32.xlu0 %v2057, 99
  %v2059 = vpop.permute.xlu0 %2058
  %vm2060 = vcmask 7168
  %s2061 = scalar_lea.vmem %s1, 797
  %2062 = vst.msk [vmem:[%s2061] sm:$0x1] %vm2060, %v2059
  %v2063 = vld [vmem:[%s0] sm:$0xff]
  %2064 = vrot.lane.b32.xlu0 %v2063, 98
  %v2065 = vpop.permute.xlu0 %2064
  %vm2066 = vcmask 7168
  %s2067 = scalar_lea.vmem %s1, 30
  %2068 = vst.msk [vmem:[%s2067] sm:$0x1] %vm2066, %v2065
  %s2069 = scalar_lea.vmem %s1, 61
  %2070 = vst.msk [vmem:[%s2069] sm:$0x2] %vm2066, %v2065
  %s2071 = scalar_lea.vmem %s1, 92
  %2072 = vst.msk [vmem:[%s2071] sm:$0x4] %vm2066, %v2065
  %s2073 = scalar_lea.vmem %s1, 123
  %2074 = vst.msk [vmem:[%s2073] sm:$0x8] %vm2066, %v2065
  %s2075 = scalar_lea.vmem %s1, 154
  %2076 = vst.msk [vmem:[%s2075] sm:$0x10] %vm2066, %v2065
  %s2077 = scalar_lea.vmem %s1, 185
  %2078 = vst.msk [vmem:[%s2077] sm:$0x20] %vm2066, %v2065
  %s2079 = scalar_lea.vmem %s1, 216
  %2080 = vst.msk [vmem:[%s2079] sm:$0x40] %vm2066, %v2065
  %s2081 = scalar_lea.vmem %s1, 247
  %2082 = vst.msk [vmem:[%s2081] sm:$0x80] %vm2066, %v2065
  %s2083 = scalar_lea.vmem %s0, 8
  %v2084 = vld [vmem:[%s2083] sm:$0xff]
  %2085 = vrot.lane.b32.xlu0 %v2084, 98
  %v2086 = vpop.permute.xlu0 %2085
  %vm2087 = vcmask 7168
  %s2088 = scalar_lea.vmem %s1, 286
  %2089 = vst.msk [vmem:[%s2088] sm:$0x1] %vm2087, %v2086
  %s2090 = scalar_lea.vmem %s1, 317
  %2091 = vst.msk [vmem:[%s2090] sm:$0x2] %vm2087, %v2086
  %s2092 = scalar_lea.vmem %s1, 348
  %2093 = vst.msk [vmem:[%s2092] sm:$0x4] %vm2087, %v2086
  %s2094 = scalar_lea.vmem %s1, 379
  %2095 = vst.msk [vmem:[%s2094] sm:$0x8] %vm2087, %v2086
  %s2096 = scalar_lea.vmem %s1, 410
  %2097 = vst.msk [vmem:[%s2096] sm:$0x10] %vm2087, %v2086
  %s2098 = scalar_lea.vmem %s1, 441
  %2099 = vst.msk [vmem:[%s2098] sm:$0x20] %vm2087, %v2086
  %s2100 = scalar_lea.vmem %s1, 472
  %2101 = vst.msk [vmem:[%s2100] sm:$0x40] %vm2087, %v2086
  %s2102 = scalar_lea.vmem %s1, 503
  %2103 = vst.msk [vmem:[%s2102] sm:$0x80] %vm2087, %v2086
  %s2104 = scalar_lea.vmem %s0, 16
  %v2105 = vld [vmem:[%s2104] sm:$0xff]
  %2106 = vrot.lane.b32.xlu0 %v2105, 98
  %v2107 = vpop.permute.xlu0 %2106
  %vm2108 = vcmask 7168
  %s2109 = scalar_lea.vmem %s1, 542
  %2110 = vst.msk [vmem:[%s2109] sm:$0x1] %vm2108, %v2107
  %s2111 = scalar_lea.vmem %s1, 573
  %2112 = vst.msk [vmem:[%s2111] sm:$0x2] %vm2108, %v2107
  %s2113 = scalar_lea.vmem %s1, 604
  %2114 = vst.msk [vmem:[%s2113] sm:$0x4] %vm2108, %v2107
  %s2115 = scalar_lea.vmem %s1, 635
  %2116 = vst.msk [vmem:[%s2115] sm:$0x8] %vm2108, %v2107
  %s2117 = scalar_lea.vmem %s1, 666
  %2118 = vst.msk [vmem:[%s2117] sm:$0x10] %vm2108, %v2107
  %s2119 = scalar_lea.vmem %s1, 697
  %2120 = vst.msk [vmem:[%s2119] sm:$0x20] %vm2108, %v2107
  %s2121 = scalar_lea.vmem %s1, 728
  %2122 = vst.msk [vmem:[%s2121] sm:$0x40] %vm2108, %v2107
  %s2123 = scalar_lea.vmem %s1, 759
  %2124 = vst.msk [vmem:[%s2123] sm:$0x80] %vm2108, %v2107
  %s2125 = scalar_lea.vmem %s0, 24
  %v2126 = vld [vmem:[%s2125] sm:$0x1]
  %2127 = vrot.lane.b32.xlu0 %v2126, 98
  %v2128 = vpop.permute.xlu0 %2127
  %vm2129 = vcmask 7168
  %s2130 = scalar_lea.vmem %s1, 798
  %2131 = vst.msk [vmem:[%s2130] sm:$0x1] %vm2129, %v2128
  %v2132 = vld [vmem:[%s0] sm:$0xff]
  %2133 = vrot.lane.b32.xlu0 %v2132, 97
  %v2134 = vpop.permute.xlu0 %2133
  %vm2135 = vcmask 7168
  %s2136 = scalar_lea.vmem %s1, 31
  %2137 = vst.msk [vmem:[%s2136] sm:$0x1] %vm2135, %v2134
  %s2138 = scalar_lea.vmem %s1, 62
  %2139 = vst.msk [vmem:[%s2138] sm:$0x2] %vm2135, %v2134
  %s2140 = scalar_lea.vmem %s1, 93
  %2141 = vst.msk [vmem:[%s2140] sm:$0x4] %vm2135, %v2134
  %s2142 = scalar_lea.vmem %s1, 124
  %2143 = vst.msk [vmem:[%s2142] sm:$0x8] %vm2135, %v2134
  %s2144 = scalar_lea.vmem %s1, 155
  %2145 = vst.msk [vmem:[%s2144] sm:$0x10] %vm2135, %v2134
  %s2146 = scalar_lea.vmem %s1, 186
  %2147 = vst.msk [vmem:[%s2146] sm:$0x20] %vm2135, %v2134
  %s2148 = scalar_lea.vmem %s1, 217
  %2149 = vst.msk [vmem:[%s2148] sm:$0x40] %vm2135, %v2134
  %s2150 = scalar_lea.vmem %s1, 248
  %2151 = vst.msk [vmem:[%s2150] sm:$0x80] %vm2135, %v2134
  %s2152 = scalar_lea.vmem %s0, 8
  %v2153 = vld [vmem:[%s2152] sm:$0xff]
  %2154 = vrot.lane.b32.xlu0 %v2153, 97
  %v2155 = vpop.permute.xlu0 %2154
  %vm2156 = vcmask 7168
  %s2157 = scalar_lea.vmem %s1, 287
  %2158 = vst.msk [vmem:[%s2157] sm:$0x1] %vm2156, %v2155
  %s2159 = scalar_lea.vmem %s1, 318
  %2160 = vst.msk [vmem:[%s2159] sm:$0x2] %vm2156, %v2155
  %s2161 = scalar_lea.vmem %s1, 349
  %2162 = vst.msk [vmem:[%s2161] sm:$0x4] %vm2156, %v2155
  %s2163 = scalar_lea.vmem %s1, 380
  %2164 = vst.msk [vmem:[%s2163] sm:$0x8] %vm2156, %v2155
  %s2165 = scalar_lea.vmem %s1, 411
  %2166 = vst.msk [vmem:[%s2165] sm:$0x10] %vm2156, %v2155
  %s2167 = scalar_lea.vmem %s1, 442
  %2168 = vst.msk [vmem:[%s2167] sm:$0x20] %vm2156, %v2155
  %s2169 = scalar_lea.vmem %s1, 473
  %2170 = vst.msk [vmem:[%s2169] sm:$0x40] %vm2156, %v2155
  %s2171 = scalar_lea.vmem %s1, 504
  %2172 = vst.msk [vmem:[%s2171] sm:$0x80] %vm2156, %v2155
  %s2173 = scalar_lea.vmem %s0, 16
  %v2174 = vld [vmem:[%s2173] sm:$0xff]
  %2175 = vrot.lane.b32.xlu0 %v2174, 97
  %v2176 = vpop.permute.xlu0 %2175
  %vm2177 = vcmask 7168
  %s2178 = scalar_lea.vmem %s1, 543
  %2179 = vst.msk [vmem:[%s2178] sm:$0x1] %vm2177, %v2176
  %s2180 = scalar_lea.vmem %s1, 574
  %2181 = vst.msk [vmem:[%s2180] sm:$0x2] %vm2177, %v2176
  %s2182 = scalar_lea.vmem %s1, 605
  %2183 = vst.msk [vmem:[%s2182] sm:$0x4] %vm2177, %v2176
  %s2184 = scalar_lea.vmem %s1, 636
  %2185 = vst.msk [vmem:[%s2184] sm:$0x8] %vm2177, %v2176
  %s2186 = scalar_lea.vmem %s1, 667
  %2187 = vst.msk [vmem:[%s2186] sm:$0x10] %vm2177, %v2176
  %s2188 = scalar_lea.vmem %s1, 698
  %2189 = vst.msk [vmem:[%s2188] sm:$0x20] %vm2177, %v2176
  %s2190 = scalar_lea.vmem %s1, 729
  %2191 = vst.msk [vmem:[%s2190] sm:$0x40] %vm2177, %v2176
  %s2192 = scalar_lea.vmem %s1, 760
  %2193 = vst.msk [vmem:[%s2192] sm:$0x80] %vm2177, %v2176
  %s2194 = scalar_lea.vmem %s0, 24
  %v2195 = vld [vmem:[%s2194] sm:$0x1]
  %2196 = vrot.lane.b32.xlu0 %v2195, 97
  %v2197 = vpop.permute.xlu0 %2196
  %vm2198 = vcmask 7168
  %s2199 = scalar_lea.vmem %s1, 799
  %2200 = vst.msk [vmem:[%s2199] sm:$0x1] %vm2198, %v2197

// kernel: conv2d_batchnorm.1
$region0: #{conv2d_batchnorm.1}
  #allocation0 [shape = 'u32[]', space=smem, size = 0x4, offset = 0x4, fixed_abs, tag = 'smem constant byte address 0x4 - core index']
  #allocation1 [shape = 'u32[144,128]{1,0:T(1,128)}', space=vmem, size = 0x12000, scoped, tag = 'internal scratch']
  %s0 = inlined_call_operand.vmem [shape: bf16[2,27,34,64], index: 0, kind: input, shape index: {}]
  %s1 = inlined_call_operand.vmem [shape: bf16[3,192,128], index: 1, kind: input, shape index: {}]
  %s2 = inlined_call_operand.vmem [shape: f32[800,1], index: 2, kind: input, shape index: {}]
  %s3 = inlined_call_operand.vmem [shape: f32[2,25,32,128], index: 3, kind: output, shape index: {0}]
  %s4 = inlined_call_operand.vmem [shape: f32[2,1,1,128], index: 4, kind: output, shape index: {1}]
  %s5 = inlined_call_operand.vmem [shape: f32[2,1,1,128], index: 5, kind: output, shape index: {2}]
  %6 = xla_tuple %s3, %s4, %s5
  %s7 = sld [smem:[#allocation0]]
  $region61: #{conv2d_batchnorm.1} parent=0
    _
  %s9 = ssub.s32 1, %s7
  %s10 = scalar_select 0, %s9, %s7
  loop: start=0, step=1, limit=4
  $region2: #{conv2d_batchnorm.1} parent=0 // loop_pre_header
    _
  $region3: #{conv2d_batchnorm.1} parent=0 // loop_header
    %s12 = sphi 0, %s16
    %p13 = scmp.ge.s32.totalorder %s12, 4
    %s19 = sphi 0, %s31
    %s20 = sphi 0, %s27
    %s21 = sphi 0, %s19
    %s22 = sphi 0, %s20
    %s23 = sphi 0, %s21
    %s24 = sphi 0, %s22
    %s34 = sphi 0, %s36
    %s37 = sphi 0, %s34
    %s38 = sphi 0, %s37
    %s54 = sphi 0, %s38
    %s58 = sphi 0, %s58
    %s60 = sphi 0, %s58
    %s61 = sphi 0, %s60
    %s75 = sphi 0, %s61
    %s79 = sphi 0, %s79
    %s81 = sphi 0, %s79
    %s82 = sphi 0, %s81
    %s96 = sphi 0, %s82
    %s104 = sphi 0, %s106
    %s107 = sphi 0, %s104
    %s108 = sphi 0, %s107
    %s124 = sphi 0, %s108
    %s132 = sphi 0, %s134
    %s135 = sphi 0, %s132
    %s136 = sphi 0, %s135
    %s152 = sphi 0, %s136
    %s160 = sphi 0, %s162
    %s163 = sphi 0, %s160
    %s164 = sphi 0, %s163
    %s180 = sphi 0, %s164
  $region4: #{conv2d_batchnorm.1} parent=0 // loop_header_branch
    %15 = sbr.rel (%p13) target = $region8
  $region5: #{conv2d_batchnorm.1} parent=0 // loop_body
    %s17 = ssub.s32 %s12, 1
    %s18 = ssub.s32 %s12, 2
    %s25 = sadd.s32 1, %s20
    %p26 = scmp.ge.s32.totalorder %s25, 1
    %s27 = scalar_select %p26, 0, %s25
    %s28 = sadd.s32 1, %s19
    %s29 = scalar_select %p26, %s28, %s19
    %p30 = scmp.ge.s32.totalorder %s29, 2
    %s31 = scalar_select %p30, 0, %s29
    %s32 = ssub.s32 %s19, %s31
    %p33 = scmp.eq.s32.totalorder %s32, 0
    %s35 = sadd.s32 %s34, 1
    %s36 = scalar_select %p33, %s34, %s35
    %p39 = pneg %p33
    %p40 = scmp.eq.s32.totalorder %s12, 1
    %p41 = por %p39, %p40
    %p42 = scmp.ne.s32.totalorder %s34, %s37
    %p43 = scmp.eq.s32.totalorder %s12, 0
    %p44 = por %p42, %p43
    %p45 = scmp.ne.s32.totalorder %s34, %s37
    %p46 = scmp.eq.s32.totalorder %s17, 1
    %p47 = por %p45, %p46
    %p48 = scmp.ne.s32.totalorder %s37, %s38
    %p49 = scmp.eq.s32.totalorder %s17, 0
    %p50 = por %p48, %p49
    %p51 = scmp.ne.s32.totalorder %s37, %s38
    %p52 = scmp.eq.s32.totalorder %s18, 1
    %p53 = por %p51, %p52
    %p55 = scmp.ne.s32.totalorder %s38, %s54
    %p56 = scmp.eq.s32.totalorder %s18, 0
    %p57 = por %p55, %p56
    %s59 = sadd.s32 %s58, 1
    %p62 = scmp.eq.s32.totalorder %s12, 1
    %p63 = scmp.ne.s32.totalorder %s58, %s60
    %p64 = scmp.eq.s32.totalorder %s12, 0
    %p65 = por %p63, %p64
    %p66 = scmp.ne.s32.totalorder %s58, %s60
    %p67 = scmp.eq.s32.totalorder %s17, 1
    %p68 = por %p66, %p67
    %p69 = scmp.ne.s32.totalorder %s60, %s61
    %p70 = scmp.eq.s32.totalorder %s17, 0
    %p71 = por %p69, %p70
    %p72 = scmp.ne.s32.totalorder %s60, %s61
    %p73 = scmp.eq.s32.totalorder %s18, 1
    %p74 = por %p72, %p73
    %p76 = scmp.ne.s32.totalorder %s61, %s75
    %p77 = scmp.eq.s32.totalorder %s18, 0
    %p78 = por %p76, %p77
    %s80 = sadd.s32 %s79, 1
    %p83 = scmp.eq.s32.totalorder %s12, 1
    %p84 = scmp.ne.s32.totalorder %s79, %s81
    %p85 = scmp.eq.s32.totalorder %s12, 0
    %p86 = por %p84, %p85
    %p87 = scmp.ne.s32.totalorder %s79, %s81
    %p88 = scmp.eq.s32.totalorder %s17, 1
    %p89 = por %p87, %p88
    %p90 = scmp.ne.s32.totalorder %s81, %s82
    %p91 = scmp.eq.s32.totalorder %s17, 0
    %p92 = por %p90, %p91
    %p93 = scmp.ne.s32.totalorder %s81, %s82
    %p94 = scmp.eq.s32.totalorder %s18, 1
    %p95 = por %p93, %p94
    %p97 = scmp.ne.s32.totalorder %s82, %s96
    %p98 = scmp.eq.s32.totalorder %s18, 0
    %p99 = por %p97, %p98
    %s100 = ssub.s32 %s19, %s31
    %s101 = ssub.s32 %s20, %s27
    %s102 = sor.u32 %s100, %s101
    %p103 = scmp.eq.s32.totalorder %s102, 0
    %s105 = sadd.s32 %s104, 1
    %s106 = scalar_select %p103, %s104, %s105
    %p109 = pneg %p103
    %p110 = scmp.eq.s32.totalorder %s12, 1
    %p111 = por %p109, %p110
    %p112 = scmp.ne.s32.totalorder %s104, %s107
    %p113 = scmp.eq.s32.totalorder %s12, 0
    %p114 = por %p112, %p113
    %p115 = scmp.ne.s32.totalorder %s104, %s107
    %p116 = scmp.eq.s32.totalorder %s17, 1
    %p117 = por %p115, %p116
    %p118 = scmp.ne.s32.totalorder %s107, %s108
    %p119 = scmp.eq.s32.totalorder %s17, 0
    %p120 = por %p118, %p119
    %p121 = scmp.ne.s32.totalorder %s107, %s108
    %p122 = scmp.eq.s32.totalorder %s18, 1
    %p123 = por %p121, %p122
    %p125 = scmp.ne.s32.totalorder %s108, %s124
    %p126 = scmp.eq.s32.totalorder %s18, 0
    %p127 = por %p125, %p126
    %s128 = ssub.s32 %s19, %s31
    %s129 = ssub.s32 %s20, %s27
    %s130 = sor.u32 %s128, %s129
    %p131 = scmp.eq.s32.totalorder %s130, 0
    %s133 = sadd.s32 %s132, 1
    %s134 = scalar_select %p131, %s132, %s133
    %p137 = pneg %p131
    %p138 = scmp.eq.s32.totalorder %s12, 1
    %p139 = por %p137, %p138
    %p140 = scmp.ne.s32.totalorder %s132, %s135
    %p141 = scmp.eq.s32.totalorder %s12, 0
    %p142 = por %p140, %p141
    %p143 = scmp.ne.s32.totalorder %s132, %s135
    %p144 = scmp.eq.s32.totalorder %s17, 1
    %p145 = por %p143, %p144
    %p146 = scmp.ne.s32.totalorder %s135, %s136
    %p147 = scmp.eq.s32.totalorder %s17, 0
    %p148 = por %p146, %p147
    %p149 = scmp.ne.s32.totalorder %s135, %s136
    %p150 = scmp.eq.s32.totalorder %s18, 1
    %p151 = por %p149, %p150
    %p153 = scmp.ne.s32.totalorder %s136, %s152
    %p154 = scmp.eq.s32.totalorder %s18, 0
    %p155 = por %p153, %p154
    %s156 = ssub.s32 %s19, %s31
    %s157 = ssub.s32 %s20, %s27
    %s158 = sor.u32 %s156, %s157
    %p159 = scmp.eq.s32.totalorder %s158, 0
    %s161 = sadd.s32 %s160, 1
    %s162 = scalar_select %p159, %s160, %s161
    %p165 = pneg %p159
    %p166 = scmp.eq.s32.totalorder %s12, 1
    %p167 = por %p165, %p166
    %p168 = scmp.ne.s32.totalorder %s160, %s163
    %p169 = scmp.eq.s32.totalorder %s12, 0
    %p170 = por %p168, %p169
    %p171 = scmp.ne.s32.totalorder %s160, %s163
    %p172 = scmp.eq.s32.totalorder %s17, 1
    %p173 = por %p171, %p172
    %p174 = scmp.ne.s32.totalorder %s163, %s164
    %p175 = scmp.eq.s32.totalorder %s17, 0
    %p176 = por %p174, %p175
    %p177 = scmp.ne.s32.totalorder %s163, %s164
    %p178 = scmp.eq.s32.totalorder %s18, 1
    %p179 = por %p177, %p178
    %p181 = scmp.ne.s32.totalorder %s164, %s180
    %p182 = scmp.eq.s32.totalorder %s18, 0
    %p183 = por %p181, %p182
    %p184 = scmp.le.s32.totalorder 1, %s12
    %p185 = scmp.lt.s32.totalorder %s12, 3
    %p186 = pnand %p184, %p185
    %p187 = pneg %p186
    // Predicated region
    $region9: #{conv2d_batchnorm.1} parent=5 // pred_check
      _
    $region10: #{conv2d_batchnorm.1} parent=5 // pred_check_branch
      %189 = sbr.rel (%p186) target = $region12
    $region11: #{conv2d_batchnorm.1} parent=5 // pred_region
      %s190 = ssub.s32 %s12, 1
      // Predicated region
      $region13: #{conv2d_batchnorm.1} parent=11 // pred_check
        %p191 = pneg %p71
      $region14: #{conv2d_batchnorm.1} parent=11 // pred_check_branch
        %193 = sbr.rel (%p191) target = $region16
      $region15: #{conv2d_batchnorm.1} parent=11 // pred_region
        _
      $region16: #{conv2d_batchnorm.1} parent=11 // pred_fallthru
        _
      // Predicated region
      $region17: #{conv2d_batchnorm.1} parent=11 // pred_check
        %p194 = pneg %p92
      $region18: #{conv2d_batchnorm.1} parent=11 // pred_check_branch
        %196 = sbr.rel (%p194) target = $region20
      $region19: #{conv2d_batchnorm.1} parent=11 // pred_region
        _
      $region20: #{conv2d_batchnorm.1} parent=11 // pred_fallthru
        _
    $region12: #{conv2d_batchnorm.1} parent=5 // pred_fallthru
      _
    %p197 = scmp.lt.s32.totalorder %s12, 2
    // Predicated region
    $region21: #{conv2d_batchnorm.1} parent=5 // pred_check
      %p198 = pneg %p197
    $region22: #{conv2d_batchnorm.1} parent=5 // pred_check_branch
      %200 = sbr.rel (%p198) target = $region24
    $region23: #{conv2d_batchnorm.1} parent=5 // pred_region
      // Predicated region
      $region25: #{conv2d_batchnorm.1} parent=23 // pred_check
        %p201 = pneg %p44
      $region26: #{conv2d_batchnorm.1} parent=23 // pred_check_branch
        %203 = sbr.rel (%p201) target = $region28
      $region27: #{conv2d_batchnorm.1} parent=23 // pred_region
        %p204 = scmp.lt.s32.totalorder %s19, 1
        %s205 = scalar_select %p204, %s19, 1
        %s206 = smul.addr %s205, 135
        %s207 = smul.addr %s206, 4
        %s208 = scalar_lea.vmem %s0, %s207
      $region28: #{conv2d_batchnorm.1} parent=23 // pred_fallthru
        _
    $region24: #{conv2d_batchnorm.1} parent=5 // pred_fallthru
      _
    %p209 = scmp.le.s32.totalorder 1, %s12
    %p210 = scmp.lt.s32.totalorder %s12, 3
    %p211 = pnand %p209, %p210
    %p212 = pneg %p211
    // Predicated region
    $region29: #{conv2d_batchnorm.1} parent=5 // pred_check
      _
    $region30: #{conv2d_batchnorm.1} parent=5 // pred_check_branch
      %214 = sbr.rel (%p211) target = $region32
    $region31: #{conv2d_batchnorm.1} parent=5 // pred_region
      %s215 = ssub.s32 %s12, 1
      %p216 = scmp.lt.s32.totalorder %s21, 1
      %s217 = scalar_select %p216, %s21, 1
      %s218 = smul.addr %s217, 135
      %s219 = smul.addr %s218, 4
      %s220 = scalar_lea.vmem %s0, %s219
      %p221 = pneg %p50
      %p222 = pneg %p47
      %p223 = pneg %p71
      %p224 = pneg %p68
      %p225 = pneg %p92
      %p226 = pneg %p89
      %p227 = pneg %p120
      %p228 = pneg %p117
      %s229 = smul.u32 25, %s22
      %p230 = scmp.lt.s32.totalorder %s21, 1
      %s231 = scalar_select %p230, %s21, 1
      %p232 = scmp.lt.s32.totalorder %s229, 24
      %s233 = scalar_select %p232, %s229, 24
      %s234 = smul.addr %s233, 4
      %s235 = smul.addr %s231, 100
      %s236 = sadd.s32 %s234, %s235
      %s237 = smul.addr %s236, 8
      %s238 = scalar_lea.vmem %s3, %s237
      %p239 = pneg %p148
      %p240 = pneg %p145
      %p241 = scmp.lt.s32.totalorder %s21, 1
      %s242 = scalar_select %p241, %s21, 1
      %p243 = scmp.lt.s32.totalorder %s22, 0
      %s244 = scalar_select %p243, %s22, 0
      %s245 = sadd.s32 %s244, %s242
      %s246 = scalar_lea.vmem %s4, %s245
      %p247 = pneg %p176
      %p248 = pneg %p173
      %p249 = scmp.lt.s32.totalorder %s21, 1
      %s250 = scalar_select %p249, %s21, 1
      %p251 = scmp.lt.s32.totalorder %s22, 0
      %s252 = scalar_select %p251, %s22, 0
      %s253 = sadd.s32 %s252, %s250
      %s254 = scalar_lea.vmem %s5, %s253
      %p255 = scmp.lt.s32.totalorder %s21, 1
      %s256 = scalar_select %p255, %s21, 1
      %s257 = smul.addr %s256, 135
      %s258 = smul.addr %s257, 4
      %s259 = scalar_lea.vmem %s0, %s258
      %s260 = smul.u32 25, %s22
      %p261 = scmp.lt.s32.totalorder %s21, 1
      %s262 = scalar_select %p261, %s21, 1
      %p263 = scmp.lt.s32.totalorder %s260, 24
      %s264 = scalar_select %p263, %s260, 24
      %s265 = smul.addr %s264, 4
      %s266 = smul.addr %s262, 100
      %s267 = sadd.s32 %s265, %s266
      %s268 = smul.addr %s267, 8
      %s269 = scalar_lea.vmem %s3, %s268
      %s270 = smul.u32 25, %s22
      %p271 = scmp.lt.s32.totalorder %s21, 1
      %s272 = scalar_select %p271, %s21, 1
      %p273 = scmp.lt.s32.totalorder %s22, 0
      %s274 = scalar_select %p273, %s22, 0
      %s275 = sadd.s32 %s274, %s272
      %s276 = scalar_lea.vmem %s4, %s275
      %p277 = scmp.lt.s32.totalorder %s21, 1
      %s278 = scalar_select %p277, %s21, 1
      %p279 = scmp.lt.s32.totalorder %s22, 0
      %s280 = scalar_select %p279, %s22, 0
      %s281 = sadd.s32 %s280, %s278
      %s282 = scalar_lea.vmem %s5, %s281
      %s284 = smul.u32 %s22, 25
      %s285 = smul.u32 %s284, 5
      %s286 = smul.addr %s285, 4
      %s287 = scalar_lea.vmem %s259, %s286
      %v288 = vld [vmem:[%s287] sm:$0xf]
      %v289 = vld [vmem:[%s287 + $0x4] sm:$0xf]
      %v290 = vld [vmem:[%s287 + $0x8] sm:$0xf]
      %v291 = vld [vmem:[%s287 + $0xc] sm:$0xf]
      %v292 = vld [vmem:[%s287 + $0x10] sm:$0x1]
      %v293 = vld [vmem:[%s287 + $0x14] sm:$0xf]
      %v294 = vld [vmem:[%s287 + $0x18] sm:$0xf]
      %v295 = vld [vmem:[%s287 + $0x1c] sm:$0xf]
      %v296 = vld [vmem:[%s287 + $0x20] sm:$0xf]
      %v297 = vld [vmem:[%s287 + $0x24] sm:$0x1]
      %v298 = vld [vmem:[%s287 + $0x28] sm:$0xf]
      %v299 = vld [vmem:[%s287 + $0x2c] sm:$0xf]
      %v300 = vld [vmem:[%s287 + $0x30] sm:$0xf]
      %v301 = vld [vmem:[%s287 + $0x34] sm:$0xf]
      %v302 = vld [vmem:[%s287 + $0x38] sm:$0x1]
      %v303 = vld [vmem:[%s287 + $0x3c] sm:$0xf]
      %v304 = vld [vmem:[%s287 + $0x40] sm:$0xf]
      %v305 = vld [vmem:[%s287 + $0x44] sm:$0xf]
      %v306 = vld [vmem:[%s287 + $0x48] sm:$0xf]
      %v307 = vld [vmem:[%s287 + $0x4c] sm:$0x1]
      %v308 = vld [vmem:[%s287 + $0x50] sm:$0xf]
      %v309 = vld [vmem:[%s287 + $0x54] sm:$0xf]
      %v310 = vld [vmem:[%s287 + $0x58] sm:$0xf]
      %v311 = vld [vmem:[%s287 + $0x5c] sm:$0xf]
      %v312 = vld [vmem:[%s287 + $0x60] sm:$0x1]
      %v313 = vld [vmem:[%s287 + $0x64] sm:$0xf]
      %v314 = vld [vmem:[%s287 + $0x68] sm:$0xf]
      %v315 = vld [vmem:[%s287 + $0x6c] sm:$0xf]
      %v316 = vld [vmem:[%s287 + $0x70] sm:$0xf]
      %v317 = vld [vmem:[%s287 + $0x74] sm:$0x1]
      %v318 = vld [vmem:[%s287 + $0x78] sm:$0xf]
      %v319 = vld [vmem:[%s287 + $0x7c] sm:$0xf]
      %v320 = vld [vmem:[%s287 + $0x80] sm:$0xf]
      %v321 = vld [vmem:[%s287 + $0x84] sm:$0xf]
      %v322 = vld [vmem:[%s287 + $0x88] sm:$0x1]
      %v323 = vld [vmem:[%s287 + $0x8c] sm:$0xf]
      %v324 = vld [vmem:[%s287 + $0x90] sm:$0xf]
      %v325 = vld [vmem:[%s287 + $0x94] sm:$0xf]
      %v326 = vld [vmem:[%s287 + $0x98] sm:$0xf]
      %v327 = vld [vmem:[%s287 + $0x9c] sm:$0x1]
      %v328 = vld [vmem:[%s287 + $0xa0] sm:$0xf]
      %v329 = vld [vmem:[%s287 + $0xa4] sm:$0xf]
      %v330 = vld [vmem:[%s287 + $0xa8] sm:$0xf]
      %v331 = vld [vmem:[%s287 + $0xac] sm:$0xf]
      %v332 = vld [vmem:[%s287 + $0xb0] sm:$0x1]
      %v333 = vld [vmem:[%s287 + $0xb4] sm:$0xf]
      %v334 = vld [vmem:[%s287 + $0xb8] sm:$0xf]
      %v335 = vld [vmem:[%s287 + $0xbc] sm:$0xf]
      %v336 = vld [vmem:[%s287 + $0xc0] sm:$0xf]
      %v337 = vld [vmem:[%s287 + $0xc4] sm:$0x1]
      %v338 = vld [vmem:[%s287 + $0xc8] sm:$0xf]
      %v339 = vld [vmem:[%s287 + $0xcc] sm:$0xf]
      %v340 = vld [vmem:[%s287 + $0xd0] sm:$0xf]
      %v341 = vld [vmem:[%s287 + $0xd4] sm:$0xf]
      %v342 = vld [vmem:[%s287 + $0xd8] sm:$0x1]
      %v343 = vld [vmem:[%s287 + $0xdc] sm:$0xf]
      %v344 = vld [vmem:[%s287 + $0xe0] sm:$0xf]
      %v345 = vld [vmem:[%s287 + $0xe4] sm:$0xf]
      %v346 = vld [vmem:[%s287 + $0xe8] sm:$0xf]
      %v347 = vld [vmem:[%s287 + $0xec] sm:$0x1]
      %v348 = vld [vmem:[%s287 + $0xf0] sm:$0xf]
      %v349 = vld [vmem:[%s287 + $0xf4] sm:$0xf]
      %v350 = vld [vmem:[%s287 + $0xf8] sm:$0xf]
      %v351 = vld [vmem:[%s287 + $0xfc] sm:$0xf]
      %v352 = vld [vmem:[%s287 + $0x100] sm:$0x1]
      %v353 = vld [vmem:[%s287 + $0x104] sm:$0xf]
      %v354 = vld [vmem:[%s287 + $0x108] sm:$0xf]
      %v355 = vld [vmem:[%s287 + $0x10c] sm:$0xf]
      %v356 = vld [vmem:[%s287 + $0x110] sm:$0xf]
      %v357 = vld [vmem:[%s287 + $0x114] sm:$0x1]
      %v358 = vld [vmem:[%s287 + $0x118] sm:$0xf]
      %v359 = vld [vmem:[%s287 + $0x11c] sm:$0xf]
      %v360 = vld [vmem:[%s287 + $0x120] sm:$0xf]
      %v361 = vld [vmem:[%s287 + $0x124] sm:$0xf]
      %v362 = vld [vmem:[%s287 + $0x128] sm:$0x1]
      %v363 = vld [vmem:[%s287 + $0x12c] sm:$0xf]
      %v364 = vld [vmem:[%s287 + $0x130] sm:$0xf]
      %v365 = vld [vmem:[%s287 + $0x134] sm:$0xf]
      %v366 = vld [vmem:[%s287 + $0x138] sm:$0xf]
      %v367 = vld [vmem:[%s287 + $0x13c] sm:$0x1]
      %v368 = vld [vmem:[%s287 + $0x140] sm:$0xf]
      %v369 = vld [vmem:[%s287 + $0x144] sm:$0xf]
      %v370 = vld [vmem:[%s287 + $0x148] sm:$0xf]
      %v371 = vld [vmem:[%s287 + $0x14c] sm:$0xf]
      %v372 = vld [vmem:[%s287 + $0x150] sm:$0x1]
      %v373 = vld [vmem:[%s287 + $0x154] sm:$0xf]
      %v374 = vld [vmem:[%s287 + $0x158] sm:$0xf]
      %v375 = vld [vmem:[%s287 + $0x15c] sm:$0xf]
      %v376 = vld [vmem:[%s287 + $0x160] sm:$0xf]
      %v377 = vld [vmem:[%s287 + $0x164] sm:$0x1]
      %v378 = vld [vmem:[%s287 + $0x168] sm:$0xf]
      %v379 = vld [vmem:[%s287 + $0x16c] sm:$0xf]
      %v380 = vld [vmem:[%s287 + $0x170] sm:$0xf]
      %v381 = vld [vmem:[%s287 + $0x174] sm:$0xf]
      %v382 = vld [vmem:[%s287 + $0x178] sm:$0x1]
      %v383 = vld [vmem:[%s287 + $0x17c] sm:$0xf]
      %v384 = vld [vmem:[%s287 + $0x180] sm:$0xf]
      %v385 = vld [vmem:[%s287 + $0x184] sm:$0xf]
      %v386 = vld [vmem:[%s287 + $0x188] sm:$0xf]
      %v387 = vld [vmem:[%s287 + $0x18c] sm:$0x1]
      %v388 = vld [vmem:[%s287 + $0x190] sm:$0xf]
      %v389 = vld [vmem:[%s287 + $0x194] sm:$0xf]
      %v390 = vld [vmem:[%s287 + $0x198] sm:$0xf]
      %v391 = vld [vmem:[%s287 + $0x19c] sm:$0xf]
      %v392 = vld [vmem:[%s287 + $0x1a0] sm:$0x1]
      %v393 = vld [vmem:[%s287 + $0x1a4] sm:$0xf]
      %v394 = vld [vmem:[%s287 + $0x1a8] sm:$0xf]
      %v395 = vld [vmem:[%s287 + $0x1ac] sm:$0xf]
      %v396 = vld [vmem:[%s287 + $0x1b0] sm:$0xf]
      %v397 = vld [vmem:[%s287 + $0x1b4] sm:$0x1]
      %v398 = vld [vmem:[%s287 + $0x1b8] sm:$0xf]
      %v399 = vld [vmem:[%s287 + $0x1bc] sm:$0xf]
      %v400 = vld [vmem:[%s287 + $0x1c0] sm:$0xf]
      %v401 = vld [vmem:[%s287 + $0x1c4] sm:$0xf]
      %v402 = vld [vmem:[%s287 + $0x1c8] sm:$0x1]
      %v403 = vld [vmem:[%s287 + $0x1cc] sm:$0xf]
      %v404 = vld [vmem:[%s287 + $0x1d0] sm:$0xf]
      %v405 = vld [vmem:[%s287 + $0x1d4] sm:$0xf]
      %v406 = vld [vmem:[%s287 + $0x1d8] sm:$0xf]
      %v407 = vld [vmem:[%s287 + $0x1dc] sm:$0x1]
      %v408 = vld [vmem:[%s287 + $0x1e0] sm:$0xf]
      %v409 = vld [vmem:[%s287 + $0x1e4] sm:$0xf]
      %v410 = vld [vmem:[%s287 + $0x1e8] sm:$0xf]
      %v411 = vld [vmem:[%s287 + $0x1ec] sm:$0xf]
      %v412 = vld [vmem:[%s287 + $0x1f0] sm:$0x1]
      %vm413 = vsmask.f32 3328
      %vm414 = vsmask.f32 7440
      %vm415 = vmor %vm413, %vm414
      %v417 = vshrl.u32 %v288, 16
      %v419 = vrot.slane %v417, 4
      %v420 = vshll.u32 %v288, 16
      %v422 = vrot.slane %v420, 5
      %v423 = vor.u32 %v419, %v422
      %v424 = vrot.slane %v423, 4
      %v426 = vshll.u32 %v289, 16
      %v428 = vrot.slane %v426, 5
      %v429 = vsel %vm415, %v424, %v428
      %v430 = vshrl.u32 %v289, 16
      %v432 = vrot.slane %v430, 4
      %v433 = vor.u32 %v432, %v428
      %v434 = vrot.slane %v433, 4
      %v436 = vshll.u32 %v290, 16
      %v438 = vrot.slane %v436, 5
      %v439 = vsel %vm415, %v434, %v438
      %v440 = vshrl.u32 %v290, 16
      %v442 = vrot.slane %v440, 4
      %v443 = vor.u32 %v442, %v438
      %v444 = vrot.slane %v443, 4
      %v446 = vshll.u32 %v291, 16
      %v448 = vrot.slane %v446, 5
      %v449 = vsel %vm415, %v444, %v448
      %v450 = vshrl.u32 %v291, 16
      %v452 = vrot.slane %v450, 4
      %v453 = vor.u32 %v452, %v448
      %v454 = vrot.slane %v453, 4
      %v456 = vshll.u32 %v292, 16
      %v458 = vrot.slane %v456, 5
      %v459 = vsel %vm415, %v454, %v458
      %v461 = vshrl.u32 %v293, 16
      %v463 = vrot.slane %v461, 4
      %v464 = vshll.u32 %v293, 16
      %v466 = vrot.slane %v464, 5
      %v467 = vor.u32 %v463, %v466
      %v468 = vrot.slane %v467, 4
      %v470 = vshll.u32 %v294, 16
      %v472 = vrot.slane %v470, 5
      %v473 = vsel %vm415, %v468, %v472
      %v474 = vshrl.u32 %v294, 16
      %v476 = vrot.slane %v474, 4
      %v477 = vor.u32 %v476, %v472
      %v478 = vrot.slane %v477, 4
      %v480 = vshll.u32 %v295, 16
      %v482 = vrot.slane %v480, 5
      %v483 = vsel %vm415, %v478, %v482
      %v484 = vshrl.u32 %v295, 16
      %v486 = vrot.slane %v484, 4
      %v487 = vor.u32 %v486, %v482
      %v488 = vrot.slane %v487, 4
      %v490 = vshll.u32 %v296, 16
      %v492 = vrot.slane %v490, 5
      %v493 = vsel %vm415, %v488, %v492
      %v494 = vshrl.u32 %v296, 16
      %v496 = vrot.slane %v494, 4
      %v497 = vor.u32 %v496, %v492
      %v498 = vrot.slane %v497, 4
      %v500 = vshll.u32 %v297, 16
      %v502 = vrot.slane %v500, 5
      %v503 = vsel %vm415, %v498, %v502
      %v505 = vshrl.u32 %v298, 16
      %v507 = vrot.slane %v505, 4
      %v508 = vshll.u32 %v298, 16
      %v510 = vrot.slane %v508, 5
      %v511 = vor.u32 %v507, %v510
      %v512 = vrot.slane %v511, 4
      %v514 = vshll.u32 %v299, 16
      %v516 = vrot.slane %v514, 5
      %v517 = vsel %vm415, %v512, %v516
      %v518 = vshrl.u32 %v299, 16
      %v520 = vrot.slane %v518, 4
      %v521 = vor.u32 %v520, %v516
      %v522 = vrot.slane %v521, 4
      %v524 = vshll.u32 %v300, 16
      %v526 = vrot.slane %v524, 5
      %v527 = vsel %vm415, %v522, %v526
      %v528 = vshrl.u32 %v300, 16
      %v530 = vrot.slane %v528, 4
      %v531 = vor.u32 %v530, %v526
      %v532 = vrot.slane %v531, 4
      %v534 = vshll.u32 %v301, 16
      %v536 = vrot.slane %v534, 5
      %v537 = vsel %vm415, %v532, %v536
      %v538 = vshrl.u32 %v301, 16
      %v540 = vrot.slane %v538, 4
      %v541 = vor.u32 %v540, %v536
      %v542 = vrot.slane %v541, 4
      %v544 = vshll.u32 %v302, 16
      %v546 = vrot.slane %v544, 5
      %v547 = vsel %vm415, %v542, %v546
      %v549 = vshrl.u32 %v303, 16
      %v551 = vrot.slane %v549, 4
      %v552 = vshll.u32 %v303, 16
      %v554 = vrot.slane %v552, 5
      %v555 = vor.u32 %v551, %v554
      %v556 = vrot.slane %v555, 4
      %v558 = vshll.u32 %v304, 16
      %v560 = vrot.slane %v558, 5
      %v561 = vsel %vm415, %v556, %v560
      %v562 = vshrl.u32 %v304, 16
      %v564 = vrot.slane %v562, 4
      %v565 = vor.u32 %v564, %v560
      %v566 = vrot.slane %v565, 4
      %v568 = vshll.u32 %v305, 16
      %v570 = vrot.slane %v568, 5
      %v571 = vsel %vm415, %v566, %v570
      %v572 = vshrl.u32 %v305, 16
      %v574 = vrot.slane %v572, 4
      %v575 = vor.u32 %v574, %v570
      %v576 = vrot.slane %v575, 4
      %v578 = vshll.u32 %v306, 16
      %v580 = vrot.slane %v578, 5
      %v581 = vsel %vm415, %v576, %v580
      %v582 = vshrl.u32 %v306, 16
      %v584 = vrot.slane %v582, 4
      %v585 = vor.u32 %v584, %v580
      %v586 = vrot.slane %v585, 4
      %v588 = vshll.u32 %v307, 16
      %v590 = vrot.slane %v588, 5
      %v591 = vsel %vm415, %v586, %v590
      %v593 = vshrl.u32 %v308, 16
      %v595 = vrot.slane %v593, 4
      %v596 = vshll.u32 %v308, 16
      %v598 = vrot.slane %v596, 5
      %v599 = vor.u32 %v595, %v598
      %v600 = vrot.slane %v599, 4
      %v602 = vshll.u32 %v309, 16
      %v604 = vrot.slane %v602, 5
      %v605 = vsel %vm415, %v600, %v604
      %v606 = vshrl.u32 %v309, 16
      %v608 = vrot.slane %v606, 4
      %v609 = vor.u32 %v608, %v604
      %v610 = vrot.slane %v609, 4
      %v612 = vshll.u32 %v310, 16
      %v614 = vrot.slane %v612, 5
      %v615 = vsel %vm415, %v610, %v614
      %v616 = vshrl.u32 %v310, 16
      %v618 = vrot.slane %v616, 4
      %v619 = vor.u32 %v618, %v614
      %v620 = vrot.slane %v619, 4
      %v622 = vshll.u32 %v311, 16
      %v624 = vrot.slane %v622, 5
      %v625 = vsel %vm415, %v620, %v624
      %v626 = vshrl.u32 %v311, 16
      %v628 = vrot.slane %v626, 4
      %v629 = vor.u32 %v628, %v624
      %v630 = vrot.slane %v629, 4
      %v632 = vshll.u32 %v312, 16
      %v634 = vrot.slane %v632, 5
      %v635 = vsel %vm415, %v630, %v634
      %v637 = vshrl.u32 %v313, 16
      %v639 = vrot.slane %v637, 4
      %v640 = vshll.u32 %v313, 16
      %v642 = vrot.slane %v640, 5
      %v643 = vor.u32 %v639, %v642
      %v644 = vrot.slane %v643, 4
      %v646 = vshll.u32 %v314, 16
      %v648 = vrot.slane %v646, 5
      %v649 = vsel %vm415, %v644, %v648
      %v650 = vshrl.u32 %v314, 16
      %v652 = vrot.slane %v650, 4
      %v653 = vor.u32 %v652, %v648
      %v654 = vrot.slane %v653, 4
      %v656 = vshll.u32 %v315, 16
      %v658 = vrot.slane %v656, 5
      %v659 = vsel %vm415, %v654, %v658
      %v660 = vshrl.u32 %v315, 16
      %v662 = vrot.slane %v660, 4
      %v663 = vor.u32 %v662, %v658
      %v664 = vrot.slane %v663, 4
      %v666 = vshll.u32 %v316, 16
      %v668 = vrot.slane %v666, 5
      %v669 = vsel %vm415, %v664, %v668
      %v670 = vshrl.u32 %v316, 16
      %v672 = vrot.slane %v670, 4
      %v673 = vor.u32 %v672, %v668
      %v674 = vrot.slane %v673, 4
      %v676 = vshll.u32 %v317, 16
      %v678 = vrot.slane %v676, 5
      %v679 = vsel %vm415, %v674, %v678
      %v681 = vshrl.u32 %v318, 16
      %v683 = vrot.slane %v681, 4
      %v684 = vshll.u32 %v318, 16
      %v686 = vrot.slane %v684, 5
      %v687 = vor.u32 %v683, %v686
      %v688 = vrot.slane %v687, 4
      %v690 = vshll.u32 %v319, 16
      %v692 = vrot.slane %v690, 5
      %v693 = vsel %vm415, %v688, %v692
      %v694 = vshrl.u32 %v319, 16
      %v696 = vrot.slane %v694, 4
      %v697 = vor.u32 %v696, %v692
      %v698 = vrot.slane %v697, 4
      %v700 = vshll.u32 %v320, 16
      %v702 = vrot.slane %v700, 5
      %v703 = vsel %vm415, %v698, %v702
      %v704 = vshrl.u32 %v320, 16
      %v706 = vrot.slane %v704, 4
      %v707 = vor.u32 %v706, %v702
      %v708 = vrot.slane %v707, 4
      %v710 = vshll.u32 %v321, 16
      %v712 = vrot.slane %v710, 5
      %v713 = vsel %vm415, %v708, %v712
      %v714 = vshrl.u32 %v321, 16
      %v716 = vrot.slane %v714, 4
      %v717 = vor.u32 %v716, %v712
      %v718 = vrot.slane %v717, 4
      %v720 = vshll.u32 %v322, 16
      %v722 = vrot.slane %v720, 5
      %v723 = vsel %vm415, %v718, %v722
      %v725 = vshrl.u32 %v323, 16
      %v727 = vrot.slane %v725, 4
      %v728 = vshll.u32 %v323, 16
      %v730 = vrot.slane %v728, 5
      %v731 = vor.u32 %v727, %v730
      %v732 = vrot.slane %v731, 4
      %v734 = vshll.u32 %v324, 16
      %v736 = vrot.slane %v734, 5
      %v737 = vsel %vm415, %v732, %v736
      %v738 = vshrl.u32 %v324, 16
      %v740 = vrot.slane %v738, 4
      %v741 = vor.u32 %v740, %v736
      %v742 = vrot.slane %v741, 4
      %v744 = vshll.u32 %v325, 16
      %v746 = vrot.slane %v744, 5
      %v747 = vsel %vm415, %v742, %v746
      %v748 = vshrl.u32 %v325, 16
      %v750 = vrot.slane %v748, 4
      %v751 = vor.u32 %v750, %v746
      %v752 = vrot.slane %v751, 4
      %v754 = vshll.u32 %v326, 16
      %v756 = vrot.slane %v754, 5
      %v757 = vsel %vm415, %v752, %v756
      %v758 = vshrl.u32 %v326, 16
      %v760 = vrot.slane %v758, 4
      %v761 = vor.u32 %v760, %v756
      %v762 = vrot.slane %v761, 4
      %v764 = vshll.u32 %v327, 16
      %v766 = vrot.slane %v764, 5
      %v767 = vsel %vm415, %v762, %v766
      %v769 = vshrl.u32 %v328, 16
      %v771 = vrot.slane %v769, 4
      %v772 = vshll.u32 %v328, 16
      %v774 = vrot.slane %v772, 5
      %v775 = vor.u32 %v771, %v774
      %v776 = vrot.slane %v775, 4
      %v778 = vshll.u32 %v329, 16
      %v780 = vrot.slane %v778, 5
      %v781 = vsel %vm415, %v776, %v780
      %v782 = vshrl.u32 %v329, 16
      %v784 = vrot.slane %v782, 4
      %v785 = vor.u32 %v784, %v780
      %v786 = vrot.slane %v785, 4
      %v788 = vshll.u32 %v330, 16
      %v790 = vrot.slane %v788, 5
      %v791 = vsel %vm415, %v786, %v790
      %v792 = vshrl.u32 %v330, 16
      %v794 = vrot.slane %v792, 4
      %v795 = vor.u32 %v794, %v790
      %v796 = vrot.slane %v795, 4
      %v798 = vshll.u32 %v331, 16
      %v800 = vrot.slane %v798, 5
      %v801 = vsel %vm415, %v796, %v800
      %v802 = vshrl.u32 %v331, 16
      %v804 = vrot.slane %v802, 4
      %v805 = vor.u32 %v804, %v800
      %v806 = vrot.slane %v805, 4
      %v808 = vshll.u32 %v332, 16
      %v810 = vrot.slane %v808, 5
      %v811 = vsel %vm415, %v806, %v810
      %v813 = vshrl.u32 %v333, 16
      %v815 = vrot.slane %v813, 4
      %v816 = vshll.u32 %v333, 16
      %v818 = vrot.slane %v816, 5
      %v819 = vor.u32 %v815, %v818
      %v820 = vrot.slane %v819, 4
      %v822 = vshll.u32 %v334, 16
      %v824 = vrot.slane %v822, 5
      %v825 = vsel %vm415, %v820, %v824
      %v826 = vshrl.u32 %v334, 16
      %v828 = vrot.slane %v826, 4
      %v829 = vor.u32 %v828, %v824
      %v830 = vrot.slane %v829, 4
      %v832 = vshll.u32 %v335, 16
      %v834 = vrot.slane %v832, 5
      %v835 = vsel %vm415, %v830, %v834
      %v836 = vshrl.u32 %v335, 16
      %v838 = vrot.slane %v836, 4
      %v839 = vor.u32 %v838, %v834
      %v840 = vrot.slane %v839, 4
      %v842 = vshll.u32 %v336, 16
      %v844 = vrot.slane %v842, 5
      %v845 = vsel %vm415, %v840, %v844
      %v846 = vshrl.u32 %v336, 16
      %v848 = vrot.slane %v846, 4
      %v849 = vor.u32 %v848, %v844
      %v850 = vrot.slane %v849, 4
      %v852 = vshll.u32 %v337, 16
      %v854 = vrot.slane %v852, 5
      %v855 = vsel %vm415, %v850, %v854
      %v857 = vshrl.u32 %v338, 16
      %v859 = vrot.slane %v857, 4
      %v860 = vshll.u32 %v338, 16
      %v862 = vrot.slane %v860, 5
      %v863 = vor.u32 %v859, %v862
      %v864 = vrot.slane %v863, 4
      %v866 = vshll.u32 %v339, 16
      %v868 = vrot.slane %v866, 5
      %v869 = vsel %vm415, %v864, %v868
      %v870 = vshrl.u32 %v339, 16
      %v872 = vrot.slane %v870, 4
      %v873 = vor.u32 %v872, %v868
      %v874 = vrot.slane %v873, 4
      %v876 = vshll.u32 %v340, 16
      %v878 = vrot.slane %v876, 5
      %v879 = vsel %vm415, %v874, %v878
      %v880 = vshrl.u32 %v340, 16
      %v882 = vrot.slane %v880, 4
      %v883 = vor.u32 %v882, %v878
      %v884 = vrot.slane %v883, 4
      %v886 = vshll.u32 %v341, 16
      %v888 = vrot.slane %v886, 5
      %v889 = vsel %vm415, %v884, %v888
      %v890 = vshrl.u32 %v341, 16
      %v892 = vrot.slane %v890, 4
      %v893 = vor.u32 %v892, %v888
      %v894 = vrot.slane %v893, 4
      %v896 = vshll.u32 %v342, 16
      %v898 = vrot.slane %v896, 5
      %v899 = vsel %vm415, %v894, %v898
      %v901 = vshrl.u32 %v343, 16
      %v903 = vrot.slane %v901, 4
      %v904 = vshll.u32 %v343, 16
      %v906 = vrot.slane %v904, 5
      %v907 = vor.u32 %v903, %v906
      %v908 = vrot.slane %v907, 4
      %v910 = vshll.u32 %v344, 16
      %v912 = vrot.slane %v910, 5
      %v913 = vsel %vm415, %v908, %v912
      %v914 = vshrl.u32 %v344, 16
      %v916 = vrot.slane %v914, 4
      %v917 = vor.u32 %v916, %v912
      %v918 = vrot.slane %v917, 4
      %v920 = vshll.u32 %v345, 16
      %v922 = vrot.slane %v920, 5
      %v923 = vsel %vm415, %v918, %v922
      %v924 = vshrl.u32 %v345, 16
      %v926 = vrot.slane %v924, 4
      %v927 = vor.u32 %v926, %v922
      %v928 = vrot.slane %v927, 4
      %v930 = vshll.u32 %v346, 16
      %v932 = vrot.slane %v930, 5
      %v933 = vsel %vm415, %v928, %v932
      %v934 = vshrl.u32 %v346, 16
      %v936 = vrot.slane %v934, 4
      %v937 = vor.u32 %v936, %v932
      %v938 = vrot.slane %v937, 4
      %v940 = vshll.u32 %v347, 16
      %v942 = vrot.slane %v940, 5
      %v943 = vsel %vm415, %v938, %v942
      %v945 = vshrl.u32 %v348, 16
      %v947 = vrot.slane %v945, 4
      %v948 = vshll.u32 %v348, 16
      %v950 = vrot.slane %v948, 5
      %v951 = vor.u32 %v947, %v950
      %v952 = vrot.slane %v951, 4
      %v954 = vshll.u32 %v349, 16
      %v956 = vrot.slane %v954, 5
      %v957 = vsel %vm415, %v952, %v956
      %v958 = vshrl.u32 %v349, 16
      %v960 = vrot.slane %v958, 4
      %v961 = vor.u32 %v960, %v956
      %v962 = vrot.slane %v961, 4
      %v964 = vshll.u32 %v350, 16
      %v966 = vrot.slane %v964, 5
      %v967 = vsel %vm415, %v962, %v966
      %v968 = vshrl.u32 %v350, 16
      %v970 = vrot.slane %v968, 4
      %v971 = vor.u32 %v970, %v966
      %v972 = vrot.slane %v971, 4
      %v974 = vshll.u32 %v351, 16
      %v976 = vrot.slane %v974, 5
      %v977 = vsel %vm415, %v972, %v976
      %v978 = vshrl.u32 %v351, 16
      %v980 = vrot.slane %v978, 4
      %v981 = vor.u32 %v980, %v976
      %v982 = vrot.slane %v981, 4
      %v984 = vshll.u32 %v352, 16
      %v986 = vrot.slane %v984, 5
      %v987 = vsel %vm415, %v982, %v986
      %v989 = vshrl.u32 %v353, 16
      %v991 = vrot.slane %v989, 4
      %v992 = vshll.u32 %v353, 16
      %v994 = vrot.slane %v992, 5
      %v995 = vor.u32 %v991, %v994
      %v996 = vrot.slane %v995, 4
      %v998 = vshll.u32 %v354, 16
      %v1000 = vrot.slane %v998, 5
      %v1001 = vsel %vm415, %v996, %v1000
      %v1002 = vshrl.u32 %v354, 16
      %v1004 = vrot.slane %v1002, 4
      %v1005 = vor.u32 %v1004, %v1000
      %v1006 = vrot.slane %v1005, 4
      %v1008 = vshll.u32 %v355, 16
      %v1010 = vrot.slane %v1008, 5
      %v1011 = vsel %vm415, %v1006, %v1010
      %v1012 = vshrl.u32 %v355, 16
      %v1014 = vrot.slane %v1012, 4
      %v1015 = vor.u32 %v1014, %v1010
      %v1016 = vrot.slane %v1015, 4
      %v1018 = vshll.u32 %v356, 16
      %v1020 = vrot.slane %v1018, 5
      %v1021 = vsel %vm415, %v1016, %v1020
      %v1022 = vshrl.u32 %v356, 16
      %v1024 = vrot.slane %v1022, 4
      %v1025 = vor.u32 %v1024, %v1020
      %v1026 = vrot.slane %v1025, 4
      %v1028 = vshll.u32 %v357, 16
      %v1030 = vrot.slane %v1028, 5
      %v1031 = vsel %vm415, %v1026, %v1030
      %v1033 = vshrl.u32 %v358, 16
      %v1035 = vrot.slane %v1033, 4
      %v1036 = vshll.u32 %v358, 16
      %v1038 = vrot.slane %v1036, 5
      %v1039 = vor.u32 %v1035, %v1038
      %v1040 = vrot.slane %v1039, 4
      %v1042 = vshll.u32 %v359, 16
      %v1044 = vrot.slane %v1042, 5
      %v1045 = vsel %vm415, %v1040, %v1044
      %v1046 = vshrl.u32 %v359, 16
      %v1048 = vrot.slane %v1046, 4
      %v1049 = vor.u32 %v1048, %v1044
      %v1050 = vrot.slane %v1049, 4
      %v1052 = vshll.u32 %v360, 16
      %v1054 = vrot.slane %v1052, 5
      %v1055 = vsel %vm415, %v1050, %v1054
      %v1056 = vshrl.u32 %v360, 16
      %v1058 = vrot.slane %v1056, 4
      %v1059 = vor.u32 %v1058, %v1054
      %v1060 = vrot.slane %v1059, 4
      %v1062 = vshll.u32 %v361, 16
      %v1064 = vrot.slane %v1062, 5
      %v1065 = vsel %vm415, %v1060, %v1064
      %v1066 = vshrl.u32 %v361, 16
      %v1068 = vrot.slane %v1066, 4
      %v1069 = vor.u32 %v1068, %v1064
      %v1070 = vrot.slane %v1069, 4
      %v1072 = vshll.u32 %v362, 16
      %v1074 = vrot.slane %v1072, 5
      %v1075 = vsel %vm415, %v1070, %v1074
      %v1077 = vshrl.u32 %v363, 16
      %v1079 = vrot.slane %v1077, 4
      %v1080 = vshll.u32 %v363, 16
      %v1082 = vrot.slane %v1080, 5
      %v1083 = vor.u32 %v1079, %v1082
      %v1084 = vrot.slane %v1083, 4
      %v1086 = vshll.u32 %v364, 16
      %v1088 = vrot.slane %v1086, 5
      %v1089 = vsel %vm415, %v1084, %v1088
      %v1090 = vshrl.u32 %v364, 16
      %v1092 = vrot.slane %v1090, 4
      %v1093 = vor.u32 %v1092, %v1088
      %v1094 = vrot.slane %v1093, 4
      %v1096 = vshll.u32 %v365, 16
      %v1098 = vrot.slane %v1096, 5
      %v1099 = vsel %vm415, %v1094, %v1098
      %v1100 = vshrl.u32 %v365, 16
      %v1102 = vrot.slane %v1100, 4
      %v1103 = vor.u32 %v1102, %v1098
      %v1104 = vrot.slane %v1103, 4
      %v1106 = vshll.u32 %v366, 16
      %v1108 = vrot.slane %v1106, 5
      %v1109 = vsel %vm415, %v1104, %v1108
      %v1110 = vshrl.u32 %v366, 16
      %v1112 = vrot.slane %v1110, 4
      %v1113 = vor.u32 %v1112, %v1108
      %v1114 = vrot.slane %v1113, 4
      %v1116 = vshll.u32 %v367, 16
      %v1118 = vrot.slane %v1116, 5
      %v1119 = vsel %vm415, %v1114, %v1118
      %v1121 = vshrl.u32 %v368, 16
      %v1123 = vrot.slane %v1121, 4
      %v1124 = vshll.u32 %v368, 16
      %v1126 = vrot.slane %v1124, 5
      %v1127 = vor.u32 %v1123, %v1126
      %v1128 = vrot.slane %v1127, 4
      %v1130 = vshll.u32 %v369, 16
      %v1132 = vrot.slane %v1130, 5
      %v1133 = vsel %vm415, %v1128, %v1132
      %v1134 = vshrl.u32 %v369, 16
      %v1136 = vrot.slane %v1134, 4
      %v1137 = vor.u32 %v1136, %v1132
      %v1138 = vrot.slane %v1137, 4
      %v1140 = vshll.u32 %v370, 16
      %v1142 = vrot.slane %v1140, 5
      %v1143 = vsel %vm415, %v1138, %v1142
      %v1144 = vshrl.u32 %v370, 16
      %v1146 = vrot.slane %v1144, 4
      %v1147 = vor.u32 %v1146, %v1142
      %v1148 = vrot.slane %v1147, 4
      %v1150 = vshll.u32 %v371, 16
      %v1152 = vrot.slane %v1150, 5
      %v1153 = vsel %vm415, %v1148, %v1152
      %v1154 = vshrl.u32 %v371, 16
      %v1156 = vrot.slane %v1154, 4
      %v1157 = vor.u32 %v1156, %v1152
      %v1158 = vrot.slane %v1157, 4
      %v1160 = vshll.u32 %v372, 16
      %v1162 = vrot.slane %v1160, 5
      %v1163 = vsel %vm415, %v1158, %v1162
      %v1165 = vshrl.u32 %v373, 16
      %v1167 = vrot.slane %v1165, 4
      %v1168 = vshll.u32 %v373, 16
      %v1170 = vrot.slane %v1168, 5
      %v1171 = vor.u32 %v1167, %v1170
      %v1172 = vrot.slane %v1171, 4
      %v1174 = vshll.u32 %v374, 16
      %v1176 = vrot.slane %v1174, 5
      %v1177 = vsel %vm415, %v1172, %v1176
      %v1178 = vshrl.u32 %v374, 16
      %v1180 = vrot.slane %v1178, 4
      %v1181 = vor.u32 %v1180, %v1176
      %v1182 = vrot.slane %v1181, 4
      %v1184 = vshll.u32 %v375, 16
      %v1186 = vrot.slane %v1184, 5
      %v1187 = vsel %vm415, %v1182, %v1186
      %v1188 = vshrl.u32 %v375, 16
      %v1190 = vrot.slane %v1188, 4
      %v1191 = vor.u32 %v1190, %v1186
      %v1192 = vrot.slane %v1191, 4
      %v1194 = vshll.u32 %v376, 16
      %v1196 = vrot.slane %v1194, 5
      %v1197 = vsel %vm415, %v1192, %v1196
      %v1198 = vshrl.u32 %v376, 16
      %v1200 = vrot.slane %v1198, 4
      %v1201 = vor.u32 %v1200, %v1196
      %v1202 = vrot.slane %v1201, 4
      %v1204 = vshll.u32 %v377, 16
      %v1206 = vrot.slane %v1204, 5
      %v1207 = vsel %vm415, %v1202, %v1206
      %v1209 = vshrl.u32 %v378, 16
      %v1211 = vrot.slane %v1209, 4
      %v1212 = vshll.u32 %v378, 16
      %v1214 = vrot.slane %v1212, 5
      %v1215 = vor.u32 %v1211, %v1214
      %v1216 = vrot.slane %v1215, 4
      %v1218 = vshll.u32 %v379, 16
      %v1220 = vrot.slane %v1218, 5
      %v1221 = vsel %vm415, %v1216, %v1220
      %v1222 = vshrl.u32 %v379, 16
      %v1224 = vrot.slane %v1222, 4
      %v1225 = vor.u32 %v1224, %v1220
      %v1226 = vrot.slane %v1225, 4
      %v1228 = vshll.u32 %v380, 16
      %v1230 = vrot.slane %v1228, 5
      %v1231 = vsel %vm415, %v1226, %v1230
      %v1232 = vshrl.u32 %v380, 16
      %v1234 = vrot.slane %v1232, 4
      %v1235 = vor.u32 %v1234, %v1230
      %v1236 = vrot.slane %v1235, 4
      %v1238 = vshll.u32 %v381, 16
      %v1240 = vrot.slane %v1238, 5
      %v1241 = vsel %vm415, %v1236, %v1240
      %v1242 = vshrl.u32 %v381, 16
      %v1244 = vrot.slane %v1242, 4
      %v1245 = vor.u32 %v1244, %v1240
      %v1246 = vrot.slane %v1245, 4
      %v1248 = vshll.u32 %v382, 16
      %v1250 = vrot.slane %v1248, 5
      %v1251 = vsel %vm415, %v1246, %v1250
      %v1253 = vshrl.u32 %v383, 16
      %v1255 = vrot.slane %v1253, 4
      %v1256 = vshll.u32 %v383, 16
      %v1258 = vrot.slane %v1256, 5
      %v1259 = vor.u32 %v1255, %v1258
      %v1260 = vrot.slane %v1259, 4
      %v1262 = vshll.u32 %v384, 16
      %v1264 = vrot.slane %v1262, 5
      %v1265 = vsel %vm415, %v1260, %v1264
      %v1266 = vshrl.u32 %v384, 16
      %v1268 = vrot.slane %v1266, 4
      %v1269 = vor.u32 %v1268, %v1264
      %v1270 = vrot.slane %v1269, 4
      %v1272 = vshll.u32 %v385, 16
      %v1274 = vrot.slane %v1272, 5
      %v1275 = vsel %vm415, %v1270, %v1274
      %v1276 = vshrl.u32 %v385, 16
      %v1278 = vrot.slane %v1276, 4
      %v1279 = vor.u32 %v1278, %v1274
      %v1280 = vrot.slane %v1279, 4
      %v1282 = vshll.u32 %v386, 16
      %v1284 = vrot.slane %v1282, 5
      %v1285 = vsel %vm415, %v1280, %v1284
      %v1286 = vshrl.u32 %v386, 16
      %v1288 = vrot.slane %v1286, 4
      %v1289 = vor.u32 %v1288, %v1284
      %v1290 = vrot.slane %v1289, 4
      %v1292 = vshll.u32 %v387, 16
      %v1294 = vrot.slane %v1292, 5
      %v1295 = vsel %vm415, %v1290, %v1294
      %v1297 = vshrl.u32 %v388, 16
      %v1299 = vrot.slane %v1297, 4
      %v1300 = vshll.u32 %v388, 16
      %v1302 = vrot.slane %v1300, 5
      %v1303 = vor.u32 %v1299, %v1302
      %v1304 = vrot.slane %v1303, 4
      %v1306 = vshll.u32 %v389, 16
      %v1308 = vrot.slane %v1306, 5
      %v1309 = vsel %vm415, %v1304, %v1308
      %v1310 = vshrl.u32 %v389, 16
      %v1312 = vrot.slane %v1310, 4
      %v1313 = vor.u32 %v1312, %v1308
      %v1314 = vrot.slane %v1313, 4
      %v1316 = vshll.u32 %v390, 16
      %v1318 = vrot.slane %v1316, 5
      %v1319 = vsel %vm415, %v1314, %v1318
      %v1320 = vshrl.u32 %v390, 16
      %v1322 = vrot.slane %v1320, 4
      %v1323 = vor.u32 %v1322, %v1318
      %v1324 = vrot.slane %v1323, 4
      %v1326 = vshll.u32 %v391, 16
      %v1328 = vrot.slane %v1326, 5
      %v1329 = vsel %vm415, %v1324, %v1328
      %v1330 = vshrl.u32 %v391, 16
      %v1332 = vrot.slane %v1330, 4
      %v1333 = vor.u32 %v1332, %v1328
      %v1334 = vrot.slane %v1333, 4
      %v1336 = vshll.u32 %v392, 16
      %v1338 = vrot.slane %v1336, 5
      %v1339 = vsel %vm415, %v1334, %v1338
      %v1341 = vshrl.u32 %v393, 16
      %v1343 = vrot.slane %v1341, 4
      %v1344 = vshll.u32 %v393, 16
      %v1346 = vrot.slane %v1344, 5
      %v1347 = vor.u32 %v1343, %v1346
      %v1348 = vrot.slane %v1347, 4
      %v1350 = vshll.u32 %v394, 16
      %v1352 = vrot.slane %v1350, 5
      %v1353 = vsel %vm415, %v1348, %v1352
      %v1354 = vshrl.u32 %v394, 16
      %v1356 = vrot.slane %v1354, 4
      %v1357 = vor.u32 %v1356, %v1352
      %v1358 = vrot.slane %v1357, 4
      %v1360 = vshll.u32 %v395, 16
      %v1362 = vrot.slane %v1360, 5
      %v1363 = vsel %vm415, %v1358, %v1362
      %v1364 = vshrl.u32 %v395, 16
      %v1366 = vrot.slane %v1364, 4
      %v1367 = vor.u32 %v1366, %v1362
      %v1368 = vrot.slane %v1367, 4
      %v1370 = vshll.u32 %v396, 16
      %v1372 = vrot.slane %v1370, 5
      %v1373 = vsel %vm415, %v1368, %v1372
      %v1374 = vshrl.u32 %v396, 16
      %v1376 = vrot.slane %v1374, 4
      %v1377 = vor.u32 %v1376, %v1372
      %v1378 = vrot.slane %v1377, 4
      %v1380 = vshll.u32 %v397, 16
      %v1382 = vrot.slane %v1380, 5
      %v1383 = vsel %vm415, %v1378, %v1382
      %v1385 = vshrl.u32 %v398, 16
      %v1387 = vrot.slane %v1385, 4
      %v1388 = vshll.u32 %v398, 16
      %v1390 = vrot.slane %v1388, 5
      %v1391 = vor.u32 %v1387, %v1390
      %v1392 = vrot.slane %v1391, 4
      %v1394 = vshll.u32 %v399, 16
      %v1396 = vrot.slane %v1394, 5
      %v1397 = vsel %vm415, %v1392, %v1396
      %v1398 = vshrl.u32 %v399, 16
      %v1400 = vrot.slane %v1398, 4
      %v1401 = vor.u32 %v1400, %v1396
      %v1402 = vrot.slane %v1401, 4
      %v1404 = vshll.u32 %v400, 16
      %v1406 = vrot.slane %v1404, 5
      %v1407 = vsel %vm415, %v1402, %v1406
      %v1408 = vshrl.u32 %v400, 16
      %v1410 = vrot.slane %v1408, 4
      %v1411 = vor.u32 %v1410, %v1406
      %v1412 = vrot.slane %v1411, 4
      %v1414 = vshll.u32 %v401, 16
      %v1416 = vrot.slane %v1414, 5
      %v1417 = vsel %vm415, %v1412, %v1416
      %v1418 = vshrl.u32 %v401, 16
      %v1420 = vrot.slane %v1418, 4
      %v1421 = vor.u32 %v1420, %v1416
      %v1422 = vrot.slane %v1421, 4
      %v1424 = vshll.u32 %v402, 16
      %v1426 = vrot.slane %v1424, 5
      %v1427 = vsel %vm415, %v1422, %v1426
      %v1429 = vshrl.u32 %v403, 16
      %v1431 = vrot.slane %v1429, 4
      %v1432 = vshll.u32 %v403, 16
      %v1434 = vrot.slane %v1432, 5
      %v1435 = vor.u32 %v1431, %v1434
      %v1436 = vrot.slane %v1435, 4
      %v1438 = vshll.u32 %v404, 16
      %v1440 = vrot.slane %v1438, 5
      %v1441 = vsel %vm415, %v1436, %v1440
      %v1442 = vshrl.u32 %v404, 16
      %v1444 = vrot.slane %v1442, 4
      %v1445 = vor.u32 %v1444, %v1440
      %v1446 = vrot.slane %v1445, 4
      %v1448 = vshll.u32 %v405, 16
      %v1450 = vrot.slane %v1448, 5
      %v1451 = vsel %vm415, %v1446, %v1450
      %v1452 = vshrl.u32 %v405, 16
      %v1454 = vrot.slane %v1452, 4
      %v1455 = vor.u32 %v1454, %v1450
      %v1456 = vrot.slane %v1455, 4
      %v1458 = vshll.u32 %v406, 16
      %v1460 = vrot.slane %v1458, 5
      %v1461 = vsel %vm415, %v1456, %v1460
      %v1462 = vshrl.u32 %v406, 16
      %v1464 = vrot.slane %v1462, 4
      %v1465 = vor.u32 %v1464, %v1460
      %v1466 = vrot.slane %v1465, 4
      %v1468 = vshll.u32 %v407, 16
      %v1470 = vrot.slane %v1468, 5
      %v1471 = vsel %vm415, %v1466, %v1470
      %v1473 = vshrl.u32 %v408, 16
      %v1475 = vrot.slane %v1473, 4
      %v1476 = vshll.u32 %v408, 16
      %v1478 = vrot.slane %v1476, 5
      %v1479 = vor.u32 %v1475, %v1478
      %v1480 = vrot.slane %v1479, 4
      %v1482 = vshll.u32 %v409, 16
      %v1484 = vrot.slane %v1482, 5
      %v1485 = vsel %vm415, %v1480, %v1484
      %v1486 = vshrl.u32 %v409, 16
      %v1488 = vrot.slane %v1486, 4
      %v1489 = vor.u32 %v1488, %v1484
      %v1490 = vrot.slane %v1489, 4
      %v1492 = vshll.u32 %v410, 16
      %v1494 = vrot.slane %v1492, 5
      %v1495 = vsel %vm415, %v1490, %v1494
      %v1496 = vshrl.u32 %v410, 16
      %v1498 = vrot.slane %v1496, 4
      %v1499 = vor.u32 %v1498, %v1494
      %v1500 = vrot.slane %v1499, 4
      %v1502 = vshll.u32 %v411, 16
      %v1504 = vrot.slane %v1502, 5
      %v1505 = vsel %vm415, %v1500, %v1504
      %v1506 = vshrl.u32 %v411, 16
      %v1508 = vrot.slane %v1506, 4
      %v1509 = vor.u32 %v1508, %v1504
      %v1510 = vrot.slane %v1509, 4
      %v1512 = vshll.u32 %v412, 16
      %v1514 = vrot.slane %v1512, 5
      %v1515 = vsel %vm415, %v1510, %v1514
      %vm1641 = vcmask 1042432
      %vm1642 = vcmask 1046532
      %vm1643 = vmor %vm1641, %vm1642
      %v1644 = vrot.slane %v288, 5
      %v1645 = vrot.slane %v1644, 4
      %v1646 = vrot.slane %v289, 5
      %v1647 = vsel %vm1643, %v1645, %v1646
      %v1648 = vrot.slane %v1646, 4
      %v1649 = vrot.slane %v290, 5
      %v1650 = vsel %vm1643, %v1648, %v1649
      %v1651 = vrot.slane %v1649, 4
      %v1652 = vrot.slane %v291, 5
      %v1653 = vsel %vm1643, %v1651, %v1652
      %v1654 = vrot.slane %v1652, 4
      %v1655 = vrot.slane %v292, 5
      %v1656 = vsel %vm1643, %v1654, %v1655
      %v1657 = vrot.slane %v293, 5
      %v1658 = vrot.slane %v1657, 4
      %v1659 = vrot.slane %v294, 5
      %v1660 = vsel %vm1643, %v1658, %v1659
      %v1661 = vrot.slane %v1659, 4
      %v1662 = vrot.slane %v295, 5
      %v1663 = vsel %vm1643, %v1661, %v1662
      %v1664 = vrot.slane %v1662, 4
      %v1665 = vrot.slane %v296, 5
      %v1666 = vsel %vm1643, %v1664, %v1665
      %v1667 = vrot.slane %v1665, 4
      %v1668 = vrot.slane %v297, 5
      %v1669 = vsel %vm1643, %v1667, %v1668
      %v1670 = vrot.slane %v298, 5
      %v1671 = vrot.slane %v1670, 4
      %v1672 = vrot.slane %v299, 5
      %v1673 = vsel %vm1643, %v1671, %v1672
      %v1674 = vrot.slane %v1672, 4
      %v1675 = vrot.slane %v300, 5
      %v1676 = vsel %vm1643, %v1674, %v1675
      %v1677 = vrot.slane %v1675, 4
      %v1678 = vrot.slane %v301, 5
      %v1679 = vsel %vm1643, %v1677, %v1678
      %v1680 = vrot.slane %v1678, 4
      %v1681 = vrot.slane %v302, 5
      %v1682 = vsel %vm1643, %v1680, %v1681
      %v1683 = vrot.slane %v303, 5
      %v1684 = vrot.slane %v1683, 4
      %v1685 = vrot.slane %v304, 5
      %v1686 = vsel %vm1643, %v1684, %v1685
      %v1687 = vrot.slane %v1685, 4
      %v1688 = vrot.slane %v305, 5
      %v1689 = vsel %vm1643, %v1687, %v1688
      %v1690 = vrot.slane %v1688, 4
      %v1691 = vrot.slane %v306, 5
      %v1692 = vsel %vm1643, %v1690, %v1691
      %v1693 = vrot.slane %v1691, 4
      %v1694 = vrot.slane %v307, 5
      %v1695 = vsel %vm1643, %v1693, %v1694
      %v1696 = vrot.slane %v308, 5
      %v1697 = vrot.slane %v1696, 4
      %v1698 = vrot.slane %v309, 5
      %v1699 = vsel %vm1643, %v1697, %v1698
      %v1700 = vrot.slane %v1698, 4
      %v1701 = vrot.slane %v310, 5
      %v1702 = vsel %vm1643, %v1700, %v1701
      %v1703 = vrot.slane %v1701, 4
      %v1704 = vrot.slane %v311, 5
      %v1705 = vsel %vm1643, %v1703, %v1704
      %v1706 = vrot.slane %v1704, 4
      %v1707 = vrot.slane %v312, 5
      %v1708 = vsel %vm1643, %v1706, %v1707
      %v1709 = vrot.slane %v313, 5
      %v1710 = vrot.slane %v1709, 4
      %v1711 = vrot.slane %v314, 5
      %v1712 = vsel %vm1643, %v1710, %v1711
      %v1713 = vrot.slane %v1711, 4
      %v1714 = vrot.slane %v315, 5
      %v1715 = vsel %vm1643, %v1713, %v1714
      %v1716 = vrot.slane %v1714, 4
      %v1717 = vrot.slane %v316, 5
      %v1718 = vsel %vm1643, %v1716, %v1717
      %v1719 = vrot.slane %v1717, 4
      %v1720 = vrot.slane %v317, 5
      %v1721 = vsel %vm1643, %v1719, %v1720
      %v1722 = vrot.slane %v318, 5
      %v1723 = vrot.slane %v1722, 4
      %v1724 = vrot.slane %v319, 5
      %v1725 = vsel %vm1643, %v1723, %v1724
      %v1726 = vrot.slane %v1724, 4
      %v1727 = vrot.slane %v320, 5
      %v1728 = vsel %vm1643, %v1726, %v1727
      %v1729 = vrot.slane %v1727, 4
      %v1730 = vrot.slane %v321, 5
      %v1731 = vsel %vm1643, %v1729, %v1730
      %v1732 = vrot.slane %v1730, 4
      %v1733 = vrot.slane %v322, 5
      %v1734 = vsel %vm1643, %v1732, %v1733
      %v1735 = vrot.slane %v323, 5
      %v1736 = vrot.slane %v1735, 4
      %v1737 = vrot.slane %v324, 5
      %v1738 = vsel %vm1643, %v1736, %v1737
      %v1739 = vrot.slane %v1737, 4
      %v1740 = vrot.slane %v325, 5
      %v1741 = vsel %vm1643, %v1739, %v1740
      %v1742 = vrot.slane %v1740, 4
      %v1743 = vrot.slane %v326, 5
      %v1744 = vsel %vm1643, %v1742, %v1743
      %v1745 = vrot.slane %v1743, 4
      %v1746 = vrot.slane %v327, 5
      %v1747 = vsel %vm1643, %v1745, %v1746
      %v1748 = vrot.slane %v328, 5
      %v1749 = vrot.slane %v1748, 4
      %v1750 = vrot.slane %v329, 5
      %v1751 = vsel %vm1643, %v1749, %v1750
      %v1752 = vrot.slane %v1750, 4
      %v1753 = vrot.slane %v330, 5
      %v1754 = vsel %vm1643, %v1752, %v1753
      %v1755 = vrot.slane %v1753, 4
      %v1756 = vrot.slane %v331, 5
      %v1757 = vsel %vm1643, %v1755, %v1756
      %v1758 = vrot.slane %v1756, 4
      %v1759 = vrot.slane %v332, 5
      %v1760 = vsel %vm1643, %v1758, %v1759
      %v1761 = vrot.slane %v333, 5
      %v1762 = vrot.slane %v1761, 4
      %v1763 = vrot.slane %v334, 5
      %v1764 = vsel %vm1643, %v1762, %v1763
      %v1765 = vrot.slane %v1763, 4
      %v1766 = vrot.slane %v335, 5
      %v1767 = vsel %vm1643, %v1765, %v1766
      %v1768 = vrot.slane %v1766, 4
      %v1769 = vrot.slane %v336, 5
      %v1770 = vsel %vm1643, %v1768, %v1769
      %v1771 = vrot.slane %v1769, 4
      %v1772 = vrot.slane %v337, 5
      %v1773 = vsel %vm1643, %v1771, %v1772
      %v1774 = vrot.slane %v338, 5
      %v1775 = vrot.slane %v1774, 4
      %v1776 = vrot.slane %v339, 5
      %v1777 = vsel %vm1643, %v1775, %v1776
      %v1778 = vrot.slane %v1776, 4
      %v1779 = vrot.slane %v340, 5
      %v1780 = vsel %vm1643, %v1778, %v1779
      %v1781 = vrot.slane %v1779, 4
      %v1782 = vrot.slane %v341, 5
      %v1783 = vsel %vm1643, %v1781, %v1782
      %v1784 = vrot.slane %v1782, 4
      %v1785 = vrot.slane %v342, 5
      %v1786 = vsel %vm1643, %v1784, %v1785
      %v1787 = vrot.slane %v343, 5
      %v1788 = vrot.slane %v1787, 4
      %v1789 = vrot.slane %v344, 5
      %v1790 = vsel %vm1643, %v1788, %v1789
      %v1791 = vrot.slane %v1789, 4
      %v1792 = vrot.slane %v345, 5
      %v1793 = vsel %vm1643, %v1791, %v1792
      %v1794 = vrot.slane %v1792, 4
      %v1795 = vrot.slane %v346, 5
      %v1796 = vsel %vm1643, %v1794, %v1795
      %v1797 = vrot.slane %v1795, 4
      %v1798 = vrot.slane %v347, 5
      %v1799 = vsel %vm1643, %v1797, %v1798
      %v1800 = vrot.slane %v348, 5
      %v1801 = vrot.slane %v1800, 4
      %v1802 = vrot.slane %v349, 5
      %v1803 = vsel %vm1643, %v1801, %v1802
      %v1804 = vrot.slane %v1802, 4
      %v1805 = vrot.slane %v350, 5
      %v1806 = vsel %vm1643, %v1804, %v1805
      %v1807 = vrot.slane %v1805, 4
      %v1808 = vrot.slane %v351, 5
      %v1809 = vsel %vm1643, %v1807, %v1808
      %v1810 = vrot.slane %v1808, 4
      %v1811 = vrot.slane %v352, 5
      %v1812 = vsel %vm1643, %v1810, %v1811
      %v1813 = vrot.slane %v353, 5
      %v1814 = vrot.slane %v1813, 4
      %v1815 = vrot.slane %v354, 5
      %v1816 = vsel %vm1643, %v1814, %v1815
      %v1817 = vrot.slane %v1815, 4
      %v1818 = vrot.slane %v355, 5
      %v1819 = vsel %vm1643, %v1817, %v1818
      %v1820 = vrot.slane %v1818, 4
      %v1821 = vrot.slane %v356, 5
      %v1822 = vsel %vm1643, %v1820, %v1821
      %v1823 = vrot.slane %v1821, 4
      %v1824 = vrot.slane %v357, 5
      %v1825 = vsel %vm1643, %v1823, %v1824
      %v1826 = vrot.slane %v358, 5
      %v1827 = vrot.slane %v1826, 4
      %v1828 = vrot.slane %v359, 5
      %v1829 = vsel %vm1643, %v1827, %v1828
      %v1830 = vrot.slane %v1828, 4
      %v1831 = vrot.slane %v360, 5
      %v1832 = vsel %vm1643, %v1830, %v1831
      %v1833 = vrot.slane %v1831, 4
      %v1834 = vrot.slane %v361, 5
      %v1835 = vsel %vm1643, %v1833, %v1834
      %v1836 = vrot.slane %v1834, 4
      %v1837 = vrot.slane %v362, 5
      %v1838 = vsel %vm1643, %v1836, %v1837
      %v1839 = vrot.slane %v363, 5
      %v1840 = vrot.slane %v1839, 4
      %v1841 = vrot.slane %v364, 5
      %v1842 = vsel %vm1643, %v1840, %v1841
      %v1843 = vrot.slane %v1841, 4
      %v1844 = vrot.slane %v365, 5
      %v1845 = vsel %vm1643, %v1843, %v1844
      %v1846 = vrot.slane %v1844, 4
      %v1847 = vrot.slane %v366, 5
      %v1848 = vsel %vm1643, %v1846, %v1847
      %v1849 = vrot.slane %v1847, 4
      %v1850 = vrot.slane %v367, 5
      %v1851 = vsel %vm1643, %v1849, %v1850
      %v1852 = vrot.slane %v368, 5
      %v1853 = vrot.slane %v1852, 4
      %v1854 = vrot.slane %v369, 5
      %v1855 = vsel %vm1643, %v1853, %v1854
      %v1856 = vrot.slane %v1854, 4
      %v1857 = vrot.slane %v370, 5
      %v1858 = vsel %vm1643, %v1856, %v1857
      %v1859 = vrot.slane %v1857, 4
      %v1860 = vrot.slane %v371, 5
      %v1861 = vsel %vm1643, %v1859, %v1860
      %v1862 = vrot.slane %v1860, 4
      %v1863 = vrot.slane %v372, 5
      %v1864 = vsel %vm1643, %v1862, %v1863
      %v1865 = vrot.slane %v373, 5
      %v1866 = vrot.slane %v1865, 4
      %v1867 = vrot.slane %v374, 5
      %v1868 = vsel %vm1643, %v1866, %v1867
      %v1869 = vrot.slane %v1867, 4
      %v1870 = vrot.slane %v375, 5
      %v1871 = vsel %vm1643, %v1869, %v1870
      %v1872 = vrot.slane %v1870, 4
      %v1873 = vrot.slane %v376, 5
      %v1874 = vsel %vm1643, %v1872, %v1873
      %v1875 = vrot.slane %v1873, 4
      %v1876 = vrot.slane %v377, 5
      %v1877 = vsel %vm1643, %v1875, %v1876
      %v1878 = vrot.slane %v378, 5
      %v1879 = vrot.slane %v1878, 4
      %v1880 = vrot.slane %v379, 5
      %v1881 = vsel %vm1643, %v1879, %v1880
      %v1882 = vrot.slane %v1880, 4
      %v1883 = vrot.slane %v380, 5
      %v1884 = vsel %vm1643, %v1882, %v1883
      %v1885 = vrot.slane %v1883, 4
      %v1886 = vrot.slane %v381, 5
      %v1887 = vsel %vm1643, %v1885, %v1886
      %v1888 = vrot.slane %v1886, 4
      %v1889 = vrot.slane %v382, 5
      %v1890 = vsel %vm1643, %v1888, %v1889
      %v1891 = vrot.slane %v383, 5
      %v1892 = vrot.slane %v1891, 4
      %v1893 = vrot.slane %v384, 5
      %v1894 = vsel %vm1643, %v1892, %v1893
      %v1895 = vrot.slane %v1893, 4
      %v1896 = vrot.slane %v385, 5
      %v1897 = vsel %vm1643, %v1895, %v1896
      %v1898 = vrot.slane %v1896, 4
      %v1899 = vrot.slane %v386, 5
      %v1900 = vsel %vm1643, %v1898, %v1899
      %v1901 = vrot.slane %v1899, 4
      %v1902 = vrot.slane %v387, 5
      %v1903 = vsel %vm1643, %v1901, %v1902
      %v1904 = vrot.slane %v388, 5
      %v1905 = vrot.slane %v1904, 4
      %v1906 = vrot.slane %v389, 5
      %v1907 = vsel %vm1643, %v1905, %v1906
      %v1908 = vrot.slane %v1906, 4
      %v1909 = vrot.slane %v390, 5
      %v1910 = vsel %vm1643, %v1908, %v1909
      %v1911 = vrot.slane %v1909, 4
      %v1912 = vrot.slane %v391, 5
      %v1913 = vsel %vm1643, %v1911, %v1912
      %v1914 = vrot.slane %v1912, 4
      %v1915 = vrot.slane %v392, 5
      %v1916 = vsel %vm1643, %v1914, %v1915
      %v1917 = vrot.slane %v393, 5
      %v1918 = vrot.slane %v1917, 4
      %v1919 = vrot.slane %v394, 5
      %v1920 = vsel %vm1643, %v1918, %v1919
      %v1921 = vrot.slane %v1919, 4
      %v1922 = vrot.slane %v395, 5
      %v1923 = vsel %vm1643, %v1921, %v1922
      %v1924 = vrot.slane %v1922, 4
      %v1925 = vrot.slane %v396, 5
      %v1926 = vsel %vm1643, %v1924, %v1925
      %v1927 = vrot.slane %v1925, 4
      %v1928 = vrot.slane %v397, 5
      %v1929 = vsel %vm1643, %v1927, %v1928
      %v1930 = vrot.slane %v398, 5
      %v1931 = vrot.slane %v1930, 4
      %v1932 = vrot.slane %v399, 5
      %v1933 = vsel %vm1643, %v1931, %v1932
      %v1934 = vrot.slane %v1932, 4
      %v1935 = vrot.slane %v400, 5
      %v1936 = vsel %vm1643, %v1934, %v1935
      %v1937 = vrot.slane %v1935, 4
      %v1938 = vrot.slane %v401, 5
      %v1939 = vsel %vm1643, %v1937, %v1938
      %v1940 = vrot.slane %v1938, 4
      %v1941 = vrot.slane %v402, 5
      %v1942 = vsel %vm1643, %v1940, %v1941
      %v1943 = vrot.slane %v403, 5
      %v1944 = vrot.slane %v1943, 4
      %v1945 = vrot.slane %v404, 5
      %v1946 = vsel %vm1643, %v1944, %v1945
      %v1947 = vrot.slane %v1945, 4
      %v1948 = vrot.slane %v405, 5
      %v1949 = vsel %vm1643, %v1947, %v1948
      %v1950 = vrot.slane %v1948, 4
      %v1951 = vrot.slane %v406, 5
      %v1952 = vsel %vm1643, %v1950, %v1951
      %v1953 = vrot.slane %v1951, 4
      %v1954 = vrot.slane %v407, 5
      %v1955 = vsel %vm1643, %v1953, %v1954
      %v1956 = vrot.slane %v408, 5
      %v1957 = vrot.slane %v1956, 4
      %v1958 = vrot.slane %v409, 5
      %v1959 = vsel %vm1643, %v1957, %v1958
      %v1960 = vrot.slane %v1958, 4
      %v1961 = vrot.slane %v410, 5
      %v1962 = vsel %vm1643, %v1960, %v1961
      %v1963 = vrot.slane %v1961, 4
      %v1964 = vrot.slane %v411, 5
      %v1965 = vsel %vm1643, %v1963, %v1964
      %v1966 = vrot.slane %v1964, 4
      %v1967 = vrot.slane %v412, 5
      %v1968 = vsel %vm1643, %v1966, %v1967
      %v1969 = vunpack.c.l.b16 %v288
      %v1970 = vunpack.c.l.b16 %v289
      %v1971 = vunpack.c.l.b16 %v290
      %v1972 = vunpack.c.l.b16 %v291
      %v1973 = vunpack.c.l.b16 %v293
      %v1974 = vunpack.c.l.b16 %v294
      %v1975 = vunpack.c.l.b16 %v295
      %v1976 = vunpack.c.l.b16 %v296
      %v1977 = vunpack.c.l.b16 %v298
      %v1978 = vunpack.c.l.b16 %v299
      %v1979 = vunpack.c.l.b16 %v300
      %v1980 = vunpack.c.l.b16 %v301
      %v1981 = vunpack.c.l.b16 %v303
      %v1982 = vunpack.c.l.b16 %v304
      %v1983 = vunpack.c.l.b16 %v305
      %v1984 = vunpack.c.l.b16 %v306
      %v1985 = vunpack.c.l.b16 %v308
      %v1986 = vunpack.c.l.b16 %v309
      %v1987 = vunpack.c.l.b16 %v310
      %v1988 = vunpack.c.l.b16 %v311
      %v1989 = vunpack.c.l.b16 %v313
      %v1990 = vunpack.c.l.b16 %v314
      %v1991 = vunpack.c.l.b16 %v315
      %v1992 = vunpack.c.l.b16 %v316
      %v1993 = vunpack.c.l.b16 %v318
      %v1994 = vunpack.c.l.b16 %v319
      %v1995 = vunpack.c.l.b16 %v320
      %v1996 = vunpack.c.l.b16 %v321
      %v1997 = vunpack.c.l.b16 %v323
      %v1998 = vunpack.c.l.b16 %v324
      %v1999 = vunpack.c.l.b16 %v325
      %v2000 = vunpack.c.l.b16 %v326
      %v2001 = vunpack.c.l.b16 %v328
      %v2002 = vunpack.c.l.b16 %v329
      %v2003 = vunpack.c.l.b16 %v330
      %v2004 = vunpack.c.l.b16 %v331
      %v2005 = vunpack.c.l.b16 %v333
      %v2006 = vunpack.c.l.b16 %v334
      %v2007 = vunpack.c.l.b16 %v335
      %v2008 = vunpack.c.l.b16 %v336
      %v2009 = vunpack.c.l.b16 %v338
      %v2010 = vunpack.c.l.b16 %v339
      %v2011 = vunpack.c.l.b16 %v340
      %v2012 = vunpack.c.l.b16 %v341
      %v2013 = vunpack.c.l.b16 %v343
      %v2014 = vunpack.c.l.b16 %v344
      %v2015 = vunpack.c.l.b16 %v345
      %v2016 = vunpack.c.l.b16 %v346
      %v2017 = vunpack.c.l.b16 %v348
      %v2018 = vunpack.c.l.b16 %v349
      %v2019 = vunpack.c.l.b16 %v350
      %v2020 = vunpack.c.l.b16 %v351
      %v2021 = vunpack.c.l.b16 %v353
      %v2022 = vunpack.c.l.b16 %v354
      %v2023 = vunpack.c.l.b16 %v355
      %v2024 = vunpack.c.l.b16 %v356
      %v2025 = vunpack.c.l.b16 %v358
      %v2026 = vunpack.c.l.b16 %v359
      %v2027 = vunpack.c.l.b16 %v360
      %v2028 = vunpack.c.l.b16 %v361
      %v2029 = vunpack.c.l.b16 %v363
      %v2030 = vunpack.c.l.b16 %v364
      %v2031 = vunpack.c.l.b16 %v365
      %v2032 = vunpack.c.l.b16 %v366
      %v2033 = vunpack.c.l.b16 %v368
      %v2034 = vunpack.c.l.b16 %v369
      %v2035 = vunpack.c.l.b16 %v370
      %v2036 = vunpack.c.l.b16 %v371
      %v2037 = vunpack.c.l.b16 %v373
      %v2038 = vunpack.c.l.b16 %v374
      %v2039 = vunpack.c.l.b16 %v375
      %v2040 = vunpack.c.l.b16 %v376
      %v2041 = vunpack.c.l.b16 %v378
      %v2042 = vunpack.c.l.b16 %v379
      %v2043 = vunpack.c.l.b16 %v380
      %v2044 = vunpack.c.l.b16 %v381
      %v2045 = vunpack.c.l.b16 %v383
      %v2046 = vunpack.c.l.b16 %v384
      %v2047 = vunpack.c.l.b16 %v385
      %v2048 = vunpack.c.l.b16 %v386
      %v2049 = vunpack.c.l.b16 %v388
      %v2050 = vunpack.c.l.b16 %v389
      %v2051 = vunpack.c.l.b16 %v390
      %v2052 = vunpack.c.l.b16 %v391
      %v2053 = vunpack.c.l.b16 %v393
      %v2054 = vunpack.c.l.b16 %v394
      %v2055 = vunpack.c.l.b16 %v395
      %v2056 = vunpack.c.l.b16 %v396
      %v2057 = vunpack.c.l.b16 %v398
      %v2058 = vunpack.c.l.b16 %v399
      %v2059 = vunpack.c.l.b16 %v400
      %v2060 = vunpack.c.l.b16 %v401
      %v2061 = vunpack.c.l.b16 %v403
      %v2062 = vunpack.c.l.b16 %v404
      %v2063 = vunpack.c.l.b16 %v405
      %v2064 = vunpack.c.l.b16 %v406
      %v2065 = vunpack.c.l.b16 %v408
      %v2066 = vunpack.c.l.b16 %v409
      %v2067 = vunpack.c.l.b16 %v410
      %v2068 = vunpack.c.l.b16 %v411
      %v2069 = vpack.c.b16 %v1970, %v1969
      %v2070 = vpack.c.b16 %v1972, %v1971
      %v2071 = vpack.c.b16 %v1974, %v1973
      %v2072 = vpack.c.b16 %v1976, %v1975
      %v2073 = vpack.c.b16 %v1978, %v1977
      %v2074 = vpack.c.b16 %v1980, %v1979
      %v2075 = vpack.c.b16 %v1982, %v1981
      %v2076 = vpack.c.b16 %v1984, %v1983
      %v2077 = vpack.c.b16 %v1986, %v1985
      %v2078 = vpack.c.b16 %v1988, %v1987
      %v2079 = vpack.c.b16 %v1990, %v1989
      %v2080 = vpack.c.b16 %v1992, %v1991
      %v2081 = vpack.c.b16 %v1994, %v1993
      %v2082 = vpack.c.b16 %v1996, %v1995
      %v2083 = vpack.c.b16 %v1998, %v1997
      %v2084 = vpack.c.b16 %v2000, %v1999
      %v2085 = vpack.c.b16 %v2002, %v2001
      %v2086 = vpack.c.b16 %v2004, %v2003
      %v2087 = vpack.c.b16 %v2006, %v2005
      %v2088 = vpack.c.b16 %v2008, %v2007
      %v2089 = vpack.c.b16 %v2010, %v2009
      %v2090 = vpack.c.b16 %v2012, %v2011
      %v2091 = vpack.c.b16 %v2014, %v2013
      %v2092 = vpack.c.b16 %v2016, %v2015
      %v2093 = vpack.c.b16 %v2018, %v2017
      %v2094 = vpack.c.b16 %v2020, %v2019
      %v2095 = vpack.c.b16 %v2022, %v2021
      %v2096 = vpack.c.b16 %v2024, %v2023
      %v2097 = vpack.c.b16 %v2026, %v2025
      %v2098 = vpack.c.b16 %v2028, %v2027
      %v2099 = vpack.c.b16 %v2030, %v2029
      %v2100 = vpack.c.b16 %v2032, %v2031
      %v2101 = vpack.c.b16 %v2034, %v2033
      %v2102 = vpack.c.b16 %v2036, %v2035
      %v2103 = vpack.c.b16 %v2038, %v2037
      %v2104 = vpack.c.b16 %v2040, %v2039
      %v2105 = vpack.c.b16 %v2042, %v2041
      %v2106 = vpack.c.b16 %v2044, %v2043
      %v2107 = vpack.c.b16 %v2046, %v2045
      %v2108 = vpack.c.b16 %v2048, %v2047
      %v2109 = vpack.c.b16 %v2050, %v2049
      %v2110 = vpack.c.b16 %v2052, %v2051
      %v2111 = vpack.c.b16 %v2054, %v2053
      %v2112 = vpack.c.b16 %v2056, %v2055
      %v2113 = vpack.c.b16 %v2058, %v2057
      %v2114 = vpack.c.b16 %v2060, %v2059
      %v2115 = vpack.c.b16 %v2062, %v2061
      %v2116 = vpack.c.b16 %v2064, %v2063
      %v2117 = vpack.c.b16 %v2066, %v2065
      %v2118 = vpack.c.b16 %v2068, %v2067
      %v2119 = vunpack.c.l.b16 %v429
      %v2120 = vunpack.c.l.b16 %v439
      %v2121 = vunpack.c.l.b16 %v449
      %v2122 = vunpack.c.l.b16 %v459
      %v2123 = vunpack.c.l.b16 %v473
      %v2124 = vunpack.c.l.b16 %v483
      %v2125 = vunpack.c.l.b16 %v493
      %v2126 = vunpack.c.l.b16 %v503
      %v2127 = vunpack.c.l.b16 %v517
      %v2128 = vunpack.c.l.b16 %v527
      %v2129 = vunpack.c.l.b16 %v537
      %v2130 = vunpack.c.l.b16 %v547
      %v2131 = vunpack.c.l.b16 %v561
      %v2132 = vunpack.c.l.b16 %v571
      %v2133 = vunpack.c.l.b16 %v581
      %v2134 = vunpack.c.l.b16 %v591
      %v2135 = vunpack.c.l.b16 %v605
      %v2136 = vunpack.c.l.b16 %v615
      %v2137 = vunpack.c.l.b16 %v625
      %v2138 = vunpack.c.l.b16 %v635
      %v2139 = vunpack.c.l.b16 %v649
      %v2140 = vunpack.c.l.b16 %v659
      %v2141 = vunpack.c.l.b16 %v669
      %v2142 = vunpack.c.l.b16 %v679
      %v2143 = vunpack.c.l.b16 %v693
      %v2144 = vunpack.c.l.b16 %v703
      %v2145 = vunpack.c.l.b16 %v713
      %v2146 = vunpack.c.l.b16 %v723
      %v2147 = vunpack.c.l.b16 %v737
      %v2148 = vunpack.c.l.b16 %v747
      %v2149 = vunpack.c.l.b16 %v757
      %v2150 = vunpack.c.l.b16 %v767
      %v2151 = vunpack.c.l.b16 %v781
      %v2152 = vunpack.c.l.b16 %v791
      %v2153 = vunpack.c.l.b16 %v801
      %v2154 = vunpack.c.l.b16 %v811
      %v2155 = vunpack.c.l.b16 %v825
      %v2156 = vunpack.c.l.b16 %v835
      %v2157 = vunpack.c.l.b16 %v845
      %v2158 = vunpack.c.l.b16 %v855
      %v2159 = vunpack.c.l.b16 %v869
      %v2160 = vunpack.c.l.b16 %v879
      %v2161 = vunpack.c.l.b16 %v889
      %v2162 = vunpack.c.l.b16 %v899
      %v2163 = vunpack.c.l.b16 %v913
      %v2164 = vunpack.c.l.b16 %v923
      %v2165 = vunpack.c.l.b16 %v933
      %v2166 = vunpack.c.l.b16 %v943
      %v2167 = vunpack.c.l.b16 %v957
      %v2168 = vunpack.c.l.b16 %v967
      %v2169 = vunpack.c.l.b16 %v977
      %v2170 = vunpack.c.l.b16 %v987
      %v2171 = vunpack.c.l.b16 %v1001
      %v2172 = vunpack.c.l.b16 %v1011
      %v2173 = vunpack.c.l.b16 %v1021
      %v2174 = vunpack.c.l.b16 %v1031
      %v2175 = vunpack.c.l.b16 %v1045
      %v2176 = vunpack.c.l.b16 %v1055
      %v2177 = vunpack.c.l.b16 %v1065
      %v2178 = vunpack.c.l.b16 %v1075
      %v2179 = vunpack.c.l.b16 %v1089
      %v2180 = vunpack.c.l.b16 %v1099
      %v2181 = vunpack.c.l.b16 %v1109
      %v2182 = vunpack.c.l.b16 %v1119
      %v2183 = vunpack.c.l.b16 %v1133
      %v2184 = vunpack.c.l.b16 %v1143
      %v2185 = vunpack.c.l.b16 %v1153
      %v2186 = vunpack.c.l.b16 %v1163
      %v2187 = vunpack.c.l.b16 %v1177
      %v2188 = vunpack.c.l.b16 %v1187
      %v2189 = vunpack.c.l.b16 %v1197
      %v2190 = vunpack.c.l.b16 %v1207
      %v2191 = vunpack.c.l.b16 %v1221
      %v2192 = vunpack.c.l.b16 %v1231
      %v2193 = vunpack.c.l.b16 %v1241
      %v2194 = vunpack.c.l.b16 %v1251
      %v2195 = vunpack.c.l.b16 %v1265
      %v2196 = vunpack.c.l.b16 %v1275
      %v2197 = vunpack.c.l.b16 %v1285
      %v2198 = vunpack.c.l.b16 %v1295
      %v2199 = vunpack.c.l.b16 %v1309
      %v2200 = vunpack.c.l.b16 %v1319
      %v2201 = vunpack.c.l.b16 %v1329
      %v2202 = vunpack.c.l.b16 %v1339
      %v2203 = vunpack.c.l.b16 %v1353
      %v2204 = vunpack.c.l.b16 %v1363
      %v2205 = vunpack.c.l.b16 %v1373
      %v2206 = vunpack.c.l.b16 %v1383
      %v2207 = vunpack.c.l.b16 %v1397
      %v2208 = vunpack.c.l.b16 %v1407
      %v2209 = vunpack.c.l.b16 %v1417
      %v2210 = vunpack.c.l.b16 %v1427
      %v2211 = vunpack.c.l.b16 %v1441
      %v2212 = vunpack.c.l.b16 %v1451
      %v2213 = vunpack.c.l.b16 %v1461
      %v2214 = vunpack.c.l.b16 %v1471
      %v2215 = vunpack.c.l.b16 %v1485
      %v2216 = vunpack.c.l.b16 %v1495
      %v2217 = vunpack.c.l.b16 %v1505
      %v2218 = vunpack.c.l.b16 %v1515
      %v2219 = vpack.c.b16 %v2120, %v2119
      %v2220 = vpack.c.b16 %v2122, %v2121
      %v2221 = vpack.c.b16 %v2124, %v2123
      %v2222 = vpack.c.b16 %v2126, %v2125
      %v2223 = vpack.c.b16 %v2128, %v2127
      %v2224 = vpack.c.b16 %v2130, %v2129
      %v2225 = vpack.c.b16 %v2132, %v2131
      %v2226 = vpack.c.b16 %v2134, %v2133
      %v2227 = vpack.c.b16 %v2136, %v2135
      %v2228 = vpack.c.b16 %v2138, %v2137
      %v2229 = vpack.c.b16 %v2140, %v2139
      %v2230 = vpack.c.b16 %v2142, %v2141
      %v2231 = vpack.c.b16 %v2144, %v2143
      %v2232 = vpack.c.b16 %v2146, %v2145
      %v2233 = vpack.c.b16 %v2148, %v2147
      %v2234 = vpack.c.b16 %v2150, %v2149
      %v2235 = vpack.c.b16 %v2152, %v2151
      %v2236 = vpack.c.b16 %v2154, %v2153
      %v2237 = vpack.c.b16 %v2156, %v2155
      %v2238 = vpack.c.b16 %v2158, %v2157
      %v2239 = vpack.c.b16 %v2160, %v2159
      %v2240 = vpack.c.b16 %v2162, %v2161
      %v2241 = vpack.c.b16 %v2164, %v2163
      %v2242 = vpack.c.b16 %v2166, %v2165
      %v2243 = vpack.c.b16 %v2168, %v2167
      %v2244 = vpack.c.b16 %v2170, %v2169
      %v2245 = vpack.c.b16 %v2172, %v2171
      %v2246 = vpack.c.b16 %v2174, %v2173
      %v2247 = vpack.c.b16 %v2176, %v2175
      %v2248 = vpack.c.b16 %v2178, %v2177
      %v2249 = vpack.c.b16 %v2180, %v2179
      %v2250 = vpack.c.b16 %v2182, %v2181
      %v2251 = vpack.c.b16 %v2184, %v2183
      %v2252 = vpack.c.b16 %v2186, %v2185
      %v2253 = vpack.c.b16 %v2188, %v2187
      %v2254 = vpack.c.b16 %v2190, %v2189
      %v2255 = vpack.c.b16 %v2192, %v2191
      %v2256 = vpack.c.b16 %v2194, %v2193
      %v2257 = vpack.c.b16 %v2196, %v2195
      %v2258 = vpack.c.b16 %v2198, %v2197
      %v2259 = vpack.c.b16 %v2200, %v2199
      %v2260 = vpack.c.b16 %v2202, %v2201
      %v2261 = vpack.c.b16 %v2204, %v2203
      %v2262 = vpack.c.b16 %v2206, %v2205
      %v2263 = vpack.c.b16 %v2208, %v2207
      %v2264 = vpack.c.b16 %v2210, %v2209
      %v2265 = vpack.c.b16 %v2212, %v2211
      %v2266 = vpack.c.b16 %v2214, %v2213
      %v2267 = vpack.c.b16 %v2216, %v2215
      %v2268 = vpack.c.b16 %v2218, %v2217
      %2269 = vrot.lane.b32.xlu0 %v2219, 64
      %v2270 = vpop.permute.xlu0 %2269
      %2271 = vrot.lane.b32.xlu0 %v2220, 64
      %v2272 = vpop.permute.xlu0 %2271
      %2273 = vrot.lane.b32.xlu0 %v2221, 64
      %v2274 = vpop.permute.xlu0 %2273
      %2275 = vrot.lane.b32.xlu0 %v2222, 64
      %v2276 = vpop.permute.xlu0 %2275
      %2277 = vrot.lane.b32.xlu0 %v2223, 64
      %v2278 = vpop.permute.xlu0 %2277
      %2279 = vrot.lane.b32.xlu0 %v2224, 64
      %v2280 = vpop.permute.xlu0 %2279
      %2281 = vrot.lane.b32.xlu0 %v2225, 64
      %v2282 = vpop.permute.xlu0 %2281
      %2283 = vrot.lane.b32.xlu0 %v2226, 64
      %v2284 = vpop.permute.xlu0 %2283
      %2285 = vrot.lane.b32.xlu0 %v2227, 64
      %v2286 = vpop.permute.xlu0 %2285
      %2287 = vrot.lane.b32.xlu0 %v2228, 64
      %v2288 = vpop.permute.xlu0 %2287
      %2289 = vrot.lane.b32.xlu0 %v2229, 64
      %v2290 = vpop.permute.xlu0 %2289
      %2291 = vrot.lane.b32.xlu0 %v2230, 64
      %v2292 = vpop.permute.xlu0 %2291
      %2293 = vrot.lane.b32.xlu0 %v2231, 64
      %v2294 = vpop.permute.xlu0 %2293
      %2295 = vrot.lane.b32.xlu0 %v2232, 64
      %v2296 = vpop.permute.xlu0 %2295
      %2297 = vrot.lane.b32.xlu0 %v2233, 64
      %v2298 = vpop.permute.xlu0 %2297
      %2299 = vrot.lane.b32.xlu0 %v2234, 64
      %v2300 = vpop.permute.xlu0 %2299
      %2301 = vrot.lane.b32.xlu0 %v2235, 64
      %v2302 = vpop.permute.xlu0 %2301
      %2303 = vrot.lane.b32.xlu0 %v2236, 64
      %v2304 = vpop.permute.xlu0 %2303
      %2305 = vrot.lane.b32.xlu0 %v2237, 64
      %v2306 = vpop.permute.xlu0 %2305
      %2307 = vrot.lane.b32.xlu0 %v2238, 64
      %v2308 = vpop.permute.xlu0 %2307
      %2309 = vrot.lane.b32.xlu0 %v2239, 64
      %v2310 = vpop.permute.xlu0 %2309
      %2311 = vrot.lane.b32.xlu0 %v2240, 64
      %v2312 = vpop.permute.xlu0 %2311
      %2313 = vrot.lane.b32.xlu0 %v2241, 64
      %v2314 = vpop.permute.xlu0 %2313
      %2315 = vrot.lane.b32.xlu0 %v2242, 64
      %v2316 = vpop.permute.xlu0 %2315
      %2317 = vrot.lane.b32.xlu0 %v2243, 64
      %v2318 = vpop.permute.xlu0 %2317
      %2319 = vrot.lane.b32.xlu0 %v2244, 64
      %v2320 = vpop.permute.xlu0 %2319
      %2321 = vrot.lane.b32.xlu0 %v2245, 64
      %v2322 = vpop.permute.xlu0 %2321
      %2323 = vrot.lane.b32.xlu0 %v2246, 64
      %v2324 = vpop.permute.xlu0 %2323
      %2325 = vrot.lane.b32.xlu0 %v2247, 64
      %v2326 = vpop.permute.xlu0 %2325
      %2327 = vrot.lane.b32.xlu0 %v2248, 64
      %v2328 = vpop.permute.xlu0 %2327
      %2329 = vrot.lane.b32.xlu0 %v2249, 64
      %v2330 = vpop.permute.xlu0 %2329
      %2331 = vrot.lane.b32.xlu0 %v2250, 64
      %v2332 = vpop.permute.xlu0 %2331
      %2333 = vrot.lane.b32.xlu0 %v2251, 64
      %v2334 = vpop.permute.xlu0 %2333
      %2335 = vrot.lane.b32.xlu0 %v2252, 64
      %v2336 = vpop.permute.xlu0 %2335
      %2337 = vrot.lane.b32.xlu0 %v2253, 64
      %v2338 = vpop.permute.xlu0 %2337
      %2339 = vrot.lane.b32.xlu0 %v2254, 64
      %v2340 = vpop.permute.xlu0 %2339
      %2341 = vrot.lane.b32.xlu0 %v2255, 64
      %v2342 = vpop.permute.xlu0 %2341
      %2343 = vrot.lane.b32.xlu0 %v2256, 64
      %v2344 = vpop.permute.xlu0 %2343
      %2345 = vrot.lane.b32.xlu0 %v2257, 64
      %v2346 = vpop.permute.xlu0 %2345
      %2347 = vrot.lane.b32.xlu0 %v2258, 64
      %v2348 = vpop.permute.xlu0 %2347
      %2349 = vrot.lane.b32.xlu0 %v2259, 64
      %v2350 = vpop.permute.xlu0 %2349
      %2351 = vrot.lane.b32.xlu0 %v2260, 64
      %v2352 = vpop.permute.xlu0 %2351
      %2353 = vrot.lane.b32.xlu0 %v2261, 64
      %v2354 = vpop.permute.xlu0 %2353
      %2355 = vrot.lane.b32.xlu0 %v2262, 64
      %v2356 = vpop.permute.xlu0 %2355
      %2357 = vrot.lane.b32.xlu0 %v2263, 64
      %v2358 = vpop.permute.xlu0 %2357
      %2359 = vrot.lane.b32.xlu0 %v2264, 64
      %v2360 = vpop.permute.xlu0 %2359
      %2361 = vrot.lane.b32.xlu0 %v2265, 64
      %v2362 = vpop.permute.xlu0 %2361
      %2363 = vrot.lane.b32.xlu0 %v2266, 64
      %v2364 = vpop.permute.xlu0 %2363
      %2365 = vrot.lane.b32.xlu0 %v2267, 64
      %v2366 = vpop.permute.xlu0 %2365
      %2367 = vrot.lane.b32.xlu0 %v2268, 64
      %v2368 = vpop.permute.xlu0 %2367
      %v2369 = vunpack.c.l.b16 %v1647
      %v2370 = vunpack.c.l.b16 %v1650
      %v2371 = vunpack.c.l.b16 %v1653
      %v2372 = vunpack.c.l.b16 %v1656
      %v2373 = vunpack.c.l.b16 %v1660
      %v2374 = vunpack.c.l.b16 %v1663
      %v2375 = vunpack.c.l.b16 %v1666
      %v2376 = vunpack.c.l.b16 %v1669
      %v2377 = vunpack.c.l.b16 %v1673
      %v2378 = vunpack.c.l.b16 %v1676
      %v2379 = vunpack.c.l.b16 %v1679
      %v2380 = vunpack.c.l.b16 %v1682
      %v2381 = vunpack.c.l.b16 %v1686
      %v2382 = vunpack.c.l.b16 %v1689
      %v2383 = vunpack.c.l.b16 %v1692
      %v2384 = vunpack.c.l.b16 %v1695
      %v2385 = vunpack.c.l.b16 %v1699
      %v2386 = vunpack.c.l.b16 %v1702
      %v2387 = vunpack.c.l.b16 %v1705
      %v2388 = vunpack.c.l.b16 %v1708
      %v2389 = vunpack.c.l.b16 %v1712
      %v2390 = vunpack.c.l.b16 %v1715
      %v2391 = vunpack.c.l.b16 %v1718
      %v2392 = vunpack.c.l.b16 %v1721
      %v2393 = vunpack.c.l.b16 %v1725
      %v2394 = vunpack.c.l.b16 %v1728
      %v2395 = vunpack.c.l.b16 %v1731
      %v2396 = vunpack.c.l.b16 %v1734
      %v2397 = vunpack.c.l.b16 %v1738
      %v2398 = vunpack.c.l.b16 %v1741
      %v2399 = vunpack.c.l.b16 %v1744
      %v2400 = vunpack.c.l.b16 %v1747
      %v2401 = vunpack.c.l.b16 %v1751
      %v2402 = vunpack.c.l.b16 %v1754
      %v2403 = vunpack.c.l.b16 %v1757
      %v2404 = vunpack.c.l.b16 %v1760
      %v2405 = vunpack.c.l.b16 %v1764
      %v2406 = vunpack.c.l.b16 %v1767
      %v2407 = vunpack.c.l.b16 %v1770
      %v2408 = vunpack.c.l.b16 %v1773
      %v2409 = vunpack.c.l.b16 %v1777
      %v2410 = vunpack.c.l.b16 %v1780
      %v2411 = vunpack.c.l.b16 %v1783
      %v2412 = vunpack.c.l.b16 %v1786
      %v2413 = vunpack.c.l.b16 %v1790
      %v2414 = vunpack.c.l.b16 %v1793
      %v2415 = vunpack.c.l.b16 %v1796
      %v2416 = vunpack.c.l.b16 %v1799
      %v2417 = vunpack.c.l.b16 %v1803
      %v2418 = vunpack.c.l.b16 %v1806
      %v2419 = vunpack.c.l.b16 %v1809
      %v2420 = vunpack.c.l.b16 %v1812
      %v2421 = vunpack.c.l.b16 %v1816
      %v2422 = vunpack.c.l.b16 %v1819
      %v2423 = vunpack.c.l.b16 %v1822
      %v2424 = vunpack.c.l.b16 %v1825
      %v2425 = vunpack.c.l.b16 %v1829
      %v2426 = vunpack.c.l.b16 %v1832
      %v2427 = vunpack.c.l.b16 %v1835
      %v2428 = vunpack.c.l.b16 %v1838
      %v2429 = vunpack.c.l.b16 %v1842
      %v2430 = vunpack.c.l.b16 %v1845
      %v2431 = vunpack.c.l.b16 %v1848
      %v2432 = vunpack.c.l.b16 %v1851
      %v2433 = vunpack.c.l.b16 %v1855
      %v2434 = vunpack.c.l.b16 %v1858
      %v2435 = vunpack.c.l.b16 %v1861
      %v2436 = vunpack.c.l.b16 %v1864
      %v2437 = vunpack.c.l.b16 %v1868
      %v2438 = vunpack.c.l.b16 %v1871
      %v2439 = vunpack.c.l.b16 %v1874
      %v2440 = vunpack.c.l.b16 %v1877
      %v2441 = vunpack.c.l.b16 %v1881
      %v2442 = vunpack.c.l.b16 %v1884
      %v2443 = vunpack.c.l.b16 %v1887
      %v2444 = vunpack.c.l.b16 %v1890
      %v2445 = vunpack.c.l.b16 %v1894
      %v2446 = vunpack.c.l.b16 %v1897
      %v2447 = vunpack.c.l.b16 %v1900
      %v2448 = vunpack.c.l.b16 %v1903
      %v2449 = vunpack.c.l.b16 %v1907
      %v2450 = vunpack.c.l.b16 %v1910
      %v2451 = vunpack.c.l.b16 %v1913
      %v2452 = vunpack.c.l.b16 %v1916
      %v2453 = vunpack.c.l.b16 %v1920
      %v2454 = vunpack.c.l.b16 %v1923
      %v2455 = vunpack.c.l.b16 %v1926
      %v2456 = vunpack.c.l.b16 %v1929
      %v2457 = vunpack.c.l.b16 %v1933
      %v2458 = vunpack.c.l.b16 %v1936
      %v2459 = vunpack.c.l.b16 %v1939
      %v2460 = vunpack.c.l.b16 %v1942
      %v2461 = vunpack.c.l.b16 %v1946
      %v2462 = vunpack.c.l.b16 %v1949
      %v2463 = vunpack.c.l.b16 %v1952
      %v2464 = vunpack.c.l.b16 %v1955
      %v2465 = vunpack.c.l.b16 %v1959
      %v2466 = vunpack.c.l.b16 %v1962
      %v2467 = vunpack.c.l.b16 %v1965
      %v2468 = vunpack.c.l.b16 %v1968
      %v2469 = vpack.c.b16 %v2370, %v2369
      %v2470 = vpack.c.b16 %v2372, %v2371
      %v2471 = vpack.c.b16 %v2374, %v2373
      %v2472 = vpack.c.b16 %v2376, %v2375
      %v2473 = vpack.c.b16 %v2378, %v2377
      %v2474 = vpack.c.b16 %v2380, %v2379
      %v2475 = vpack.c.b16 %v2382, %v2381
      %v2476 = vpack.c.b16 %v2384, %v2383
      %v2477 = vpack.c.b16 %v2386, %v2385
      %v2478 = vpack.c.b16 %v2388, %v2387
      %v2479 = vpack.c.b16 %v2390, %v2389
      %v2480 = vpack.c.b16 %v2392, %v2391
      %v2481 = vpack.c.b16 %v2394, %v2393
      %v2482 = vpack.c.b16 %v2396, %v2395
      %v2483 = vpack.c.b16 %v2398, %v2397
      %v2484 = vpack.c.b16 %v2400, %v2399
      %v2485 = vpack.c.b16 %v2402, %v2401
      %v2486 = vpack.c.b16 %v2404, %v2403
      %v2487 = vpack.c.b16 %v2406, %v2405
      %v2488 = vpack.c.b16 %v2408, %v2407
      %v2489 = vpack.c.b16 %v2410, %v2409
      %v2490 = vpack.c.b16 %v2412, %v2411
      %v2491 = vpack.c.b16 %v2414, %v2413
      %v2492 = vpack.c.b16 %v2416, %v2415
      %v2493 = vpack.c.b16 %v2418, %v2417
      %v2494 = vpack.c.b16 %v2420, %v2419
      %v2495 = vpack.c.b16 %v2422, %v2421
      %v2496 = vpack.c.b16 %v2424, %v2423
      %v2497 = vpack.c.b16 %v2426, %v2425
      %v2498 = vpack.c.b16 %v2428, %v2427
      %v2499 = vpack.c.b16 %v2430, %v2429
      %v2500 = vpack.c.b16 %v2432, %v2431
      %v2501 = vpack.c.b16 %v2434, %v2433
      %v2502 = vpack.c.b16 %v2436, %v2435
      %v2503 = vpack.c.b16 %v2438, %v2437
      %v2504 = vpack.c.b16 %v2440, %v2439
      %v2505 = vpack.c.b16 %v2442, %v2441
      %v2506 = vpack.c.b16 %v2444, %v2443
      %v2507 = vpack.c.b16 %v2446, %v2445
      %v2508 = vpack.c.b16 %v2448, %v2447
      %v2509 = vpack.c.b16 %v2450, %v2449
      %v2510 = vpack.c.b16 %v2452, %v2451
      %v2511 = vpack.c.b16 %v2454, %v2453
      %v2512 = vpack.c.b16 %v2456, %v2455
      %v2513 = vpack.c.b16 %v2458, %v2457
      %v2514 = vpack.c.b16 %v2460, %v2459
      %v2515 = vpack.c.b16 %v2462, %v2461
      %v2516 = vpack.c.b16 %v2464, %v2463
      %v2517 = vpack.c.b16 %v2466, %v2465
      %v2518 = vpack.c.b16 %v2468, %v2467
      %vm2519 = vcmask 523264
      %v2522 = vsel %vm2519, %v2069, %v2270
      %v2526 = vsel %vm2519, %v2070, %v2272
      %v2530 = vsel %vm2519, %v2071, %v2274
      %v2534 = vsel %vm2519, %v2072, %v2276
      %v2538 = vsel %vm2519, %v2073, %v2278
      %v2542 = vsel %vm2519, %v2074, %v2280
      %v2546 = vsel %vm2519, %v2075, %v2282
      %v2550 = vsel %vm2519, %v2076, %v2284
      %v2554 = vsel %vm2519, %v2077, %v2286
      %v2558 = vsel %vm2519, %v2078, %v2288
      %v2562 = vsel %vm2519, %v2079, %v2290
      %v2566 = vsel %vm2519, %v2080, %v2292
      %v2570 = vsel %vm2519, %v2081, %v2294
      %v2574 = vsel %vm2519, %v2082, %v2296
      %v2578 = vsel %vm2519, %v2083, %v2298
      %v2582 = vsel %vm2519, %v2084, %v2300
      %v2586 = vsel %vm2519, %v2085, %v2302
      %v2590 = vsel %vm2519, %v2086, %v2304
      %v2594 = vsel %vm2519, %v2087, %v2306
      %v2598 = vsel %vm2519, %v2088, %v2308
      %v2602 = vsel %vm2519, %v2089, %v2310
      %v2606 = vsel %vm2519, %v2090, %v2312
      %v2610 = vsel %vm2519, %v2091, %v2314
      %v2614 = vsel %vm2519, %v2092, %v2316
      %v2618 = vsel %vm2519, %v2093, %v2318
      %v2622 = vsel %vm2519, %v2094, %v2320
      %v2626 = vsel %vm2519, %v2095, %v2322
      %v2630 = vsel %vm2519, %v2096, %v2324
      %v2634 = vsel %vm2519, %v2097, %v2326
      %v2638 = vsel %vm2519, %v2098, %v2328
      %v2642 = vsel %vm2519, %v2099, %v2330
      %v2646 = vsel %vm2519, %v2100, %v2332
      %v2650 = vsel %vm2519, %v2101, %v2334
      %v2654 = vsel %vm2519, %v2102, %v2336
      %v2658 = vsel %vm2519, %v2103, %v2338
      %v2662 = vsel %vm2519, %v2104, %v2340
      %v2666 = vsel %vm2519, %v2105, %v2342
      %v2670 = vsel %vm2519, %v2106, %v2344
      %v2674 = vsel %vm2519, %v2107, %v2346
      %v2678 = vsel %vm2519, %v2108, %v2348
      %v2682 = vsel %vm2519, %v2109, %v2350
      %v2686 = vsel %vm2519, %v2110, %v2352
      %v2690 = vsel %vm2519, %v2111, %v2354
      %v2694 = vsel %vm2519, %v2112, %v2356
      %v2698 = vsel %vm2519, %v2113, %v2358
      %v2702 = vsel %vm2519, %v2114, %v2360
      %v2706 = vsel %vm2519, %v2115, %v2362
      %v2710 = vsel %vm2519, %v2116, %v2364
      %v2714 = vsel %vm2519, %v2117, %v2366
      %v2718 = vsel %vm2519, %v2118, %v2368
      %v2720 = vld [vmem:[%s1] sm:$0xf]
      %v2721 = vld [vmem:[%s1 + $0x4] sm:$0xf]
      %v2722 = vld [vmem:[%s1 + $0x8] sm:$0xf]
      %v2723 = vld [vmem:[%s1 + $0xc] sm:$0xf]
      %v2724 = vld [vmem:[%s1 + $0x10] sm:$0xf]
      %v2725 = vld [vmem:[%s1 + $0x14] sm:$0xf]
      %v2726 = vld [vmem:[%s1 + $0x18] sm:$0xf]
      %v2727 = vld [vmem:[%s1 + $0x1c] sm:$0xf]
      %v2728 = vld [vmem:[%s1 + $0x20] sm:$0xf]
      %v2729 = vld [vmem:[%s1 + $0x24] sm:$0xf]
      %v2730 = vld [vmem:[%s1 + $0x28] sm:$0xf]
      %v2731 = vld [vmem:[%s1 + $0x2c] sm:$0xf]
      %v2732 = vld [vmem:[%s1 + $0x30] sm:$0xf]
      %v2733 = vld [vmem:[%s1 + $0x34] sm:$0xf]
      %v2734 = vld [vmem:[%s1 + $0x38] sm:$0xf]
      %v2735 = vld [vmem:[%s1 + $0x3c] sm:$0xf]
      %v2736 = vld [vmem:[%s1 + $0x40] sm:$0xf]
      %v2737 = vld [vmem:[%s1 + $0x44] sm:$0xf]
      %v2738 = vld [vmem:[%s1 + $0x48] sm:$0xf]
      %v2739 = vld [vmem:[%s1 + $0x4c] sm:$0xf]
      %v2740 = vld [vmem:[%s1 + $0x50] sm:$0xf]
      %v2741 = vld [vmem:[%s1 + $0x54] sm:$0xf]
      %v2742 = vld [vmem:[%s1 + $0x58] sm:$0xf]
      %v2743 = vld [vmem:[%s1 + $0x5c] sm:$0xf]
      %s2744 = sadd.s32 %s284, 1
      %s2745 = smul.u32 %s2744, 5
      %s2746 = smul.addr %s2745, 4
      %s2747 = scalar_lea.vmem %s259, %s2746
      %v2748 = vld [vmem:[%s2747] sm:$0xf]
      %v2749 = vld [vmem:[%s2747 + $0x4] sm:$0xf]
      %v2750 = vld [vmem:[%s2747 + $0x8] sm:$0xf]
      %v2751 = vld [vmem:[%s2747 + $0xc] sm:$0xf]
      %v2752 = vld [vmem:[%s2747 + $0x10] sm:$0x1]
      %v2753 = vld [vmem:[%s2747 + $0x14] sm:$0xf]
      %v2754 = vld [vmem:[%s2747 + $0x18] sm:$0xf]
      %v2755 = vld [vmem:[%s2747 + $0x1c] sm:$0xf]
      %v2756 = vld [vmem:[%s2747 + $0x20] sm:$0xf]
      %v2757 = vld [vmem:[%s2747 + $0x24] sm:$0x1]
      %v2758 = vld [vmem:[%s2747 + $0x28] sm:$0xf]
      %v2759 = vld [vmem:[%s2747 + $0x2c] sm:$0xf]
      %v2760 = vld [vmem:[%s2747 + $0x30] sm:$0xf]
      %v2761 = vld [vmem:[%s2747 + $0x34] sm:$0xf]
      %v2762 = vld [vmem:[%s2747 + $0x38] sm:$0x1]
      %v2763 = vld [vmem:[%s2747 + $0x3c] sm:$0xf]
      %v2764 = vld [vmem:[%s2747 + $0x40] sm:$0xf]
      %v2765 = vld [vmem:[%s2747 + $0x44] sm:$0xf]
      %v2766 = vld [vmem:[%s2747 + $0x48] sm:$0xf]
      %v2767 = vld [vmem:[%s2747 + $0x4c] sm:$0x1]
      %v2768 = vld [vmem:[%s2747 + $0x50] sm:$0xf]
      %v2769 = vld [vmem:[%s2747 + $0x54] sm:$0xf]
      %v2770 = vld [vmem:[%s2747 + $0x58] sm:$0xf]
      %v2771 = vld [vmem:[%s2747 + $0x5c] sm:$0xf]
      %v2772 = vld [vmem:[%s2747 + $0x60] sm:$0x1]
      %v2773 = vld [vmem:[%s2747 + $0x64] sm:$0xf]
      %v2774 = vld [vmem:[%s2747 + $0x68] sm:$0xf]
      %v2775 = vld [vmem:[%s2747 + $0x6c] sm:$0xf]
      %v2776 = vld [vmem:[%s2747 + $0x70] sm:$0xf]
      %v2777 = vld [vmem:[%s2747 + $0x74] sm:$0x1]
      %v2778 = vld [vmem:[%s2747 + $0x78] sm:$0xf]
      %v2779 = vld [vmem:[%s2747 + $0x7c] sm:$0xf]
      %v2780 = vld [vmem:[%s2747 + $0x80] sm:$0xf]
      %v2781 = vld [vmem:[%s2747 + $0x84] sm:$0xf]
      %v2782 = vld [vmem:[%s2747 + $0x88] sm:$0x1]
      %v2783 = vld [vmem:[%s2747 + $0x8c] sm:$0xf]
      %v2784 = vld [vmem:[%s2747 + $0x90] sm:$0xf]
      %v2785 = vld [vmem:[%s2747 + $0x94] sm:$0xf]
      %v2786 = vld [vmem:[%s2747 + $0x98] sm:$0xf]
      %v2787 = vld [vmem:[%s2747 + $0x9c] sm:$0x1]
      %v2788 = vld [vmem:[%s2747 + $0xa0] sm:$0xf]
      %v2789 = vld [vmem:[%s2747 + $0xa4] sm:$0xf]
      %v2790 = vld [vmem:[%s2747 + $0xa8] sm:$0xf]
      %v2791 = vld [vmem:[%s2747 + $0xac] sm:$0xf]
      %v2792 = vld [vmem:[%s2747 + $0xb0] sm:$0x1]
      %v2793 = vld [vmem:[%s2747 + $0xb4] sm:$0xf]
      %v2794 = vld [vmem:[%s2747 + $0xb8] sm:$0xf]
      %v2795 = vld [vmem:[%s2747 + $0xbc] sm:$0xf]
      %v2796 = vld [vmem:[%s2747 + $0xc0] sm:$0xf]
      %v2797 = vld [vmem:[%s2747 + $0xc4] sm:$0x1]
      %v2798 = vld [vmem:[%s2747 + $0xc8] sm:$0xf]
      %v2799 = vld [vmem:[%s2747 + $0xcc] sm:$0xf]
      %v2800 = vld [vmem:[%s2747 + $0xd0] sm:$0xf]
      %v2801 = vld [vmem:[%s2747 + $0xd4] sm:$0xf]
      %v2802 = vld [vmem:[%s2747 + $0xd8] sm:$0x1]
      %v2803 = vld [vmem:[%s2747 + $0xdc] sm:$0xf]
      %v2804 = vld [vmem:[%s2747 + $0xe0] sm:$0xf]
      %v2805 = vld [vmem:[%s2747 + $0xe4] sm:$0xf]
      %v2806 = vld [vmem:[%s2747 + $0xe8] sm:$0xf]
      %v2807 = vld [vmem:[%s2747 + $0xec] sm:$0x1]
      %v2808 = vld [vmem:[%s2747 + $0xf0] sm:$0xf]
      %v2809 = vld [vmem:[%s2747 + $0xf4] sm:$0xf]
      %v2810 = vld [vmem:[%s2747 + $0xf8] sm:$0xf]
      %v2811 = vld [vmem:[%s2747 + $0xfc] sm:$0xf]
      %v2812 = vld [vmem:[%s2747 + $0x100] sm:$0x1]
      %v2813 = vld [vmem:[%s2747 + $0x104] sm:$0xf]
      %v2814 = vld [vmem:[%s2747 + $0x108] sm:$0xf]
      %v2815 = vld [vmem:[%s2747 + $0x10c] sm:$0xf]
      %v2816 = vld [vmem:[%s2747 + $0x110] sm:$0xf]
      %v2817 = vld [vmem:[%s2747 + $0x114] sm:$0x1]
      %v2818 = vld [vmem:[%s2747 + $0x118] sm:$0xf]
      %v2819 = vld [vmem:[%s2747 + $0x11c] sm:$0xf]
      %v2820 = vld [vmem:[%s2747 + $0x120] sm:$0xf]
      %v2821 = vld [vmem:[%s2747 + $0x124] sm:$0xf]
      %v2822 = vld [vmem:[%s2747 + $0x128] sm:$0x1]
      %v2823 = vld [vmem:[%s2747 + $0x12c] sm:$0xf]
      %v2824 = vld [vmem:[%s2747 + $0x130] sm:$0xf]
      %v2825 = vld [vmem:[%s2747 + $0x134] sm:$0xf]
      %v2826 = vld [vmem:[%s2747 + $0x138] sm:$0xf]
      %v2827 = vld [vmem:[%s2747 + $0x13c] sm:$0x1]
      %v2828 = vld [vmem:[%s2747 + $0x140] sm:$0xf]
      %v2829 = vld [vmem:[%s2747 + $0x144] sm:$0xf]
      %v2830 = vld [vmem:[%s2747 + $0x148] sm:$0xf]
      %v2831 = vld [vmem:[%s2747 + $0x14c] sm:$0xf]
      %v2832 = vld [vmem:[%s2747 + $0x150] sm:$0x1]
      %v2833 = vld [vmem:[%s2747 + $0x154] sm:$0xf]
      %v2834 = vld [vmem:[%s2747 + $0x158] sm:$0xf]
      %v2835 = vld [vmem:[%s2747 + $0x15c] sm:$0xf]
      %v2836 = vld [vmem:[%s2747 + $0x160] sm:$0xf]
      %v2837 = vld [vmem:[%s2747 + $0x164] sm:$0x1]
      %v2838 = vld [vmem:[%s2747 + $0x168] sm:$0xf]
      %v2839 = vld [vmem:[%s2747 + $0x16c] sm:$0xf]
      %v2840 = vld [vmem:[%s2747 + $0x170] sm:$0xf]
      %v2841 = vld [vmem:[%s2747 + $0x174] sm:$0xf]
      %v2842 = vld [vmem:[%s2747 + $0x178] sm:$0x1]
      %v2843 = vld [vmem:[%s2747 + $0x17c] sm:$0xf]
      %v2844 = vld [vmem:[%s2747 + $0x180] sm:$0xf]
      %v2845 = vld [vmem:[%s2747 + $0x184] sm:$0xf]
      %v2846 = vld [vmem:[%s2747 + $0x188] sm:$0xf]
      %v2847 = vld [vmem:[%s2747 + $0x18c] sm:$0x1]
      %v2848 = vld [vmem:[%s2747 + $0x190] sm:$0xf]
      %v2849 = vld [vmem:[%s2747 + $0x194] sm:$0xf]
      %v2850 = vld [vmem:[%s2747 + $0x198] sm:$0xf]
      %v2851 = vld [vmem:[%s2747 + $0x19c] sm:$0xf]
      %v2852 = vld [vmem:[%s2747 + $0x1a0] sm:$0x1]
      %v2853 = vld [vmem:[%s2747 + $0x1a4] sm:$0xf]
      %v2854 = vld [vmem:[%s2747 + $0x1a8] sm:$0xf]
      %v2855 = vld [vmem:[%s2747 + $0x1ac] sm:$0xf]
      %v2856 = vld [vmem:[%s2747 + $0x1b0] sm:$0xf]
      %v2857 = vld [vmem:[%s2747 + $0x1b4] sm:$0x1]
      %v2858 = vld [vmem:[%s2747 + $0x1b8] sm:$0xf]
      %v2859 = vld [vmem:[%s2747 + $0x1bc] sm:$0xf]
      %v2860 = vld [vmem:[%s2747 + $0x1c0] sm:$0xf]
      %v2861 = vld [vmem:[%s2747 + $0x1c4] sm:$0xf]
      %v2862 = vld [vmem:[%s2747 + $0x1c8] sm:$0x1]
      %v2863 = vld [vmem:[%s2747 + $0x1cc] sm:$0xf]
      %v2864 = vld [vmem:[%s2747 + $0x1d0] sm:$0xf]
      %v2865 = vld [vmem:[%s2747 + $0x1d4] sm:$0xf]
      %v2866 = vld [vmem:[%s2747 + $0x1d8] sm:$0xf]
      %v2867 = vld [vmem:[%s2747 + $0x1dc] sm:$0x1]
      %v2868 = vld [vmem:[%s2747 + $0x1e0] sm:$0xf]
      %v2869 = vld [vmem:[%s2747 + $0x1e4] sm:$0xf]
      %v2870 = vld [vmem:[%s2747 + $0x1e8] sm:$0xf]
      %v2871 = vld [vmem:[%s2747 + $0x1ec] sm:$0xf]
      %v2872 = vld [vmem:[%s2747 + $0x1f0] sm:$0x1]
      %v2874 = vshrl.u32 %v2748, 16
      %v2876 = vrot.slane %v2874, 4
      %v2877 = vshll.u32 %v2748, 16
      %v2879 = vrot.slane %v2877, 5
      %v2880 = vor.u32 %v2876, %v2879
      %v2881 = vrot.slane %v2880, 4
      %v2883 = vshll.u32 %v2749, 16
      %v2885 = vrot.slane %v2883, 5
      %v2886 = vsel %vm415, %v2881, %v2885
      %v2887 = vshrl.u32 %v2749, 16
      %v2889 = vrot.slane %v2887, 4
      %v2890 = vor.u32 %v2889, %v2885
      %v2891 = vrot.slane %v2890, 4
      %v2893 = vshll.u32 %v2750, 16
      %v2895 = vrot.slane %v2893, 5
      %v2896 = vsel %vm415, %v2891, %v2895
      %v2897 = vshrl.u32 %v2750, 16
      %v2899 = vrot.slane %v2897, 4
      %v2900 = vor.u32 %v2899, %v2895
      %v2901 = vrot.slane %v2900, 4
      %v2903 = vshll.u32 %v2751, 16
      %v2905 = vrot.slane %v2903, 5
      %v2906 = vsel %vm415, %v2901, %v2905
      %v2907 = vshrl.u32 %v2751, 16
      %v2909 = vrot.slane %v2907, 4
      %v2910 = vor.u32 %v2909, %v2905
      %v2911 = vrot.slane %v2910, 4
      %v2913 = vshll.u32 %v2752, 16
      %v2915 = vrot.slane %v2913, 5
      %v2916 = vsel %vm415, %v2911, %v2915
      %v2918 = vshrl.u32 %v2753, 16
      %v2920 = vrot.slane %v2918, 4
      %v2921 = vshll.u32 %v2753, 16
      %v2923 = vrot.slane %v2921, 5
      %v2924 = vor.u32 %v2920, %v2923
      %v2925 = vrot.slane %v2924, 4
      %v2927 = vshll.u32 %v2754, 16
      %v2929 = vrot.slane %v2927, 5
      %v2930 = vsel %vm415, %v2925, %v2929
      %v2931 = vshrl.u32 %v2754, 16
      %v2933 = vrot.slane %v2931, 4
      %v2934 = vor.u32 %v2933, %v2929
      %v2935 = vrot.slane %v2934, 4
      %v2937 = vshll.u32 %v2755, 16
      %v2939 = vrot.slane %v2937, 5
      %v2940 = vsel %vm415, %v2935, %v2939
      %v2941 = vshrl.u32 %v2755, 16
      %v2943 = vrot.slane %v2941, 4
      %v2944 = vor.u32 %v2943, %v2939
      %v2945 = vrot.slane %v2944, 4
      %v2947 = vshll.u32 %v2756, 16
      %v2949 = vrot.slane %v2947, 5
      %v2950 = vsel %vm415, %v2945, %v2949
      %v2951 = vshrl.u32 %v2756, 16
      %v2953 = vrot.slane %v2951, 4
      %v2954 = vor.u32 %v2953, %v2949
      %v2955 = vrot.slane %v2954, 4
      %v2957 = vshll.u32 %v2757, 16
      %v2959 = vrot.slane %v2957, 5
      %v2960 = vsel %vm415, %v2955, %v2959
      %v2962 = vshrl.u32 %v2758, 16
      %v2964 = vrot.slane %v2962, 4
      %v2965 = vshll.u32 %v2758, 16
      %v2967 = vrot.slane %v2965, 5
      %v2968 = vor.u32 %v2964, %v2967
      %v2969 = vrot.slane %v2968, 4
      %v2971 = vshll.u32 %v2759, 16
      %v2973 = vrot.slane %v2971, 5
      %v2974 = vsel %vm415, %v2969, %v2973
      %v2975 = vshrl.u32 %v2759, 16
      %v2977 = vrot.slane %v2975, 4
      %v2978 = vor.u32 %v2977, %v2973
      %v2979 = vrot.slane %v2978, 4
      %v2981 = vshll.u32 %v2760, 16
      %v2983 = vrot.slane %v2981, 5
      %v2984 = vsel %vm415, %v2979, %v2983
      %v2985 = vshrl.u32 %v2760, 16
      %v2987 = vrot.slane %v2985, 4
      %v2988 = vor.u32 %v2987, %v2983
      %v2989 = vrot.slane %v2988, 4
      %v2991 = vshll.u32 %v2761, 16
      %v2993 = vrot.slane %v2991, 5
      %v2994 = vsel %vm415, %v2989, %v2993
      %v2995 = vshrl.u32 %v2761, 16
      %v2997 = vrot.slane %v2995, 4
      %v2998 = vor.u32 %v2997, %v2993
      %v2999 = vrot.slane %v2998, 4
      %v3001 = vshll.u32 %v2762, 16
      %v3003 = vrot.slane %v3001, 5
      %v3004 = vsel %vm415, %v2999, %v3003
      %v3006 = vshrl.u32 %v2763, 16
      %v3008 = vrot.slane %v3006, 4
      %v3009 = vshll.u32 %v2763, 16
      %v3011 = vrot.slane %v3009, 5
      %v3012 = vor.u32 %v3008, %v3011
      %v3013 = vrot.slane %v3012, 4
      %v3015 = vshll.u32 %v2764, 16
      %v3017 = vrot.slane %v3015, 5
      %v3018 = vsel %vm415, %v3013, %v3017
      %v3019 = vshrl.u32 %v2764, 16
      %v3021 = vrot.slane %v3019, 4
      %v3022 = vor.u32 %v3021, %v3017
      %v3023 = vrot.slane %v3022, 4
      %v3025 = vshll.u32 %v2765, 16
      %v3027 = vrot.slane %v3025, 5
      %v3028 = vsel %vm415, %v3023, %v3027
      %v3029 = vshrl.u32 %v2765, 16
      %v3031 = vrot.slane %v3029, 4
      %v3032 = vor.u32 %v3031, %v3027
      %v3033 = vrot.slane %v3032, 4
      %v3035 = vshll.u32 %v2766, 16
      %v3037 = vrot.slane %v3035, 5
      %v3038 = vsel %vm415, %v3033, %v3037
      %v3039 = vshrl.u32 %v2766, 16
      %v3041 = vrot.slane %v3039, 4
      %v3042 = vor.u32 %v3041, %v3037
      %v3043 = vrot.slane %v3042, 4
      %v3045 = vshll.u32 %v2767, 16
      %v3047 = vrot.slane %v3045, 5
      %v3048 = vsel %vm415, %v3043, %v3047
      %v3050 = vshrl.u32 %v2768, 16
      %v3052 = vrot.slane %v3050, 4
      %v3053 = vshll.u32 %v2768, 16
      %v3055 = vrot.slane %v3053, 5
      %v3056 = vor.u32 %v3052, %v3055
      %v3057 = vrot.slane %v3056, 4
      %v3059 = vshll.u32 %v2769, 16
      %v3061 = vrot.slane %v3059, 5
      %v3062 = vsel %vm415, %v3057, %v3061
      %v3063 = vshrl.u32 %v2769, 16
      %v3065 = vrot.slane %v3063, 4
      %v3066 = vor.u32 %v3065, %v3061
      %v3067 = vrot.slane %v3066, 4
      %v3069 = vshll.u32 %v2770, 16
      %v3071 = vrot.slane %v3069, 5
      %v3072 = vsel %vm415, %v3067, %v3071
      %v3073 = vshrl.u32 %v2770, 16
      %v3075 = vrot.slane %v3073, 4
      %v3076 = vor.u32 %v3075, %v3071
      %v3077 = vrot.slane %v3076, 4
      %v3079 = vshll.u32 %v2771, 16
      %v3081 = vrot.slane %v3079, 5
      %v3082 = vsel %vm415, %v3077, %v3081
      %v3083 = vshrl.u32 %v2771, 16
      %v3085 = vrot.slane %v3083, 4
      %v3086 = vor.u32 %v3085, %v3081
      %v3087 = vrot.slane %v3086, 4
      %v3089 = vshll.u32 %v2772, 16
      %v3091 = vrot.slane %v3089, 5
      %v3092 = vsel %vm415, %v3087, %v3091
      %v3094 = vshrl.u32 %v2773, 16
      %v3096 = vrot.slane %v3094, 4
      %v3097 = vshll.u32 %v2773, 16
      %v3099 = vrot.slane %v3097, 5
      %v3100 = vor.u32 %v3096, %v3099
      %v3101 = vrot.slane %v3100, 4
      %v3103 = vshll.u32 %v2774, 16
      %v3105 = vrot.slane %v3103, 5
      %v3106 = vsel %vm415, %v3101, %v3105
      %v3107 = vshrl.u32 %v2774, 16
      %v3109 = vrot.slane %v3107, 4
      %v3110 = vor.u32 %v3109, %v3105
      %v3111 = vrot.slane %v3110, 4
      %v3113 = vshll.u32 %v2775, 16
      %v3115 = vrot.slane %v3113, 5
      %v3116 = vsel %vm415, %v3111, %v3115
      %v3117 = vshrl.u32 %v2775, 16
      %v3119 = vrot.slane %v3117, 4
      %v3120 = vor.u32 %v3119, %v3115
      %v3121 = vrot.slane %v3120, 4
      %v3123 = vshll.u32 %v2776, 16
      %v3125 = vrot.slane %v3123, 5
      %v3126 = vsel %vm415, %v3121, %v3125
      %v3127 = vshrl.u32 %v2776, 16
      %v3129 = vrot.slane %v3127, 4
      %v3130 = vor.u32 %v3129, %v3125
      %v3131 = vrot.slane %v3130, 4
      %v3133 = vshll.u32 %v2777, 16
      %v3135 = vrot.slane %v3133, 5
      %v3136 = vsel %vm415, %v3131, %v3135
      %v3138 = vshrl.u32 %v2778, 16
      %v3140 = vrot.slane %v3138, 4
      %v3141 = vshll.u32 %v2778, 16
      %v3143 = vrot.slane %v3141, 5
      %v3144 = vor.u32 %v3140, %v3143
      %v3145 = vrot.slane %v3144, 4
      %v3147 = vshll.u32 %v2779, 16
      %v3149 = vrot.slane %v3147, 5
      %v3150 = vsel %vm415, %v3145, %v3149
      %v3151 = vshrl.u32 %v2779, 16
      %v3153 = vrot.slane %v3151, 4
      %v3154 = vor.u32 %v3153, %v3149
      %v3155 = vrot.slane %v3154, 4
      %v3157 = vshll.u32 %v2780, 16
      %v3159 = vrot.slane %v3157, 5
      %v3160 = vsel %vm415, %v3155, %v3159
      %v3161 = vshrl.u32 %v2780, 16
      %v3163 = vrot.slane %v3161, 4
      %v3164 = vor.u32 %v3163, %v3159
      %v3165 = vrot.slane %v3164, 4
      %v3167 = vshll.u32 %v2781, 16
      %v3169 = vrot.slane %v3167, 5
      %v3170 = vsel %vm415, %v3165, %v3169
      %v3171 = vshrl.u32 %v2781, 16
      %v3173 = vrot.slane %v3171, 4
      %v3174 = vor.u32 %v3173, %v3169
      %v3175 = vrot.slane %v3174, 4
      %v3177 = vshll.u32 %v2782, 16
      %v3179 = vrot.slane %v3177, 5
      %v3180 = vsel %vm415, %v3175, %v3179
      %v3182 = vshrl.u32 %v2783, 16
      %v3184 = vrot.slane %v3182, 4
      %v3185 = vshll.u32 %v2783, 16
      %v3187 = vrot.slane %v3185, 5
      %v3188 = vor.u32 %v3184, %v3187
      %v3189 = vrot.slane %v3188, 4
      %v3191 = vshll.u32 %v2784, 16
      %v3193 = vrot.slane %v3191, 5
      %v3194 = vsel %vm415, %v3189, %v3193
      %v3195 = vshrl.u32 %v2784, 16
      %v3197 = vrot.slane %v3195, 4
      %v3198 = vor.u32 %v3197, %v3193
      %v3199 = vrot.slane %v3198, 4
      %v3201 = vshll.u32 %v2785, 16
      %v3203 = vrot.slane %v3201, 5
      %v3204 = vsel %vm415, %v3199, %v3203
      %v3205 = vshrl.u32 %v2785, 16
      %v3207 = vrot.slane %v3205, 4
      %v3208 = vor.u32 %v3207, %v3203
      %v3209 = vrot.slane %v3208, 4
      %v3211 = vshll.u32 %v2786, 16
      %v3213 = vrot.slane %v3211, 5
      %v3214 = vsel %vm415, %v3209, %v3213
      %v3215 = vshrl.u32 %v2786, 16
      %v3217 = vrot.slane %v3215, 4
      %v3218 = vor.u32 %v3217, %v3213
      %v3219 = vrot.slane %v3218, 4
      %v3221 = vshll.u32 %v2787, 16
      %v3223 = vrot.slane %v3221, 5
      %v3224 = vsel %vm415, %v3219, %v3223
      %v3226 = vshrl.u32 %v2788, 16
      %v3228 = vrot.slane %v3226, 4
      %v3229 = vshll.u32 %v2788, 16
      %v3231 = vrot.slane %v3229, 5
      %v3232 = vor.u32 %v3228, %v3231
      %v3233 = vrot.slane %v3232, 4
      %v3235 = vshll.u32 %v2789, 16
      %v3237 = vrot.slane %v3235, 5
      %v3238 = vsel %vm415, %v3233, %v3237
      %v3239 = vshrl.u32 %v2789, 16
      %v3241 = vrot.slane %v3239, 4
      %v3242 = vor.u32 %v3241, %v3237
      %v3243 = vrot.slane %v3242, 4
      %v3245 = vshll.u32 %v2790, 16
      %v3247 = vrot.slane %v3245, 5
      %v3248 = vsel %vm415, %v3243, %v3247
      %v3249 = vshrl.u32 %v2790, 16
      %v3251 = vrot.slane %v3249, 4
      %v3252 = vor.u32 %v3251, %v3247
      %v3253 = vrot.slane %v3252, 4
      %v3255 = vshll.u32 %v2791, 16
      %v3257 = vrot.slane %v3255, 5
      %v3258 = vsel %vm415, %v3253, %v3257
      %v3259 = vshrl.u32 %v2791, 16
      %v3261 = vrot.slane %v3259, 4
      %v3262 = vor.u32 %v3261, %v3257
      %v3263 = vrot.slane %v3262, 4
      %v3265 = vshll.u32 %v2792, 16
      %v3267 = vrot.slane %v3265, 5
      %v3268 = vsel %vm415, %v3263, %v3267
      %v3270 = vshrl.u32 %v2793, 16
      %v3272 = vrot.slane %v3270, 4
      %v3273 = vshll.u32 %v2793, 16
      %v3275 = vrot.slane %v3273, 5
      %v3276 = vor.u32 %v3272, %v3275
      %v3277 = vrot.slane %v3276, 4
      %v3279 = vshll.u32 %v2794, 16
      %v3281 = vrot.slane %v3279, 5
      %v3282 = vsel %vm415, %v3277, %v3281
      %v3283 = vshrl.u32 %v2794, 16
      %v3285 = vrot.slane %v3283, 4
      %v3286 = vor.u32 %v3285, %v3281
      %v3287 = vrot.slane %v3286, 4
      %v3289 = vshll.u32 %v2795, 16
      %v3291 = vrot.slane %v3289, 5
      %v3292 = vsel %vm415, %v3287, %v3291
      %v3293 = vshrl.u32 %v2795, 16
      %v3295 = vrot.slane %v3293, 4
      %v3296 = vor.u32 %v3295, %v3291
      %v3297 = vrot.slane %v3296, 4
      %v3299 = vshll.u32 %v2796, 16
      %v3301 = vrot.slane %v3299, 5
      %v3302 = vsel %vm415, %v3297, %v3301
      %v3303 = vshrl.u32 %v2796, 16
      %v3305 = vrot.slane %v3303, 4
      %v3306 = vor.u32 %v3305, %v3301
      %v3307 = vrot.slane %v3306, 4
      %v3309 = vshll.u32 %v2797, 16
      %v3311 = vrot.slane %v3309, 5
      %v3312 = vsel %vm415, %v3307, %v3311
      %v3314 = vshrl.u32 %v2798, 16
      %v3316 = vrot.slane %v3314, 4
      %v3317 = vshll.u32 %v2798, 16
      %v3319 = vrot.slane %v3317, 5
      %v3320 = vor.u32 %v3316, %v3319
      %v3321 = vrot.slane %v3320, 4
      %v3323 = vshll.u32 %v2799, 16
      %v3325 = vrot.slane %v3323, 5
      %v3326 = vsel %vm415, %v3321, %v3325
      %v3327 = vshrl.u32 %v2799, 16
      %v3329 = vrot.slane %v3327, 4
      %v3330 = vor.u32 %v3329, %v3325
      %v3331 = vrot.slane %v3330, 4
      %v3333 = vshll.u32 %v2800, 16
      %v3335 = vrot.slane %v3333, 5
      %v3336 = vsel %vm415, %v3331, %v3335
      %v3337 = vshrl.u32 %v2800, 16
      %v3339 = vrot.slane %v3337, 4
      %v3340 = vor.u32 %v3339, %v3335
      %v3341 = vrot.slane %v3340, 4
      %v3343 = vshll.u32 %v2801, 16
      %v3345 = vrot.slane %v3343, 5
      %v3346 = vsel %vm415, %v3341, %v3345
      %v3347 = vshrl.u32 %v2801, 16
      %v3349 = vrot.slane %v3347, 4
      %v3350 = vor.u32 %v3349, %v3345
      %v3351 = vrot.slane %v3350, 4
      %v3353 = vshll.u32 %v2802, 16
      %v3355 = vrot.slane %v3353, 5
      %v3356 = vsel %vm415, %v3351, %v3355
      %v3358 = vshrl.u32 %v2803, 16
      %v3360 = vrot.slane %v3358, 4
      %v3361 = vshll.u32 %v2803, 16
      %v3363 = vrot.slane %v3361, 5
      %v3364 = vor.u32 %v3360, %v3363
      %v3365 = vrot.slane %v3364, 4
      %v3367 = vshll.u32 %v2804, 16
      %v3369 = vrot.slane %v3367, 5
      %v3370 = vsel %vm415, %v3365, %v3369
      %v3371 = vshrl.u32 %v2804, 16
      %v3373 = vrot.slane %v3371, 4
      %v3374 = vor.u32 %v3373, %v3369
      %v3375 = vrot.slane %v3374, 4
      %v3377 = vshll.u32 %v2805, 16
      %v3379 = vrot.slane %v3377, 5
      %v3380 = vsel %vm415, %v3375, %v3379
      %v3381 = vshrl.u32 %v2805, 16
      %v3383 = vrot.slane %v3381, 4
      %v3384 = vor.u32 %v3383, %v3379
      %v3385 = vrot.slane %v3384, 4
      %v3387 = vshll.u32 %v2806, 16
      %v3389 = vrot.slane %v3387, 5
      %v3390 = vsel %vm415, %v3385, %v3389
      %v3391 = vshrl.u32 %v2806, 16
      %v3393 = vrot.slane %v3391, 4
      %v3394 = vor.u32 %v3393, %v3389
      %v3395 = vrot.slane %v3394, 4
      %v3397 = vshll.u32 %v2807, 16
      %v3399 = vrot.slane %v3397, 5
      %v3400 = vsel %vm415, %v3395, %v3399
      %v3402 = vshrl.u32 %v2808, 16
      %v3404 = vrot.slane %v3402, 4
      %v3405 = vshll.u32 %v2808, 16
      %v3407 = vrot.slane %v3405, 5
      %v3408 = vor.u32 %v3404, %v3407
      %v3409 = vrot.slane %v3408, 4
      %v3411 = vshll.u32 %v2809, 16
      %v3413 = vrot.slane %v3411, 5
      %v3414 = vsel %vm415, %v3409, %v3413
      %v3415 = vshrl.u32 %v2809, 16
      %v3417 = vrot.slane %v3415, 4
      %v3418 = vor.u32 %v3417, %v3413
      %v3419 = vrot.slane %v3418, 4
      %v3421 = vshll.u32 %v2810, 16
      %v3423 = vrot.slane %v3421, 5
      %v3424 = vsel %vm415, %v3419, %v3423
      %v3425 = vshrl.u32 %v2810, 16
      %v3427 = vrot.slane %v3425, 4
      %v3428 = vor.u32 %v3427, %v3423
      %v3429 = vrot.slane %v3428, 4
      %v3431 = vshll.u32 %v2811, 16
      %v3433 = vrot.slane %v3431, 5
      %v3434 = vsel %vm415, %v3429, %v3433
      %v3435 = vshrl.u32 %v2811, 16
      %v3437 = vrot.slane %v3435, 4
      %v3438 = vor.u32 %v3437, %v3433
      %v3439 = vrot.slane %v3438, 4
      %v3441 = vshll.u32 %v2812, 16
      %v3443 = vrot.slane %v3441, 5
      %v3444 = vsel %vm415, %v3439, %v3443
      %v3446 = vshrl.u32 %v2813, 16
      %v3448 = vrot.slane %v3446, 4
      %v3449 = vshll.u32 %v2813, 16
      %v3451 = vrot.slane %v3449, 5
      %v3452 = vor.u32 %v3448, %v3451
      %v3453 = vrot.slane %v3452, 4
      %v3455 = vshll.u32 %v2814, 16
      %v3457 = vrot.slane %v3455, 5
      %v3458 = vsel %vm415, %v3453, %v3457
      %v3459 = vshrl.u32 %v2814, 16
      %v3461 = vrot.slane %v3459, 4
      %v3462 = vor.u32 %v3461, %v3457
      %v3463 = vrot.slane %v3462, 4
      %v3465 = vshll.u32 %v2815, 16
      %v3467 = vrot.slane %v3465, 5
      %v3468 = vsel %vm415, %v3463, %v3467
      %v3469 = vshrl.u32 %v2815, 16
      %v3471 = vrot.slane %v3469, 4
      %v3472 = vor.u32 %v3471, %v3467
      %v3473 = vrot.slane %v3472, 4
      %v3475 = vshll.u32 %v2816, 16
      %v3477 = vrot.slane %v3475, 5
      %v3478 = vsel %vm415, %v3473, %v3477
      %v3479 = vshrl.u32 %v2816, 16
      %v3481 = vrot.slane %v3479, 4
      %v3482 = vor.u32 %v3481, %v3477
      %v3483 = vrot.slane %v3482, 4
      %v3485 = vshll.u32 %v2817, 16
      %v3487 = vrot.slane %v3485, 5
      %v3488 = vsel %vm415, %v3483, %v3487
      %v3490 = vshrl.u32 %v2818, 16
      %v3492 = vrot.slane %v3490, 4
      %v3493 = vshll.u32 %v2818, 16
      %v3495 = vrot.slane %v3493, 5
      %v3496 = vor.u32 %v3492, %v3495
      %v3497 = vrot.slane %v3496, 4
      %v3499 = vshll.u32 %v2819, 16
      %v3501 = vrot.slane %v3499, 5
      %v3502 = vsel %vm415, %v3497, %v3501
      %v3503 = vshrl.u32 %v2819, 16
      %v3505 = vrot.slane %v3503, 4
      %v3506 = vor.u32 %v3505, %v3501
      %v3507 = vrot.slane %v3506, 4
      %v3509 = vshll.u32 %v2820, 16
      %v3511 = vrot.slane %v3509, 5
      %v3512 = vsel %vm415, %v3507, %v3511
      %v3513 = vshrl.u32 %v2820, 16
      %v3515 = vrot.slane %v3513, 4
      %v3516 = vor.u32 %v3515, %v3511
      %v3517 = vrot.slane %v3516, 4
      %v3519 = vshll.u32 %v2821, 16
      %v3521 = vrot.slane %v3519, 5
      %v3522 = vsel %vm415, %v3517, %v3521
      %v3523 = vshrl.u32 %v2821, 16
      %v3525 = vrot.slane %v3523, 4
      %v3526 = vor.u32 %v3525, %v3521
      %v3527 = vrot.slane %v3526, 4
      %v3529 = vshll.u32 %v2822, 16
      %v3531 = vrot.slane %v3529, 5
      %v3532 = vsel %vm415, %v3527, %v3531
      %v3534 = vshrl.u32 %v2823, 16
      %v3536 = vrot.slane %v3534, 4
      %v3537 = vshll.u32 %v2823, 16
      %v3539 = vrot.slane %v3537, 5
      %v3540 = vor.u32 %v3536, %v3539
      %v3541 = vrot.slane %v3540, 4
      %v3543 = vshll.u32 %v2824, 16
      %v3545 = vrot.slane %v3543, 5
      %v3546 = vsel %vm415, %v3541, %v3545
      %v3547 = vshrl.u32 %v2824, 16
      %v3549 = vrot.slane %v3547, 4
      %v3550 = vor.u32 %v3549, %v3545
      %v3551 = vrot.slane %v3550, 4
      %v3553 = vshll.u32 %v2825, 16
      %v3555 = vrot.slane %v3553, 5
      %v3556 = vsel %vm415, %v3551, %v3555
      %v3557 = vshrl.u32 %v2825, 16
      %v3559 = vrot.slane %v3557, 4
      %v3560 = vor.u32 %v3559, %v3555
      %v3561 = vrot.slane %v3560, 4
      %v3563 = vshll.u32 %v2826, 16
      %v3565 = vrot.slane %v3563, 5
      %v3566 = vsel %vm415, %v3561, %v3565
      %v3567 = vshrl.u32 %v2826, 16
      %v3569 = vrot.slane %v3567, 4
      %v3570 = vor.u32 %v3569, %v3565
      %v3571 = vrot.slane %v3570, 4
      %v3573 = vshll.u32 %v2827, 16
      %v3575 = vrot.slane %v3573, 5
      %v3576 = vsel %vm415, %v3571, %v3575
      %v3578 = vshrl.u32 %v2828, 16
      %v3580 = vrot.slane %v3578, 4
      %v3581 = vshll.u32 %v2828, 16
      %v3583 = vrot.slane %v3581, 5
      %v3584 = vor.u32 %v3580, %v3583
      %v3585 = vrot.slane %v3584, 4
      %v3587 = vshll.u32 %v2829, 16
      %v3589 = vrot.slane %v3587, 5
      %v3590 = vsel %vm415, %v3585, %v3589
      %v3591 = vshrl.u32 %v2829, 16
      %v3593 = vrot.slane %v3591, 4
      %v3594 = vor.u32 %v3593, %v3589
      %v3595 = vrot.slane %v3594, 4
      %v3597 = vshll.u32 %v2830, 16
      %v3599 = vrot.slane %v3597, 5
      %v3600 = vsel %vm415, %v3595, %v3599
      %v3601 = vshrl.u32 %v2830, 16
      %v3603 = vrot.slane %v3601, 4
      %v3604 = vor.u32 %v3603, %v3599
      %v3605 = vrot.slane %v3604, 4
      %v3607 = vshll.u32 %v2831, 16
      %v3609 = vrot.slane %v3607, 5
      %v3610 = vsel %vm415, %v3605, %v3609
      %v3611 = vshrl.u32 %v2831, 16
      %v3613 = vrot.slane %v3611, 4
      %v3614 = vor.u32 %v3613, %v3609
      %v3615 = vrot.slane %v3614, 4
      %v3617 = vshll.u32 %v2832, 16
      %v3619 = vrot.slane %v3617, 5
      %v3620 = vsel %vm415, %v3615, %v3619
      %v3622 = vshrl.u32 %v2833, 16
      %v3624 = vrot.slane %v3622, 4
      %v3625 = vshll.u32 %v2833, 16
      %v3627 = vrot.slane %v3625, 5
      %v3628 = vor.u32 %v3624, %v3627
      %v3629 = vrot.slane %v3628, 4
      %v3631 = vshll.u32 %v2834, 16
      %v3633 = vrot.slane %v3631, 5
      %v3634 = vsel %vm415, %v3629, %v3633
      %v3635 = vshrl.u32 %v2834, 16
      %v3637 = vrot.slane %v3635, 4
      %v3638 = vor.u32 %v3637, %v3633
      %v3639 = vrot.slane %v3638, 4
      %v3641 = vshll.u32 %v2835, 16
      %v3643 = vrot.slane %v3641, 5
      %v3644 = vsel %vm415, %v3639, %v3643
      %v3645 = vshrl.u32 %v2835, 16
      %v3647 = vrot.slane %v3645, 4
      %v3648 = vor.u32 %v3647, %v3643
      %v3649 = vrot.slane %v3648, 4
      %v3651 = vshll.u32 %v2836, 16
      %v3653 = vrot.slane %v3651, 5
      %v3654 = vsel %vm415, %v3649, %v3653
      %v3655 = vshrl.u32 %v2836, 16
      %v3657 = vrot.slane %v3655, 4
      %v3658 = vor.u32 %v3657, %v3653
      %v3659 = vrot.slane %v3658, 4
      %v3661 = vshll.u32 %v2837, 16
      %v3663 = vrot.slane %v3661, 5
      %v3664 = vsel %vm415, %v3659, %v3663
      %v3666 = vshrl.u32 %v2838, 16
      %v3668 = vrot.slane %v3666, 4
      %v3669 = vshll.u32 %v2838, 16
      %v3671 = vrot.slane %v3669, 5
      %v3672 = vor.u32 %v3668, %v3671
      %v3673 = vrot.slane %v3672, 4
      %v3675 = vshll.u32 %v2839, 16
      %v3677 = vrot.slane %v3675, 5
      %v3678 = vsel %vm415, %v3673, %v3677
      %v3679 = vshrl.u32 %v2839, 16
      %v3681 = vrot.slane %v3679, 4
      %v3682 = vor.u32 %v3681, %v3677
      %v3683 = vrot.slane %v3682, 4
      %v3685 = vshll.u32 %v2840, 16
      %v3687 = vrot.slane %v3685, 5
      %v3688 = vsel %vm415, %v3683, %v3687
      %v3689 = vshrl.u32 %v2840, 16
      %v3691 = vrot.slane %v3689, 4
      %v3692 = vor.u32 %v3691, %v3687
      %v3693 = vrot.slane %v3692, 4
      %v3695 = vshll.u32 %v2841, 16
      %v3697 = vrot.slane %v3695, 5
      %v3698 = vsel %vm415, %v3693, %v3697
      %v3699 = vshrl.u32 %v2841, 16
      %v3701 = vrot.slane %v3699, 4
      %v3702 = vor.u32 %v3701, %v3697
      %v3703 = vrot.slane %v3702, 4
      %v3705 = vshll.u32 %v2842, 16
      %v3707 = vrot.slane %v3705, 5
      %v3708 = vsel %vm415, %v3703, %v3707
      %v3710 = vshrl.u32 %v2843, 16
      %v3712 = vrot.slane %v3710, 4
      %v3713 = vshll.u32 %v2843, 16
      %v3715 = vrot.slane %v3713, 5
      %v3716 = vor.u32 %v3712, %v3715
      %v3717 = vrot.slane %v3716, 4
      %v3719 = vshll.u32 %v2844, 16
      %v3721 = vrot.slane %v3719, 5
      %v3722 = vsel %vm415, %v3717, %v3721
      %v3723 = vshrl.u32 %v2844, 16
      %v3725 = vrot.slane %v3723, 4
      %v3726 = vor.u32 %v3725, %v3721
      %v3727 = vrot.slane %v3726, 4
      %v3729 = vshll.u32 %v2845, 16
      %v3731 = vrot.slane %v3729, 5
      %v3732 = vsel %vm415, %v3727, %v3731
      %v3733 = vshrl.u32 %v2845, 16
      %v3735 = vrot.slane %v3733, 4
      %v3736 = vor.u32 %v3735, %v3731
      %v3737 = vrot.slane %v3736, 4
      %v3739 = vshll.u32 %v2846, 16
      %v3741 = vrot.slane %v3739, 5
      %v3742 = vsel %vm415, %v3737, %v3741
      %v3743 = vshrl.u32 %v2846, 16
      %v3745 = vrot.slane %v3743, 4
      %v3746 = vor.u32 %v3745, %v3741
      %v3747 = vrot.slane %v3746, 4
      %v3749 = vshll.u32 %v2847, 16
      %v3751 = vrot.slane %v3749, 5
      %v3752 = vsel %vm415, %v3747, %v3751
      %v3754 = vshrl.u32 %v2848, 16
      %v3756 = vrot.slane %v3754, 4
      %v3757 = vshll.u32 %v2848, 16
      %v3759 = vrot.slane %v3757, 5
      %v3760 = vor.u32 %v3756, %v3759
      %v3761 = vrot.slane %v3760, 4
      %v3763 = vshll.u32 %v2849, 16
      %v3765 = vrot.slane %v3763, 5
      %v3766 = vsel %vm415, %v3761, %v3765
      %v3767 = vshrl.u32 %v2849, 16
      %v3769 = vrot.slane %v3767, 4
      %v3770 = vor.u32 %v3769, %v3765
      %v3771 = vrot.slane %v3770, 4
      %v3773 = vshll.u32 %v2850, 16
      %v3775 = vrot.slane %v3773, 5
      %v3776 = vsel %vm415, %v3771, %v3775
      %v3777 = vshrl.u32 %v2850, 16
      %v3779 = vrot.slane %v3777, 4
      %v3780 = vor.u32 %v3779, %v3775
      %v3781 = vrot.slane %v3780, 4
      %v3783 = vshll.u32 %v2851, 16
      %v3785 = vrot.slane %v3783, 5
      %v3786 = vsel %vm415, %v3781, %v3785
      %v3787 = vshrl.u32 %v2851, 16
      %v3789 = vrot.slane %v3787, 4
      %v3790 = vor.u32 %v3789, %v3785
      %v3791 = vrot.slane %v3790, 4
      %v3793 = vshll.u32 %v2852, 16
      %v3795 = vrot.slane %v3793, 5
      %v3796 = vsel %vm415, %v3791, %v3795
      %v3798 = vshrl.u32 %v2853, 16
      %v3800 = vrot.slane %v3798, 4
      %v3801 = vshll.u32 %v2853, 16
      %v3803 = vrot.slane %v3801, 5
      %v3804 = vor.u32 %v3800, %v3803
      %v3805 = vrot.slane %v3804, 4
      %v3807 = vshll.u32 %v2854, 16
      %v3809 = vrot.slane %v3807, 5
      %v3810 = vsel %vm415, %v3805, %v3809
      %v3811 = vshrl.u32 %v2854, 16
      %v3813 = vrot.slane %v3811, 4
      %v3814 = vor.u32 %v3813, %v3809
      %v3815 = vrot.slane %v3814, 4
      %v3817 = vshll.u32 %v2855, 16
      %v3819 = vrot.slane %v3817, 5
      %v3820 = vsel %vm415, %v3815, %v3819
      %v3821 = vshrl.u32 %v2855, 16
      %v3823 = vrot.slane %v3821, 4
      %v3824 = vor.u32 %v3823, %v3819
      %v3825 = vrot.slane %v3824, 4
      %v3827 = vshll.u32 %v2856, 16
      %v3829 = vrot.slane %v3827, 5
      %v3830 = vsel %vm415, %v3825, %v3829
      %v3831 = vshrl.u32 %v2856, 16
      %v3833 = vrot.slane %v3831, 4
      %v3834 = vor.u32 %v3833, %v3829
      %v3835 = vrot.slane %v3834, 4
      %v3837 = vshll.u32 %v2857, 16
      %v3839 = vrot.slane %v3837, 5
      %v3840 = vsel %vm415, %v3835, %v3839
      %v3842 = vshrl.u32 %v2858, 16
      %v3844 = vrot.slane %v3842, 4
      %v3845 = vshll.u32 %v2858, 16
      %v3847 = vrot.slane %v3845, 5
      %v3848 = vor.u32 %v3844, %v3847
      %v3849 = vrot.slane %v3848, 4
      %v3851 = vshll.u32 %v2859, 16
      %v3853 = vrot.slane %v3851, 5
      %v3854 = vsel %vm415, %v3849, %v3853
      %v3855 = vshrl.u32 %v2859, 16
      %v3857 = vrot.slane %v3855, 4
      %v3858 = vor.u32 %v3857, %v3853
      %v3859 = vrot.slane %v3858, 4
      %v3861 = vshll.u32 %v2860, 16
      %v3863 = vrot.slane %v3861, 5
      %v3864 = vsel %vm415, %v3859, %v3863
      %v3865 = vshrl.u32 %v2860, 16
      %v3867 = vrot.slane %v3865, 4
      %v3868 = vor.u32 %v3867, %v3863
      %v3869 = vrot.slane %v3868, 4
      %v3871 = vshll.u32 %v2861, 16
      %v3873 = vrot.slane %v3871, 5
      %v3874 = vsel %vm415, %v3869, %v3873
      %v3875 = vshrl.u32 %v2861, 16
      %v3877 = vrot.slane %v3875, 4
      %v3878 = vor.u32 %v3877, %v3873
      %v3879 = vrot.slane %v3878, 4
      %v3881 = vshll.u32 %v2862, 16
      %v3883 = vrot.slane %v3881, 5
      %v3884 = vsel %vm415, %v3879, %v3883
      %v3886 = vshrl.u32 %v2863, 16
      %v3888 = vrot.slane %v3886, 4
      %v3889 = vshll.u32 %v2863, 16
      %v3891 = vrot.slane %v3889, 5
      %v3892 = vor.u32 %v3888, %v3891
      %v3893 = vrot.slane %v3892, 4
      %v3895 = vshll.u32 %v2864, 16
      %v3897 = vrot.slane %v3895, 5
      %v3898 = vsel %vm415, %v3893, %v3897
      %v3899 = vshrl.u32 %v2864, 16
      %v3901 = vrot.slane %v3899, 4
      %v3902 = vor.u32 %v3901, %v3897
      %v3903 = vrot.slane %v3902, 4
      %v3905 = vshll.u32 %v2865, 16
      %v3907 = vrot.slane %v3905, 5
      %v3908 = vsel %vm415, %v3903, %v3907
      %v3909 = vshrl.u32 %v2865, 16
      %v3911 = vrot.slane %v3909, 4
      %v3912 = vor.u32 %v3911, %v3907
      %v3913 = vrot.slane %v3912, 4
      %v3915 = vshll.u32 %v2866, 16
      %v3917 = vrot.slane %v3915, 5
      %v3918 = vsel %vm415, %v3913, %v3917
      %v3919 = vshrl.u32 %v2866, 16
      %v3921 = vrot.slane %v3919, 4
      %v3922 = vor.u32 %v3921, %v3917
      %v3923 = vrot.slane %v3922, 4
      %v3925 = vshll.u32 %v2867, 16
      %v3927 = vrot.slane %v3925, 5
      %v3928 = vsel %vm415, %v3923, %v3927
      %v3930 = vshrl.u32 %v2868, 16
      %v3932 = vrot.slane %v3930, 4
      %v3933 = vshll.u32 %v2868, 16
      %v3935 = vrot.slane %v3933, 5
      %v3936 = vor.u32 %v3932, %v3935
      %v3937 = vrot.slane %v3936, 4
      %v3939 = vshll.u32 %v2869, 16
      %v3941 = vrot.slane %v3939, 5
      %v3942 = vsel %vm415, %v3937, %v3941
      %v3943 = vshrl.u32 %v2869, 16
      %v3945 = vrot.slane %v3943, 4
      %v3946 = vor.u32 %v3945, %v3941
      %v3947 = vrot.slane %v3946, 4
      %v3949 = vshll.u32 %v2870, 16
      %v3951 = vrot.slane %v3949, 5
      %v3952 = vsel %vm415, %v3947, %v3951
      %v3953 = vshrl.u32 %v2870, 16
      %v3955 = vrot.slane %v3953, 4
      %v3956 = vor.u32 %v3955, %v3951
      %v3957 = vrot.slane %v3956, 4
      %v3959 = vshll.u32 %v2871, 16
      %v3961 = vrot.slane %v3959, 5
      %v3962 = vsel %vm415, %v3957, %v3961
      %v3963 = vshrl.u32 %v2871, 16
      %v3965 = vrot.slane %v3963, 4
      %v3966 = vor.u32 %v3965, %v3961
      %v3967 = vrot.slane %v3966, 4
      %v3969 = vshll.u32 %v2872, 16
      %v3971 = vrot.slane %v3969, 5
      %v3972 = vsel %vm415, %v3967, %v3971
      %v4098 = vrot.slane %v2748, 5
      %v4099 = vrot.slane %v4098, 4
      %v4100 = vrot.slane %v2749, 5
      %v4101 = vsel %vm1643, %v4099, %v4100
      %v4102 = vrot.slane %v4100, 4
      %v4103 = vrot.slane %v2750, 5
      %v4104 = vsel %vm1643, %v4102, %v4103
      %v4105 = vrot.slane %v4103, 4
      %v4106 = vrot.slane %v2751, 5
      %v4107 = vsel %vm1643, %v4105, %v4106
      %v4108 = vrot.slane %v4106, 4
      %v4109 = vrot.slane %v2752, 5
      %v4110 = vsel %vm1643, %v4108, %v4109
      %v4111 = vrot.slane %v2753, 5
      %v4112 = vrot.slane %v4111, 4
      %v4113 = vrot.slane %v2754, 5
      %v4114 = vsel %vm1643, %v4112, %v4113
      %v4115 = vrot.slane %v4113, 4
      %v4116 = vrot.slane %v2755, 5
      %v4117 = vsel %vm1643, %v4115, %v4116
      %v4118 = vrot.slane %v4116, 4
      %v4119 = vrot.slane %v2756, 5
      %v4120 = vsel %vm1643, %v4118, %v4119
      %v4121 = vrot.slane %v4119, 4
      %v4122 = vrot.slane %v2757, 5
      %v4123 = vsel %vm1643, %v4121, %v4122
      %v4124 = vrot.slane %v2758, 5
      %v4125 = vrot.slane %v4124, 4
      %v4126 = vrot.slane %v2759, 5
      %v4127 = vsel %vm1643, %v4125, %v4126
      %v4128 = vrot.slane %v4126, 4
      %v4129 = vrot.slane %v2760, 5
      %v4130 = vsel %vm1643, %v4128, %v4129
      %v4131 = vrot.slane %v4129, 4
      %v4132 = vrot.slane %v2761, 5
      %v4133 = vsel %vm1643, %v4131, %v4132
      %v4134 = vrot.slane %v4132, 4
      %v4135 = vrot.slane %v2762, 5
      %v4136 = vsel %vm1643, %v4134, %v4135
      %v4137 = vrot.slane %v2763, 5
      %v4138 = vrot.slane %v4137, 4
      %v4139 = vrot.slane %v2764, 5
      %v4140 = vsel %vm1643, %v4138, %v4139
      %v4141 = vrot.slane %v4139, 4
      %v4142 = vrot.slane %v2765, 5
      %v4143 = vsel %vm1643, %v4141, %v4142
      %v4144 = vrot.slane %v4142, 4
      %v4145 = vrot.slane %v2766, 5
      %v4146 = vsel %vm1643, %v4144, %v4145
      %v4147 = vrot.slane %v4145, 4
      %v4148 = vrot.slane %v2767, 5
      %v4149 = vsel %vm1643, %v4147, %v4148
      %v4150 = vrot.slane %v2768, 5
      %v4151 = vrot.slane %v4150, 4
      %v4152 = vrot.slane %v2769, 5
      %v4153 = vsel %vm1643, %v4151, %v4152
      %v4154 = vrot.slane %v4152, 4
      %v4155 = vrot.slane %v2770, 5
      %v4156 = vsel %vm1643, %v4154, %v4155
      %v4157 = vrot.slane %v4155, 4
      %v4158 = vrot.slane %v2771, 5
      %v4159 = vsel %vm1643, %v4157, %v4158
      %v4160 = vrot.slane %v4158, 4
      %v4161 = vrot.slane %v2772, 5
      %v4162 = vsel %vm1643, %v4160, %v4161
      %v4163 = vrot.slane %v2773, 5
      %v4164 = vrot.slane %v4163, 4
      %v4165 = vrot.slane %v2774, 5
      %v4166 = vsel %vm1643, %v4164, %v4165
      %v4167 = vrot.slane %v4165, 4
      %v4168 = vrot.slane %v2775, 5
      %v4169 = vsel %vm1643, %v4167, %v4168
      %v4170 = vrot.slane %v4168, 4
      %v4171 = vrot.slane %v2776, 5
      %v4172 = vsel %vm1643, %v4170, %v4171
      %v4173 = vrot.slane %v4171, 4
      %v4174 = vrot.slane %v2777, 5
      %v4175 = vsel %vm1643, %v4173, %v4174
      %v4176 = vrot.slane %v2778, 5
      %v4177 = vrot.slane %v4176, 4
      %v4178 = vrot.slane %v2779, 5
      %v4179 = vsel %vm1643, %v4177, %v4178
      %v4180 = vrot.slane %v4178, 4
      %v4181 = vrot.slane %v2780, 5
      %v4182 = vsel %vm1643, %v4180, %v4181
      %v4183 = vrot.slane %v4181, 4
      %v4184 = vrot.slane %v2781, 5
      %v4185 = vsel %vm1643, %v4183, %v4184
      %v4186 = vrot.slane %v4184, 4
      %v4187 = vrot.slane %v2782, 5
      %v4188 = vsel %vm1643, %v4186, %v4187
      %v4189 = vrot.slane %v2783, 5
      %v4190 = vrot.slane %v4189, 4
      %v4191 = vrot.slane %v2784, 5
      %v4192 = vsel %vm1643, %v4190, %v4191
      %v4193 = vrot.slane %v4191, 4
      %v4194 = vrot.slane %v2785, 5
      %v4195 = vsel %vm1643, %v4193, %v4194
      %v4196 = vrot.slane %v4194, 4
      %v4197 = vrot.slane %v2786, 5
      %v4198 = vsel %vm1643, %v4196, %v4197
      %v4199 = vrot.slane %v4197, 4
      %v4200 = vrot.slane %v2787, 5
      %v4201 = vsel %vm1643, %v4199, %v4200
      %v4202 = vrot.slane %v2788, 5
      %v4203 = vrot.slane %v4202, 4
      %v4204 = vrot.slane %v2789, 5
      %v4205 = vsel %vm1643, %v4203, %v4204
      %v4206 = vrot.slane %v4204, 4
      %v4207 = vrot.slane %v2790, 5
      %v4208 = vsel %vm1643, %v4206, %v4207
      %v4209 = vrot.slane %v4207, 4
      %v4210 = vrot.slane %v2791, 5
      %v4211 = vsel %vm1643, %v4209, %v4210
      %v4212 = vrot.slane %v4210, 4
      %v4213 = vrot.slane %v2792, 5
      %v4214 = vsel %vm1643, %v4212, %v4213
      %v4215 = vrot.slane %v2793, 5
      %v4216 = vrot.slane %v4215, 4
      %v4217 = vrot.slane %v2794, 5
      %v4218 = vsel %vm1643, %v4216, %v4217
      %v4219 = vrot.slane %v4217, 4
      %v4220 = vrot.slane %v2795, 5
      %v4221 = vsel %vm1643, %v4219, %v4220
      %v4222 = vrot.slane %v4220, 4
      %v4223 = vrot.slane %v2796, 5
      %v4224 = vsel %vm1643, %v4222, %v4223
      %v4225 = vrot.slane %v4223, 4
      %v4226 = vrot.slane %v2797, 5
      %v4227 = vsel %vm1643, %v4225, %v4226
      %v4228 = vrot.slane %v2798, 5
      %v4229 = vrot.slane %v4228, 4
      %v4230 = vrot.slane %v2799, 5
      %v4231 = vsel %vm1643, %v4229, %v4230
      %v4232 = vrot.slane %v4230, 4
      %v4233 = vrot.slane %v2800, 5
      %v4234 = vsel %vm1643, %v4232, %v4233
      %v4235 = vrot.slane %v4233, 4
      %v4236 = vrot.slane %v2801, 5
      %v4237 = vsel %vm1643, %v4235, %v4236
      %v4238 = vrot.slane %v4236, 4
      %v4239 = vrot.slane %v2802, 5
      %v4240 = vsel %vm1643, %v4238, %v4239
      %v4241 = vrot.slane %v2803, 5
      %v4242 = vrot.slane %v4241, 4
      %v4243 = vrot.slane %v2804, 5
      %v4244 = vsel %vm1643, %v4242, %v4243
      %v4245 = vrot.slane %v4243, 4
      %v4246 = vrot.slane %v2805, 5
      %v4247 = vsel %vm1643, %v4245, %v4246
      %v4248 = vrot.slane %v4246, 4
      %v4249 = vrot.slane %v2806, 5
      %v4250 = vsel %vm1643, %v4248, %v4249
      %v4251 = vrot.slane %v4249, 4
      %v4252 = vrot.slane %v2807, 5
      %v4253 = vsel %vm1643, %v4251, %v4252
      %v4254 = vrot.slane %v2808, 5
      %v4255 = vrot.slane %v4254, 4
      %v4256 = vrot.slane %v2809, 5
      %v4257 = vsel %vm1643, %v4255, %v4256
      %v4258 = vrot.slane %v4256, 4
      %v4259 = vrot.slane %v2810, 5
      %v4260 = vsel %vm1643, %v4258, %v4259
      %v4261 = vrot.slane %v4259, 4
      %v4262 = vrot.slane %v2811, 5
      %v4263 = vsel %vm1643, %v4261, %v4262
      %v4264 = vrot.slane %v4262, 4
      %v4265 = vrot.slane %v2812, 5
      %v4266 = vsel %vm1643, %v4264, %v4265
      %v4267 = vrot.slane %v2813, 5
      %v4268 = vrot.slane %v4267, 4
      %v4269 = vrot.slane %v2814, 5
      %v4270 = vsel %vm1643, %v4268, %v4269
      %v4271 = vrot.slane %v4269, 4
      %v4272 = vrot.slane %v2815, 5
      %v4273 = vsel %vm1643, %v4271, %v4272
      %v4274 = vrot.slane %v4272, 4
      %v4275 = vrot.slane %v2816, 5
      %v4276 = vsel %vm1643, %v4274, %v4275
      %v4277 = vrot.slane %v4275, 4
      %v4278 = vrot.slane %v2817, 5
      %v4279 = vsel %vm1643, %v4277, %v4278
      %v4280 = vrot.slane %v2818, 5
      %v4281 = vrot.slane %v4280, 4
      %v4282 = vrot.slane %v2819, 5
      %v4283 = vsel %vm1643, %v4281, %v4282
      %v4284 = vrot.slane %v4282, 4
      %v4285 = vrot.slane %v2820, 5
      %v4286 = vsel %vm1643, %v4284, %v4285
      %v4287 = vrot.slane %v4285, 4
      %v4288 = vrot.slane %v2821, 5
      %v4289 = vsel %vm1643, %v4287, %v4288
      %v4290 = vrot.slane %v4288, 4
      %v4291 = vrot.slane %v2822, 5
      %v4292 = vsel %vm1643, %v4290, %v4291
      %v4293 = vrot.slane %v2823, 5
      %v4294 = vrot.slane %v4293, 4
      %v4295 = vrot.slane %v2824, 5
      %v4296 = vsel %vm1643, %v4294, %v4295
      %v4297 = vrot.slane %v4295, 4
      %v4298 = vrot.slane %v2825, 5
      %v4299 = vsel %vm1643, %v4297, %v4298
      %v4300 = vrot.slane %v4298, 4
      %v4301 = vrot.slane %v2826, 5
      %v4302 = vsel %vm1643, %v4300, %v4301
      %v4303 = vrot.slane %v4301, 4
      %v4304 = vrot.slane %v2827, 5
      %v4305 = vsel %vm1643, %v4303, %v4304
      %v4306 = vrot.slane %v2828, 5
      %v4307 = vrot.slane %v4306, 4
      %v4308 = vrot.slane %v2829, 5
      %v4309 = vsel %vm1643, %v4307, %v4308
      %v4310 = vrot.slane %v4308, 4
      %v4311 = vrot.slane %v2830, 5
      %v4312 = vsel %vm1643, %v4310, %v4311
      %v4313 = vrot.slane %v4311, 4
      %v4314 = vrot.slane %v2831, 5
      %v4315 = vsel %vm1643, %v4313, %v4314
      %v4316 = vrot.slane %v4314, 4
      %v4317 = vrot.slane %v2832, 5
      %v4318 = vsel %vm1643, %v4316, %v4317
      %v4319 = vrot.slane %v2833, 5
      %v4320 = vrot.slane %v4319, 4
      %v4321 = vrot.slane %v2834, 5
      %v4322 = vsel %vm1643, %v4320, %v4321
      %v4323 = vrot.slane %v4321, 4
      %v4324 = vrot.slane %v2835, 5
      %v4325 = vsel %vm1643, %v4323, %v4324
      %v4326 = vrot.slane %v4324, 4
      %v4327 = vrot.slane %v2836, 5
      %v4328 = vsel %vm1643, %v4326, %v4327
      %v4329 = vrot.slane %v4327, 4
      %v4330 = vrot.slane %v2837, 5
      %v4331 = vsel %vm1643, %v4329, %v4330
      %v4332 = vrot.slane %v2838, 5
      %v4333 = vrot.slane %v4332, 4
      %v4334 = vrot.slane %v2839, 5
      %v4335 = vsel %vm1643, %v4333, %v4334
      %v4336 = vrot.slane %v4334, 4
      %v4337 = vrot.slane %v2840, 5
      %v4338 = vsel %vm1643, %v4336, %v4337
      %v4339 = vrot.slane %v4337, 4
      %v4340 = vrot.slane %v2841, 5
      %v4341 = vsel %vm1643, %v4339, %v4340
      %v4342 = vrot.slane %v4340, 4
      %v4343 = vrot.slane %v2842, 5
      %v4344 = vsel %vm1643, %v4342, %v4343
      %v4345 = vrot.slane %v2843, 5
      %v4346 = vrot.slane %v4345, 4
      %v4347 = vrot.slane %v2844, 5
      %v4348 = vsel %vm1643, %v4346, %v4347
      %v4349 = vrot.slane %v4347, 4
      %v4350 = vrot.slane %v2845, 5
      %v4351 = vsel %vm1643, %v4349, %v4350
      %v4352 = vrot.slane %v4350, 4
      %v4353 = vrot.slane %v2846, 5
      %v4354 = vsel %vm1643, %v4352, %v4353
      %v4355 = vrot.slane %v4353, 4
      %v4356 = vrot.slane %v2847, 5
      %v4357 = vsel %vm1643, %v4355, %v4356
      %v4358 = vrot.slane %v2848, 5
      %v4359 = vrot.slane %v4358, 4
      %v4360 = vrot.slane %v2849, 5
      %v4361 = vsel %vm1643, %v4359, %v4360
      %v4362 = vrot.slane %v4360, 4
      %v4363 = vrot.slane %v2850, 5
      %v4364 = vsel %vm1643, %v4362, %v4363
      %v4365 = vrot.slane %v4363, 4
      %v4366 = vrot.slane %v2851, 5
      %v4367 = vsel %vm1643, %v4365, %v4366
      %v4368 = vrot.slane %v4366, 4
      %v4369 = vrot.slane %v2852, 5
      %v4370 = vsel %vm1643, %v4368, %v4369
      %v4371 = vrot.slane %v2853, 5
      %v4372 = vrot.slane %v4371, 4
      %v4373 = vrot.slane %v2854, 5
      %v4374 = vsel %vm1643, %v4372, %v4373
      %v4375 = vrot.slane %v4373, 4
      %v4376 = vrot.slane %v2855, 5
      %v4377 = vsel %vm1643, %v4375, %v4376
      %v4378 = vrot.slane %v4376, 4
      %v4379 = vrot.slane %v2856, 5
      %v4380 = vsel %vm1643, %v4378, %v4379
      %v4381 = vrot.slane %v4379, 4
      %v4382 = vrot.slane %v2857, 5
      %v4383 = vsel %vm1643, %v4381, %v4382
      %v4384 = vrot.slane %v2858, 5
      %v4385 = vrot.slane %v4384, 4
      %v4386 = vrot.slane %v2859, 5
      %v4387 = vsel %vm1643, %v4385, %v4386
      %v4388 = vrot.slane %v4386, 4
      %v4389 = vrot.slane %v2860, 5
      %v4390 = vsel %vm1643, %v4388, %v4389
      %v4391 = vrot.slane %v4389, 4
      %v4392 = vrot.slane %v2861, 5
      %v4393 = vsel %vm1643, %v4391, %v4392
      %v4394 = vrot.slane %v4392, 4
      %v4395 = vrot.slane %v2862, 5
      %v4396 = vsel %vm1643, %v4394, %v4395
      %v4397 = vrot.slane %v2863, 5
      %v4398 = vrot.slane %v4397, 4
      %v4399 = vrot.slane %v2864, 5
      %v4400 = vsel %vm1643, %v4398, %v4399
      %v4401 = vrot.slane %v4399, 4
      %v4402 = vrot.slane %v2865, 5
      %v4403 = vsel %vm1643, %v4401, %v4402
      %v4404 = vrot.slane %v4402, 4
      %v4405 = vrot.slane %v2866, 5
      %v4406 = vsel %vm1643, %v4404, %v4405
      %v4407 = vrot.slane %v4405, 4
      %v4408 = vrot.slane %v2867, 5
      %v4409 = vsel %vm1643, %v4407, %v4408
      %v4410 = vrot.slane %v2868, 5
      %v4411 = vrot.slane %v4410, 4
      %v4412 = vrot.slane %v2869, 5
      %v4413 = vsel %vm1643, %v4411, %v4412
      %v4414 = vrot.slane %v4412, 4
      %v4415 = vrot.slane %v2870, 5
      %v4416 = vsel %vm1643, %v4414, %v4415
      %v4417 = vrot.slane %v4415, 4
      %v4418 = vrot.slane %v2871, 5
      %v4419 = vsel %vm1643, %v4417, %v4418
      %v4420 = vrot.slane %v4418, 4
      %v4421 = vrot.slane %v2872, 5
      %v4422 = vsel %vm1643, %v4420, %v4421
      %v4423 = vunpack.c.l.b16 %v2748
      %v4424 = vunpack.c.l.b16 %v2749
      %v4425 = vunpack.c.l.b16 %v2750
      %v4426 = vunpack.c.l.b16 %v2751
      %v4427 = vunpack.c.l.b16 %v2753
      %v4428 = vunpack.c.l.b16 %v2754
      %v4429 = vunpack.c.l.b16 %v2755
      %v4430 = vunpack.c.l.b16 %v2756
      %v4431 = vunpack.c.l.b16 %v2758
      %v4432 = vunpack.c.l.b16 %v2759
      %v4433 = vunpack.c.l.b16 %v2760
      %v4434 = vunpack.c.l.b16 %v2761
      %v4435 = vunpack.c.l.b16 %v2763
      %v4436 = vunpack.c.l.b16 %v2764
      %v4437 = vunpack.c.l.b16 %v2765
      %v4438 = vunpack.c.l.b16 %v2766
      %v4439 = vunpack.c.l.b16 %v2768
      %v4440 = vunpack.c.l.b16 %v2769
      %v4441 = vunpack.c.l.b16 %v2770
      %v4442 = vunpack.c.l.b16 %v2771
      %v4443 = vunpack.c.l.b16 %v2773
      %v4444 = vunpack.c.l.b16 %v2774
      %v4445 = vunpack.c.l.b16 %v2775
      %v4446 = vunpack.c.l.b16 %v2776
      %v4447 = vunpack.c.l.b16 %v2778
      %v4448 = vunpack.c.l.b16 %v2779
      %v4449 = vunpack.c.l.b16 %v2780
      %v4450 = vunpack.c.l.b16 %v2781
      %v4451 = vunpack.c.l.b16 %v2783
      %v4452 = vunpack.c.l.b16 %v2784
      %v4453 = vunpack.c.l.b16 %v2785
      %v4454 = vunpack.c.l.b16 %v2786
      %v4455 = vunpack.c.l.b16 %v2788
      %v4456 = vunpack.c.l.b16 %v2789
      %v4457 = vunpack.c.l.b16 %v2790
      %v4458 = vunpack.c.l.b16 %v2791
      %v4459 = vunpack.c.l.b16 %v2793
      %v4460 = vunpack.c.l.b16 %v2794
      %v4461 = vunpack.c.l.b16 %v2795
      %v4462 = vunpack.c.l.b16 %v2796
      %v4463 = vunpack.c.l.b16 %v2798
      %v4464 = vunpack.c.l.b16 %v2799
      %v4465 = vunpack.c.l.b16 %v2800
      %v4466 = vunpack.c.l.b16 %v2801
      %v4467 = vunpack.c.l.b16 %v2803
      %v4468 = vunpack.c.l.b16 %v2804
      %v4469 = vunpack.c.l.b16 %v2805
      %v4470 = vunpack.c.l.b16 %v2806
      %v4471 = vunpack.c.l.b16 %v2808
      %v4472 = vunpack.c.l.b16 %v2809
      %v4473 = vunpack.c.l.b16 %v2810
      %v4474 = vunpack.c.l.b16 %v2811
      %v4475 = vunpack.c.l.b16 %v2813
      %v4476 = vunpack.c.l.b16 %v2814
      %v4477 = vunpack.c.l.b16 %v2815
      %v4478 = vunpack.c.l.b16 %v2816
      %v4479 = vunpack.c.l.b16 %v2818
      %v4480 = vunpack.c.l.b16 %v2819
      %v4481 = vunpack.c.l.b16 %v2820
      %v4482 = vunpack.c.l.b16 %v2821
      %v4483 = vunpack.c.l.b16 %v2823
      %v4484 = vunpack.c.l.b16 %v2824
      %v4485 = vunpack.c.l.b16 %v2825
      %v4486 = vunpack.c.l.b16 %v2826
      %v4487 = vunpack.c.l.b16 %v2828
      %v4488 = vunpack.c.l.b16 %v2829
      %v4489 = vunpack.c.l.b16 %v2830
      %v4490 = vunpack.c.l.b16 %v2831
      %v4491 = vunpack.c.l.b16 %v2833
      %v4492 = vunpack.c.l.b16 %v2834
      %v4493 = vunpack.c.l.b16 %v2835
      %v4494 = vunpack.c.l.b16 %v2836
      %v4495 = vunpack.c.l.b16 %v2838
      %v4496 = vunpack.c.l.b16 %v2839
      %v4497 = vunpack.c.l.b16 %v2840
      %v4498 = vunpack.c.l.b16 %v2841
      %v4499 = vunpack.c.l.b16 %v2843
      %v4500 = vunpack.c.l.b16 %v2844
      %v4501 = vunpack.c.l.b16 %v2845
      %v4502 = vunpack.c.l.b16 %v2846
      %v4503 = vunpack.c.l.b16 %v2848
      %v4504 = vunpack.c.l.b16 %v2849
      %v4505 = vunpack.c.l.b16 %v2850
      %v4506 = vunpack.c.l.b16 %v2851
      %v4507 = vunpack.c.l.b16 %v2853
      %v4508 = vunpack.c.l.b16 %v2854
      %v4509 = vunpack.c.l.b16 %v2855
      %v4510 = vunpack.c.l.b16 %v2856
      %v4511 = vunpack.c.l.b16 %v2858
      %v4512 = vunpack.c.l.b16 %v2859
      %v4513 = vunpack.c.l.b16 %v2860
      %v4514 = vunpack.c.l.b16 %v2861
      %v4515 = vunpack.c.l.b16 %v2863
      %v4516 = vunpack.c.l.b16 %v2864
      %v4517 = vunpack.c.l.b16 %v2865
      %v4518 = vunpack.c.l.b16 %v2866
      %v4519 = vunpack.c.l.b16 %v2868
      %v4520 = vunpack.c.l.b16 %v2869
      %v4521 = vunpack.c.l.b16 %v2870
      %v4522 = vunpack.c.l.b16 %v2871
      %v4523 = vpack.c.b16 %v4424, %v4423
      %v4524 = vpack.c.b16 %v4426, %v4425
      %v4525 = vpack.c.b16 %v4428, %v4427
      %v4526 = vpack.c.b16 %v4430, %v4429
      %v4527 = vpack.c.b16 %v4432, %v4431
      %v4528 = vpack.c.b16 %v4434, %v4433
      %v4529 = vpack.c.b16 %v4436, %v4435
      %v4530 = vpack.c.b16 %v4438, %v4437
      %v4531 = vpack.c.b16 %v4440, %v4439
      %v4532 = vpack.c.b16 %v4442, %v4441
      %v4533 = vpack.c.b16 %v4444, %v4443
      %v4534 = vpack.c.b16 %v4446, %v4445
      %v4535 = vpack.c.b16 %v4448, %v4447
      %v4536 = vpack.c.b16 %v4450, %v4449
      %v4537 = vpack.c.b16 %v4452, %v4451
      %v4538 = vpack.c.b16 %v4454, %v4453
      %v4539 = vpack.c.b16 %v4456, %v4455
      %v4540 = vpack.c.b16 %v4458, %v4457
      %v4541 = vpack.c.b16 %v4460, %v4459
      %v4542 = vpack.c.b16 %v4462, %v4461
      %v4543 = vpack.c.b16 %v4464, %v4463
      %v4544 = vpack.c.b16 %v4466, %v4465
      %v4545 = vpack.c.b16 %v4468, %v4467
      %v4546 = vpack.c.b16 %v4470, %v4469
      %v4547 = vpack.c.b16 %v4472, %v4471
      %v4548 = vpack.c.b16 %v4474, %v4473
      %v4549 = vpack.c.b16 %v4476, %v4475
      %v4550 = vpack.c.b16 %v4478, %v4477
      %v4551 = vpack.c.b16 %v4480, %v4479
      %v4552 = vpack.c.b16 %v4482, %v4481
      %v4553 = vpack.c.b16 %v4484, %v4483
      %v4554 = vpack.c.b16 %v4486, %v4485
      %v4555 = vpack.c.b16 %v4488, %v4487
      %v4556 = vpack.c.b16 %v4490, %v4489
      %v4557 = vpack.c.b16 %v4492, %v4491
      %v4558 = vpack.c.b16 %v4494, %v4493
      %v4559 = vpack.c.b16 %v4496, %v4495
      %v4560 = vpack.c.b16 %v4498, %v4497
      %v4561 = vpack.c.b16 %v4500, %v4499
      %v4562 = vpack.c.b16 %v4502, %v4501
      %v4563 = vpack.c.b16 %v4504, %v4503
      %v4564 = vpack.c.b16 %v4506, %v4505
      %v4565 = vpack.c.b16 %v4508, %v4507
      %v4566 = vpack.c.b16 %v4510, %v4509
      %v4567 = vpack.c.b16 %v4512, %v4511
      %v4568 = vpack.c.b16 %v4514, %v4513
      %v4569 = vpack.c.b16 %v4516, %v4515
      %v4570 = vpack.c.b16 %v4518, %v4517
      %v4571 = vpack.c.b16 %v4520, %v4519
      %v4572 = vpack.c.b16 %v4522, %v4521
      %v4573 = vunpack.c.l.b16 %v2886
      %v4574 = vunpack.c.l.b16 %v2896
      %v4575 = vunpack.c.l.b16 %v2906
      %v4576 = vunpack.c.l.b16 %v2916
      %v4577 = vunpack.c.l.b16 %v2930
      %v4578 = vunpack.c.l.b16 %v2940
      %v4579 = vunpack.c.l.b16 %v2950
      %v4580 = vunpack.c.l.b16 %v2960
      %v4581 = vunpack.c.l.b16 %v2974
      %v4582 = vunpack.c.l.b16 %v2984
      %v4583 = vunpack.c.l.b16 %v2994
      %v4584 = vunpack.c.l.b16 %v3004
      %v4585 = vunpack.c.l.b16 %v3018
      %v4586 = vunpack.c.l.b16 %v3028
      %v4587 = vunpack.c.l.b16 %v3038
      %v4588 = vunpack.c.l.b16 %v3048
      %v4589 = vunpack.c.l.b16 %v3062
      %v4590 = vunpack.c.l.b16 %v3072
      %v4591 = vunpack.c.l.b16 %v3082
      %v4592 = vunpack.c.l.b16 %v3092
      %v4593 = vunpack.c.l.b16 %v3106
      %v4594 = vunpack.c.l.b16 %v3116
      %v4595 = vunpack.c.l.b16 %v3126
      %v4596 = vunpack.c.l.b16 %v3136
      %v4597 = vunpack.c.l.b16 %v3150
      %v4598 = vunpack.c.l.b16 %v3160
      %v4599 = vunpack.c.l.b16 %v3170
      %v4600 = vunpack.c.l.b16 %v3180
      %v4601 = vunpack.c.l.b16 %v3194
      %v4602 = vunpack.c.l.b16 %v3204
      %v4603 = vunpack.c.l.b16 %v3214
      %v4604 = vunpack.c.l.b16 %v3224
      %v4605 = vunpack.c.l.b16 %v3238
      %v4606 = vunpack.c.l.b16 %v3248
      %v4607 = vunpack.c.l.b16 %v3258
      %v4608 = vunpack.c.l.b16 %v3268
      %v4609 = vunpack.c.l.b16 %v3282
      %v4610 = vunpack.c.l.b16 %v3292
      %v4611 = vunpack.c.l.b16 %v3302
      %v4612 = vunpack.c.l.b16 %v3312
      %v4613 = vunpack.c.l.b16 %v3326
      %v4614 = vunpack.c.l.b16 %v3336
      %v4615 = vunpack.c.l.b16 %v3346
      %v4616 = vunpack.c.l.b16 %v3356
      %v4617 = vunpack.c.l.b16 %v3370
      %v4618 = vunpack.c.l.b16 %v3380
      %v4619 = vunpack.c.l.b16 %v3390
      %v4620 = vunpack.c.l.b16 %v3400
      %v4621 = vunpack.c.l.b16 %v3414
      %v4622 = vunpack.c.l.b16 %v3424
      %v4623 = vunpack.c.l.b16 %v3434
      %v4624 = vunpack.c.l.b16 %v3444
      %v4625 = vunpack.c.l.b16 %v3458
      %v4626 = vunpack.c.l.b16 %v3468
      %v4627 = vunpack.c.l.b16 %v3478
      %v4628 = vunpack.c.l.b16 %v3488
      %v4629 = vunpack.c.l.b16 %v3502
      %v4630 = vunpack.c.l.b16 %v3512
      %v4631 = vunpack.c.l.b16 %v3522
      %v4632 = vunpack.c.l.b16 %v3532
      %v4633 = vunpack.c.l.b16 %v3546
      %v4634 = vunpack.c.l.b16 %v3556
      %v4635 = vunpack.c.l.b16 %v3566
      %v4636 = vunpack.c.l.b16 %v3576
      %v4637 = vunpack.c.l.b16 %v3590
      %v4638 = vunpack.c.l.b16 %v3600
      %v4639 = vunpack.c.l.b16 %v3610
      %v4640 = vunpack.c.l.b16 %v3620
      %v4641 = vunpack.c.l.b16 %v3634
      %v4642 = vunpack.c.l.b16 %v3644
      %v4643 = vunpack.c.l.b16 %v3654
      %v4644 = vunpack.c.l.b16 %v3664
      %v4645 = vunpack.c.l.b16 %v3678
      %v4646 = vunpack.c.l.b16 %v3688
      %v4647 = vunpack.c.l.b16 %v3698
      %v4648 = vunpack.c.l.b16 %v3708
      %v4649 = vunpack.c.l.b16 %v3722
      %v4650 = vunpack.c.l.b16 %v3732
      %v4651 = vunpack.c.l.b16 %v3742
      %v4652 = vunpack.c.l.b16 %v3752
      %v4653 = vunpack.c.l.b16 %v3766
      %v4654 = vunpack.c.l.b16 %v3776
      %v4655 = vunpack.c.l.b16 %v3786
      %v4656 = vunpack.c.l.b16 %v3796
      %v4657 = vunpack.c.l.b16 %v3810
      %v4658 = vunpack.c.l.b16 %v3820
      %v4659 = vunpack.c.l.b16 %v3830
      %v4660 = vunpack.c.l.b16 %v3840
      %v4661 = vunpack.c.l.b16 %v3854
      %v4662 = vunpack.c.l.b16 %v3864
      %v4663 = vunpack.c.l.b16 %v3874
      %v4664 = vunpack.c.l.b16 %v3884
      %v4665 = vunpack.c.l.b16 %v3898
      %v4666 = vunpack.c.l.b16 %v3908
      %v4667 = vunpack.c.l.b16 %v3918
      %v4668 = vunpack.c.l.b16 %v3928
      %v4669 = vunpack.c.l.b16 %v3942
      %v4670 = vunpack.c.l.b16 %v3952
      %v4671 = vunpack.c.l.b16 %v3962
      %v4672 = vunpack.c.l.b16 %v3972
      %v4673 = vpack.c.b16 %v4574, %v4573
      %v4674 = vpack.c.b16 %v4576, %v4575
      %v4675 = vpack.c.b16 %v4578, %v4577
      %v4676 = vpack.c.b16 %v4580, %v4579
      %v4677 = vpack.c.b16 %v4582, %v4581
      %v4678 = vpack.c.b16 %v4584, %v4583
      %v4679 = vpack.c.b16 %v4586, %v4585
      %v4680 = vpack.c.b16 %v4588, %v4587
      %v4681 = vpack.c.b16 %v4590, %v4589
      %v4682 = vpack.c.b16 %v4592, %v4591
      %v4683 = vpack.c.b16 %v4594, %v4593
      %v4684 = vpack.c.b16 %v4596, %v4595
      %v4685 = vpack.c.b16 %v4598, %v4597
      %v4686 = vpack.c.b16 %v4600, %v4599
      %v4687 = vpack.c.b16 %v4602, %v4601
      %v4688 = vpack.c.b16 %v4604, %v4603
      %v4689 = vpack.c.b16 %v4606, %v4605
      %v4690 = vpack.c.b16 %v4608, %v4607
      %v4691 = vpack.c.b16 %v4610, %v4609
      %v4692 = vpack.c.b16 %v4612, %v4611
      %v4693 = vpack.c.b16 %v4614, %v4613
      %v4694 = vpack.c.b16 %v4616, %v4615
      %v4695 = vpack.c.b16 %v4618, %v4617
      %v4696 = vpack.c.b16 %v4620, %v4619
      %v4697 = vpack.c.b16 %v4622, %v4621
      %v4698 = vpack.c.b16 %v4624, %v4623
      %v4699 = vpack.c.b16 %v4626, %v4625
      %v4700 = vpack.c.b16 %v4628, %v4627
      %v4701 = vpack.c.b16 %v4630, %v4629
      %v4702 = vpack.c.b16 %v4632, %v4631
      %v4703 = vpack.c.b16 %v4634, %v4633
      %v4704 = vpack.c.b16 %v4636, %v4635
      %v4705 = vpack.c.b16 %v4638, %v4637
      %v4706 = vpack.c.b16 %v4640, %v4639
      %v4707 = vpack.c.b16 %v4642, %v4641
      %v4708 = vpack.c.b16 %v4644, %v4643
      %v4709 = vpack.c.b16 %v4646, %v4645
      %v4710 = vpack.c.b16 %v4648, %v4647
      %v4711 = vpack.c.b16 %v4650, %v4649
      %v4712 = vpack.c.b16 %v4652, %v4651
      %v4713 = vpack.c.b16 %v4654, %v4653
      %v4714 = vpack.c.b16 %v4656, %v4655
      %v4715 = vpack.c.b16 %v4658, %v4657
      %v4716 = vpack.c.b16 %v4660, %v4659
      %v4717 = vpack.c.b16 %v4662, %v4661
      %v4718 = vpack.c.b16 %v4664, %v4663
      %v4719 = vpack.c.b16 %v4666, %v4665
      %v4720 = vpack.c.b16 %v4668, %v4667
      %v4721 = vpack.c.b16 %v4670, %v4669
      %v4722 = vpack.c.b16 %v4672, %v4671
      %4723 = vrot.lane.b32.xlu0 %v4673, 64
      %v4724 = vpop.permute.xlu0 %4723
      %4725 = vrot.lane.b32.xlu0 %v4674, 64
      %v4726 = vpop.permute.xlu0 %4725
      %4727 = vrot.lane.b32.xlu0 %v4675, 64
      %v4728 = vpop.permute.xlu0 %4727
      %4729 = vrot.lane.b32.xlu0 %v4676, 64
      %v4730 = vpop.permute.xlu0 %4729
      %4731 = vrot.lane.b32.xlu0 %v4677, 64
      %v4732 = vpop.permute.xlu0 %4731
      %4733 = vrot.lane.b32.xlu0 %v4678, 64
      %v4734 = vpop.permute.xlu0 %4733
      %4735 = vrot.lane.b32.xlu0 %v4679, 64
      %v4736 = vpop.permute.xlu0 %4735
      %4737 = vrot.lane.b32.xlu0 %v4680, 64
      %v4738 = vpop.permute.xlu0 %4737
      %4739 = vrot.lane.b32.xlu0 %v4681, 64
      %v4740 = vpop.permute.xlu0 %4739
      %4741 = vrot.lane.b32.xlu0 %v4682, 64
      %v4742 = vpop.permute.xlu0 %4741
      %4743 = vrot.lane.b32.xlu0 %v4683, 64
      %v4744 = vpop.permute.xlu0 %4743
      %4745 = vrot.lane.b32.xlu0 %v4684, 64
      %v4746 = vpop.permute.xlu0 %4745
      %4747 = vrot.lane.b32.xlu0 %v4685, 64
      %v4748 = vpop.permute.xlu0 %4747
      %4749 = vrot.lane.b32.xlu0 %v4686, 64
      %v4750 = vpop.permute.xlu0 %4749
      %4751 = vrot.lane.b32.xlu0 %v4687, 64
      %v4752 = vpop.permute.xlu0 %4751
      %4753 = vrot.lane.b32.xlu0 %v4688, 64
      %v4754 = vpop.permute.xlu0 %4753
      %4755 = vrot.lane.b32.xlu0 %v4689, 64
      %v4756 = vpop.permute.xlu0 %4755
      %4757 = vrot.lane.b32.xlu0 %v4690, 64
      %v4758 = vpop.permute.xlu0 %4757
      %4759 = vrot.lane.b32.xlu0 %v4691, 64
      %v4760 = vpop.permute.xlu0 %4759
      %4761 = vrot.lane.b32.xlu0 %v4692, 64
      %v4762 = vpop.permute.xlu0 %4761
      %4763 = vrot.lane.b32.xlu0 %v4693, 64
      %v4764 = vpop.permute.xlu0 %4763
      %4765 = vrot.lane.b32.xlu0 %v4694, 64
      %v4766 = vpop.permute.xlu0 %4765
      %4767 = vrot.lane.b32.xlu0 %v4695, 64
      %v4768 = vpop.permute.xlu0 %4767
      %4769 = vrot.lane.b32.xlu0 %v4696, 64
      %v4770 = vpop.permute.xlu0 %4769
      %4771 = vrot.lane.b32.xlu0 %v4697, 64
      %v4772 = vpop.permute.xlu0 %4771
      %4773 = vrot.lane.b32.xlu0 %v4698, 64
      %v4774 = vpop.permute.xlu0 %4773
      %4775 = vrot.lane.b32.xlu0 %v4699, 64
      %v4776 = vpop.permute.xlu0 %4775
      %4777 = vrot.lane.b32.xlu0 %v4700, 64
      %v4778 = vpop.permute.xlu0 %4777
      %4779 = vrot.lane.b32.xlu0 %v4701, 64
      %v4780 = vpop.permute.xlu0 %4779
      %4781 = vrot.lane.b32.xlu0 %v4702, 64
      %v4782 = vpop.permute.xlu0 %4781
      %4783 = vrot.lane.b32.xlu0 %v4703, 64
      %v4784 = vpop.permute.xlu0 %4783
      %4785 = vrot.lane.b32.xlu0 %v4704, 64
      %v4786 = vpop.permute.xlu0 %4785
      %4787 = vrot.lane.b32.xlu0 %v4705, 64
      %v4788 = vpop.permute.xlu0 %4787
      %4789 = vrot.lane.b32.xlu0 %v4706, 64
      %v4790 = vpop.permute.xlu0 %4789
      %4791 = vrot.lane.b32.xlu0 %v4707, 64
      %v4792 = vpop.permute.xlu0 %4791
      %4793 = vrot.lane.b32.xlu0 %v4708, 64
      %v4794 = vpop.permute.xlu0 %4793
      %4795 = vrot.lane.b32.xlu0 %v4709, 64
      %v4796 = vpop.permute.xlu0 %4795
      %4797 = vrot.lane.b32.xlu0 %v4710, 64
      %v4798 = vpop.permute.xlu0 %4797
      %4799 = vrot.lane.b32.xlu0 %v4711, 64
      %v4800 = vpop.permute.xlu0 %4799
      %4801 = vrot.lane.b32.xlu0 %v4712, 64
      %v4802 = vpop.permute.xlu0 %4801
      %4803 = vrot.lane.b32.xlu0 %v4713, 64
      %v4804 = vpop.permute.xlu0 %4803
      %4805 = vrot.lane.b32.xlu0 %v4714, 64
      %v4806 = vpop.permute.xlu0 %4805
      %4807 = vrot.lane.b32.xlu0 %v4715, 64
      %v4808 = vpop.permute.xlu0 %4807
      %4809 = vrot.lane.b32.xlu0 %v4716, 64
      %v4810 = vpop.permute.xlu0 %4809
      %4811 = vrot.lane.b32.xlu0 %v4717, 64
      %v4812 = vpop.permute.xlu0 %4811
      %4813 = vrot.lane.b32.xlu0 %v4718, 64
      %v4814 = vpop.permute.xlu0 %4813
      %4815 = vrot.lane.b32.xlu0 %v4719, 64
      %v4816 = vpop.permute.xlu0 %4815
      %4817 = vrot.lane.b32.xlu0 %v4720, 64
      %v4818 = vpop.permute.xlu0 %4817
      %4819 = vrot.lane.b32.xlu0 %v4721, 64
      %v4820 = vpop.permute.xlu0 %4819
      %4821 = vrot.lane.b32.xlu0 %v4722, 64
      %v4822 = vpop.permute.xlu0 %4821
      %v4823 = vunpack.c.l.b16 %v4101
      %v4824 = vunpack.c.l.b16 %v4104
      %v4825 = vunpack.c.l.b16 %v4107
      %v4826 = vunpack.c.l.b16 %v4110
      %v4827 = vunpack.c.l.b16 %v4114
      %v4828 = vunpack.c.l.b16 %v4117
      %v4829 = vunpack.c.l.b16 %v4120
      %v4830 = vunpack.c.l.b16 %v4123
      %v4831 = vunpack.c.l.b16 %v4127
      %v4832 = vunpack.c.l.b16 %v4130
      %v4833 = vunpack.c.l.b16 %v4133
      %v4834 = vunpack.c.l.b16 %v4136
      %v4835 = vunpack.c.l.b16 %v4140
      %v4836 = vunpack.c.l.b16 %v4143
      %v4837 = vunpack.c.l.b16 %v4146
      %v4838 = vunpack.c.l.b16 %v4149
      %v4839 = vunpack.c.l.b16 %v4153
      %v4840 = vunpack.c.l.b16 %v4156
      %v4841 = vunpack.c.l.b16 %v4159
      %v4842 = vunpack.c.l.b16 %v4162
      %v4843 = vunpack.c.l.b16 %v4166
      %v4844 = vunpack.c.l.b16 %v4169
      %v4845 = vunpack.c.l.b16 %v4172
      %v4846 = vunpack.c.l.b16 %v4175
      %v4847 = vunpack.c.l.b16 %v4179
      %v4848 = vunpack.c.l.b16 %v4182
      %v4849 = vunpack.c.l.b16 %v4185
      %v4850 = vunpack.c.l.b16 %v4188
      %v4851 = vunpack.c.l.b16 %v4192
      %v4852 = vunpack.c.l.b16 %v4195
      %v4853 = vunpack.c.l.b16 %v4198
      %v4854 = vunpack.c.l.b16 %v4201
      %v4855 = vunpack.c.l.b16 %v4205
      %v4856 = vunpack.c.l.b16 %v4208
      %v4857 = vunpack.c.l.b16 %v4211
      %v4858 = vunpack.c.l.b16 %v4214
      %v4859 = vunpack.c.l.b16 %v4218
      %v4860 = vunpack.c.l.b16 %v4221
      %v4861 = vunpack.c.l.b16 %v4224
      %v4862 = vunpack.c.l.b16 %v4227
      %v4863 = vunpack.c.l.b16 %v4231
      %v4864 = vunpack.c.l.b16 %v4234
      %v4865 = vunpack.c.l.b16 %v4237
      %v4866 = vunpack.c.l.b16 %v4240
      %v4867 = vunpack.c.l.b16 %v4244
      %v4868 = vunpack.c.l.b16 %v4247
      %v4869 = vunpack.c.l.b16 %v4250
      %v4870 = vunpack.c.l.b16 %v4253
      %v4871 = vunpack.c.l.b16 %v4257
      %v4872 = vunpack.c.l.b16 %v4260
      %v4873 = vunpack.c.l.b16 %v4263
      %v4874 = vunpack.c.l.b16 %v4266
      %v4875 = vunpack.c.l.b16 %v4270
      %v4876 = vunpack.c.l.b16 %v4273
      %v4877 = vunpack.c.l.b16 %v4276
      %v4878 = vunpack.c.l.b16 %v4279
      %v4879 = vunpack.c.l.b16 %v4283
      %v4880 = vunpack.c.l.b16 %v4286
      %v4881 = vunpack.c.l.b16 %v4289
      %v4882 = vunpack.c.l.b16 %v4292
      %v4883 = vunpack.c.l.b16 %v4296
      %v4884 = vunpack.c.l.b16 %v4299
      %v4885 = vunpack.c.l.b16 %v4302
      %v4886 = vunpack.c.l.b16 %v4305
      %v4887 = vunpack.c.l.b16 %v4309
      %v4888 = vunpack.c.l.b16 %v4312
      %v4889 = vunpack.c.l.b16 %v4315
      %v4890 = vunpack.c.l.b16 %v4318
      %v4891 = vunpack.c.l.b16 %v4322
      %v4892 = vunpack.c.l.b16 %v4325
      %v4893 = vunpack.c.l.b16 %v4328
      %v4894 = vunpack.c.l.b16 %v4331
      %v4895 = vunpack.c.l.b16 %v4335
      %v4896 = vunpack.c.l.b16 %v4338
      %v4897 = vunpack.c.l.b16 %v4341
      %v4898 = vunpack.c.l.b16 %v4344
      %v4899 = vunpack.c.l.b16 %v4348
      %v4900 = vunpack.c.l.b16 %v4351
      %v4901 = vunpack.c.l.b16 %v4354
      %v4902 = vunpack.c.l.b16 %v4357
      %v4903 = vunpack.c.l.b16 %v4361
      %v4904 = vunpack.c.l.b16 %v4364
      %v4905 = vunpack.c.l.b16 %v4367
      %v4906 = vunpack.c.l.b16 %v4370
      %v4907 = vunpack.c.l.b16 %v4374
      %v4908 = vunpack.c.l.b16 %v4377
      %v4909 = vunpack.c.l.b16 %v4380
      %v4910 = vunpack.c.l.b16 %v4383
      %v4911 = vunpack.c.l.b16 %v4387
      %v4912 = vunpack.c.l.b16 %v4390
      %v4913 = vunpack.c.l.b16 %v4393
      %v4914 = vunpack.c.l.b16 %v4396
      %v4915 = vunpack.c.l.b16 %v4400
      %v4916 = vunpack.c.l.b16 %v4403
      %v4917 = vunpack.c.l.b16 %v4406
      %v4918 = vunpack.c.l.b16 %v4409
      %v4919 = vunpack.c.l.b16 %v4413
      %v4920 = vunpack.c.l.b16 %v4416
      %v4921 = vunpack.c.l.b16 %v4419
      %v4922 = vunpack.c.l.b16 %v4422
      %v4923 = vpack.c.b16 %v4824, %v4823
      %v4924 = vpack.c.b16 %v4826, %v4825
      %v4925 = vpack.c.b16 %v4828, %v4827
      %v4926 = vpack.c.b16 %v4830, %v4829
      %v4927 = vpack.c.b16 %v4832, %v4831
      %v4928 = vpack.c.b16 %v4834, %v4833
      %v4929 = vpack.c.b16 %v4836, %v4835
      %v4930 = vpack.c.b16 %v4838, %v4837
      %v4931 = vpack.c.b16 %v4840, %v4839
      %v4932 = vpack.c.b16 %v4842, %v4841
      %v4933 = vpack.c.b16 %v4844, %v4843
      %v4934 = vpack.c.b16 %v4846, %v4845
      %v4935 = vpack.c.b16 %v4848, %v4847
      %v4936 = vpack.c.b16 %v4850, %v4849
      %v4937 = vpack.c.b16 %v4852, %v4851
      %v4938 = vpack.c.b16 %v4854, %v4853
      %v4939 = vpack.c.b16 %v4856, %v4855
      %v4940 = vpack.c.b16 %v4858, %v4857
      %v4941 = vpack.c.b16 %v4860, %v4859
      %v4942 = vpack.c.b16 %v4862, %v4861
      %v4943 = vpack.c.b16 %v4864, %v4863
      %v4944 = vpack.c.b16 %v4866, %v4865
      %v4945 = vpack.c.b16 %v4868, %v4867
      %v4946 = vpack.c.b16 %v4870, %v4869
      %v4947 = vpack.c.b16 %v4872, %v4871
      %v4948 = vpack.c.b16 %v4874, %v4873
      %v4949 = vpack.c.b16 %v4876, %v4875
      %v4950 = vpack.c.b16 %v4878, %v4877
      %v4951 = vpack.c.b16 %v4880, %v4879
      %v4952 = vpack.c.b16 %v4882, %v4881
      %v4953 = vpack.c.b16 %v4884, %v4883
      %v4954 = vpack.c.b16 %v4886, %v4885
      %v4955 = vpack.c.b16 %v4888, %v4887
      %v4956 = vpack.c.b16 %v4890, %v4889
      %v4957 = vpack.c.b16 %v4892, %v4891
      %v4958 = vpack.c.b16 %v4894, %v4893
      %v4959 = vpack.c.b16 %v4896, %v4895
      %v4960 = vpack.c.b16 %v4898, %v4897
      %v4961 = vpack.c.b16 %v4900, %v4899
      %v4962 = vpack.c.b16 %v4902, %v4901
      %v4963 = vpack.c.b16 %v4904, %v4903
      %v4964 = vpack.c.b16 %v4906, %v4905
      %v4965 = vpack.c.b16 %v4908, %v4907
      %v4966 = vpack.c.b16 %v4910, %v4909
      %v4967 = vpack.c.b16 %v4912, %v4911
      %v4968 = vpack.c.b16 %v4914, %v4913
      %v4969 = vpack.c.b16 %v4916, %v4915
      %v4970 = vpack.c.b16 %v4918, %v4917
      %v4971 = vpack.c.b16 %v4920, %v4919
      %v4972 = vpack.c.b16 %v4922, %v4921
      %v4975 = vsel %vm2519, %v4523, %v4724
      %v4979 = vsel %vm2519, %v4524, %v4726
      %v4983 = vsel %vm2519, %v4525, %v4728
      %v4987 = vsel %vm2519, %v4526, %v4730
      %v4991 = vsel %vm2519, %v4527, %v4732
      %v4995 = vsel %vm2519, %v4528, %v4734
      %v4999 = vsel %vm2519, %v4529, %v4736
      %v5003 = vsel %vm2519, %v4530, %v4738
      %v5007 = vsel %vm2519, %v4531, %v4740
      %v5011 = vsel %vm2519, %v4532, %v4742
      %v5015 = vsel %vm2519, %v4533, %v4744
      %v5019 = vsel %vm2519, %v4534, %v4746
      %v5023 = vsel %vm2519, %v4535, %v4748
      %v5027 = vsel %vm2519, %v4536, %v4750
      %v5031 = vsel %vm2519, %v4537, %v4752
      %v5035 = vsel %vm2519, %v4538, %v4754
      %v5039 = vsel %vm2519, %v4539, %v4756
      %v5043 = vsel %vm2519, %v4540, %v4758
      %v5047 = vsel %vm2519, %v4541, %v4760
      %v5051 = vsel %vm2519, %v4542, %v4762
      %v5055 = vsel %vm2519, %v4543, %v4764
      %v5059 = vsel %vm2519, %v4544, %v4766
      %v5063 = vsel %vm2519, %v4545, %v4768
      %v5067 = vsel %vm2519, %v4546, %v4770
      %v5071 = vsel %vm2519, %v4547, %v4772
      %v5075 = vsel %vm2519, %v4548, %v4774
      %v5079 = vsel %vm2519, %v4549, %v4776
      %v5083 = vsel %vm2519, %v4550, %v4778
      %v5087 = vsel %vm2519, %v4551, %v4780
      %v5091 = vsel %vm2519, %v4552, %v4782
      %v5095 = vsel %vm2519, %v4553, %v4784
      %v5099 = vsel %vm2519, %v4554, %v4786
      %v5103 = vsel %vm2519, %v4555, %v4788
      %v5107 = vsel %vm2519, %v4556, %v4790
      %v5111 = vsel %vm2519, %v4557, %v4792
      %v5115 = vsel %vm2519, %v4558, %v4794
      %v5119 = vsel %vm2519, %v4559, %v4796
      %v5123 = vsel %vm2519, %v4560, %v4798
      %v5127 = vsel %vm2519, %v4561, %v4800
      %v5131 = vsel %vm2519, %v4562, %v4802
      %v5135 = vsel %vm2519, %v4563, %v4804
      %v5139 = vsel %vm2519, %v4564, %v4806
      %v5143 = vsel %vm2519, %v4565, %v4808
      %v5147 = vsel %vm2519, %v4566, %v4810
      %v5151 = vsel %vm2519, %v4567, %v4812
      %v5155 = vsel %vm2519, %v4568, %v4814
      %v5159 = vsel %vm2519, %v4569, %v4816
      %v5163 = vsel %vm2519, %v4570, %v4818
      %v5167 = vsel %vm2519, %v4571, %v4820
      %v5171 = vsel %vm2519, %v4572, %v4822
      %s5173 = scalar_lea.vmem %s1, 96
      %v5174 = vld [vmem:[%s5173] sm:$0xf]
      %v5175 = vld [vmem:[%s5173 + $0x4] sm:$0xf]
      %v5176 = vld [vmem:[%s5173 + $0x8] sm:$0xf]
      %v5177 = vld [vmem:[%s5173 + $0xc] sm:$0xf]
      %v5178 = vld [vmem:[%s5173 + $0x10] sm:$0xf]
      %v5179 = vld [vmem:[%s5173 + $0x14] sm:$0xf]
      %v5180 = vld [vmem:[%s5173 + $0x18] sm:$0xf]
      %v5181 = vld [vmem:[%s5173 + $0x1c] sm:$0xf]
      %v5182 = vld [vmem:[%s5173 + $0x20] sm:$0xf]
      %v5183 = vld [vmem:[%s5173 + $0x24] sm:$0xf]
      %v5184 = vld [vmem:[%s5173 + $0x28] sm:$0xf]
      %v5185 = vld [vmem:[%s5173 + $0x2c] sm:$0xf]
      %v5186 = vld [vmem:[%s5173 + $0x30] sm:$0xf]
      %v5187 = vld [vmem:[%s5173 + $0x34] sm:$0xf]
      %v5188 = vld [vmem:[%s5173 + $0x38] sm:$0xf]
      %v5189 = vld [vmem:[%s5173 + $0x3c] sm:$0xf]
      %v5190 = vld [vmem:[%s5173 + $0x40] sm:$0xf]
      %v5191 = vld [vmem:[%s5173 + $0x44] sm:$0xf]
      %v5192 = vld [vmem:[%s5173 + $0x48] sm:$0xf]
      %v5193 = vld [vmem:[%s5173 + $0x4c] sm:$0xf]
      %v5194 = vld [vmem:[%s5173 + $0x50] sm:$0xf]
      %v5195 = vld [vmem:[%s5173 + $0x54] sm:$0xf]
      %v5196 = vld [vmem:[%s5173 + $0x58] sm:$0xf]
      %v5197 = vld [vmem:[%s5173 + $0x5c] sm:$0xf]
      %v5222 = vunpack.c.l.b16 %v5174
      %v5223 = vunpack.c.l.b16 %v5175
      %v5224 = vunpack.c.l.b16 %v5176
      %v5225 = vunpack.c.l.b16 %v5177
      %v5226 = vunpack.c.l.b16 %v5178
      %v5227 = vunpack.c.l.b16 %v5179
      %v5228 = vunpack.c.l.b16 %v5180
      %v5229 = vunpack.c.l.b16 %v5181
      %v5230 = vunpack.c.l.b16 %v5182
      %v5231 = vunpack.c.l.b16 %v5183
      %v5232 = vunpack.c.l.b16 %v5184
      %v5233 = vunpack.c.l.b16 %v5185
      %v5234 = vunpack.c.l.b16 %v5186
      %v5235 = vunpack.c.l.b16 %v5187
      %v5236 = vunpack.c.l.b16 %v5188
      %v5237 = vunpack.c.l.b16 %v5189
      %v5238 = vunpack.c.l.b16 %v5190
      %v5239 = vunpack.c.l.b16 %v5191
      %v5240 = vunpack.c.l.b16 %v5192
      %v5241 = vunpack.c.l.b16 %v5193
      %v5242 = vunpack.c.l.b16 %v5194
      %v5243 = vunpack.c.l.b16 %v5195
      %v5244 = vunpack.c.l.b16 %v5196
      %v5245 = vunpack.c.l.b16 %v5197
      %v5246 = vpack.c.b16 %v5223, %v5222
      %v5247 = vpack.c.b16 %v5225, %v5224
      %v5248 = vpack.c.b16 %v5227, %v5226
      %v5249 = vpack.c.b16 %v5229, %v5228
      %v5250 = vpack.c.b16 %v5231, %v5230
      %v5251 = vpack.c.b16 %v5233, %v5232
      %v5252 = vpack.c.b16 %v5235, %v5234
      %v5253 = vpack.c.b16 %v5237, %v5236
      %v5254 = vpack.c.b16 %v5239, %v5238
      %v5255 = vpack.c.b16 %v5241, %v5240
      %v5256 = vpack.c.b16 %v5243, %v5242
      %v5257 = vpack.c.b16 %v5245, %v5244
      %v5271 = vsel %vm2519, %v4923, 0
      %v5274 = vsel %vm2519, %v4924, 0
      %v5277 = vsel %vm2519, %v4925, 0
      %v5280 = vsel %vm2519, %v4926, 0
      %v5283 = vsel %vm2519, %v4927, 0
      %v5286 = vsel %vm2519, %v4928, 0
      %v5289 = vsel %vm2519, %v4929, 0
      %v5292 = vsel %vm2519, %v4930, 0
      %v5295 = vsel %vm2519, %v4931, 0
      %v5298 = vsel %vm2519, %v4932, 0
      %v5301 = vsel %vm2519, %v4933, 0
      %v5304 = vsel %vm2519, %v4934, 0
      %v5307 = vsel %vm2519, %v4935, 0
      %v5310 = vsel %vm2519, %v4936, 0
      %v5313 = vsel %vm2519, %v4937, 0
      %v5316 = vsel %vm2519, %v4938, 0
      %v5319 = vsel %vm2519, %v4939, 0
      %v5322 = vsel %vm2519, %v4940, 0
      %v5325 = vsel %vm2519, %v4941, 0
      %v5328 = vsel %vm2519, %v4942, 0
      %v5331 = vsel %vm2519, %v4943, 0
      %v5334 = vsel %vm2519, %v4944, 0
      %v5337 = vsel %vm2519, %v4945, 0
      %v5340 = vsel %vm2519, %v4946, 0
      %v5343 = vsel %vm2519, %v4947, 0
      %v5346 = vsel %vm2519, %v4948, 0
      %v5349 = vsel %vm2519, %v4949, 0
      %v5352 = vsel %vm2519, %v4950, 0
      %v5355 = vsel %vm2519, %v4951, 0
      %v5358 = vsel %vm2519, %v4952, 0
      %v5361 = vsel %vm2519, %v4953, 0
      %v5364 = vsel %vm2519, %v4954, 0
      %v5367 = vsel %vm2519, %v4955, 0
      %v5370 = vsel %vm2519, %v4956, 0
      %v5373 = vsel %vm2519, %v4957, 0
      %v5376 = vsel %vm2519, %v4958, 0
      %v5379 = vsel %vm2519, %v4959, 0
      %v5382 = vsel %vm2519, %v4960, 0
      %v5385 = vsel %vm2519, %v4961, 0
      %v5388 = vsel %vm2519, %v4962, 0
      %v5391 = vsel %vm2519, %v4963, 0
      %v5394 = vsel %vm2519, %v4964, 0
      %v5397 = vsel %vm2519, %v4965, 0
      %v5400 = vsel %vm2519, %v4966, 0
      %v5403 = vsel %vm2519, %v4967, 0
      %v5406 = vsel %vm2519, %v4968, 0
      %v5409 = vsel %vm2519, %v4969, 0
      %v5412 = vsel %vm2519, %v4970, 0
      %v5415 = vsel %vm2519, %v4971, 0
      %v5418 = vsel %vm2519, %v4972, 0
      %5420 = vmatprep.subr.bf16.mxu0 0
      %5421 = vmatpush1.bf16.msra.mxu0 %v5246
      %5422 = vmatprep.subr.bf16.mxu0 0
      %5423 = vmatpush1.bf16.msra.mxu0 %v5247
      %5424 = vmatprep.subr.bf16.mxu0 0
      %5425 = vmatpush1.bf16.msra.mxu0 %v5248
      %5426 = vmatprep.subr.bf16.mxu0 0
      %5427 = vmatpush1.bf16.msra.mxu0 %v5249
      %5428 = vmatprep.subr.bf16.mxu0 0
      %5429 = vmatpush1.bf16.msra.mxu0 %v5250
      %5430 = vmatprep.subr.bf16.mxu0 0
      %5431 = vmatpush1.bf16.msra.mxu0 %v5251
      %5432 = vmatprep.subr.bf16.mxu0 0
      %5433 = vmatpush1.bf16.msra.mxu0 %v5252
      %5434 = vmatprep.subr.bf16.mxu0 0
      %5435 = vmatpush1.bf16.msra.mxu0 %v5253
      %5436 = vmatprep.subr.bf16.mxu0 0
      %5437 = vmatpush1.bf16.msra.mxu0 %v5254
      %5438 = vmatprep.subr.bf16.mxu0 0
      %5439 = vmatpush1.bf16.msra.mxu0 %v5255
      %5440 = vmatprep.subr.bf16.mxu0 0
      %5441 = vmatpush1.bf16.msra.mxu0 %v5256
      %5442 = vmatprep.subr.bf16.mxu0 0
      %5443 = vmatpush1.bf16.msra.mxu0 %v5257
      %5444 = vmatprep.subr.bf16.mxu0 0
      %5445 = vmatpush1.bf16.msra.mxu0 0
      %5446 = vmatprep.subr.bf16.mxu0 0
      %5447 = vmatpush1.bf16.msra.mxu0 0
      %5448 = vmatprep.subr.bf16.mxu0 0
      %5449 = vmatpush1.bf16.msra.mxu0 0
      %5450 = vmatprep.subr.bf16.mxu0 0
      %5451 = vmatpush1.bf16.msra.mxu0 0
      %5452 = vmatprep.mubr.bf16.mxu0 %v5271
      %5453 = vmatmul.mubr.bf16.gmra.mrb[0].mxu0 %v4975
      %v5454 = vpop.f32.mrb[0].mxu0
      %v5455 = vadd.f32 0.0, %v5454
      %v5456 = vpop.f32.mrb[0].mxu0
      %v5457 = vpop.f32.mrb[0].mxu0
      %v5458 = vadd.f32 0.0, %v5457
      %v5459 = vpop.f32.mrb[0].mxu0
      %5460 = vmatprep.mubr.bf16.mxu0 %v5274
      %5461 = vmatmul.mubr.bf16.gmra.mrb[0].mxu0 %v4979
      %v5462 = vpop.f32.mrb[0].mxu0
      %v5463 = vadd.f32 0.0, %v5462
      %v5464 = vpop.f32.mrb[0].mxu0
      %v5465 = vpop.f32.mrb[0].mxu0
      %v5466 = vadd.f32 0.0, %v5465
      %v5467 = vpop.f32.mrb[0].mxu0
      %5468 = vmatprep.mubr.bf16.mxu0 %v5277
      %5469 = vmatmul.mubr.bf16.gmra.mrb[0].mxu0 %v4983
      %v5470 = vpop.f32.mrb[0].mxu0
      %v5471 = vadd.f32 0.0, %v5470
      %v5472 = vpop.f32.mrb[0].mxu0
      %v5473 = vpop.f32.mrb[0].mxu0
      %v5474 = vadd.f32 0.0, %v5473
      %v5475 = vpop.f32.mrb[0].mxu0
      %5476 = vmatprep.mubr.bf16.mxu0 %v5280
      %5477 = vmatmul.mubr.bf16.gmra.mrb[0].mxu0 %v4987
      %v5478 = vpop.f32.mrb[0].mxu0
      %v5479 = vadd.f32 0.0, %v5478
      %v5480 = vpop.f32.mrb[0].mxu0
      %v5481 = vpop.f32.mrb[0].mxu0
      %v5482 = vadd.f32 0.0, %v5481
      %v5483 = vpop.f32.mrb[0].mxu0
      %5484 = vmatprep.mubr.bf16.mxu0 %v5283
      %5485 = vmatmul.mubr.bf16.gmra.mrb[0].mxu0 %v4991
      %v5486 = vpop.f32.mrb[0].mxu0
      %v5487 = vadd.f32 0.0, %v5486
      %v5488 = vpop.f32.mrb[0].mxu0
      %v5489 = vpop.f32.mrb[0].mxu0
      %v5490 = vadd.f32 0.0, %v5489
      %v5491 = vpop.f32.mrb[0].mxu0
      %5492 = vmatprep.mubr.bf16.mxu0 %v5286
      %5493 = vmatmul.mubr.bf16.gmra.mrb[0].mxu0 %v4995
      %v5494 = vpop.f32.mrb[0].mxu0
      %v5495 = vadd.f32 0.0, %v5494
      %v5496 = vpop.f32.mrb[0].mxu0
      %v5497 = vpop.f32.mrb[0].mxu0
      %v5498 = vadd.f32 0.0, %v5497
      %v5499 = vpop.f32.mrb[0].mxu0
      %5500 = vmatprep.mubr.bf16.mxu0 %v5289
      %5501 = vmatmul.mubr.bf16.gmra.mrb[0].mxu0 %v4999
      %v5502 = vpop.f32.mrb[0].mxu0
      %v5503 = vadd.f32 0.0, %v5502
      %v5504 = vpop.f32.mrb[0].mxu0
      %v5505 = vpop.f32.mrb[0].mxu0
      %v5506 = vadd.f32 0.0, %v5505
      %v5507 = vpop.f32.mrb[0].mxu0
      %5508 = vmatprep.mubr.bf16.mxu0 %v5292
      %5509 = vmatmul.mubr.bf16.gmra.mrb[0].mxu0 %v5003
      %v5510 = vpop.f32.mrb[0].mxu0
      %v5511 = vadd.f32 0.0, %v5510
      %v5512 = vpop.f32.mrb[0].mxu0
      %v5513 = vpop.f32.mrb[0].mxu0
      %v5514 = vadd.f32 0.0, %v5513
      %v5515 = vpop.f32.mrb[0].mxu0
      %5516 = vmatprep.mubr.bf16.mxu0 %v5295
      %5517 = vmatmul.mubr.bf16.gmra.mrb[0].mxu0 %v5007
      %v5518 = vpop.f32.mrb[0].mxu0
      %v5519 = vadd.f32 0.0, %v5518
      %v5520 = vpop.f32.mrb[0].mxu0
      %v5521 = vpop.f32.mrb[0].mxu0
      %v5522 = vadd.f32 0.0, %v5521
      %v5523 = vpop.f32.mrb[0].mxu0
      %5524 = vmatprep.mubr.bf16.mxu0 %v5298
      %5525 = vmatmul.mubr.bf16.gmra.mrb[0].mxu0 %v5011
      %v5526 = vpop.f32.mrb[0].mxu0
      %v5527 = vadd.f32 0.0, %v5526
      %v5528 = vpop.f32.mrb[0].mxu0
      %v5529 = vpop.f32.mrb[0].mxu0
      %v5530 = vadd.f32 0.0, %v5529
      %v5531 = vpop.f32.mrb[0].mxu0
      %5532 = vmatprep.mubr.bf16.mxu0 %v5301
      %5533 = vmatmul.mubr.bf16.gmra.mrb[0].mxu0 %v5015
      %v5534 = vpop.f32.mrb[0].mxu0
      %v5535 = vadd.f32 0.0, %v5534
      %v5536 = vpop.f32.mrb[0].mxu0
      %v5537 = vpop.f32.mrb[0].mxu0
      %v5538 = vadd.f32 0.0, %v5537
      %v5539 = vpop.f32.mrb[0].mxu0
      %5540 = vmatprep.mubr.bf16.mxu0 %v5304
      %5541 = vmatmul.mubr.bf16.gmra.mrb[0].mxu0 %v5019
      %v5542 = vpop.f32.mrb[0].mxu0
      %v5543 = vadd.f32 0.0, %v5542
      %v5544 = vpop.f32.mrb[0].mxu0
      %v5545 = vpop.f32.mrb[0].mxu0
      %v5546 = vadd.f32 0.0, %v5545
      %v5547 = vpop.f32.mrb[0].mxu0
      %5548 = vmatprep.mubr.bf16.mxu0 %v5307
      %5549 = vmatmul.mubr.bf16.gmra.mrb[0].mxu0 %v5023
      %v5550 = vpop.f32.mrb[0].mxu0
      %v5551 = vadd.f32 0.0, %v5550
      %v5552 = vpop.f32.mrb[0].mxu0
      %v5553 = vpop.f32.mrb[0].mxu0
      %v5554 = vadd.f32 0.0, %v5553
      %v5555 = vpop.f32.mrb[0].mxu0
      %5556 = vmatprep.mubr.bf16.mxu0 %v5310
      %5557 = vmatmul.mubr.bf16.gmra.mrb[0].mxu0 %v5027
      %v5558 = vpop.f32.mrb[0].mxu0
      %v5559 = vadd.f32 0.0, %v5558
      %v5560 = vpop.f32.mrb[0].mxu0
      %v5561 = vpop.f32.mrb[0].mxu0
      %v5562 = vadd.f32 0.0, %v5561
      %v5563 = vpop.f32.mrb[0].mxu0
      %5564 = vmatprep.mubr.bf16.mxu0 %v5313
      %5565 = vmatmul.mubr.bf16.gmra.mrb[0].mxu0 %v5031
      %v5566 = vpop.f32.mrb[0].mxu0
      %v5567 = vadd.f32 0.0, %v5566
      %v5568 = vpop.f32.mrb[0].mxu0
      %v5569 = vpop.f32.mrb[0].mxu0
      %v5570 = vadd.f32 0.0, %v5569
      %v5571 = vpop.f32.mrb[0].mxu0
      %5572 = vmatprep.mubr.bf16.mxu0 %v5316
      %5573 = vmatmul.mubr.bf16.gmra.mrb[0].mxu0 %v5035
      %v5574 = vpop.f32.mrb[0].mxu0
      %v5575 = vadd.f32 0.0, %v5574
      %v5576 = vpop.f32.mrb[0].mxu0
      %v5577 = vpop.f32.mrb[0].mxu0
      %v5578 = vadd.f32 0.0, %v5577
      %v5579 = vpop.f32.mrb[0].mxu0
      %5580 = vmatprep.mubr.bf16.mxu0 %v5319
      %5581 = vmatmul.mubr.bf16.gmra.mrb[0].mxu0 %v5039
      %v5582 = vpop.f32.mrb[0].mxu0
      %v5583 = vadd.f32 0.0, %v5582
      %v5584 = vpop.f32.mrb[0].mxu0
      %v5585 = vpop.f32.mrb[0].mxu0
      %v5586 = vadd.f32 0.0, %v5585
      %v5587 = vpop.f32.mrb[0].mxu0
      %5588 = vmatprep.mubr.bf16.mxu0 %v5322
      %5589 = vmatmul.mubr.bf16.gmra.mrb[0].mxu0 %v5043
      %v5590 = vpop.f32.mrb[0].mxu0
      %v5591 = vadd.f32 0.0, %v5590
      %v5592 = vpop.f32.mrb[0].mxu0
      %v5593 = vpop.f32.mrb[0].mxu0
      %v5594 = vadd.f32 0.0, %v5593
      %v5595 = vpop.f32.mrb[0].mxu0
      %5596 = vmatprep.mubr.bf16.mxu0 %v5325
      %5597 = vmatmul.mubr.bf16.gmra.mrb[0].mxu0 %v5047
      %v5598 = vpop.f32.mrb[0].mxu0
      %v5599 = vadd.f32 0.0, %v5598
      %v5600 = vpop.f32.mrb[0].mxu0
      %v5601 = vpop.f32.mrb[0].mxu0
      %v5602 = vadd.f32 0.0, %v5601
      %v5603 = vpop.f32.mrb[0].mxu0
      %5604 = vmatprep.mubr.bf16.mxu0 %v5328
      %5605 = vmatmul.mubr.bf16.gmra.mrb[0].mxu0 %v5051
      %v5606 = vpop.f32.mrb[0].mxu0
      %v5607 = vadd.f32 0.0, %v5606
      %v5608 = vpop.f32.mrb[0].mxu0
      %v5609 = vpop.f32.mrb[0].mxu0
      %v5610 = vadd.f32 0.0, %v5609
      %v5611 = vpop.f32.mrb[0].mxu0
      %5612 = vmatprep.mubr.bf16.mxu0 %v5331
      %5613 = vmatmul.mubr.bf16.gmra.mrb[0].mxu0 %v5055
      %v5614 = vpop.f32.mrb[0].mxu0
      %v5615 = vadd.f32 0.0, %v5614
      %v5616 = vpop.f32.mrb[0].mxu0
      %v5617 = vpop.f32.mrb[0].mxu0
      %v5618 = vadd.f32 0.0, %v5617
      %v5619 = vpop.f32.mrb[0].mxu0
      %5620 = vmatprep.mubr.bf16.mxu0 %v5334
      %5621 = vmatmul.mubr.bf16.gmra.mrb[0].mxu0 %v5059
      %v5622 = vpop.f32.mrb[0].mxu0
      %v5623 = vadd.f32 0.0, %v5622
      %v5624 = vpop.f32.mrb[0].mxu0
      %v5625 = vpop.f32.mrb[0].mxu0
      %v5626 = vadd.f32 0.0, %v5625
      %v5627 = vpop.f32.mrb[0].mxu0
      %5628 = vmatprep.mubr.bf16.mxu0 %v5337
      %5629 = vmatmul.mubr.bf16.gmra.mrb[0].mxu0 %v5063
      %v5630 = vpop.f32.mrb[0].mxu0
      %v5631 = vadd.f32 0.0, %v5630
      %v5632 = vpop.f32.mrb[0].mxu0
      %v5633 = vpop.f32.mrb[0].mxu0
      %v5634 = vadd.f32 0.0, %v5633
      %v5635 = vpop.f32.mrb[0].mxu0
      %5636 = vmatprep.mubr.bf16.mxu0 %v5340
      %5637 = vmatmul.mubr.bf16.gmra.mrb[0].mxu0 %v5067
      %v5638 = vpop.f32.mrb[0].mxu0
      %v5639 = vadd.f32 0.0, %v5638
      %v5640 = vpop.f32.mrb[0].mxu0
      %v5641 = vpop.f32.mrb[0].mxu0
      %v5642 = vadd.f32 0.0, %v5641
      %v5643 = vpop.f32.mrb[0].mxu0
      %5644 = vmatprep.mubr.bf16.mxu0 %v5343
      %5645 = vmatmul.mubr.bf16.gmra.mrb[0].mxu0 %v5071
      %v5646 = vpop.f32.mrb[0].mxu0
      %v5647 = vadd.f32 0.0, %v5646
      %v5648 = vpop.f32.mrb[0].mxu0
      %v5649 = vpop.f32.mrb[0].mxu0
      %v5650 = vadd.f32 0.0, %v5649
      %v5651 = vpop.f32.mrb[0].mxu0
      %5652 = vmatprep.mubr.bf16.mxu0 %v5346
      %5653 = vmatmul.mubr.bf16.gmra.mrb[0].mxu0 %v5075
      %v5654 = vpop.f32.mrb[0].mxu0
      %v5655 = vadd.f32 0.0, %v5654
      %v5656 = vpop.f32.mrb[0].mxu0
      %v5657 = vpop.f32.mrb[0].mxu0
      %v5658 = vadd.f32 0.0, %v5657
      %v5659 = vpop.f32.mrb[0].mxu0
      %5660 = vmatprep.mubr.bf16.mxu0 %v5349
      %5661 = vmatmul.mubr.bf16.gmra.mrb[0].mxu0 %v5079
      %v5662 = vpop.f32.mrb[0].mxu0
      %v5663 = vadd.f32 0.0, %v5662
      %v5664 = vpop.f32.mrb[0].mxu0
      %v5665 = vpop.f32.mrb[0].mxu0
      %v5666 = vadd.f32 0.0, %v5665
      %v5667 = vpop.f32.mrb[0].mxu0
      %5668 = vmatprep.mubr.bf16.mxu0 %v5352
      %5669 = vmatmul.mubr.bf16.gmra.mrb[0].mxu0 %v5083
      %v5670 = vpop.f32.mrb[0].mxu0
      %v5671 = vadd.f32 0.0, %v5670
      %v5672 = vpop.f32.mrb[0].mxu0
      %v5673 = vpop.f32.mrb[0].mxu0
      %v5674 = vadd.f32 0.0, %v5673
      %v5675 = vpop.f32.mrb[0].mxu0
      %5676 = vmatprep.mubr.bf16.mxu0 %v5355
      %5677 = vmatmul.mubr.bf16.gmra.mrb[0].mxu0 %v5087
      %v5678 = vpop.f32.mrb[0].mxu0
      %v5679 = vadd.f32 0.0, %v5678
      %v5680 = vpop.f32.mrb[0].mxu0
      %v5681 = vpop.f32.mrb[0].mxu0
      %v5682 = vadd.f32 0.0, %v5681
      %v5683 = vpop.f32.mrb[0].mxu0
      %5684 = vmatprep.mubr.bf16.mxu0 %v5358
      %5685 = vmatmul.mubr.bf16.gmra.mrb[0].mxu0 %v5091
      %v5686 = vpop.f32.mrb[0].mxu0
      %v5687 = vadd.f32 0.0, %v5686
      %v5688 = vpop.f32.mrb[0].mxu0
      %v5689 = vpop.f32.mrb[0].mxu0
      %v5690 = vadd.f32 0.0, %v5689
      %v5691 = vpop.f32.mrb[0].mxu0
      %5692 = vmatprep.mubr.bf16.mxu0 %v5361
      %5693 = vmatmul.mubr.bf16.gmra.mrb[0].mxu0 %v5095
      %v5694 = vpop.f32.mrb[0].mxu0
      %v5695 = vadd.f32 0.0, %v5694
      %v5696 = vpop.f32.mrb[0].mxu0
      %v5697 = vpop.f32.mrb[0].mxu0
      %v5698 = vadd.f32 0.0, %v5697
      %v5699 = vpop.f32.mrb[0].mxu0
      %5700 = vmatprep.mubr.bf16.mxu0 %v5364
      %5701 = vmatmul.mubr.bf16.gmra.mrb[0].mxu0 %v5099
      %v5702 = vpop.f32.mrb[0].mxu0
      %v5703 = vadd.f32 0.0, %v5702
      %v5704 = vpop.f32.mrb[0].mxu0
      %v5705 = vpop.f32.mrb[0].mxu0
      %v5706 = vadd.f32 0.0, %v5705
      %v5707 = vpop.f32.mrb[0].mxu0
      %5708 = vmatprep.mubr.bf16.mxu0 %v5367
      %5709 = vmatmul.mubr.bf16.gmra.mrb[0].mxu0 %v5103
      %v5710 = vpop.f32.mrb[0].mxu0
      %v5711 = vadd.f32 0.0, %v5710
      %v5712 = vpop.f32.mrb[0].mxu0
      %v5713 = vpop.f32.mrb[0].mxu0
      %v5714 = vadd.f32 0.0, %v5713
      %v5715 = vpop.f32.mrb[0].mxu0
      %5716 = vmatprep.mubr.bf16.mxu0 %v5370
      %5717 = vmatmul.mubr.bf16.gmra.mrb[0].mxu0 %v5107
      %v5718 = vpop.f32.mrb[0].mxu0
      %v5719 = vadd.f32 0.0, %v5718
      %v5720 = vpop.f32.mrb[0].mxu0
      %v5721 = vpop.f32.mrb[0].mxu0
      %v5722 = vadd.f32 0.0, %v5721
      %v5723 = vpop.f32.mrb[0].mxu0
      %5724 = vmatprep.mubr.bf16.mxu0 %v5373
      %5725 = vmatmul.mubr.bf16.gmra.mrb[0].mxu0 %v5111
      %v5726 = vpop.f32.mrb[0].mxu0
      %v5727 = vadd.f32 0.0, %v5726
      %v5728 = vpop.f32.mrb[0].mxu0
      %v5729 = vpop.f32.mrb[0].mxu0
      %v5730 = vadd.f32 0.0, %v5729
      %v5731 = vpop.f32.mrb[0].mxu0
      %5732 = vmatprep.mubr.bf16.mxu0 %v5376
      %5733 = vmatmul.mubr.bf16.gmra.mrb[0].mxu0 %v5115
      %v5734 = vpop.f32.mrb[0].mxu0
      %v5735 = vadd.f32 0.0, %v5734
      %v5736 = vpop.f32.mrb[0].mxu0
      %v5737 = vpop.f32.mrb[0].mxu0
      %v5738 = vadd.f32 0.0, %v5737
      %v5739 = vpop.f32.mrb[0].mxu0
      %5740 = vmatprep.mubr.bf16.mxu0 %v5379
      %5741 = vmatmul.mubr.bf16.gmra.mrb[0].mxu0 %v5119
      %v5742 = vpop.f32.mrb[0].mxu0
      %v5743 = vadd.f32 0.0, %v5742
      %v5744 = vpop.f32.mrb[0].mxu0
      %v5745 = vpop.f32.mrb[0].mxu0
      %v5746 = vadd.f32 0.0, %v5745
      %v5747 = vpop.f32.mrb[0].mxu0
      %5748 = vmatprep.mubr.bf16.mxu0 %v5382
      %5749 = vmatmul.mubr.bf16.gmra.mrb[0].mxu0 %v5123
      %v5750 = vpop.f32.mrb[0].mxu0
      %v5751 = vadd.f32 0.0, %v5750
      %v5752 = vpop.f32.mrb[0].mxu0
      %v5753 = vpop.f32.mrb[0].mxu0
      %v5754 = vadd.f32 0.0, %v5753
      %v5755 = vpop.f32.mrb[0].mxu0
      %5756 = vmatprep.mubr.bf16.mxu0 %v5385
      %5757 = vmatmul.mubr.bf16.gmra.mrb[0].mxu0 %v5127
      %v5758 = vpop.f32.mrb[0].mxu0
      %v5759 = vadd.f32 0.0, %v5758
      %v5760 = vpop.f32.mrb[0].mxu0
      %v5761 = vpop.f32.mrb[0].mxu0
      %v5762 = vadd.f32 0.0, %v5761
      %v5763 = vpop.f32.mrb[0].mxu0
      %5764 = vmatprep.mubr.bf16.mxu0 %v5388
      %5765 = vmatmul.mubr.bf16.gmra.mrb[0].mxu0 %v5131
      %v5766 = vpop.f32.mrb[0].mxu0
      %v5767 = vadd.f32 0.0, %v5766
      %v5768 = vpop.f32.mrb[0].mxu0
      %v5769 = vpop.f32.mrb[0].mxu0
      %v5770 = vadd.f32 0.0, %v5769
      %v5771 = vpop.f32.mrb[0].mxu0
      %5772 = vmatprep.mubr.bf16.mxu0 %v5391
      %5773 = vmatmul.mubr.bf16.gmra.mrb[0].mxu0 %v5135
      %v5774 = vpop.f32.mrb[0].mxu0
      %v5775 = vadd.f32 0.0, %v5774
      %v5776 = vpop.f32.mrb[0].mxu0
      %v5777 = vpop.f32.mrb[0].mxu0
      %v5778 = vadd.f32 0.0, %v5777
      %v5779 = vpop.f32.mrb[0].mxu0
      %5780 = vmatprep.mubr.bf16.mxu0 %v5394
      %5781 = vmatmul.mubr.bf16.gmra.mrb[0].mxu0 %v5139
      %v5782 = vpop.f32.mrb[0].mxu0
      %v5783 = vadd.f32 0.0, %v5782
      %v5784 = vpop.f32.mrb[0].mxu0
      %v5785 = vpop.f32.mrb[0].mxu0
      %v5786 = vadd.f32 0.0, %v5785
      %v5787 = vpop.f32.mrb[0].mxu0
      %5788 = vmatprep.mubr.bf16.mxu0 %v5397
      %5789 = vmatmul.mubr.bf16.gmra.mrb[0].mxu0 %v5143
      %v5790 = vpop.f32.mrb[0].mxu0
      %v5791 = vadd.f32 0.0, %v5790
      %v5792 = vpop.f32.mrb[0].mxu0
      %v5793 = vpop.f32.mrb[0].mxu0
      %v5794 = vadd.f32 0.0, %v5793
      %v5795 = vpop.f32.mrb[0].mxu0
      %5796 = vmatprep.mubr.bf16.mxu0 %v5400
      %5797 = vmatmul.mubr.bf16.gmra.mrb[0].mxu0 %v5147
      %v5798 = vpop.f32.mrb[0].mxu0
      %v5799 = vadd.f32 0.0, %v5798
      %v5800 = vpop.f32.mrb[0].mxu0
      %v5801 = vpop.f32.mrb[0].mxu0
      %v5802 = vadd.f32 0.0, %v5801
      %v5803 = vpop.f32.mrb[0].mxu0
      %5804 = vmatprep.mubr.bf16.mxu0 %v5403
      %5805 = vmatmul.mubr.bf16.gmra.mrb[0].mxu0 %v5151
      %v5806 = vpop.f32.mrb[0].mxu0
      %v5807 = vadd.f32 0.0, %v5806
      %v5808 = vpop.f32.mrb[0].mxu0
      %v5809 = vpop.f32.mrb[0].mxu0
      %v5810 = vadd.f32 0.0, %v5809
      %v5811 = vpop.f32.mrb[0].mxu0
      %5812 = vmatprep.mubr.bf16.mxu0 %v5406
      %5813 = vmatmul.mubr.bf16.gmra.mrb[0].mxu0 %v5155
      %v5814 = vpop.f32.mrb[0].mxu0
      %v5815 = vadd.f32 0.0, %v5814
      %v5816 = vpop.f32.mrb[0].mxu0
      %v5817 = vpop.f32.mrb[0].mxu0
      %v5818 = vadd.f32 0.0, %v5817
      %v5819 = vpop.f32.mrb[0].mxu0
      %5820 = vmatprep.mubr.bf16.mxu0 %v5409
      %5821 = vmatmul.mubr.bf16.gmra.mrb[0].mxu0 %v5159
      %v5822 = vpop.f32.mrb[0].mxu0
      %v5823 = vadd.f32 0.0, %v5822
      %v5824 = vpop.f32.mrb[0].mxu0
      %v5825 = vpop.f32.mrb[0].mxu0
      %v5826 = vadd.f32 0.0, %v5825
      %v5827 = vpop.f32.mrb[0].mxu0
      %5828 = vmatprep.mubr.bf16.mxu0 %v5412
      %5829 = vmatmul.mubr.bf16.gmra.mrb[0].mxu0 %v5163
      %v5830 = vpop.f32.mrb[0].mxu0
      %v5831 = vadd.f32 0.0, %v5830
      %v5832 = vpop.f32.mrb[0].mxu0
      %v5833 = vpop.f32.mrb[0].mxu0
      %v5834 = vadd.f32 0.0, %v5833
      %v5835 = vpop.f32.mrb[0].mxu0
      %5836 = vmatprep.mubr.bf16.mxu0 %v5415
      %5837 = vmatmul.mubr.bf16.gmra.mrb[0].mxu0 %v5167
      %v5838 = vpop.f32.mrb[0].mxu0
      %v5839 = vadd.f32 0.0, %v5838
      %v5840 = vpop.f32.mrb[0].mxu0
      %v5841 = vpop.f32.mrb[0].mxu0
      %v5842 = vadd.f32 0.0, %v5841
      %v5843 = vpop.f32.mrb[0].mxu0
      %5844 = vmatprep.mubr.bf16.mxu0 %v5418
      %5845 = vmatmul.mubr.bf16.gmra.mrb[0].mxu0 %v5171
      %v5846 = vpop.f32.mrb[0].mxu0
      %v5847 = vadd.f32 0.0, %v5846
      %v5848 = vpop.f32.mrb[0].mxu0
      %v5849 = vpop.f32.mrb[0].mxu0
      %v5850 = vadd.f32 0.0, %v5849
      %v5851 = vpop.f32.mrb[0].mxu0
      %5852 = vdwg.mxu0
      %v5877 = vunpack.c.l.b16 %v2720
      %v5878 = vunpack.c.l.b16 %v2721
      %v5879 = vunpack.c.l.b16 %v2722
      %v5880 = vunpack.c.l.b16 %v2723
      %v5881 = vunpack.c.l.b16 %v2724
      %v5882 = vunpack.c.l.b16 %v2725
      %v5883 = vunpack.c.l.b16 %v2726
      %v5884 = vunpack.c.l.b16 %v2727
      %v5885 = vunpack.c.l.b16 %v2728
      %v5886 = vunpack.c.l.b16 %v2729
      %v5887 = vunpack.c.l.b16 %v2730
      %v5888 = vunpack.c.l.b16 %v2731
      %v5889 = vunpack.c.l.b16 %v2732
      %v5890 = vunpack.c.l.b16 %v2733
      %v5891 = vunpack.c.l.b16 %v2734
      %v5892 = vunpack.c.l.b16 %v2735
      %v5893 = vunpack.c.l.b16 %v2736
      %v5894 = vunpack.c.l.b16 %v2737
      %v5895 = vunpack.c.l.b16 %v2738
      %v5896 = vunpack.c.l.b16 %v2739
      %v5897 = vunpack.c.l.b16 %v2740
      %v5898 = vunpack.c.l.b16 %v2741
      %v5899 = vunpack.c.l.b16 %v2742
      %v5900 = vunpack.c.l.b16 %v2743
      %v5901 = vpack.c.b16 %v5878, %v5877
      %v5902 = vpack.c.b16 %v5880, %v5879
      %v5903 = vpack.c.b16 %v5882, %v5881
      %v5904 = vpack.c.b16 %v5884, %v5883
      %v5905 = vpack.c.b16 %v5886, %v5885
      %v5906 = vpack.c.b16 %v5888, %v5887
      %v5907 = vpack.c.b16 %v5890, %v5889
      %v5908 = vpack.c.b16 %v5892, %v5891
      %v5909 = vpack.c.b16 %v5894, %v5893
      %v5910 = vpack.c.b16 %v5896, %v5895
      %v5911 = vpack.c.b16 %v5898, %v5897
      %v5912 = vpack.c.b16 %v5900, %v5899
      %v5926 = vsel %vm2519, %v2469, 0
      %v5929 = vsel %vm2519, %v2470, 0
      %v5932 = vsel %vm2519, %v2471, 0
      %v5935 = vsel %vm2519, %v2472, 0
      %v5938 = vsel %vm2519, %v2473, 0
      %v5941 = vsel %vm2519, %v2474, 0
      %v5944 = vsel %vm2519, %v2475, 0
      %v5947 = vsel %vm2519, %v2476, 0
      %v5950 = vsel %vm2519, %v2477, 0
      %v5953 = vsel %vm2519, %v2478, 0
      %v5956 = vsel %vm2519, %v2479, 0
      %v5959 = vsel %vm2519, %v2480, 0
      %v5962 = vsel %vm2519, %v2481, 0
      %v5965 = vsel %vm2519, %v2482, 0
      %v5968 = vsel %vm2519, %v2483, 0
      %v5971 = vsel %vm2519, %v2484, 0
      %v5974 = vsel %vm2519, %v2485, 0
      %v5977 = vsel %vm2519, %v2486, 0
      %v5980 = vsel %vm2519, %v2487, 0
      %v5983 = vsel %vm2519, %v2488, 0
      %v5986 = vsel %vm2519, %v2489, 0
      %v5989 = vsel %vm2519, %v2490, 0
      %v5992 = vsel %vm2519, %v2491, 0
      %v5995 = vsel %vm2519, %v2492, 0
      %v5998 = vsel %vm2519, %v2493, 0
      %v6001 = vsel %vm2519, %v2494, 0
      %v6004 = vsel %vm2519, %v2495, 0
      %v6007 = vsel %vm2519, %v2496, 0
      %v6010 = vsel %vm2519, %v2497, 0
      %v6013 = vsel %vm2519, %v2498, 0
      %v6016 = vsel %vm2519, %v2499, 0
      %v6019 = vsel %vm2519, %v2500, 0
      %v6022 = vsel %vm2519, %v2501, 0
      %v6025 = vsel %vm2519, %v2502, 0
      %v6028 = vsel %vm2519, %v2503, 0
      %v6031 = vsel %vm2519, %v2504, 0
      %v6034 = vsel %vm2519, %v2505, 0
      %v6037 = vsel %vm2519, %v2506, 0
      %v6040 = vsel %vm2519, %v2507, 0
      %v6043 = vsel %vm2519, %v2508, 0
      %v6046 = vsel %vm2519, %v2509, 0
      %v6049 = vsel %vm2519, %v2510, 0
      %v6052 = vsel %vm2519, %v2511, 0
      %v6055 = vsel %vm2519, %v2512, 0
      %v6058 = vsel %vm2519, %v2513, 0
      %v6061 = vsel %vm2519, %v2514, 0
      %v6064 = vsel %vm2519, %v2515, 0
      %v6067 = vsel %vm2519, %v2516, 0
      %v6070 = vsel %vm2519, %v2517, 0
      %v6073 = vsel %vm2519, %v2518, 0
      %6075 = vmatprep.subr.bf16.mxu0 0
      %6076 = vmatpush1.bf16.msra.mxu0 %v5901
      %6077 = vmatprep.subr.bf16.mxu0 0
      %6078 = vmatpush1.bf16.msra.mxu0 %v5902
      %6079 = vmatprep.subr.bf16.mxu0 0
      %6080 = vmatpush1.bf16.msra.mxu0 %v5903
      %6081 = vmatprep.subr.bf16.mxu0 0
      %6082 = vmatpush1.bf16.msra.mxu0 %v5904
      %6083 = vmatprep.subr.bf16.mxu0 0
      %6084 = vmatpush1.bf16.msra.mxu0 %v5905
      %6085 = vmatprep.subr.bf16.mxu0 0
      %6086 = vmatpush1.bf16.msra.mxu0 %v5906
      %6087 = vmatprep.subr.bf16.mxu0 0
      %6088 = vmatpush1.bf16.msra.mxu0 %v5907
      %6089 = vmatprep.subr.bf16.mxu0 0
      %6090 = vmatpush1.bf16.msra.mxu0 %v5908
      %6091 = vmatprep.subr.bf16.mxu0 0
      %6092 = vmatpush1.bf16.msra.mxu0 %v5909
      %6093 = vmatprep.subr.bf16.mxu0 0
      %6094 = vmatpush1.bf16.msra.mxu0 %v5910
      %6095 = vmatprep.subr.bf16.mxu0 0
      %6096 = vmatpush1.bf16.msra.mxu0 %v5911
      %6097 = vmatprep.subr.bf16.mxu0 0
      %6098 = vmatpush1.bf16.msra.mxu0 %v5912
      %6099 = vmatprep.subr.bf16.mxu0 0
      %6100 = vmatpush1.bf16.msra.mxu0 0
      %6101 = vmatprep.subr.bf16.mxu0 0
      %6102 = vmatpush1.bf16.msra.mxu0 0
      %6103 = vmatprep.subr.bf16.mxu0 0
      %6104 = vmatpush1.bf16.msra.mxu0 0
      %6105 = vmatprep.subr.bf16.mxu0 0
      %6106 = vmatpush1.bf16.msra.mxu0 0
      %6107 = vmatprep.mubr.bf16.mxu0 %v5926
      %6108 = vmatmul.mubr.bf16.gmra.mrb[0].mxu0 %v2522
      %v6109 = vpop.f32.mrb[0].mxu0
      %v6110 = vadd.f32 %v5455, %v6109
      %v6111 = vpop.f32.mrb[0].mxu0
      %v6112 = vpop.f32.mrb[0].mxu0
      %v6113 = vadd.f32 %v5458, %v6112
      %v6114 = vpop.f32.mrb[0].mxu0
      %6115 = vmatprep.mubr.bf16.mxu0 %v5929
      %6116 = vmatmul.mubr.bf16.gmra.mrb[0].mxu0 %v2526
      %v6117 = vpop.f32.mrb[0].mxu0
      %v6118 = vadd.f32 %v5463, %v6117
      %v6119 = vpop.f32.mrb[0].mxu0
      %v6120 = vpop.f32.mrb[0].mxu0
      %v6121 = vadd.f32 %v5466, %v6120
      %v6122 = vpop.f32.mrb[0].mxu0
      %6123 = vmatprep.mubr.bf16.mxu0 %v5932
      %6124 = vmatmul.mubr.bf16.gmra.mrb[0].mxu0 %v2530
      %v6125 = vpop.f32.mrb[0].mxu0
      %v6126 = vadd.f32 %v5471, %v6125
      %v6127 = vpop.f32.mrb[0].mxu0
      %v6128 = vpop.f32.mrb[0].mxu0
      %v6129 = vadd.f32 %v5474, %v6128
      %v6130 = vpop.f32.mrb[0].mxu0
      %6131 = vmatprep.mubr.bf16.mxu0 %v5935
      %6132 = vmatmul.mubr.bf16.gmra.mrb[0].mxu0 %v2534
      %v6133 = vpop.f32.mrb[0].mxu0
      %v6134 = vadd.f32 %v5479, %v6133
      %v6135 = vpop.f32.mrb[0].mxu0
      %v6136 = vpop.f32.mrb[0].mxu0
      %v6137 = vadd.f32 %v5482, %v6136
      %v6138 = vpop.f32.mrb[0].mxu0
      %6139 = vmatprep.mubr.bf16.mxu0 %v5938
      %6140 = vmatmul.mubr.bf16.gmra.mrb[0].mxu0 %v2538
      %v6141 = vpop.f32.mrb[0].mxu0
      %v6142 = vadd.f32 %v5487, %v6141
      %v6143 = vpop.f32.mrb[0].mxu0
      %v6144 = vpop.f32.mrb[0].mxu0
      %v6145 = vadd.f32 %v5490, %v6144
      %v6146 = vpop.f32.mrb[0].mxu0
      %6147 = vmatprep.mubr.bf16.mxu0 %v5941
      %6148 = vmatmul.mubr.bf16.gmra.mrb[0].mxu0 %v2542
      %v6149 = vpop.f32.mrb[0].mxu0
      %v6150 = vadd.f32 %v5495, %v6149
      %v6151 = vpop.f32.mrb[0].mxu0
      %v6152 = vpop.f32.mrb[0].mxu0
      %v6153 = vadd.f32 %v5498, %v6152
      %v6154 = vpop.f32.mrb[0].mxu0
      %6155 = vmatprep.mubr.bf16.mxu0 %v5944
      %6156 = vmatmul.mubr.bf16.gmra.mrb[0].mxu0 %v2546
      %v6157 = vpop.f32.mrb[0].mxu0
      %v6158 = vadd.f32 %v5503, %v6157
      %v6159 = vpop.f32.mrb[0].mxu0
      %v6160 = vpop.f32.mrb[0].mxu0
      %v6161 = vadd.f32 %v5506, %v6160
      %v6162 = vpop.f32.mrb[0].mxu0
      %6163 = vmatprep.mubr.bf16.mxu0 %v5947
      %6164 = vmatmul.mubr.bf16.gmra.mrb[0].mxu0 %v2550
      %v6165 = vpop.f32.mrb[0].mxu0
      %v6166 = vadd.f32 %v5511, %v6165
      %v6167 = vpop.f32.mrb[0].mxu0
      %v6168 = vpop.f32.mrb[0].mxu0
      %v6169 = vadd.f32 %v5514, %v6168
      %v6170 = vpop.f32.mrb[0].mxu0
      %6171 = vmatprep.mubr.bf16.mxu0 %v5950
      %6172 = vmatmul.mubr.bf16.gmra.mrb[0].mxu0 %v2554
      %v6173 = vpop.f32.mrb[0].mxu0
      %v6174 = vadd.f32 %v5519, %v6173
      %v6175 = vpop.f32.mrb[0].mxu0
      %v6176 = vpop.f32.mrb[0].mxu0
      %v6177 = vadd.f32 %v5522, %v6176
      %v6178 = vpop.f32.mrb[0].mxu0
      %6179 = vmatprep.mubr.bf16.mxu0 %v5953
      %6180 = vmatmul.mubr.bf16.gmra.mrb[0].mxu0 %v2558
      %v6181 = vpop.f32.mrb[0].mxu0
      %v6182 = vadd.f32 %v5527, %v6181
      %v6183 = vpop.f32.mrb[0].mxu0
      %v6184 = vpop.f32.mrb[0].mxu0
      %v6185 = vadd.f32 %v5530, %v6184
      %v6186 = vpop.f32.mrb[0].mxu0
      %6187 = vmatprep.mubr.bf16.mxu0 %v5956
      %6188 = vmatmul.mubr.bf16.gmra.mrb[0].mxu0 %v2562
      %v6189 = vpop.f32.mrb[0].mxu0
      %v6190 = vadd.f32 %v5535, %v6189
      %v6191 = vpop.f32.mrb[0].mxu0
      %v6192 = vpop.f32.mrb[0].mxu0
      %v6193 = vadd.f32 %v5538, %v6192
      %v6194 = vpop.f32.mrb[0].mxu0
      %6195 = vmatprep.mubr.bf16.mxu0 %v5959
      %6196 = vmatmul.mubr.bf16.gmra.mrb[0].mxu0 %v2566
      %v6197 = vpop.f32.mrb[0].mxu0
      %v6198 = vadd.f32 %v5543, %v6197
      %v6199 = vpop.f32.mrb[0].mxu0
      %v6200 = vpop.f32.mrb[0].mxu0
      %v6201 = vadd.f32 %v5546, %v6200
      %v6202 = vpop.f32.mrb[0].mxu0
      %6203 = vmatprep.mubr.bf16.mxu0 %v5962
      %6204 = vmatmul.mubr.bf16.gmra.mrb[0].mxu0 %v2570
      %v6205 = vpop.f32.mrb[0].mxu0
      %v6206 = vadd.f32 %v5551, %v6205
      %v6207 = vpop.f32.mrb[0].mxu0
      %v6208 = vpop.f32.mrb[0].mxu0
      %v6209 = vadd.f32 %v5554, %v6208
      %v6210 = vpop.f32.mrb[0].mxu0
      %6211 = vmatprep.mubr.bf16.mxu0 %v5965
      %6212 = vmatmul.mubr.bf16.gmra.mrb[0].mxu0 %v2574
      %v6213 = vpop.f32.mrb[0].mxu0
      %v6214 = vadd.f32 %v5559, %v6213
      %v6215 = vpop.f32.mrb[0].mxu0
      %v6216 = vpop.f32.mrb[0].mxu0
      %v6217 = vadd.f32 %v5562, %v6216
      %v6218 = vpop.f32.mrb[0].mxu0
      %6219 = vmatprep.mubr.bf16.mxu0 %v5968
      %6220 = vmatmul.mubr.bf16.gmra.mrb[0].mxu0 %v2578
      %v6221 = vpop.f32.mrb[0].mxu0
      %v6222 = vadd.f32 %v5567, %v6221
      %v6223 = vpop.f32.mrb[0].mxu0
      %v6224 = vpop.f32.mrb[0].mxu0
      %v6225 = vadd.f32 %v5570, %v6224
      %v6226 = vpop.f32.mrb[0].mxu0
      %6227 = vmatprep.mubr.bf16.mxu0 %v5971
      %6228 = vmatmul.mubr.bf16.gmra.mrb[0].mxu0 %v2582
      %v6229 = vpop.f32.mrb[0].mxu0
      %v6230 = vadd.f32 %v5575, %v6229
      %v6231 = vpop.f32.mrb[0].mxu0
      %v6232 = vpop.f32.mrb[0].mxu0
      %v6233 = vadd.f32 %v5578, %v6232
      %v6234 = vpop.f32.mrb[0].mxu0
      %6235 = vmatprep.mubr.bf16.mxu0 %v5974
      %6236 = vmatmul.mubr.bf16.gmra.mrb[0].mxu0 %v2586
      %v6237 = vpop.f32.mrb[0].mxu0
      %v6238 = vadd.f32 %v5583, %v6237
      %v6239 = vpop.f32.mrb[0].mxu0
      %v6240 = vpop.f32.mrb[0].mxu0
      %v6241 = vadd.f32 %v5586, %v6240
      %v6242 = vpop.f32.mrb[0].mxu0
      %6243 = vmatprep.mubr.bf16.mxu0 %v5977
      %6244 = vmatmul.mubr.bf16.gmra.mrb[0].mxu0 %v2590
      %v6245 = vpop.f32.mrb[0].mxu0
      %v6246 = vadd.f32 %v5591, %v6245
      %v6247 = vpop.f32.mrb[0].mxu0
      %v6248 = vpop.f32.mrb[0].mxu0
      %v6249 = vadd.f32 %v5594, %v6248
      %v6250 = vpop.f32.mrb[0].mxu0
      %6251 = vmatprep.mubr.bf16.mxu0 %v5980
      %6252 = vmatmul.mubr.bf16.gmra.mrb[0].mxu0 %v2594
      %v6253 = vpop.f32.mrb[0].mxu0
      %v6254 = vadd.f32 %v5599, %v6253
      %v6255 = vpop.f32.mrb[0].mxu0
      %v6256 = vpop.f32.mrb[0].mxu0
      %v6257 = vadd.f32 %v5602, %v6256
      %v6258 = vpop.f32.mrb[0].mxu0
      %6259 = vmatprep.mubr.bf16.mxu0 %v5983
      %6260 = vmatmul.mubr.bf16.gmra.mrb[0].mxu0 %v2598
      %v6261 = vpop.f32.mrb[0].mxu0
      %v6262 = vadd.f32 %v5607, %v6261
      %v6263 = vpop.f32.mrb[0].mxu0
      %v6264 = vpop.f32.mrb[0].mxu0
      %v6265 = vadd.f32 %v5610, %v6264
      %v6266 = vpop.f32.mrb[0].mxu0
      %6267 = vmatprep.mubr.bf16.mxu0 %v5986
      %6268 = vmatmul.mubr.bf16.gmra.mrb[0].mxu0 %v2602
      %v6269 = vpop.f32.mrb[0].mxu0
      %v6270 = vadd.f32 %v5615, %v6269
      %v6271 = vpop.f32.mrb[0].mxu0
      %v6272 = vpop.f32.mrb[0].mxu0
      %v6273 = vadd.f32 %v5618, %v6272
      %v6274 = vpop.f32.mrb[0].mxu0
      %6275 = vmatprep.mubr.bf16.mxu0 %v5989
      %6276 = vmatmul.mubr.bf16.gmra.mrb[0].mxu0 %v2606
      %v6277 = vpop.f32.mrb[0].mxu0
      %v6278 = vadd.f32 %v5623, %v6277
      %v6279 = vpop.f32.mrb[0].mxu0
      %v6280 = vpop.f32.mrb[0].mxu0
      %v6281 = vadd.f32 %v5626, %v6280
      %v6282 = vpop.f32.mrb[0].mxu0
      %6283 = vmatprep.mubr.bf16.mxu0 %v5992
      %6284 = vmatmul.mubr.bf16.gmra.mrb[0].mxu0 %v2610
      %v6285 = vpop.f32.mrb[0].mxu0
      %v6286 = vadd.f32 %v5631, %v6285
      %v6287 = vpop.f32.mrb[0].mxu0
      %v6288 = vpop.f32.mrb[0].mxu0
      %v6289 = vadd.f32 %v5634, %v6288
      %v6290 = vpop.f32.mrb[0].mxu0
      %6291 = vmatprep.mubr.bf16.mxu0 %v5995
      %6292 = vmatmul.mubr.bf16.gmra.mrb[0].mxu0 %v2614
      %v6293 = vpop.f32.mrb[0].mxu0
      %v6294 = vadd.f32 %v5639, %v6293
      %v6295 = vpop.f32.mrb[0].mxu0
      %v6296 = vpop.f32.mrb[0].mxu0
      %v6297 = vadd.f32 %v5642, %v6296
      %v6298 = vpop.f32.mrb[0].mxu0
      %6299 = vmatprep.mubr.bf16.mxu0 %v5998
      %6300 = vmatmul.mubr.bf16.gmra.mrb[0].mxu0 %v2618
      %v6301 = vpop.f32.mrb[0].mxu0
      %v6302 = vadd.f32 %v5647, %v6301
      %v6303 = vpop.f32.mrb[0].mxu0
      %v6304 = vpop.f32.mrb[0].mxu0
      %v6305 = vadd.f32 %v5650, %v6304
      %v6306 = vpop.f32.mrb[0].mxu0
      %6307 = vmatprep.mubr.bf16.mxu0 %v6001
      %6308 = vmatmul.mubr.bf16.gmra.mrb[0].mxu0 %v2622
      %v6309 = vpop.f32.mrb[0].mxu0
      %v6310 = vadd.f32 %v5655, %v6309
      %v6311 = vpop.f32.mrb[0].mxu0
      %v6312 = vpop.f32.mrb[0].mxu0
      %v6313 = vadd.f32 %v5658, %v6312
      %v6314 = vpop.f32.mrb[0].mxu0
      %6315 = vmatprep.mubr.bf16.mxu0 %v6004
      %6316 = vmatmul.mubr.bf16.gmra.mrb[0].mxu0 %v2626
      %v6317 = vpop.f32.mrb[0].mxu0
      %v6318 = vadd.f32 %v5663, %v6317
      %v6319 = vpop.f32.mrb[0].mxu0
      %v6320 = vpop.f32.mrb[0].mxu0
      %v6321 = vadd.f32 %v5666, %v6320
      %v6322 = vpop.f32.mrb[0].mxu0
      %6323 = vmatprep.mubr.bf16.mxu0 %v6007
      %6324 = vmatmul.mubr.bf16.gmra.mrb[0].mxu0 %v2630
      %v6325 = vpop.f32.mrb[0].mxu0
      %v6326 = vadd.f32 %v5671, %v6325
      %v6327 = vpop.f32.mrb[0].mxu0
      %v6328 = vpop.f32.mrb[0].mxu0
      %v6329 = vadd.f32 %v5674, %v6328
      %v6330 = vpop.f32.mrb[0].mxu0
      %6331 = vmatprep.mubr.bf16.mxu0 %v6010
      %6332 = vmatmul.mubr.bf16.gmra.mrb[0].mxu0 %v2634
      %v6333 = vpop.f32.mrb[0].mxu0
      %v6334 = vadd.f32 %v5679, %v6333
      %v6335 = vpop.f32.mrb[0].mxu0
      %v6336 = vpop.f32.mrb[0].mxu0
      %v6337 = vadd.f32 %v5682, %v6336
      %v6338 = vpop.f32.mrb[0].mxu0
      %6339 = vmatprep.mubr.bf16.mxu0 %v6013
      %6340 = vmatmul.mubr.bf16.gmra.mrb[0].mxu0 %v2638
      %v6341 = vpop.f32.mrb[0].mxu0
      %v6342 = vadd.f32 %v5687, %v6341
      %v6343 = vpop.f32.mrb[0].mxu0
      %v6344 = vpop.f32.mrb[0].mxu0
      %v6345 = vadd.f32 %v5690, %v6344
      %v6346 = vpop.f32.mrb[0].mxu0
      %6347 = vmatprep.mubr.bf16.mxu0 %v6016
      %6348 = vmatmul.mubr.bf16.gmra.mrb[0].mxu0 %v2642
      %v6349 = vpop.f32.mrb[0].mxu0
      %v6350 = vadd.f32 %v5695, %v6349
      %v6351 = vpop.f32.mrb[0].mxu0
      %v6352 = vpop.f32.mrb[0].mxu0
      %v6353 = vadd.f32 %v5698, %v6352
      %v6354 = vpop.f32.mrb[0].mxu0
      %6355 = vmatprep.mubr.bf16.mxu0 %v6019
      %6356 = vmatmul.mubr.bf16.gmra.mrb[0].mxu0 %v2646
      %v6357 = vpop.f32.mrb[0].mxu0
      %v6358 = vadd.f32 %v5703, %v6357
      %v6359 = vpop.f32.mrb[0].mxu0
      %v6360 = vpop.f32.mrb[0].mxu0
      %v6361 = vadd.f32 %v5706, %v6360
      %v6362 = vpop.f32.mrb[0].mxu0
      %6363 = vmatprep.mubr.bf16.mxu0 %v6022
      %6364 = vmatmul.mubr.bf16.gmra.mrb[0].mxu0 %v2650
      %v6365 = vpop.f32.mrb[0].mxu0
      %v6366 = vadd.f32 %v5711, %v6365
      %v6367 = vpop.f32.mrb[0].mxu0
      %v6368 = vpop.f32.mrb[0].mxu0
      %v6369 = vadd.f32 %v5714, %v6368
      %v6370 = vpop.f32.mrb[0].mxu0
      %6371 = vmatprep.mubr.bf16.mxu0 %v6025
      %6372 = vmatmul.mubr.bf16.gmra.mrb[0].mxu0 %v2654
      %v6373 = vpop.f32.mrb[0].mxu0
      %v6374 = vadd.f32 %v5719, %v6373
      %v6375 = vpop.f32.mrb[0].mxu0
      %v6376 = vpop.f32.mrb[0].mxu0
      %v6377 = vadd.f32 %v5722, %v6376
      %v6378 = vpop.f32.mrb[0].mxu0
      %6379 = vmatprep.mubr.bf16.mxu0 %v6028
      %6380 = vmatmul.mubr.bf16.gmra.mrb[0].mxu0 %v2658
      %v6381 = vpop.f32.mrb[0].mxu0
      %v6382 = vadd.f32 %v5727, %v6381
      %v6383 = vpop.f32.mrb[0].mxu0
      %v6384 = vpop.f32.mrb[0].mxu0
      %v6385 = vadd.f32 %v5730, %v6384
      %v6386 = vpop.f32.mrb[0].mxu0
      %6387 = vmatprep.mubr.bf16.mxu0 %v6031
      %6388 = vmatmul.mubr.bf16.gmra.mrb[0].mxu0 %v2662
      %v6389 = vpop.f32.mrb[0].mxu0
      %v6390 = vadd.f32 %v5735, %v6389
      %v6391 = vpop.f32.mrb[0].mxu0
      %v6392 = vpop.f32.mrb[0].mxu0
      %v6393 = vadd.f32 %v5738, %v6392
      %v6394 = vpop.f32.mrb[0].mxu0
      %6395 = vmatprep.mubr.bf16.mxu0 %v6034
      %6396 = vmatmul.mubr.bf16.gmra.mrb[0].mxu0 %v2666
      %v6397 = vpop.f32.mrb[0].mxu0
      %v6398 = vadd.f32 %v5743, %v6397
      %v6399 = vpop.f32.mrb[0].mxu0
      %v6400 = vpop.f32.mrb[0].mxu0
      %v6401 = vadd.f32 %v5746, %v6400
      %v6402 = vpop.f32.mrb[0].mxu0
      %6403 = vmatprep.mubr.bf16.mxu0 %v6037
      %6404 = vmatmul.mubr.bf16.gmra.mrb[0].mxu0 %v2670
      %v6405 = vpop.f32.mrb[0].mxu0
      %v6406 = vadd.f32 %v5751, %v6405
      %v6407 = vpop.f32.mrb[0].mxu0
      %v6408 = vpop.f32.mrb[0].mxu0
      %v6409 = vadd.f32 %v5754, %v6408
      %v6410 = vpop.f32.mrb[0].mxu0
      %6411 = vmatprep.mubr.bf16.mxu0 %v6040
      %6412 = vmatmul.mubr.bf16.gmra.mrb[0].mxu0 %v2674
      %v6413 = vpop.f32.mrb[0].mxu0
      %v6414 = vadd.f32 %v5759, %v6413
      %v6415 = vpop.f32.mrb[0].mxu0
      %v6416 = vpop.f32.mrb[0].mxu0
      %v6417 = vadd.f32 %v5762, %v6416
      %v6418 = vpop.f32.mrb[0].mxu0
      %6419 = vmatprep.mubr.bf16.mxu0 %v6043
      %6420 = vmatmul.mubr.bf16.gmra.mrb[0].mxu0 %v2678
      %v6421 = vpop.f32.mrb[0].mxu0
      %v6422 = vadd.f32 %v5767, %v6421
      %v6423 = vpop.f32.mrb[0].mxu0
      %v6424 = vpop.f32.mrb[0].mxu0
      %v6425 = vadd.f32 %v5770, %v6424
      %v6426 = vpop.f32.mrb[0].mxu0
      %6427 = vmatprep.mubr.bf16.mxu0 %v6046
      %6428 = vmatmul.mubr.bf16.gmra.mrb[0].mxu0 %v2682
      %v6429 = vpop.f32.mrb[0].mxu0
      %v6430 = vadd.f32 %v5775, %v6429
      %v6431 = vpop.f32.mrb[0].mxu0
      %v6432 = vpop.f32.mrb[0].mxu0
      %v6433 = vadd.f32 %v5778, %v6432
      %v6434 = vpop.f32.mrb[0].mxu0
      %6435 = vmatprep.mubr.bf16.mxu0 %v6049
      %6436 = vmatmul.mubr.bf16.gmra.mrb[0].mxu0 %v2686
      %v6437 = vpop.f32.mrb[0].mxu0
      %v6438 = vadd.f32 %v5783, %v6437
      %v6439 = vpop.f32.mrb[0].mxu0
      %v6440 = vpop.f32.mrb[0].mxu0
      %v6441 = vadd.f32 %v5786, %v6440
      %v6442 = vpop.f32.mrb[0].mxu0
      %6443 = vmatprep.mubr.bf16.mxu0 %v6052
      %6444 = vmatmul.mubr.bf16.gmra.mrb[0].mxu0 %v2690
      %v6445 = vpop.f32.mrb[0].mxu0
      %v6446 = vadd.f32 %v5791, %v6445
      %v6447 = vpop.f32.mrb[0].mxu0
      %v6448 = vpop.f32.mrb[0].mxu0
      %v6449 = vadd.f32 %v5794, %v6448
      %v6450 = vpop.f32.mrb[0].mxu0
      %6451 = vmatprep.mubr.bf16.mxu0 %v6055
      %6452 = vmatmul.mubr.bf16.gmra.mrb[0].mxu0 %v2694
      %v6453 = vpop.f32.mrb[0].mxu0
      %v6454 = vadd.f32 %v5799, %v6453
      %v6455 = vpop.f32.mrb[0].mxu0
      %v6456 = vpop.f32.mrb[0].mxu0
      %v6457 = vadd.f32 %v5802, %v6456
      %v6458 = vpop.f32.mrb[0].mxu0
      %6459 = vmatprep.mubr.bf16.mxu0 %v6058
      %6460 = vmatmul.mubr.bf16.gmra.mrb[0].mxu0 %v2698
      %v6461 = vpop.f32.mrb[0].mxu0
      %v6462 = vadd.f32 %v5807, %v6461
      %v6463 = vpop.f32.mrb[0].mxu0
      %v6464 = vpop.f32.mrb[0].mxu0
      %v6465 = vadd.f32 %v5810, %v6464
      %v6466 = vpop.f32.mrb[0].mxu0
      %6467 = vmatprep.mubr.bf16.mxu0 %v6061
      %6468 = vmatmul.mubr.bf16.gmra.mrb[0].mxu0 %v2702
      %v6469 = vpop.f32.mrb[0].mxu0
      %v6470 = vadd.f32 %v5815, %v6469
      %v6471 = vpop.f32.mrb[0].mxu0
      %v6472 = vpop.f32.mrb[0].mxu0
      %v6473 = vadd.f32 %v5818, %v6472
      %v6474 = vpop.f32.mrb[0].mxu0
      %6475 = vmatprep.mubr.bf16.mxu0 %v6064
      %6476 = vmatmul.mubr.bf16.gmra.mrb[0].mxu0 %v2706
      %v6477 = vpop.f32.mrb[0].mxu0
      %v6478 = vadd.f32 %v5823, %v6477
      %v6479 = vpop.f32.mrb[0].mxu0
      %v6480 = vpop.f32.mrb[0].mxu0
      %v6481 = vadd.f32 %v5826, %v6480
      %v6482 = vpop.f32.mrb[0].mxu0
      %6483 = vmatprep.mubr.bf16.mxu0 %v6067
      %6484 = vmatmul.mubr.bf16.gmra.mrb[0].mxu0 %v2710
      %v6485 = vpop.f32.mrb[0].mxu0
      %v6486 = vadd.f32 %v5831, %v6485
      %v6487 = vpop.f32.mrb[0].mxu0
      %v6488 = vpop.f32.mrb[0].mxu0
      %v6489 = vadd.f32 %v5834, %v6488
      %v6490 = vpop.f32.mrb[0].mxu0
      %6491 = vmatprep.mubr.bf16.mxu0 %v6070
      %6492 = vmatmul.mubr.bf16.gmra.mrb[0].mxu0 %v2714
      %v6493 = vpop.f32.mrb[0].mxu0
      %v6494 = vadd.f32 %v5839, %v6493
      %v6495 = vpop.f32.mrb[0].mxu0
      %v6496 = vpop.f32.mrb[0].mxu0
      %v6497 = vadd.f32 %v5842, %v6496
      %v6498 = vpop.f32.mrb[0].mxu0
      %6499 = vmatprep.mubr.bf16.mxu0 %v6073
      %6500 = vmatmul.mubr.bf16.gmra.mrb[0].mxu0 %v2718
      %v6501 = vpop.f32.mrb[0].mxu0
      %v6502 = vadd.f32 %v5847, %v6501
      %v6503 = vpop.f32.mrb[0].mxu0
      %v6504 = vpop.f32.mrb[0].mxu0
      %v6505 = vadd.f32 %v5850, %v6504
      %v6506 = vpop.f32.mrb[0].mxu0
      %6507 = vdwg.mxu0
      %s6508 = sadd.s32 %s284, 2
      %s6509 = smul.u32 %s6508, 5
      %s6510 = smul.addr %s6509, 4
      %s6511 = scalar_lea.vmem %s259, %s6510
      %v6512 = vld [vmem:[%s6511] sm:$0xf]
      %v6513 = vld [vmem:[%s6511 + $0x4] sm:$0xf]
      %v6514 = vld [vmem:[%s6511 + $0x8] sm:$0xf]
      %v6515 = vld [vmem:[%s6511 + $0xc] sm:$0xf]
      %v6516 = vld [vmem:[%s6511 + $0x10] sm:$0x1]
      %v6517 = vld [vmem:[%s6511 + $0x14] sm:$0xf]
      %v6518 = vld [vmem:[%s6511 + $0x18] sm:$0xf]
      %v6519 = vld [vmem:[%s6511 + $0x1c] sm:$0xf]
      %v6520 = vld [vmem:[%s6511 + $0x20] sm:$0xf]
      %v6521 = vld [vmem:[%s6511 + $0x24] sm:$0x1]
      %v6522 = vld [vmem:[%s6511 + $0x28] sm:$0xf]
      %v6523 = vld [vmem:[%s6511 + $0x2c] sm:$0xf]
      %v6524 = vld [vmem:[%s6511 + $0x30] sm:$0xf]
      %v6525 = vld [vmem:[%s6511 + $0x34] sm:$0xf]
      %v6526 = vld [vmem:[%s6511 + $0x38] sm:$0x1]
      %v6527 = vld [vmem:[%s6511 + $0x3c] sm:$0xf]
      %v6528 = vld [vmem:[%s6511 + $0x40] sm:$0xf]
      %v6529 = vld [vmem:[%s6511 + $0x44] sm:$0xf]
      %v6530 = vld [vmem:[%s6511 + $0x48] sm:$0xf]
      %v6531 = vld [vmem:[%s6511 + $0x4c] sm:$0x1]
      %v6532 = vld [vmem:[%s6511 + $0x50] sm:$0xf]
      %v6533 = vld [vmem:[%s6511 + $0x54] sm:$0xf]
      %v6534 = vld [vmem:[%s6511 + $0x58] sm:$0xf]
      %v6535 = vld [vmem:[%s6511 + $0x5c] sm:$0xf]
      %v6536 = vld [vmem:[%s6511 + $0x60] sm:$0x1]
      %v6537 = vld [vmem:[%s6511 + $0x64] sm:$0xf]
      %v6538 = vld [vmem:[%s6511 + $0x68] sm:$0xf]
      %v6539 = vld [vmem:[%s6511 + $0x6c] sm:$0xf]
      %v6540 = vld [vmem:[%s6511 + $0x70] sm:$0xf]
      %v6541 = vld [vmem:[%s6511 + $0x74] sm:$0x1]
      %v6542 = vld [vmem:[%s6511 + $0x78] sm:$0xf]
      %v6543 = vld [vmem:[%s6511 + $0x7c] sm:$0xf]
      %v6544 = vld [vmem:[%s6511 + $0x80] sm:$0xf]
      %v6545 = vld [vmem:[%s6511 + $0x84] sm:$0xf]
      %v6546 = vld [vmem:[%s6511 + $0x88] sm:$0x1]
      %v6547 = vld [vmem:[%s6511 + $0x8c] sm:$0xf]
      %v6548 = vld [vmem:[%s6511 + $0x90] sm:$0xf]
      %v6549 = vld [vmem:[%s6511 + $0x94] sm:$0xf]
      %v6550 = vld [vmem:[%s6511 + $0x98] sm:$0xf]
      %v6551 = vld [vmem:[%s6511 + $0x9c] sm:$0x1]
      %v6552 = vld [vmem:[%s6511 + $0xa0] sm:$0xf]
      %v6553 = vld [vmem:[%s6511 + $0xa4] sm:$0xf]
      %v6554 = vld [vmem:[%s6511 + $0xa8] sm:$0xf]
      %v6555 = vld [vmem:[%s6511 + $0xac] sm:$0xf]
      %v6556 = vld [vmem:[%s6511 + $0xb0] sm:$0x1]
      %v6557 = vld [vmem:[%s6511 + $0xb4] sm:$0xf]
      %v6558 = vld [vmem:[%s6511 + $0xb8] sm:$0xf]
      %v6559 = vld [vmem:[%s6511 + $0xbc] sm:$0xf]
      %v6560 = vld [vmem:[%s6511 + $0xc0] sm:$0xf]
      %v6561 = vld [vmem:[%s6511 + $0xc4] sm:$0x1]
      %v6562 = vld [vmem:[%s6511 + $0xc8] sm:$0xf]
      %v6563 = vld [vmem:[%s6511 + $0xcc] sm:$0xf]
      %v6564 = vld [vmem:[%s6511 + $0xd0] sm:$0xf]
      %v6565 = vld [vmem:[%s6511 + $0xd4] sm:$0xf]
      %v6566 = vld [vmem:[%s6511 + $0xd8] sm:$0x1]
      %v6567 = vld [vmem:[%s6511 + $0xdc] sm:$0xf]
      %v6568 = vld [vmem:[%s6511 + $0xe0] sm:$0xf]
      %v6569 = vld [vmem:[%s6511 + $0xe4] sm:$0xf]
      %v6570 = vld [vmem:[%s6511 + $0xe8] sm:$0xf]
      %v6571 = vld [vmem:[%s6511 + $0xec] sm:$0x1]
      %v6572 = vld [vmem:[%s6511 + $0xf0] sm:$0xf]
      %v6573 = vld [vmem:[%s6511 + $0xf4] sm:$0xf]
      %v6574 = vld [vmem:[%s6511 + $0xf8] sm:$0xf]
      %v6575 = vld [vmem:[%s6511 + $0xfc] sm:$0xf]
      %v6576 = vld [vmem:[%s6511 + $0x100] sm:$0x1]
      %v6577 = vld [vmem:[%s6511 + $0x104] sm:$0xf]
      %v6578 = vld [vmem:[%s6511 + $0x108] sm:$0xf]
      %v6579 = vld [vmem:[%s6511 + $0x10c] sm:$0xf]
      %v6580 = vld [vmem:[%s6511 + $0x110] sm:$0xf]
      %v6581 = vld [vmem:[%s6511 + $0x114] sm:$0x1]
      %v6582 = vld [vmem:[%s6511 + $0x118] sm:$0xf]
      %v6583 = vld [vmem:[%s6511 + $0x11c] sm:$0xf]
      %v6584 = vld [vmem:[%s6511 + $0x120] sm:$0xf]
      %v6585 = vld [vmem:[%s6511 + $0x124] sm:$0xf]
      %v6586 = vld [vmem:[%s6511 + $0x128] sm:$0x1]
      %v6587 = vld [vmem:[%s6511 + $0x12c] sm:$0xf]
      %v6588 = vld [vmem:[%s6511 + $0x130] sm:$0xf]
      %v6589 = vld [vmem:[%s6511 + $0x134] sm:$0xf]
      %v6590 = vld [vmem:[%s6511 + $0x138] sm:$0xf]
      %v6591 = vld [vmem:[%s6511 + $0x13c] sm:$0x1]
      %v6592 = vld [vmem:[%s6511 + $0x140] sm:$0xf]
      %v6593 = vld [vmem:[%s6511 + $0x144] sm:$0xf]
      %v6594 = vld [vmem:[%s6511 + $0x148] sm:$0xf]
      %v6595 = vld [vmem:[%s6511 + $0x14c] sm:$0xf]
      %v6596 = vld [vmem:[%s6511 + $0x150] sm:$0x1]
      %v6597 = vld [vmem:[%s6511 + $0x154] sm:$0xf]
      %v6598 = vld [vmem:[%s6511 + $0x158] sm:$0xf]
      %v6599 = vld [vmem:[%s6511 + $0x15c] sm:$0xf]
      %v6600 = vld [vmem:[%s6511 + $0x160] sm:$0xf]
      %v6601 = vld [vmem:[%s6511 + $0x164] sm:$0x1]
      %v6602 = vld [vmem:[%s6511 + $0x168] sm:$0xf]
      %v6603 = vld [vmem:[%s6511 + $0x16c] sm:$0xf]
      %v6604 = vld [vmem:[%s6511 + $0x170] sm:$0xf]
      %v6605 = vld [vmem:[%s6511 + $0x174] sm:$0xf]
      %v6606 = vld [vmem:[%s6511 + $0x178] sm:$0x1]
      %v6607 = vld [vmem:[%s6511 + $0x17c] sm:$0xf]
      %v6608 = vld [vmem:[%s6511 + $0x180] sm:$0xf]
      %v6609 = vld [vmem:[%s6511 + $0x184] sm:$0xf]
      %v6610 = vld [vmem:[%s6511 + $0x188] sm:$0xf]
      %v6611 = vld [vmem:[%s6511 + $0x18c] sm:$0x1]
      %v6612 = vld [vmem:[%s6511 + $0x190] sm:$0xf]
      %v6613 = vld [vmem:[%s6511 + $0x194] sm:$0xf]
      %v6614 = vld [vmem:[%s6511 + $0x198] sm:$0xf]
      %v6615 = vld [vmem:[%s6511 + $0x19c] sm:$0xf]
      %v6616 = vld [vmem:[%s6511 + $0x1a0] sm:$0x1]
      %v6617 = vld [vmem:[%s6511 + $0x1a4] sm:$0xf]
      %v6618 = vld [vmem:[%s6511 + $0x1a8] sm:$0xf]
      %v6619 = vld [vmem:[%s6511 + $0x1ac] sm:$0xf]
      %v6620 = vld [vmem:[%s6511 + $0x1b0] sm:$0xf]
      %v6621 = vld [vmem:[%s6511 + $0x1b4] sm:$0x1]
      %v6622 = vld [vmem:[%s6511 + $0x1b8] sm:$0xf]
      %v6623 = vld [vmem:[%s6511 + $0x1bc] sm:$0xf]
      %v6624 = vld [vmem:[%s6511 + $0x1c0] sm:$0xf]
      %v6625 = vld [vmem:[%s6511 + $0x1c4] sm:$0xf]
      %v6626 = vld [vmem:[%s6511 + $0x1c8] sm:$0x1]
      %v6627 = vld [vmem:[%s6511 + $0x1cc] sm:$0xf]
      %v6628 = vld [vmem:[%s6511 + $0x1d0] sm:$0xf]
      %v6629 = vld [vmem:[%s6511 + $0x1d4] sm:$0xf]
      %v6630 = vld [vmem:[%s6511 + $0x1d8] sm:$0xf]
      %v6631 = vld [vmem:[%s6511 + $0x1dc] sm:$0x1]
      %v6632 = vld [vmem:[%s6511 + $0x1e0] sm:$0xf]
      %v6633 = vld [vmem:[%s6511 + $0x1e4] sm:$0xf]
      %v6634 = vld [vmem:[%s6511 + $0x1e8] sm:$0xf]
      %v6635 = vld [vmem:[%s6511 + $0x1ec] sm:$0xf]
      %v6636 = vld [vmem:[%s6511 + $0x1f0] sm:$0x1]
      %v6638 = vshrl.u32 %v6512, 16
      %v6640 = vrot.slane %v6638, 4
      %v6641 = vshll.u32 %v6512, 16
      %v6643 = vrot.slane %v6641, 5
      %v6644 = vor.u32 %v6640, %v6643
      %v6645 = vrot.slane %v6644, 4
      %v6647 = vshll.u32 %v6513, 16
      %v6649 = vrot.slane %v6647, 5
      %v6650 = vsel %vm415, %v6645, %v6649
      %v6651 = vshrl.u32 %v6513, 16
      %v6653 = vrot.slane %v6651, 4
      %v6654 = vor.u32 %v6653, %v6649
      %v6655 = vrot.slane %v6654, 4
      %v6657 = vshll.u32 %v6514, 16
      %v6659 = vrot.slane %v6657, 5
      %v6660 = vsel %vm415, %v6655, %v6659
      %v6661 = vshrl.u32 %v6514, 16
      %v6663 = vrot.slane %v6661, 4
      %v6664 = vor.u32 %v6663, %v6659
      %v6665 = vrot.slane %v6664, 4
      %v6667 = vshll.u32 %v6515, 16
      %v6669 = vrot.slane %v6667, 5
      %v6670 = vsel %vm415, %v6665, %v6669
      %v6671 = vshrl.u32 %v6515, 16
      %v6673 = vrot.slane %v6671, 4
      %v6674 = vor.u32 %v6673, %v6669
      %v6675 = vrot.slane %v6674, 4
      %v6677 = vshll.u32 %v6516, 16
      %v6679 = vrot.slane %v6677, 5
      %v6680 = vsel %vm415, %v6675, %v6679
      %v6682 = vshrl.u32 %v6517, 16
      %v6684 = vrot.slane %v6682, 4
      %v6685 = vshll.u32 %v6517, 16
      %v6687 = vrot.slane %v6685, 5
      %v6688 = vor.u32 %v6684, %v6687
      %v6689 = vrot.slane %v6688, 4
      %v6691 = vshll.u32 %v6518, 16
      %v6693 = vrot.slane %v6691, 5
      %v6694 = vsel %vm415, %v6689, %v6693
      %v6695 = vshrl.u32 %v6518, 16
      %v6697 = vrot.slane %v6695, 4
      %v6698 = vor.u32 %v6697, %v6693
      %v6699 = vrot.slane %v6698, 4
      %v6701 = vshll.u32 %v6519, 16
      %v6703 = vrot.slane %v6701, 5
      %v6704 = vsel %vm415, %v6699, %v6703
      %v6705 = vshrl.u32 %v6519, 16
      %v6707 = vrot.slane %v6705, 4
      %v6708 = vor.u32 %v6707, %v6703
      %v6709 = vrot.slane %v6708, 4
      %v6711 = vshll.u32 %v6520, 16
      %v6713 = vrot.slane %v6711, 5
      %v6714 = vsel %vm415, %v6709, %v6713
      %v6715 = vshrl.u32 %v6520, 16
      %v6717 = vrot.slane %v6715, 4
      %v6718 = vor.u32 %v6717, %v6713
      %v6719 = vrot.slane %v6718, 4
      %v6721 = vshll.u32 %v6521, 16
      %v6723 = vrot.slane %v6721, 5
      %v6724 = vsel %vm415, %v6719, %v6723
      %v6726 = vshrl.u32 %v6522, 16
      %v6728 = vrot.slane %v6726, 4
      %v6729 = vshll.u32 %v6522, 16
      %v6731 = vrot.slane %v6729, 5
      %v6732 = vor.u32 %v6728, %v6731
      %v6733 = vrot.slane %v6732, 4
      %v6735 = vshll.u32 %v6523, 16
      %v6737 = vrot.slane %v6735, 5
      %v6738 = vsel %vm415, %v6733, %v6737
      %v6739 = vshrl.u32 %v6523, 16
      %v6741 = vrot.slane %v6739, 4
      %v6742 = vor.u32 %v6741, %v6737
      %v6743 = vrot.slane %v6742, 4
      %v6745 = vshll.u32 %v6524, 16
      %v6747 = vrot.slane %v6745, 5
      %v6748 = vsel %vm415, %v6743, %v6747
      %v6749 = vshrl.u32 %v6524, 16
      %v6751 = vrot.slane %v6749, 4
      %v6752 = vor.u32 %v6751, %v6747
      %v6753 = vrot.slane %v6752, 4
      %v6755 = vshll.u32 %v6525, 16
      %v6757 = vrot.slane %v6755, 5
      %v6758 = vsel %vm415, %v6753, %v6757
      %v6759 = vshrl.u32 %v6525, 16
      %v6761 = vrot.slane %v6759, 4
      %v6762 = vor.u32 %v6761, %v6757
      %v6763 = vrot.slane %v6762, 4
      %v6765 = vshll.u32 %v6526, 16
      %v6767 = vrot.slane %v6765, 5
      %v6768 = vsel %vm415, %v6763, %v6767
      %v6770 = vshrl.u32 %v6527, 16
      %v6772 = vrot.slane %v6770, 4
      %v6773 = vshll.u32 %v6527, 16
      %v6775 = vrot.slane %v6773, 5
      %v6776 = vor.u32 %v6772, %v6775
      %v6777 = vrot.slane %v6776, 4
      %v6779 = vshll.u32 %v6528, 16
      %v6781 = vrot.slane %v6779, 5
      %v6782 = vsel %vm415, %v6777, %v6781
      %v6783 = vshrl.u32 %v6528, 16
      %v6785 = vrot.slane %v6783, 4
      %v6786 = vor.u32 %v6785, %v6781
      %v6787 = vrot.slane %v6786, 4
      %v6789 = vshll.u32 %v6529, 16
      %v6791 = vrot.slane %v6789, 5
      %v6792 = vsel %vm415, %v6787, %v6791
      %v6793 = vshrl.u32 %v6529, 16
      %v6795 = vrot.slane %v6793, 4
      %v6796 = vor.u32 %v6795, %v6791
      %v6797 = vrot.slane %v6796, 4
      %v6799 = vshll.u32 %v6530, 16
      %v6801 = vrot.slane %v6799, 5
      %v6802 = vsel %vm415, %v6797, %v6801
      %v6803 = vshrl.u32 %v6530, 16
      %v6805 = vrot.slane %v6803, 4
      %v6806 = vor.u32 %v6805, %v6801
      %v6807 = vrot.slane %v6806, 4
      %v6809 = vshll.u32 %v6531, 16
      %v6811 = vrot.slane %v6809, 5
      %v6812 = vsel %vm415, %v6807, %v6811
      %v6814 = vshrl.u32 %v6532, 16
      %v6816 = vrot.slane %v6814, 4
      %v6817 = vshll.u32 %v6532, 16
      %v6819 = vrot.slane %v6817, 5
      %v6820 = vor.u32 %v6816, %v6819
      %v6821 = vrot.slane %v6820, 4
      %v6823 = vshll.u32 %v6533, 16
      %v6825 = vrot.slane %v6823, 5
      %v6826 = vsel %vm415, %v6821, %v6825
      %v6827 = vshrl.u32 %v6533, 16
      %v6829 = vrot.slane %v6827, 4
      %v6830 = vor.u32 %v6829, %v6825
      %v6831 = vrot.slane %v6830, 4
      %v6833 = vshll.u32 %v6534, 16
      %v6835 = vrot.slane %v6833, 5
      %v6836 = vsel %vm415, %v6831, %v6835
      %v6837 = vshrl.u32 %v6534, 16
      %v6839 = vrot.slane %v6837, 4
      %v6840 = vor.u32 %v6839, %v6835
      %v6841 = vrot.slane %v6840, 4
      %v6843 = vshll.u32 %v6535, 16
      %v6845 = vrot.slane %v6843, 5
      %v6846 = vsel %vm415, %v6841, %v6845
      %v6847 = vshrl.u32 %v6535, 16
      %v6849 = vrot.slane %v6847, 4
      %v6850 = vor.u32 %v6849, %v6845
      %v6851 = vrot.slane %v6850, 4
      %v6853 = vshll.u32 %v6536, 16
      %v6855 = vrot.slane %v6853, 5
      %v6856 = vsel %vm415, %v6851, %v6855
      %v6858 = vshrl.u32 %v6537, 16
      %v6860 = vrot.slane %v6858, 4
      %v6861 = vshll.u32 %v6537, 16
      %v6863 = vrot.slane %v6861, 5
      %v6864 = vor.u32 %v6860, %v6863
      %v6865 = vrot.slane %v6864, 4
      %v6867 = vshll.u32 %v6538, 16
      %v6869 = vrot.slane %v6867, 5
      %v6870 = vsel %vm415, %v6865, %v6869
      %v6871 = vshrl.u32 %v6538, 16
      %v6873 = vrot.slane %v6871, 4
      %v6874 = vor.u32 %v6873, %v6869
      %v6875 = vrot.slane %v6874, 4
      %v6877 = vshll.u32 %v6539, 16
      %v6879 = vrot.slane %v6877, 5
      %v6880 = vsel %vm415, %v6875, %v6879
      %v6881 = vshrl.u32 %v6539, 16
      %v6883 = vrot.slane %v6881, 4
      %v6884 = vor.u32 %v6883, %v6879
      %v6885 = vrot.slane %v6884, 4
      %v6887 = vshll.u32 %v6540, 16
      %v6889 = vrot.slane %v6887, 5
      %v6890 = vsel %vm415, %v6885, %v6889
      %v6891 = vshrl.u32 %v6540, 16
      %v6893 = vrot.slane %v6891, 4
      %v6894 = vor.u32 %v6893, %v6889
      %v6895 = vrot.slane %v6894, 4
      %v6897 = vshll.u32 %v6541, 16
      %v6899 = vrot.slane %v6897, 5
      %v6900 = vsel %vm415, %v6895, %v6899
      %v6902 = vshrl.u32 %v6542, 16
      %v6904 = vrot.slane %v6902, 4
      %v6905 = vshll.u32 %v6542, 16
      %v6907 = vrot.slane %v6905, 5
      %v6908 = vor.u32 %v6904, %v6907
      %v6909 = vrot.slane %v6908, 4
      %v6911 = vshll.u32 %v6543, 16
      %v6913 = vrot.slane %v6911, 5
      %v6914 = vsel %vm415, %v6909, %v6913
      %v6915 = vshrl.u32 %v6543, 16
      %v6917 = vrot.slane %v6915, 4
      %v6918 = vor.u32 %v6917, %v6913
      %v6919 = vrot.slane %v6918, 4
      %v6921 = vshll.u32 %v6544, 16
      %v6923 = vrot.slane %v6921, 5
      %v6924 = vsel %vm415, %v6919, %v6923
      %v6925 = vshrl.u32 %v6544, 16
      %v6927 = vrot.slane %v6925, 4
      %v6928 = vor.u32 %v6927, %v6923
      %v6929 = vrot.slane %v6928, 4
      %v6931 = vshll.u32 %v6545, 16
      %v6933 = vrot.slane %v6931, 5
      %v6934 = vsel %vm415, %v6929, %v6933
      %v6935 = vshrl.u32 %v6545, 16
      %v6937 = vrot.slane %v6935, 4
      %v6938 = vor.u32 %v6937, %v6933
      %v6939 = vrot.slane %v6938, 4
      %v6941 = vshll.u32 %v6546, 16
      %v6943 = vrot.slane %v6941, 5
      %v6944 = vsel %vm415, %v6939, %v6943
      %v6946 = vshrl.u32 %v6547, 16
      %v6948 = vrot.slane %v6946, 4
      %v6949 = vshll.u32 %v6547, 16
      %v6951 = vrot.slane %v6949, 5
      %v6952 = vor.u32 %v6948, %v6951
      %v6953 = vrot.slane %v6952, 4
      %v6955 = vshll.u32 %v6548, 16
      %v6957 = vrot.slane %v6955, 5
      %v6958 = vsel %vm415, %v6953, %v6957
      %v6959 = vshrl.u32 %v6548, 16
      %v6961 = vrot.slane %v6959, 4
      %v6962 = vor.u32 %v6961, %v6957
      %v6963 = vrot.slane %v6962, 4
      %v6965 = vshll.u32 %v6549, 16
      %v6967 = vrot.slane %v6965, 5
      %v6968 = vsel %vm415, %v6963, %v6967
      %v6969 = vshrl.u32 %v6549, 16
      %v6971 = vrot.slane %v6969, 4
      %v6972 = vor.u32 %v6971, %v6967
      %v6973 = vrot.slane %v6972, 4
      %v6975 = vshll.u32 %v6550, 16
      %v6977 = vrot.slane %v6975, 5
      %v6978 = vsel %vm415, %v6973, %v6977
      %v6979 = vshrl.u32 %v6550, 16
      %v6981 = vrot.slane %v6979, 4
      %v6982 = vor.u32 %v6981, %v6977
      %v6983 = vrot.slane %v6982, 4
      %v6985 = vshll.u32 %v6551, 16
      %v6987 = vrot.slane %v6985, 5
      %v6988 = vsel %vm415, %v6983, %v6987
      %v6990 = vshrl.u32 %v6552, 16
      %v6992 = vrot.slane %v6990, 4
      %v6993 = vshll.u32 %v6552, 16
      %v6995 = vrot.slane %v6993, 5
      %v6996 = vor.u32 %v6992, %v6995
      %v6997 = vrot.slane %v6996, 4
      %v6999 = vshll.u32 %v6553, 16
      %v7001 = vrot.slane %v6999, 5
      %v7002 = vsel %vm415, %v6997, %v7001
      %v7003 = vshrl.u32 %v6553, 16
      %v7005 = vrot.slane %v7003, 4
      %v7006 = vor.u32 %v7005, %v7001
      %v7007 = vrot.slane %v7006, 4
      %v7009 = vshll.u32 %v6554, 16
      %v7011 = vrot.slane %v7009, 5
      %v7012 = vsel %vm415, %v7007, %v7011
      %v7013 = vshrl.u32 %v6554, 16
      %v7015 = vrot.slane %v7013, 4
      %v7016 = vor.u32 %v7015, %v7011
      %v7017 = vrot.slane %v7016, 4
      %v7019 = vshll.u32 %v6555, 16
      %v7021 = vrot.slane %v7019, 5
      %v7022 = vsel %vm415, %v7017, %v7021
      %v7023 = vshrl.u32 %v6555, 16
      %v7025 = vrot.slane %v7023, 4
      %v7026 = vor.u32 %v7025, %v7021
      %v7027 = vrot.slane %v7026, 4
      %v7029 = vshll.u32 %v6556, 16
      %v7031 = vrot.slane %v7029, 5
      %v7032 = vsel %vm415, %v7027, %v7031
      %v7034 = vshrl.u32 %v6557, 16
      %v7036 = vrot.slane %v7034, 4
      %v7037 = vshll.u32 %v6557, 16
      %v7039 = vrot.slane %v7037, 5
      %v7040 = vor.u32 %v7036, %v7039
      %v7041 = vrot.slane %v7040, 4
      %v7043 = vshll.u32 %v6558, 16
      %v7045 = vrot.slane %v7043, 5
      %v7046 = vsel %vm415, %v7041, %v7045
      %v7047 = vshrl.u32 %v6558, 16
      %v7049 = vrot.slane %v7047, 4
      %v7050 = vor.u32 %v7049, %v7045
      %v7051 = vrot.slane %v7050, 4
      %v7053 = vshll.u32 %v6559, 16
      %v7055 = vrot.slane %v7053, 5
      %v7056 = vsel %vm415, %v7051, %v7055
      %v7057 = vshrl.u32 %v6559, 16
      %v7059 = vrot.slane %v7057, 4
      %v7060 = vor.u32 %v7059, %v7055
      %v7061 = vrot.slane %v7060, 4
      %v7063 = vshll.u32 %v6560, 16
      %v7065 = vrot.slane %v7063, 5
      %v7066 = vsel %vm415, %v7061, %v7065
      %v7067 = vshrl.u32 %v6560, 16
      %v7069 = vrot.slane %v7067, 4
      %v7070 = vor.u32 %v7069, %v7065
      %v7071 = vrot.slane %v7070, 4
      %v7073 = vshll.u32 %v6561, 16
      %v7075 = vrot.slane %v7073, 5
      %v7076 = vsel %vm415, %v7071, %v7075
      %v7078 = vshrl.u32 %v6562, 16
      %v7080 = vrot.slane %v7078, 4
      %v7081 = vshll.u32 %v6562, 16
      %v7083 = vrot.slane %v7081, 5
      %v7084 = vor.u32 %v7080, %v7083
      %v7085 = vrot.slane %v7084, 4
      %v7087 = vshll.u32 %v6563, 16
      %v7089 = vrot.slane %v7087, 5
      %v7090 = vsel %vm415, %v7085, %v7089
      %v7091 = vshrl.u32 %v6563, 16
      %v7093 = vrot.slane %v7091, 4
      %v7094 = vor.u32 %v7093, %v7089
      %v7095 = vrot.slane %v7094, 4
      %v7097 = vshll.u32 %v6564, 16
      %v7099 = vrot.slane %v7097, 5
      %v7100 = vsel %vm415, %v7095, %v7099
      %v7101 = vshrl.u32 %v6564, 16
      %v7103 = vrot.slane %v7101, 4
      %v7104 = vor.u32 %v7103, %v7099
      %v7105 = vrot.slane %v7104, 4
      %v7107 = vshll.u32 %v6565, 16
      %v7109 = vrot.slane %v7107, 5
      %v7110 = vsel %vm415, %v7105, %v7109
      %v7111 = vshrl.u32 %v6565, 16
      %v7113 = vrot.slane %v7111, 4
      %v7114 = vor.u32 %v7113, %v7109
      %v7115 = vrot.slane %v7114, 4
      %v7117 = vshll.u32 %v6566, 16
      %v7119 = vrot.slane %v7117, 5
      %v7120 = vsel %vm415, %v7115, %v7119
      %v7122 = vshrl.u32 %v6567, 16
      %v7124 = vrot.slane %v7122, 4
      %v7125 = vshll.u32 %v6567, 16
      %v7127 = vrot.slane %v7125, 5
      %v7128 = vor.u32 %v7124, %v7127
      %v7129 = vrot.slane %v7128, 4
      %v7131 = vshll.u32 %v6568, 16
      %v7133 = vrot.slane %v7131, 5
      %v7134 = vsel %vm415, %v7129, %v7133
      %v7135 = vshrl.u32 %v6568, 16
      %v7137 = vrot.slane %v7135, 4
      %v7138 = vor.u32 %v7137, %v7133
      %v7139 = vrot.slane %v7138, 4
      %v7141 = vshll.u32 %v6569, 16
      %v7143 = vrot.slane %v7141, 5
      %v7144 = vsel %vm415, %v7139, %v7143
      %v7145 = vshrl.u32 %v6569, 16
      %v7147 = vrot.slane %v7145, 4
      %v7148 = vor.u32 %v7147, %v7143
      %v7149 = vrot.slane %v7148, 4
      %v7151 = vshll.u32 %v6570, 16
      %v7153 = vrot.slane %v7151, 5
      %v7154 = vsel %vm415, %v7149, %v7153
      %v7155 = vshrl.u32 %v6570, 16
      %v7157 = vrot.slane %v7155, 4
      %v7158 = vor.u32 %v7157, %v7153
      %v7159 = vrot.slane %v7158, 4
      %v7161 = vshll.u32 %v6571, 16
      %v7163 = vrot.slane %v7161, 5
      %v7164 = vsel %vm415, %v7159, %v7163
      %v7166 = vshrl.u32 %v6572, 16
      %v7168 = vrot.slane %v7166, 4
      %v7169 = vshll.u32 %v6572, 16
      %v7171 = vrot.slane %v7169, 5
      %v7172 = vor.u32 %v7168, %v7171
      %v7173 = vrot.slane %v7172, 4
      %v7175 = vshll.u32 %v6573, 16
      %v7177 = vrot.slane %v7175, 5
      %v7178 = vsel %vm415, %v7173, %v7177
      %v7179 = vshrl.u32 %v6573, 16
      %v7181 = vrot.slane %v7179, 4
      %v7182 = vor.u32 %v7181, %v7177
      %v7183 = vrot.slane %v7182, 4
      %v7185 = vshll.u32 %v6574, 16
      %v7187 = vrot.slane %v7185, 5
      %v7188 = vsel %vm415, %v7183, %v7187
      %v7189 = vshrl.u32 %v6574, 16
      %v7191 = vrot.slane %v7189, 4
      %v7192 = vor.u32 %v7191, %v7187
      %v7193 = vrot.slane %v7192, 4
      %v7195 = vshll.u32 %v6575, 16
      %v7197 = vrot.slane %v7195, 5
      %v7198 = vsel %vm415, %v7193, %v7197
      %v7199 = vshrl.u32 %v6575, 16
      %v7201 = vrot.slane %v7199, 4
      %v7202 = vor.u32 %v7201, %v7197
      %v7203 = vrot.slane %v7202, 4
      %v7205 = vshll.u32 %v6576, 16
      %v7207 = vrot.slane %v7205, 5
      %v7208 = vsel %vm415, %v7203, %v7207
      %v7210 = vshrl.u32 %v6577, 16
      %v7212 = vrot.slane %v7210, 4
      %v7213 = vshll.u32 %v6577, 16
      %v7215 = vrot.slane %v7213, 5
      %v7216 = vor.u32 %v7212, %v7215
      %v7217 = vrot.slane %v7216, 4
      %v7219 = vshll.u32 %v6578, 16
      %v7221 = vrot.slane %v7219, 5
      %v7222 = vsel %vm415, %v7217, %v7221
      %v7223 = vshrl.u32 %v6578, 16
      %v7225 = vrot.slane %v7223, 4
      %v7226 = vor.u32 %v7225, %v7221
      %v7227 = vrot.slane %v7226, 4
      %v7229 = vshll.u32 %v6579, 16
      %v7231 = vrot.slane %v7229, 5
      %v7232 = vsel %vm415, %v7227, %v7231
      %v7233 = vshrl.u32 %v6579, 16
      %v7235 = vrot.slane %v7233, 4
      %v7236 = vor.u32 %v7235, %v7231
      %v7237 = vrot.slane %v7236, 4
      %v7239 = vshll.u32 %v6580, 16
      %v7241 = vrot.slane %v7239, 5
      %v7242 = vsel %vm415, %v7237, %v7241
      %v7243 = vshrl.u32 %v6580, 16
      %v7245 = vrot.slane %v7243, 4
      %v7246 = vor.u32 %v7245, %v7241
      %v7247 = vrot.slane %v7246, 4
      %v7249 = vshll.u32 %v6581, 16
      %v7251 = vrot.slane %v7249, 5
      %v7252 = vsel %vm415, %v7247, %v7251
      %v7254 = vshrl.u32 %v6582, 16
      %v7256 = vrot.slane %v7254, 4
      %v7257 = vshll.u32 %v6582, 16
      %v7259 = vrot.slane %v7257, 5
      %v7260 = vor.u32 %v7256, %v7259
      %v7261 = vrot.slane %v7260, 4
      %v7263 = vshll.u32 %v6583, 16
      %v7265 = vrot.slane %v7263, 5
      %v7266 = vsel %vm415, %v7261, %v7265
      %v7267 = vshrl.u32 %v6583, 16
      %v7269 = vrot.slane %v7267, 4
      %v7270 = vor.u32 %v7269, %v7265
      %v7271 = vrot.slane %v7270, 4
      %v7273 = vshll.u32 %v6584, 16
      %v7275 = vrot.slane %v7273, 5
      %v7276 = vsel %vm415, %v7271, %v7275
      %v7277 = vshrl.u32 %v6584, 16
      %v7279 = vrot.slane %v7277, 4
      %v7280 = vor.u32 %v7279, %v7275
      %v7281 = vrot.slane %v7280, 4
      %v7283 = vshll.u32 %v6585, 16
      %v7285 = vrot.slane %v7283, 5
      %v7286 = vsel %vm415, %v7281, %v7285
      %v7287 = vshrl.u32 %v6585, 16
      %v7289 = vrot.slane %v7287, 4
      %v7290 = vor.u32 %v7289, %v7285
      %v7291 = vrot.slane %v7290, 4
      %v7293 = vshll.u32 %v6586, 16
      %v7295 = vrot.slane %v7293, 5
      %v7296 = vsel %vm415, %v7291, %v7295
      %v7298 = vshrl.u32 %v6587, 16
      %v7300 = vrot.slane %v7298, 4
      %v7301 = vshll.u32 %v6587, 16
      %v7303 = vrot.slane %v7301, 5
      %v7304 = vor.u32 %v7300, %v7303
      %v7305 = vrot.slane %v7304, 4
      %v7307 = vshll.u32 %v6588, 16
      %v7309 = vrot.slane %v7307, 5
      %v7310 = vsel %vm415, %v7305, %v7309
      %v7311 = vshrl.u32 %v6588, 16
      %v7313 = vrot.slane %v7311, 4
      %v7314 = vor.u32 %v7313, %v7309
      %v7315 = vrot.slane %v7314, 4
      %v7317 = vshll.u32 %v6589, 16
      %v7319 = vrot.slane %v7317, 5
      %v7320 = vsel %vm415, %v7315, %v7319
      %v7321 = vshrl.u32 %v6589, 16
      %v7323 = vrot.slane %v7321, 4
      %v7324 = vor.u32 %v7323, %v7319
      %v7325 = vrot.slane %v7324, 4
      %v7327 = vshll.u32 %v6590, 16
      %v7329 = vrot.slane %v7327, 5
      %v7330 = vsel %vm415, %v7325, %v7329
      %v7331 = vshrl.u32 %v6590, 16
      %v7333 = vrot.slane %v7331, 4
      %v7334 = vor.u32 %v7333, %v7329
      %v7335 = vrot.slane %v7334, 4
      %v7337 = vshll.u32 %v6591, 16
      %v7339 = vrot.slane %v7337, 5
      %v7340 = vsel %vm415, %v7335, %v7339
      %v7342 = vshrl.u32 %v6592, 16
      %v7344 = vrot.slane %v7342, 4
      %v7345 = vshll.u32 %v6592, 16
      %v7347 = vrot.slane %v7345, 5
      %v7348 = vor.u32 %v7344, %v7347
      %v7349 = vrot.slane %v7348, 4
      %v7351 = vshll.u32 %v6593, 16
      %v7353 = vrot.slane %v7351, 5
      %v7354 = vsel %vm415, %v7349, %v7353
      %v7355 = vshrl.u32 %v6593, 16
      %v7357 = vrot.slane %v7355, 4
      %v7358 = vor.u32 %v7357, %v7353
      %v7359 = vrot.slane %v7358, 4
      %v7361 = vshll.u32 %v6594, 16
      %v7363 = vrot.slane %v7361, 5
      %v7364 = vsel %vm415, %v7359, %v7363
      %v7365 = vshrl.u32 %v6594, 16
      %v7367 = vrot.slane %v7365, 4
      %v7368 = vor.u32 %v7367, %v7363
      %v7369 = vrot.slane %v7368, 4
      %v7371 = vshll.u32 %v6595, 16
      %v7373 = vrot.slane %v7371, 5
      %v7374 = vsel %vm415, %v7369, %v7373
      %v7375 = vshrl.u32 %v6595, 16
      %v7377 = vrot.slane %v7375, 4
      %v7378 = vor.u32 %v7377, %v7373
      %v7379 = vrot.slane %v7378, 4
      %v7381 = vshll.u32 %v6596, 16
      %v7383 = vrot.slane %v7381, 5
      %v7384 = vsel %vm415, %v7379, %v7383
      %v7386 = vshrl.u32 %v6597, 16
      %v7388 = vrot.slane %v7386, 4
      %v7389 = vshll.u32 %v6597, 16
      %v7391 = vrot.slane %v7389, 5
      %v7392 = vor.u32 %v7388, %v7391
      %v7393 = vrot.slane %v7392, 4
      %v7395 = vshll.u32 %v6598, 16
      %v7397 = vrot.slane %v7395, 5
      %v7398 = vsel %vm415, %v7393, %v7397
      %v7399 = vshrl.u32 %v6598, 16
      %v7401 = vrot.slane %v7399, 4
      %v7402 = vor.u32 %v7401, %v7397
      %v7403 = vrot.slane %v7402, 4
      %v7405 = vshll.u32 %v6599, 16
      %v7407 = vrot.slane %v7405, 5
      %v7408 = vsel %vm415, %v7403, %v7407
      %v7409 = vshrl.u32 %v6599, 16
      %v7411 = vrot.slane %v7409, 4
      %v7412 = vor.u32 %v7411, %v7407
      %v7413 = vrot.slane %v7412, 4
      %v7415 = vshll.u32 %v6600, 16
      %v7417 = vrot.slane %v7415, 5
      %v7418 = vsel %vm415, %v7413, %v7417
      %v7419 = vshrl.u32 %v6600, 16
      %v7421 = vrot.slane %v7419, 4
      %v7422 = vor.u32 %v7421, %v7417
      %v7423 = vrot.slane %v7422, 4
      %v7425 = vshll.u32 %v6601, 16
      %v7427 = vrot.slane %v7425, 5
      %v7428 = vsel %vm415, %v7423, %v7427
      %v7430 = vshrl.u32 %v6602, 16
      %v7432 = vrot.slane %v7430, 4
      %v7433 = vshll.u32 %v6602, 16
      %v7435 = vrot.slane %v7433, 5
      %v7436 = vor.u32 %v7432, %v7435
      %v7437 = vrot.slane %v7436, 4
      %v7439 = vshll.u32 %v6603, 16
      %v7441 = vrot.slane %v7439, 5
      %v7442 = vsel %vm415, %v7437, %v7441
      %v7443 = vshrl.u32 %v6603, 16
      %v7445 = vrot.slane %v7443, 4
      %v7446 = vor.u32 %v7445, %v7441
      %v7447 = vrot.slane %v7446, 4
      %v7449 = vshll.u32 %v6604, 16
      %v7451 = vrot.slane %v7449, 5
      %v7452 = vsel %vm415, %v7447, %v7451
      %v7453 = vshrl.u32 %v6604, 16
      %v7455 = vrot.slane %v7453, 4
      %v7456 = vor.u32 %v7455, %v7451
      %v7457 = vrot.slane %v7456, 4
      %v7459 = vshll.u32 %v6605, 16
      %v7461 = vrot.slane %v7459, 5
      %v7462 = vsel %vm415, %v7457, %v7461
      %v7463 = vshrl.u32 %v6605, 16
      %v7465 = vrot.slane %v7463, 4
      %v7466 = vor.u32 %v7465, %v7461
      %v7467 = vrot.slane %v7466, 4
      %v7469 = vshll.u32 %v6606, 16
      %v7471 = vrot.slane %v7469, 5
      %v7472 = vsel %vm415, %v7467, %v7471
      %v7474 = vshrl.u32 %v6607, 16
      %v7476 = vrot.slane %v7474, 4
      %v7477 = vshll.u32 %v6607, 16
      %v7479 = vrot.slane %v7477, 5
      %v7480 = vor.u32 %v7476, %v7479
      %v7481 = vrot.slane %v7480, 4
      %v7483 = vshll.u32 %v6608, 16
      %v7485 = vrot.slane %v7483, 5
      %v7486 = vsel %vm415, %v7481, %v7485
      %v7487 = vshrl.u32 %v6608, 16
      %v7489 = vrot.slane %v7487, 4
      %v7490 = vor.u32 %v7489, %v7485
      %v7491 = vrot.slane %v7490, 4
      %v7493 = vshll.u32 %v6609, 16
      %v7495 = vrot.slane %v7493, 5
      %v7496 = vsel %vm415, %v7491, %v7495
      %v7497 = vshrl.u32 %v6609, 16
      %v7499 = vrot.slane %v7497, 4
      %v7500 = vor.u32 %v7499, %v7495
      %v7501 = vrot.slane %v7500, 4
      %v7503 = vshll.u32 %v6610, 16
      %v7505 = vrot.slane %v7503, 5
      %v7506 = vsel %vm415, %v7501, %v7505
      %v7507 = vshrl.u32 %v6610, 16
      %v7509 = vrot.slane %v7507, 4
      %v7510 = vor.u32 %v7509, %v7505
      %v7511 = vrot.slane %v7510, 4
      %v7513 = vshll.u32 %v6611, 16
      %v7515 = vrot.slane %v7513, 5
      %v7516 = vsel %vm415, %v7511, %v7515
      %v7518 = vshrl.u32 %v6612, 16
      %v7520 = vrot.slane %v7518, 4
      %v7521 = vshll.u32 %v6612, 16
      %v7523 = vrot.slane %v7521, 5
      %v7524 = vor.u32 %v7520, %v7523
      %v7525 = vrot.slane %v7524, 4
      %v7527 = vshll.u32 %v6613, 16
      %v7529 = vrot.slane %v7527, 5
      %v7530 = vsel %vm415, %v7525, %v7529
      %v7531 = vshrl.u32 %v6613, 16
      %v7533 = vrot.slane %v7531, 4
      %v7534 = vor.u32 %v7533, %v7529
      %v7535 = vrot.slane %v7534, 4
      %v7537 = vshll.u32 %v6614, 16
      %v7539 = vrot.slane %v7537, 5
      %v7540 = vsel %vm415, %v7535, %v7539
      %v7541 = vshrl.u32 %v6614, 16
      %v7543 = vrot.slane %v7541, 4
      %v7544 = vor.u32 %v7543, %v7539
      %v7545 = vrot.slane %v7544, 4
      %v7547 = vshll.u32 %v6615, 16
      %v7549 = vrot.slane %v7547, 5
      %v7550 = vsel %vm415, %v7545, %v7549
      %v7551 = vshrl.u32 %v6615, 16
      %v7553 = vrot.slane %v7551, 4
      %v7554 = vor.u32 %v7553, %v7549
      %v7555 = vrot.slane %v7554, 4
      %v7557 = vshll.u32 %v6616, 16
      %v7559 = vrot.slane %v7557, 5
      %v7560 = vsel %vm415, %v7555, %v7559
      %v7562 = vshrl.u32 %v6617, 16
      %v7564 = vrot.slane %v7562, 4
      %v7565 = vshll.u32 %v6617, 16
      %v7567 = vrot.slane %v7565, 5
      %v7568 = vor.u32 %v7564, %v7567
      %v7569 = vrot.slane %v7568, 4
      %v7571 = vshll.u32 %v6618, 16
      %v7573 = vrot.slane %v7571, 5
      %v7574 = vsel %vm415, %v7569, %v7573
      %v7575 = vshrl.u32 %v6618, 16
      %v7577 = vrot.slane %v7575, 4
      %v7578 = vor.u32 %v7577, %v7573
      %v7579 = vrot.slane %v7578, 4
      %v7581 = vshll.u32 %v6619, 16
      %v7583 = vrot.slane %v7581, 5
      %v7584 = vsel %vm415, %v7579, %v7583
      %v7585 = vshrl.u32 %v6619, 16
      %v7587 = vrot.slane %v7585, 4
      %v7588 = vor.u32 %v7587, %v7583
      %v7589 = vrot.slane %v7588, 4
      %v7591 = vshll.u32 %v6620, 16
      %v7593 = vrot.slane %v7591, 5
      %v7594 = vsel %vm415, %v7589, %v7593
      %v7595 = vshrl.u32 %v6620, 16
      %v7597 = vrot.slane %v7595, 4
      %v7598 = vor.u32 %v7597, %v7593
      %v7599 = vrot.slane %v7598, 4
      %v7601 = vshll.u32 %v6621, 16
      %v7603 = vrot.slane %v7601, 5
      %v7604 = vsel %vm415, %v7599, %v7603
      %v7606 = vshrl.u32 %v6622, 16
      %v7608 = vrot.slane %v7606, 4
      %v7609 = vshll.u32 %v6622, 16
      %v7611 = vrot.slane %v7609, 5
      %v7612 = vor.u32 %v7608, %v7611
      %v7613 = vrot.slane %v7612, 4
      %v7615 = vshll.u32 %v6623, 16
      %v7617 = vrot.slane %v7615, 5
      %v7618 = vsel %vm415, %v7613, %v7617
      %v7619 = vshrl.u32 %v6623, 16
      %v7621 = vrot.slane %v7619, 4
      %v7622 = vor.u32 %v7621, %v7617
      %v7623 = vrot.slane %v7622, 4
      %v7625 = vshll.u32 %v6624, 16
      %v7627 = vrot.slane %v7625, 5
      %v7628 = vsel %vm415, %v7623, %v7627
      %v7629 = vshrl.u32 %v6624, 16
      %v7631 = vrot.slane %v7629, 4
      %v7632 = vor.u32 %v7631, %v7627
      %v7633 = vrot.slane %v7632, 4
      %v7635 = vshll.u32 %v6625, 16
      %v7637 = vrot.slane %v7635, 5
      %v7638 = vsel %vm415, %v7633, %v7637
      %v7639 = vshrl.u32 %v6625, 16
      %v7641 = vrot.slane %v7639, 4
      %v7642 = vor.u32 %v7641, %v7637
      %v7643 = vrot.slane %v7642, 4
      %v7645 = vshll.u32 %v6626, 16
      %v7647 = vrot.slane %v7645, 5
      %v7648 = vsel %vm415, %v7643, %v7647
      %v7650 = vshrl.u32 %v6627, 16
      %v7652 = vrot.slane %v7650, 4
      %v7653 = vshll.u32 %v6627, 16
      %v7655 = vrot.slane %v7653, 5
      %v7656 = vor.u32 %v7652, %v7655
      %v7657 = vrot.slane %v7656, 4
      %v7659 = vshll.u32 %v6628, 16
      %v7661 = vrot.slane %v7659, 5
      %v7662 = vsel %vm415, %v7657, %v7661
      %v7663 = vshrl.u32 %v6628, 16
      %v7665 = vrot.slane %v7663, 4
      %v7666 = vor.u32 %v7665, %v7661
      %v7667 = vrot.slane %v7666, 4
      %v7669 = vshll.u32 %v6629, 16
      %v7671 = vrot.slane %v7669, 5
      %v7672 = vsel %vm415, %v7667, %v7671
      %v7673 = vshrl.u32 %v6629, 16
      %v7675 = vrot.slane %v7673, 4
      %v7676 = vor.u32 %v7675, %v7671
      %v7677 = vrot.slane %v7676, 4
      %v7679 = vshll.u32 %v6630, 16
      %v7681 = vrot.slane %v7679, 5
      %v7682 = vsel %vm415, %v7677, %v7681
      %v7683 = vshrl.u32 %v6630, 16
      %v7685 = vrot.slane %v7683, 4
      %v7686 = vor.u32 %v7685, %v7681
      %v7687 = vrot.slane %v7686, 4
      %v7689 = vshll.u32 %v6631, 16
      %v7691 = vrot.slane %v7689, 5
      %v7692 = vsel %vm415, %v7687, %v7691
      %v7694 = vshrl.u32 %v6632, 16
      %v7696 = vrot.slane %v7694, 4
      %v7697 = vshll.u32 %v6632, 16
      %v7699 = vrot.slane %v7697, 5
      %v7700 = vor.u32 %v7696, %v7699
      %v7701 = vrot.slane %v7700, 4
      %v7703 = vshll.u32 %v6633, 16
      %v7705 = vrot.slane %v7703, 5
      %v7706 = vsel %vm415, %v7701, %v7705
      %v7707 = vshrl.u32 %v6633, 16
      %v7709 = vrot.slane %v7707, 4
      %v7710 = vor.u32 %v7709, %v7705
      %v7711 = vrot.slane %v7710, 4
      %v7713 = vshll.u32 %v6634, 16
      %v7715 = vrot.slane %v7713, 5
      %v7716 = vsel %vm415, %v7711, %v7715
      %v7717 = vshrl.u32 %v6634, 16
      %v7719 = vrot.slane %v7717, 4
      %v7720 = vor.u32 %v7719, %v7715
      %v7721 = vrot.slane %v7720, 4
      %v7723 = vshll.u32 %v6635, 16
      %v7725 = vrot.slane %v7723, 5
      %v7726 = vsel %vm415, %v7721, %v7725
      %v7727 = vshrl.u32 %v6635, 16
      %v7729 = vrot.slane %v7727, 4
      %v7730 = vor.u32 %v7729, %v7725
      %v7731 = vrot.slane %v7730, 4
      %v7733 = vshll.u32 %v6636, 16
      %v7735 = vrot.slane %v7733, 5
      %v7736 = vsel %vm415, %v7731, %v7735
      %v7862 = vrot.slane %v6512, 5
      %v7863 = vrot.slane %v7862, 4
      %v7864 = vrot.slane %v6513, 5
      %v7865 = vsel %vm1643, %v7863, %v7864
      %v7866 = vrot.slane %v7864, 4
      %v7867 = vrot.slane %v6514, 5
      %v7868 = vsel %vm1643, %v7866, %v7867
      %v7869 = vrot.slane %v7867, 4
      %v7870 = vrot.slane %v6515, 5
      %v7871 = vsel %vm1643, %v7869, %v7870
      %v7872 = vrot.slane %v7870, 4
      %v7873 = vrot.slane %v6516, 5
      %v7874 = vsel %vm1643, %v7872, %v7873
      %v7875 = vrot.slane %v6517, 5
      %v7876 = vrot.slane %v7875, 4
      %v7877 = vrot.slane %v6518, 5
      %v7878 = vsel %vm1643, %v7876, %v7877
      %v7879 = vrot.slane %v7877, 4
      %v7880 = vrot.slane %v6519, 5
      %v7881 = vsel %vm1643, %v7879, %v7880
      %v7882 = vrot.slane %v7880, 4
      %v7883 = vrot.slane %v6520, 5
      %v7884 = vsel %vm1643, %v7882, %v7883
      %v7885 = vrot.slane %v7883, 4
      %v7886 = vrot.slane %v6521, 5
      %v7887 = vsel %vm1643, %v7885, %v7886
      %v7888 = vrot.slane %v6522, 5
      %v7889 = vrot.slane %v7888, 4
      %v7890 = vrot.slane %v6523, 5
      %v7891 = vsel %vm1643, %v7889, %v7890
      %v7892 = vrot.slane %v7890, 4
      %v7893 = vrot.slane %v6524, 5
      %v7894 = vsel %vm1643, %v7892, %v7893
      %v7895 = vrot.slane %v7893, 4
      %v7896 = vrot.slane %v6525, 5
      %v7897 = vsel %vm1643, %v7895, %v7896
      %v7898 = vrot.slane %v7896, 4
      %v7899 = vrot.slane %v6526, 5
      %v7900 = vsel %vm1643, %v7898, %v7899
      %v7901 = vrot.slane %v6527, 5
      %v7902 = vrot.slane %v7901, 4
      %v7903 = vrot.slane %v6528, 5
      %v7904 = vsel %vm1643, %v7902, %v7903
      %v7905 = vrot.slane %v7903, 4
      %v7906 = vrot.slane %v6529, 5
      %v7907 = vsel %vm1643, %v7905, %v7906
      %v7908 = vrot.slane %v7906, 4
      %v7909 = vrot.slane %v6530, 5
      %v7910 = vsel %vm1643, %v7908, %v7909
      %v7911 = vrot.slane %v7909, 4
      %v7912 = vrot.slane %v6531, 5
      %v7913 = vsel %vm1643, %v7911, %v7912
      %v7914 = vrot.slane %v6532, 5
      %v7915 = vrot.slane %v7914, 4
      %v7916 = vrot.slane %v6533, 5
      %v7917 = vsel %vm1643, %v7915, %v7916
      %v7918 = vrot.slane %v7916, 4
      %v7919 = vrot.slane %v6534, 5
      %v7920 = vsel %vm1643, %v7918, %v7919
      %v7921 = vrot.slane %v7919, 4
      %v7922 = vrot.slane %v6535, 5
      %v7923 = vsel %vm1643, %v7921, %v7922
      %v7924 = vrot.slane %v7922, 4
      %v7925 = vrot.slane %v6536, 5
      %v7926 = vsel %vm1643, %v7924, %v7925
      %v7927 = vrot.slane %v6537, 5
      %v7928 = vrot.slane %v7927, 4
      %v7929 = vrot.slane %v6538, 5
      %v7930 = vsel %vm1643, %v7928, %v7929
      %v7931 = vrot.slane %v7929, 4
      %v7932 = vrot.slane %v6539, 5
      %v7933 = vsel %vm1643, %v7931, %v7932
      %v7934 = vrot.slane %v7932, 4
      %v7935 = vrot.slane %v6540, 5
      %v7936 = vsel %vm1643, %v7934, %v7935
      %v7937 = vrot.slane %v7935, 4
      %v7938 = vrot.slane %v6541, 5
      %v7939 = vsel %vm1643, %v7937, %v7938
      %v7940 = vrot.slane %v6542, 5
      %v7941 = vrot.slane %v7940, 4
      %v7942 = vrot.slane %v6543, 5
      %v7943 = vsel %vm1643, %v7941, %v7942
      %v7944 = vrot.slane %v7942, 4
      %v7945 = vrot.slane %v6544, 5
      %v7946 = vsel %vm1643, %v7944, %v7945
      %v7947 = vrot.slane %v7945, 4
      %v7948 = vrot.slane %v6545, 5
      %v7949 = vsel %vm1643, %v7947, %v7948
      %v7950 = vrot.slane %v7948, 4
      %v7951 = vrot.slane %v6546, 5
      %v7952 = vsel %vm1643, %v7950, %v7951
      %v7953 = vrot.slane %v6547, 5
      %v7954 = vrot.slane %v7953, 4
      %v7955 = vrot.slane %v6548, 5
      %v7956 = vsel %vm1643, %v7954, %v7955
      %v7957 = vrot.slane %v7955, 4
      %v7958 = vrot.slane %v6549, 5
      %v7959 = vsel %vm1643, %v7957, %v7958
      %v7960 = vrot.slane %v7958, 4
      %v7961 = vrot.slane %v6550, 5
      %v7962 = vsel %vm1643, %v7960, %v7961
      %v7963 = vrot.slane %v7961, 4
      %v7964 = vrot.slane %v6551, 5
      %v7965 = vsel %vm1643, %v7963, %v7964
      %v7966 = vrot.slane %v6552, 5
      %v7967 = vrot.slane %v7966, 4
      %v7968 = vrot.slane %v6553, 5
      %v7969 = vsel %vm1643, %v7967, %v7968
      %v7970 = vrot.slane %v7968, 4
      %v7971 = vrot.slane %v6554, 5
      %v7972 = vsel %vm1643, %v7970, %v7971
      %v7973 = vrot.slane %v7971, 4
      %v7974 = vrot.slane %v6555, 5
      %v7975 = vsel %vm1643, %v7973, %v7974
      %v7976 = vrot.slane %v7974, 4
      %v7977 = vrot.slane %v6556, 5
      %v7978 = vsel %vm1643, %v7976, %v7977
      %v7979 = vrot.slane %v6557, 5
      %v7980 = vrot.slane %v7979, 4
      %v7981 = vrot.slane %v6558, 5
      %v7982 = vsel %vm1643, %v7980, %v7981
      %v7983 = vrot.slane %v7981, 4
      %v7984 = vrot.slane %v6559, 5
      %v7985 = vsel %vm1643, %v7983, %v7984
      %v7986 = vrot.slane %v7984, 4
      %v7987 = vrot.slane %v6560, 5
      %v7988 = vsel %vm1643, %v7986, %v7987
      %v7989 = vrot.slane %v7987, 4
      %v7990 = vrot.slane %v6561, 5
      %v7991 = vsel %vm1643, %v7989, %v7990
      %v7992 = vrot.slane %v6562, 5
      %v7993 = vrot.slane %v7992, 4
      %v7994 = vrot.slane %v6563, 5
      %v7995 = vsel %vm1643, %v7993, %v7994
      %v7996 = vrot.slane %v7994, 4
      %v7997 = vrot.slane %v6564, 5
      %v7998 = vsel %vm1643, %v7996, %v7997
      %v7999 = vrot.slane %v7997, 4
      %v8000 = vrot.slane %v6565, 5
      %v8001 = vsel %vm1643, %v7999, %v8000
      %v8002 = vrot.slane %v8000, 4
      %v8003 = vrot.slane %v6566, 5
      %v8004 = vsel %vm1643, %v8002, %v8003
      %v8005 = vrot.slane %v6567, 5
      %v8006 = vrot.slane %v8005, 4
      %v8007 = vrot.slane %v6568, 5
      %v8008 = vsel %vm1643, %v8006, %v8007
      %v8009 = vrot.slane %v8007, 4
      %v8010 = vrot.slane %v6569, 5
      %v8011 = vsel %vm1643, %v8009, %v8010
      %v8012 = vrot.slane %v8010, 4
      %v8013 = vrot.slane %v6570, 5
      %v8014 = vsel %vm1643, %v8012, %v8013
      %v8015 = vrot.slane %v8013, 4
      %v8016 = vrot.slane %v6571, 5
      %v8017 = vsel %vm1643, %v8015, %v8016
      %v8018 = vrot.slane %v6572, 5
      %v8019 = vrot.slane %v8018, 4
      %v8020 = vrot.slane %v6573, 5
      %v8021 = vsel %vm1643, %v8019, %v8020
      %v8022 = vrot.slane %v8020, 4
      %v8023 = vrot.slane %v6574, 5
      %v8024 = vsel %vm1643, %v8022, %v8023
      %v8025 = vrot.slane %v8023, 4
      %v8026 = vrot.slane %v6575, 5
      %v8027 = vsel %vm1643, %v8025, %v8026
      %v8028 = vrot.slane %v8026, 4
      %v8029 = vrot.slane %v6576, 5
      %v8030 = vsel %vm1643, %v8028, %v8029
      %v8031 = vrot.slane %v6577, 5
      %v8032 = vrot.slane %v8031, 4
      %v8033 = vrot.slane %v6578, 5
      %v8034 = vsel %vm1643, %v8032, %v8033
      %v8035 = vrot.slane %v8033, 4
      %v8036 = vrot.slane %v6579, 5
      %v8037 = vsel %vm1643, %v8035, %v8036
      %v8038 = vrot.slane %v8036, 4
      %v8039 = vrot.slane %v6580, 5
      %v8040 = vsel %vm1643, %v8038, %v8039
      %v8041 = vrot.slane %v8039, 4
      %v8042 = vrot.slane %v6581, 5
      %v8043 = vsel %vm1643, %v8041, %v8042
      %v8044 = vrot.slane %v6582, 5
      %v8045 = vrot.slane %v8044, 4
      %v8046 = vrot.slane %v6583, 5
      %v8047 = vsel %vm1643, %v8045, %v8046
      %v8048 = vrot.slane %v8046, 4
      %v8049 = vrot.slane %v6584, 5
      %v8050 = vsel %vm1643, %v8048, %v8049
      %v8051 = vrot.slane %v8049, 4
      %v8052 = vrot.slane %v6585, 5
      %v8053 = vsel %vm1643, %v8051, %v8052
      %v8054 = vrot.slane %v8052, 4
      %v8055 = vrot.slane %v6586, 5
      %v8056 = vsel %vm1643, %v8054, %v8055
      %v8057 = vrot.slane %v6587, 5
      %v8058 = vrot.slane %v8057, 4
      %v8059 = vrot.slane %v6588, 5
      %v8060 = vsel %vm1643, %v8058, %v8059
      %v8061 = vrot.slane %v8059, 4
      %v8062 = vrot.slane %v6589, 5
      %v8063 = vsel %vm1643, %v8061, %v8062
      %v8064 = vrot.slane %v8062, 4
      %v8065 = vrot.slane %v6590, 5
      %v8066 = vsel %vm1643, %v8064, %v8065
      %v8067 = vrot.slane %v8065, 4
      %v8068 = vrot.slane %v6591, 5
      %v8069 = vsel %vm1643, %v8067, %v8068
      %v8070 = vrot.slane %v6592, 5
      %v8071 = vrot.slane %v8070, 4
      %v8072 = vrot.slane %v6593, 5
      %v8073 = vsel %vm1643, %v8071, %v8072
      %v8074 = vrot.slane %v8072, 4
      %v8075 = vrot.slane %v6594, 5
      %v8076 = vsel %vm1643, %v8074, %v8075
      %v8077 = vrot.slane %v8075, 4
      %v8078 = vrot.slane %v6595, 5
      %v8079 = vsel %vm1643, %v8077, %v8078
      %v8080 = vrot.slane %v8078, 4
      %v8081 = vrot.slane %v6596, 5
      %v8082 = vsel %vm1643, %v8080, %v8081
      %v8083 = vrot.slane %v6597, 5
      %v8084 = vrot.slane %v8083, 4
      %v8085 = vrot.slane %v6598, 5
      %v8086 = vsel %vm1643, %v8084, %v8085
      %v8087 = vrot.slane %v8085, 4
      %v8088 = vrot.slane %v6599, 5
      %v8089 = vsel %vm1643, %v8087, %v8088
      %v8090 = vrot.slane %v8088, 4
      %v8091 = vrot.slane %v6600, 5
      %v8092 = vsel %vm1643, %v8090, %v8091
      %v8093 = vrot.slane %v8091, 4
      %v8094 = vrot.slane %v6601, 5
      %v8095 = vsel %vm1643, %v8093, %v8094
      %v8096 = vrot.slane %v6602, 5
      %v8097 = vrot.slane %v8096, 4
      %v8098 = vrot.slane %v6603, 5
      %v8099 = vsel %vm1643, %v8097, %v8098
      %v8100 = vrot.slane %v8098, 4
      %v8101 = vrot.slane %v6604, 5
      %v8102 = vsel %vm1643, %v8100, %v8101
      %v8103 = vrot.slane %v8101, 4
      %v8104 = vrot.slane %v6605, 5
      %v8105 = vsel %vm1643, %v8103, %v8104
      %v8106 = vrot.slane %v8104, 4
      %v8107 = vrot.slane %v6606, 5
      %v8108 = vsel %vm1643, %v8106, %v8107
      %v8109 = vrot.slane %v6607, 5
      %v8110 = vrot.slane %v8109, 4
      %v8111 = vrot.slane %v6608, 5
      %v8112 = vsel %vm1643, %v8110, %v8111
      %v8113 = vrot.slane %v8111, 4
      %v8114 = vrot.slane %v6609, 5
      %v8115 = vsel %vm1643, %v8113, %v8114
      %v8116 = vrot.slane %v8114, 4
      %v8117 = vrot.slane %v6610, 5
      %v8118 = vsel %vm1643, %v8116, %v8117
      %v8119 = vrot.slane %v8117, 4
      %v8120 = vrot.slane %v6611, 5
      %v8121 = vsel %vm1643, %v8119, %v8120
      %v8122 = vrot.slane %v6612, 5
      %v8123 = vrot.slane %v8122, 4
      %v8124 = vrot.slane %v6613, 5
      %v8125 = vsel %vm1643, %v8123, %v8124
      %v8126 = vrot.slane %v8124, 4
      %v8127 = vrot.slane %v6614, 5
      %v8128 = vsel %vm1643, %v8126, %v8127
      %v8129 = vrot.slane %v8127, 4
      %v8130 = vrot.slane %v6615, 5
      %v8131 = vsel %vm1643, %v8129, %v8130
      %v8132 = vrot.slane %v8130, 4
      %v8133 = vrot.slane %v6616, 5
      %v8134 = vsel %vm1643, %v8132, %v8133
      %v8135 = vrot.slane %v6617, 5
      %v8136 = vrot.slane %v8135, 4
      %v8137 = vrot.slane %v6618, 5
      %v8138 = vsel %vm1643, %v8136, %v8137
      %v8139 = vrot.slane %v8137, 4
      %v8140 = vrot.slane %v6619, 5
      %v8141 = vsel %vm1643, %v8139, %v8140
      %v8142 = vrot.slane %v8140, 4
      %v8143 = vrot.slane %v6620, 5
      %v8144 = vsel %vm1643, %v8142, %v8143
      %v8145 = vrot.slane %v8143, 4
      %v8146 = vrot.slane %v6621, 5
      %v8147 = vsel %vm1643, %v8145, %v8146
      %v8148 = vrot.slane %v6622, 5
      %v8149 = vrot.slane %v8148, 4
      %v8150 = vrot.slane %v6623, 5
      %v8151 = vsel %vm1643, %v8149, %v8150
      %v8152 = vrot.slane %v8150, 4
      %v8153 = vrot.slane %v6624, 5
      %v8154 = vsel %vm1643, %v8152, %v8153
      %v8155 = vrot.slane %v8153, 4
      %v8156 = vrot.slane %v6625, 5
      %v8157 = vsel %vm1643, %v8155, %v8156
      %v8158 = vrot.slane %v8156, 4
      %v8159 = vrot.slane %v6626, 5
      %v8160 = vsel %vm1643, %v8158, %v8159
      %v8161 = vrot.slane %v6627, 5
      %v8162 = vrot.slane %v8161, 4
      %v8163 = vrot.slane %v6628, 5
      %v8164 = vsel %vm1643, %v8162, %v8163
      %v8165 = vrot.slane %v8163, 4
      %v8166 = vrot.slane %v6629, 5
      %v8167 = vsel %vm1643, %v8165, %v8166
      %v8168 = vrot.slane %v8166, 4
      %v8169 = vrot.slane %v6630, 5
      %v8170 = vsel %vm1643, %v8168, %v8169
      %v8171 = vrot.slane %v8169, 4
      %v8172 = vrot.slane %v6631, 5
      %v8173 = vsel %vm1643, %v8171, %v8172
      %v8174 = vrot.slane %v6632, 5
      %v8175 = vrot.slane %v8174, 4
      %v8176 = vrot.slane %v6633, 5
      %v8177 = vsel %vm1643, %v8175, %v8176
      %v8178 = vrot.slane %v8176, 4
      %v8179 = vrot.slane %v6634, 5
      %v8180 = vsel %vm1643, %v8178, %v8179
      %v8181 = vrot.slane %v8179, 4
      %v8182 = vrot.slane %v6635, 5
      %v8183 = vsel %vm1643, %v8181, %v8182
      %v8184 = vrot.slane %v8182, 4
      %v8185 = vrot.slane %v6636, 5
      %v8186 = vsel %vm1643, %v8184, %v8185
      %v8187 = vunpack.c.l.b16 %v6512
      %v8188 = vunpack.c.l.b16 %v6513
      %v8189 = vunpack.c.l.b16 %v6514
      %v8190 = vunpack.c.l.b16 %v6515
      %v8191 = vunpack.c.l.b16 %v6517
      %v8192 = vunpack.c.l.b16 %v6518
      %v8193 = vunpack.c.l.b16 %v6519
      %v8194 = vunpack.c.l.b16 %v6520
      %v8195 = vunpack.c.l.b16 %v6522
      %v8196 = vunpack.c.l.b16 %v6523
      %v8197 = vunpack.c.l.b16 %v6524
      %v8198 = vunpack.c.l.b16 %v6525
      %v8199 = vunpack.c.l.b16 %v6527
      %v8200 = vunpack.c.l.b16 %v6528
      %v8201 = vunpack.c.l.b16 %v6529
      %v8202 = vunpack.c.l.b16 %v6530
      %v8203 = vunpack.c.l.b16 %v6532
      %v8204 = vunpack.c.l.b16 %v6533
      %v8205 = vunpack.c.l.b16 %v6534
      %v8206 = vunpack.c.l.b16 %v6535
      %v8207 = vunpack.c.l.b16 %v6537
      %v8208 = vunpack.c.l.b16 %v6538
      %v8209 = vunpack.c.l.b16 %v6539
      %v8210 = vunpack.c.l.b16 %v6540
      %v8211 = vunpack.c.l.b16 %v6542
      %v8212 = vunpack.c.l.b16 %v6543
      %v8213 = vunpack.c.l.b16 %v6544
      %v8214 = vunpack.c.l.b16 %v6545
      %v8215 = vunpack.c.l.b16 %v6547
      %v8216 = vunpack.c.l.b16 %v6548
      %v8217 = vunpack.c.l.b16 %v6549
      %v8218 = vunpack.c.l.b16 %v6550
      %v8219 = vunpack.c.l.b16 %v6552
      %v8220 = vunpack.c.l.b16 %v6553
      %v8221 = vunpack.c.l.b16 %v6554
      %v8222 = vunpack.c.l.b16 %v6555
      %v8223 = vunpack.c.l.b16 %v6557
      %v8224 = vunpack.c.l.b16 %v6558
      %v8225 = vunpack.c.l.b16 %v6559
      %v8226 = vunpack.c.l.b16 %v6560
      %v8227 = vunpack.c.l.b16 %v6562
      %v8228 = vunpack.c.l.b16 %v6563
      %v8229 = vunpack.c.l.b16 %v6564
      %v8230 = vunpack.c.l.b16 %v6565
      %v8231 = vunpack.c.l.b16 %v6567
      %v8232 = vunpack.c.l.b16 %v6568
      %v8233 = vunpack.c.l.b16 %v6569
      %v8234 = vunpack.c.l.b16 %v6570
      %v8235 = vunpack.c.l.b16 %v6572
      %v8236 = vunpack.c.l.b16 %v6573
      %v8237 = vunpack.c.l.b16 %v6574
      %v8238 = vunpack.c.l.b16 %v6575
      %v8239 = vunpack.c.l.b16 %v6577
      %v8240 = vunpack.c.l.b16 %v6578
      %v8241 = vunpack.c.l.b16 %v6579
      %v8242 = vunpack.c.l.b16 %v6580
      %v8243 = vunpack.c.l.b16 %v6582
      %v8244 = vunpack.c.l.b16 %v6583
      %v8245 = vunpack.c.l.b16 %v6584
      %v8246 = vunpack.c.l.b16 %v6585
      %v8247 = vunpack.c.l.b16 %v6587
      %v8248 = vunpack.c.l.b16 %v6588
      %v8249 = vunpack.c.l.b16 %v6589
      %v8250 = vunpack.c.l.b16 %v6590
      %v8251 = vunpack.c.l.b16 %v6592
      %v8252 = vunpack.c.l.b16 %v6593
      %v8253 = vunpack.c.l.b16 %v6594
      %v8254 = vunpack.c.l.b16 %v6595
      %v8255 = vunpack.c.l.b16 %v6597
      %v8256 = vunpack.c.l.b16 %v6598
      %v8257 = vunpack.c.l.b16 %v6599
      %v8258 = vunpack.c.l.b16 %v6600
      %v8259 = vunpack.c.l.b16 %v6602
      %v8260 = vunpack.c.l.b16 %v6603
      %v8261 = vunpack.c.l.b16 %v6604
      %v8262 = vunpack.c.l.b16 %v6605
      %v8263 = vunpack.c.l.b16 %v6607
      %v8264 = vunpack.c.l.b16 %v6608
      %v8265 = vunpack.c.l.b16 %v6609
      %v8266 = vunpack.c.l.b16 %v6610
      %v8267 = vunpack.c.l.b16 %v6612
      %v8268 = vunpack.c.l.b16 %v6613
      %v8269 = vunpack.c.l.b16 %v6614
      %v8270 = vunpack.c.l.b16 %v6615
      %v8271 = vunpack.c.l.b16 %v6617
      %v8272 = vunpack.c.l.b16 %v6618
      %v8273 = vunpack.c.l.b16 %v6619
      %v8274 = vunpack.c.l.b16 %v6620
      %v8275 = vunpack.c.l.b16 %v6622
      %v8276 = vunpack.c.l.b16 %v6623
      %v8277 = vunpack.c.l.b16 %v6624
      %v8278 = vunpack.c.l.b16 %v6625
      %v8279 = vunpack.c.l.b16 %v6627
      %v8280 = vunpack.c.l.b16 %v6628
      %v8281 = vunpack.c.l.b16 %v6629
      %v8282 = vunpack.c.l.b16 %v6630
      %v8283 = vunpack.c.l.b16 %v6632
      %v8284 = vunpack.c.l.b16 %v6633
      %v8285 = vunpack.c.l.b16 %v6634
      %v8286 = vunpack.c.l.b16 %v6635
      %v8287 = vpack.c.b16 %v8188, %v8187
      %v8288 = vpack.c.b16 %v8190, %v8189
      %v8289 = vpack.c.b16 %v8192, %v8191
      %v8290 = vpack.c.b16 %v8194, %v8193
      %v8291 = vpack.c.b16 %v8196, %v8195
      %v8292 = vpack.c.b16 %v8198, %v8197
      %v8293 = vpack.c.b16 %v8200, %v8199
      %v8294 = vpack.c.b16 %v8202, %v8201
      %v8295 = vpack.c.b16 %v8204, %v8203
      %v8296 = vpack.c.b16 %v8206, %v8205
      %v8297 = vpack.c.b16 %v8208, %v8207
      %v8298 = vpack.c.b16 %v8210, %v8209
      %v8299 = vpack.c.b16 %v8212, %v8211
      %v8300 = vpack.c.b16 %v8214, %v8213
      %v8301 = vpack.c.b16 %v8216, %v8215
      %v8302 = vpack.c.b16 %v8218, %v8217
      %v8303 = vpack.c.b16 %v8220, %v8219
      %v8304 = vpack.c.b16 %v8222, %v8221
      %v8305 = vpack.c.b16 %v8224, %v8223
      %v8306 = vpack.c.b16 %v8226, %v8225
      %v8307 = vpack.c.b16 %v8228, %v8227
      %v8308 = vpack.c.b16 %v8230, %v8229
      %v8309 = vpack.c.b16 %v8232, %v8231
      %v8310 = vpack.c.b16 %v8234, %v8233
      %v8311 = vpack.c.b16 %v8236, %v8235
      %v8312 = vpack.c.b16 %v8238, %v8237
      %v8313 = vpack.c.b16 %v8240, %v8239
      %v8314 = vpack.c.b16 %v8242, %v8241
      %v8315 = vpack.c.b16 %v8244, %v8243
      %v8316 = vpack.c.b16 %v8246, %v8245
      %v8317 = vpack.c.b16 %v8248, %v8247
      %v8318 = vpack.c.b16 %v8250, %v8249
      %v8319 = vpack.c.b16 %v8252, %v8251
      %v8320 = vpack.c.b16 %v8254, %v8253
      %v8321 = vpack.c.b16 %v8256, %v8255
      %v8322 = vpack.c.b16 %v8258, %v8257
      %v8323 = vpack.c.b16 %v8260, %v8259
      %v8324 = vpack.c.b16 %v8262, %v8261
      %v8325 = vpack.c.b16 %v8264, %v8263
      %v8326 = vpack.c.b16 %v8266, %v8265
      %v8327 = vpack.c.b16 %v8268, %v8267
      %v8328 = vpack.c.b16 %v8270, %v8269
      %v8329 = vpack.c.b16 %v8272, %v8271
      %v8330 = vpack.c.b16 %v8274, %v8273
      %v8331 = vpack.c.b16 %v8276, %v8275
      %v8332 = vpack.c.b16 %v8278, %v8277
      %v8333 = vpack.c.b16 %v8280, %v8279
      %v8334 = vpack.c.b16 %v8282, %v8281
      %v8335 = vpack.c.b16 %v8284, %v8283
      %v8336 = vpack.c.b16 %v8286, %v8285
      %v8337 = vunpack.c.l.b16 %v6650
      %v8338 = vunpack.c.l.b16 %v6660
      %v8339 = vunpack.c.l.b16 %v6670
      %v8340 = vunpack.c.l.b16 %v6680
      %v8341 = vunpack.c.l.b16 %v6694
      %v8342 = vunpack.c.l.b16 %v6704
      %v8343 = vunpack.c.l.b16 %v6714
      %v8344 = vunpack.c.l.b16 %v6724
      %v8345 = vunpack.c.l.b16 %v6738
      %v8346 = vunpack.c.l.b16 %v6748
      %v8347 = vunpack.c.l.b16 %v6758
      %v8348 = vunpack.c.l.b16 %v6768
      %v8349 = vunpack.c.l.b16 %v6782
      %v8350 = vunpack.c.l.b16 %v6792
      %v8351 = vunpack.c.l.b16 %v6802
      %v8352 = vunpack.c.l.b16 %v6812
      %v8353 = vunpack.c.l.b16 %v6826
      %v8354 = vunpack.c.l.b16 %v6836
      %v8355 = vunpack.c.l.b16 %v6846
      %v8356 = vunpack.c.l.b16 %v6856
      %v8357 = vunpack.c.l.b16 %v6870
      %v8358 = vunpack.c.l.b16 %v6880
      %v8359 = vunpack.c.l.b16 %v6890
      %v8360 = vunpack.c.l.b16 %v6900
      %v8361 = vunpack.c.l.b16 %v6914
      %v8362 = vunpack.c.l.b16 %v6924
      %v8363 = vunpack.c.l.b16 %v6934
      %v8364 = vunpack.c.l.b16 %v6944
      %v8365 = vunpack.c.l.b16 %v6958
      %v8366 = vunpack.c.l.b16 %v6968
      %v8367 = vunpack.c.l.b16 %v6978
      %v8368 = vunpack.c.l.b16 %v6988
      %v8369 = vunpack.c.l.b16 %v7002
      %v8370 = vunpack.c.l.b16 %v7012
      %v8371 = vunpack.c.l.b16 %v7022
      %v8372 = vunpack.c.l.b16 %v7032
      %v8373 = vunpack.c.l.b16 %v7046
      %v8374 = vunpack.c.l.b16 %v7056
      %v8375 = vunpack.c.l.b16 %v7066
      %v8376 = vunpack.c.l.b16 %v7076
      %v8377 = vunpack.c.l.b16 %v7090
      %v8378 = vunpack.c.l.b16 %v7100
      %v8379 = vunpack.c.l.b16 %v7110
      %v8380 = vunpack.c.l.b16 %v7120
      %v8381 = vunpack.c.l.b16 %v7134
      %v8382 = vunpack.c.l.b16 %v7144
      %v8383 = vunpack.c.l.b16 %v7154
      %v8384 = vunpack.c.l.b16 %v7164
      %v8385 = vunpack.c.l.b16 %v7178
      %v8386 = vunpack.c.l.b16 %v7188
      %v8387 = vunpack.c.l.b16 %v7198
      %v8388 = vunpack.c.l.b16 %v7208
      %v8389 = vunpack.c.l.b16 %v7222
      %v8390 = vunpack.c.l.b16 %v7232
      %v8391 = vunpack.c.l.b16 %v7242
      %v8392 = vunpack.c.l.b16 %v7252
      %v8393 = vunpack.c.l.b16 %v7266
      %v8394 = vunpack.c.l.b16 %v7276
      %v8395 = vunpack.c.l.b16 %v7286
      %v8396 = vunpack.c.l.b16 %v7296
      %v8397 = vunpack.c.l.b16 %v7310
      %v8398 = vunpack.c.l.b16 %v7320
      %v8399 = vunpack.c.l.b16 %v7330
      %v8400 = vunpack.c.l.b16 %v7340
      %v8401 = vunpack.c.l.b16 %v7354
      %v8402 = vunpack.c.l.b16 %v7364
      %v8403 = vunpack.c.l.b16 %v7374
      %v8404 = vunpack.c.l.b16 %v7384
      %v8405 = vunpack.c.l.b16 %v7398
      %v8406 = vunpack.c.l.b16 %v7408
      %v8407 = vunpack.c.l.b16 %v7418
      %v8408 = vunpack.c.l.b16 %v7428
      %v8409 = vunpack.c.l.b16 %v7442
      %v8410 = vunpack.c.l.b16 %v7452
      %v8411 = vunpack.c.l.b16 %v7462
      %v8412 = vunpack.c.l.b16 %v7472
      %v8413 = vunpack.c.l.b16 %v7486
      %v8414 = vunpack.c.l.b16 %v7496
      %v8415 = vunpack.c.l.b16 %v7506
      %v8416 = vunpack.c.l.b16 %v7516
      %v8417 = vunpack.c.l.b16 %v7530
      %v8418 = vunpack.c.l.b16 %v7540
      %v8419 = vunpack.c.l.b16 %v7550
      %v8420 = vunpack.c.l.b16 %v7560
      %v8421 = vunpack.c.l.b16 %v7574
      %v8422 = vunpack.c.l.b16 %v7584
      %v8423 = vunpack.c.l.b16 %v7594
      %v8424 = vunpack.c.l.b16 %v7604
      %v8425 = vunpack.c.l.b16 %v7618
      %v8426 = vunpack.c.l.b16 %v7628
      %v8427 = vunpack.c.l.b16 %v7638
      %v8428 = vunpack.c.l.b16 %v7648
      %v8429 = vunpack.c.l.b16 %v7662
      %v8430 = vunpack.c.l.b16 %v7672
      %v8431 = vunpack.c.l.b16 %v7682
      %v8432 = vunpack.c.l.b16 %v7692
      %v8433 = vunpack.c.l.b16 %v7706
      %v8434 = vunpack.c.l.b16 %v7716
      %v8435 = vunpack.c.l.b16 %v7726
      %v8436 = vunpack.c.l.b16 %v7736
      %v8437 = vpack.c.b16 %v8338, %v8337
      %v8438 = vpack.c.b16 %v8340, %v8339
      %v8439 = vpack.c.b16 %v8342, %v8341
      %v8440 = vpack.c.b16 %v8344, %v8343
      %v8441 = vpack.c.b16 %v8346, %v8345
      %v8442 = vpack.c.b16 %v8348, %v8347
      %v8443 = vpack.c.b16 %v8350, %v8349
      %v8444 = vpack.c.b16 %v8352, %v8351
      %v8445 = vpack.c.b16 %v8354, %v8353
      %v8446 = vpack.c.b16 %v8356, %v8355
      %v8447 = vpack.c.b16 %v8358, %v8357
      %v8448 = vpack.c.b16 %v8360, %v8359
      %v8449 = vpack.c.b16 %v8362, %v8361
      %v8450 = vpack.c.b16 %v8364, %v8363
      %v8451 = vpack.c.b16 %v8366, %v8365
      %v8452 = vpack.c.b16 %v8368, %v8367
      %v8453 = vpack.c.b16 %v8370, %v8369
      %v8454 = vpack.c.b16 %v8372, %v8371
      %v8455 = vpack.c.b16 %v8374, %v8373
      %v8456 = vpack.c.b16 %v8376, %v8375
      %v8457 = vpack.c.b16 %v8378, %v8377
      %v8458 = vpack.c.b16 %v8380, %v8379
      %v8459 = vpack.c.b16 %v8382, %v8381
      %v8460 = vpack.c.b16 %v8384, %v8383
      %v8461 = vpack.c.b16 %v8386, %v8385
      %v8462 = vpack.c.b16 %v8388, %v8387
      %v8463 = vpack.c.b16 %v8390, %v8389
      %v8464 = vpack.c.b16 %v8392, %v8391
      %v8465 = vpack.c.b16 %v8394, %v8393
      %v8466 = vpack.c.b16 %v8396, %v8395
      %v8467 = vpack.c.b16 %v8398, %v8397
      %v8468 = vpack.c.b16 %v8400, %v8399
      %v8469 = vpack.c.b16 %v8402, %v8401
      %v8470 = vpack.c.b16 %v8404, %v8403
      %v8471 = vpack.c.b16 %v8406, %v8405
      %v8472 = vpack.c.b16 %v8408, %v8407
      %v8473 = vpack.c.b16 %v8410, %v8409
      %v8474 = vpack.c.b16 %v8412, %v8411
      %v8475 = vpack.c.b16 %v8414, %v8413
      %v8476 = vpack.c.b16 %v8416, %v8415
      %v8477 = vpack.c.b16 %v8418, %v8417
      %v8478 = vpack.c.b16 %v8420, %v8419
      %v8479 = vpack.c.b16 %v8422, %v8421
      %v8480 = vpack.c.b16 %v8424, %v8423
      %v8481 = vpack.c.b16 %v8426, %v8425
      %v8482 = vpack.c.b16 %v8428, %v8427
      %v8483 = vpack.c.b16 %v8430, %v8429
      %v8484 = vpack.c.b16 %v8432, %v8431
      %v8485 = vpack.c.b16 %v8434, %v8433
      %v8486 = vpack.c.b16 %v8436, %v8435
      %8487 = vrot.lane.b32.xlu0 %v8437, 64
      %v8488 = vpop.permute.xlu0 %8487
      %8489 = vrot.lane.b32.xlu0 %v8438, 64
      %v8490 = vpop.permute.xlu0 %8489
      %8491 = vrot.lane.b32.xlu0 %v8439, 64
      %v8492 = vpop.permute.xlu0 %8491
      %8493 = vrot.lane.b32.xlu0 %v8440, 64
      %v8494 = vpop.permute.xlu0 %8493
      %8495 = vrot.lane.b32.xlu0 %v8441, 64
      %v8496 = vpop.permute.xlu0 %8495
      %8497 = vrot.lane.b32.xlu0 %v8442, 64
      %v8498 = vpop.permute.xlu0 %8497
      %8499 = vrot.lane.b32.xlu0 %v8443, 64
      %v8500 = vpop.permute.xlu0 %8499
      %8501 = vrot.lane.b32.xlu0 %v8444, 64
      %v8502 = vpop.permute.xlu0 %8501
      %8503 = vrot.lane.b32.xlu0 %v8445, 64
      %v8504 = vpop.permute.xlu0 %8503
      %8505 = vrot.lane.b32.xlu0 %v8446, 64
      %v8506 = vpop.permute.xlu0 %8505
      %8507 = vrot.lane.b32.xlu0 %v8447, 64
      %v8508 = vpop.permute.xlu0 %8507
      %8509 = vrot.lane.b32.xlu0 %v8448, 64
      %v8510 = vpop.permute.xlu0 %8509
      %8511 = vrot.lane.b32.xlu0 %v8449, 64
      %v8512 = vpop.permute.xlu0 %8511
      %8513 = vrot.lane.b32.xlu0 %v8450, 64
      %v8514 = vpop.permute.xlu0 %8513
      %8515 = vrot.lane.b32.xlu0 %v8451, 64
      %v8516 = vpop.permute.xlu0 %8515
      %8517 = vrot.lane.b32.xlu0 %v8452, 64
      %v8518 = vpop.permute.xlu0 %8517
      %8519 = vrot.lane.b32.xlu0 %v8453, 64
      %v8520 = vpop.permute.xlu0 %8519
      %8521 = vrot.lane.b32.xlu0 %v8454, 64
      %v8522 = vpop.permute.xlu0 %8521
      %8523 = vrot.lane.b32.xlu0 %v8455, 64
      %v8524 = vpop.permute.xlu0 %8523
      %8525 = vrot.lane.b32.xlu0 %v8456, 64
      %v8526 = vpop.permute.xlu0 %8525
      %8527 = vrot.lane.b32.xlu0 %v8457, 64
      %v8528 = vpop.permute.xlu0 %8527
      %8529 = vrot.lane.b32.xlu0 %v8458, 64
      %v8530 = vpop.permute.xlu0 %8529
      %8531 = vrot.lane.b32.xlu0 %v8459, 64
      %v8532 = vpop.permute.xlu0 %8531
      %8533 = vrot.lane.b32.xlu0 %v8460, 64
      %v8534 = vpop.permute.xlu0 %8533
      %8535 = vrot.lane.b32.xlu0 %v8461, 64
      %v8536 = vpop.permute.xlu0 %8535
      %8537 = vrot.lane.b32.xlu0 %v8462, 64
      %v8538 = vpop.permute.xlu0 %8537
      %8539 = vrot.lane.b32.xlu0 %v8463, 64
      %v8540 = vpop.permute.xlu0 %8539
      %8541 = vrot.lane.b32.xlu0 %v8464, 64
      %v8542 = vpop.permute.xlu0 %8541
      %8543 = vrot.lane.b32.xlu0 %v8465, 64
      %v8544 = vpop.permute.xlu0 %8543
      %8545 = vrot.lane.b32.xlu0 %v8466, 64
      %v8546 = vpop.permute.xlu0 %8545
      %8547 = vrot.lane.b32.xlu0 %v8467, 64
      %v8548 = vpop.permute.xlu0 %8547
      %8549 = vrot.lane.b32.xlu0 %v8468, 64
      %v8550 = vpop.permute.xlu0 %8549
      %8551 = vrot.lane.b32.xlu0 %v8469, 64
      %v8552 = vpop.permute.xlu0 %8551
      %8553 = vrot.lane.b32.xlu0 %v8470, 64
      %v8554 = vpop.permute.xlu0 %8553
      %8555 = vrot.lane.b32.xlu0 %v8471, 64
      %v8556 = vpop.permute.xlu0 %8555
      %8557 = vrot.lane.b32.xlu0 %v8472, 64
      %v8558 = vpop.permute.xlu0 %8557
      %8559 = vrot.lane.b32.xlu0 %v8473, 64
      %v8560 = vpop.permute.xlu0 %8559
      %8561 = vrot.lane.b32.xlu0 %v8474, 64
      %v8562 = vpop.permute.xlu0 %8561
      %8563 = vrot.lane.b32.xlu0 %v8475, 64
      %v8564 = vpop.permute.xlu0 %8563
      %8565 = vrot.lane.b32.xlu0 %v8476, 64
      %v8566 = vpop.permute.xlu0 %8565
      %8567 = vrot.lane.b32.xlu0 %v8477, 64
      %v8568 = vpop.permute.xlu0 %8567
      %8569 = vrot.lane.b32.xlu0 %v8478, 64
      %v8570 = vpop.permute.xlu0 %8569
      %8571 = vrot.lane.b32.xlu0 %v8479, 64
      %v8572 = vpop.permute.xlu0 %8571
      %8573 = vrot.lane.b32.xlu0 %v8480, 64
      %v8574 = vpop.permute.xlu0 %8573
      %8575 = vrot.lane.b32.xlu0 %v8481, 64
      %v8576 = vpop.permute.xlu0 %8575
      %8577 = vrot.lane.b32.xlu0 %v8482, 64
      %v8578 = vpop.permute.xlu0 %8577
      %8579 = vrot.lane.b32.xlu0 %v8483, 64
      %v8580 = vpop.permute.xlu0 %8579
      %8581 = vrot.lane.b32.xlu0 %v8484, 64
      %v8582 = vpop.permute.xlu0 %8581
      %8583 = vrot.lane.b32.xlu0 %v8485, 64
      %v8584 = vpop.permute.xlu0 %8583
      %8585 = vrot.lane.b32.xlu0 %v8486, 64
      %v8586 = vpop.permute.xlu0 %8585
      %v8587 = vunpack.c.l.b16 %v7865
      %v8588 = vunpack.c.l.b16 %v7868
      %v8589 = vunpack.c.l.b16 %v7871
      %v8590 = vunpack.c.l.b16 %v7874
      %v8591 = vunpack.c.l.b16 %v7878
      %v8592 = vunpack.c.l.b16 %v7881
      %v8593 = vunpack.c.l.b16 %v7884
      %v8594 = vunpack.c.l.b16 %v7887
      %v8595 = vunpack.c.l.b16 %v7891
      %v8596 = vunpack.c.l.b16 %v7894
      %v8597 = vunpack.c.l.b16 %v7897
      %v8598 = vunpack.c.l.b16 %v7900
      %v8599 = vunpack.c.l.b16 %v7904
      %v8600 = vunpack.c.l.b16 %v7907
      %v8601 = vunpack.c.l.b16 %v7910
      %v8602 = vunpack.c.l.b16 %v7913
      %v8603 = vunpack.c.l.b16 %v7917
      %v8604 = vunpack.c.l.b16 %v7920
      %v8605 = vunpack.c.l.b16 %v7923
      %v8606 = vunpack.c.l.b16 %v7926
      %v8607 = vunpack.c.l.b16 %v7930
      %v8608 = vunpack.c.l.b16 %v7933
      %v8609 = vunpack.c.l.b16 %v7936
      %v8610 = vunpack.c.l.b16 %v7939
      %v8611 = vunpack.c.l.b16 %v7943
      %v8612 = vunpack.c.l.b16 %v7946
      %v8613 = vunpack.c.l.b16 %v7949
      %v8614 = vunpack.c.l.b16 %v7952
      %v8615 = vunpack.c.l.b16 %v7956
      %v8616 = vunpack.c.l.b16 %v7959
      %v8617 = vunpack.c.l.b16 %v7962
      %v8618 = vunpack.c.l.b16 %v7965
      %v8619 = vunpack.c.l.b16 %v7969
      %v8620 = vunpack.c.l.b16 %v7972
      %v8621 = vunpack.c.l.b16 %v7975
      %v8622 = vunpack.c.l.b16 %v7978
      %v8623 = vunpack.c.l.b16 %v7982
      %v8624 = vunpack.c.l.b16 %v7985
      %v8625 = vunpack.c.l.b16 %v7988
      %v8626 = vunpack.c.l.b16 %v7991
      %v8627 = vunpack.c.l.b16 %v7995
      %v8628 = vunpack.c.l.b16 %v7998
      %v8629 = vunpack.c.l.b16 %v8001
      %v8630 = vunpack.c.l.b16 %v8004
      %v8631 = vunpack.c.l.b16 %v8008
      %v8632 = vunpack.c.l.b16 %v8011
      %v8633 = vunpack.c.l.b16 %v8014
      %v8634 = vunpack.c.l.b16 %v8017
      %v8635 = vunpack.c.l.b16 %v8021
      %v8636 = vunpack.c.l.b16 %v8024
      %v8637 = vunpack.c.l.b16 %v8027
      %v8638 = vunpack.c.l.b16 %v8030
      %v8639 = vunpack.c.l.b16 %v8034
      %v8640 = vunpack.c.l.b16 %v8037
      %v8641 = vunpack.c.l.b16 %v8040
      %v8642 = vunpack.c.l.b16 %v8043
      %v8643 = vunpack.c.l.b16 %v8047
      %v8644 = vunpack.c.l.b16 %v8050
      %v8645 = vunpack.c.l.b16 %v8053
      %v8646 = vunpack.c.l.b16 %v8056
      %v8647 = vunpack.c.l.b16 %v8060
      %v8648 = vunpack.c.l.b16 %v8063
      %v8649 = vunpack.c.l.b16 %v8066
      %v8650 = vunpack.c.l.b16 %v8069
      %v8651 = vunpack.c.l.b16 %v8073
      %v8652 = vunpack.c.l.b16 %v8076
      %v8653 = vunpack.c.l.b16 %v8079
      %v8654 = vunpack.c.l.b16 %v8082
      %v8655 = vunpack.c.l.b16 %v8086
      %v8656 = vunpack.c.l.b16 %v8089
      %v8657 = vunpack.c.l.b16 %v8092
      %v8658 = vunpack.c.l.b16 %v8095
      %v8659 = vunpack.c.l.b16 %v8099
      %v8660 = vunpack.c.l.b16 %v8102
      %v8661 = vunpack.c.l.b16 %v8105
      %v8662 = vunpack.c.l.b16 %v8108
      %v8663 = vunpack.c.l.b16 %v8112
      %v8664 = vunpack.c.l.b16 %v8115
      %v8665 = vunpack.c.l.b16 %v8118
      %v8666 = vunpack.c.l.b16 %v8121
      %v8667 = vunpack.c.l.b16 %v8125
      %v8668 = vunpack.c.l.b16 %v8128
      %v8669 = vunpack.c.l.b16 %v8131
      %v8670 = vunpack.c.l.b16 %v8134
      %v8671 = vunpack.c.l.b16 %v8138
      %v8672 = vunpack.c.l.b16 %v8141
      %v8673 = vunpack.c.l.b16 %v8144
      %v8674 = vunpack.c.l.b16 %v8147
      %v8675 = vunpack.c.l.b16 %v8151
      %v8676 = vunpack.c.l.b16 %v8154
      %v8677 = vunpack.c.l.b16 %v8157
      %v8678 = vunpack.c.l.b16 %v8160
      %v8679 = vunpack.c.l.b16 %v8164
      %v8680 = vunpack.c.l.b16 %v8167
      %v8681 = vunpack.c.l.b16 %v8170
      %v8682 = vunpack.c.l.b16 %v8173
      %v8683 = vunpack.c.l.b16 %v8177
      %v8684 = vunpack.c.l.b16 %v8180
      %v8685 = vunpack.c.l.b16 %v8183
      %v8686 = vunpack.c.l.b16 %v8186
      %v8687 = vpack.c.b16 %v8588, %v8587
      %v8688 = vpack.c.b16 %v8590, %v8589
      %v8689 = vpack.c.b16 %v8592, %v8591
      %v8690 = vpack.c.b16 %v8594, %v8593
      %v8691 = vpack.c.b16 %v8596, %v8595
      %v8692 = vpack.c.b16 %v8598, %v8597
      %v8693 = vpack.c.b16 %v8600, %v8599
      %v8694 = vpack.c.b16 %v8602, %v8601
      %v8695 = vpack.c.b16 %v8604, %v8603
      %v8696 = vpack.c.b16 %v8606, %v8605
      %v8697 = vpack.c.b16 %v8608, %v8607
      %v8698 = vpack.c.b16 %v8610, %v8609
      %v8699 = vpack.c.b16 %v8612, %v8611
      %v8700 = vpack.c.b16 %v8614, %v8613
      %v8701 = vpack.c.b16 %v8616, %v8615
      %v8702 = vpack.c.b16 %v8618, %v8617
      %v8703 = vpack.c.b16 %v8620, %v8619
      %v8704 = vpack.c.b16 %v8622, %v8621
      %v8705 = vpack.c.b16 %v8624, %v8623
      %v8706 = vpack.c.b16 %v8626, %v8625
      %v8707 = vpack.c.b16 %v8628, %v8627
      %v8708 = vpack.c.b16 %v8630, %v8629
      %v8709 = vpack.c.b16 %v8632, %v8631
      %v8710 = vpack.c.b16 %v8634, %v8633
      %v8711 = vpack.c.b16 %v8636, %v8635
      %v8712 = vpack.c.b16 %v8638, %v8637
      %v8713 = vpack.c.b16 %v8640, %v8639
      %v8714 = vpack.c.b16 %v8642, %v8641
      %v8715 = vpack.c.b16 %v8644, %v8643
      %v8716 = vpack.c.b16 %v8646, %v8645
      %v8717 = vpack.c.b16 %v8648, %v8647
      %v8718 = vpack.c.b16 %v8650, %v8649
      %v8719 = vpack.c.b16 %v8652, %v8651
      %v8720 = vpack.c.b16 %v8654, %v8653
      %v8721 = vpack.c.b16 %v8656, %v8655
      %v8722 = vpack.c.b16 %v8658, %v8657
      %v8723 = vpack.c.b16 %v8660, %v8659
      %v8724 = vpack.c.b16 %v8662, %v8661
      %v8725 = vpack.c.b16 %v8664, %v8663
      %v8726 = vpack.c.b16 %v8666, %v8665
      %v8727 = vpack.c.b16 %v8668, %v8667
      %v8728 = vpack.c.b16 %v8670, %v8669
      %v8729 = vpack.c.b16 %v8672, %v8671
      %v8730 = vpack.c.b16 %v8674, %v8673
      %v8731 = vpack.c.b16 %v8676, %v8675
      %v8732 = vpack.c.b16 %v8678, %v8677
      %v8733 = vpack.c.b16 %v8680, %v8679
      %v8734 = vpack.c.b16 %v8682, %v8681
      %v8735 = vpack.c.b16 %v8684, %v8683
      %v8736 = vpack.c.b16 %v8686, %v8685
      %v8739 = vsel %vm2519, %v8287, %v8488
      %v8743 = vsel %vm2519, %v8288, %v8490
      %v8747 = vsel %vm2519, %v8289, %v8492
      %v8751 = vsel %vm2519, %v8290, %v8494
      %v8755 = vsel %vm2519, %v8291, %v8496
      %v8759 = vsel %vm2519, %v8292, %v8498
      %v8763 = vsel %vm2519, %v8293, %v8500
      %v8767 = vsel %vm2519, %v8294, %v8502
      %v8771 = vsel %vm2519, %v8295, %v8504
      %v8775 = vsel %vm2519, %v8296, %v8506
      %v8779 = vsel %vm2519, %v8297, %v8508
      %v8783 = vsel %vm2519, %v8298, %v8510
      %v8787 = vsel %vm2519, %v8299, %v8512
      %v8791 = vsel %vm2519, %v8300, %v8514
      %v8795 = vsel %vm2519, %v8301, %v8516
      %v8799 = vsel %vm2519, %v8302, %v8518
      %v8803 = vsel %vm2519, %v8303, %v8520
      %v8807 = vsel %vm2519, %v8304, %v8522
      %v8811 = vsel %vm2519, %v8305, %v8524
      %v8815 = vsel %vm2519, %v8306, %v8526
      %v8819 = vsel %vm2519, %v8307, %v8528
      %v8823 = vsel %vm2519, %v8308, %v8530
      %v8827 = vsel %vm2519, %v8309, %v8532
      %v8831 = vsel %vm2519, %v8310, %v8534
      %v8835 = vsel %vm2519, %v8311, %v8536
      %v8839 = vsel %vm2519, %v8312, %v8538
      %v8843 = vsel %vm2519, %v8313, %v8540
      %v8847 = vsel %vm2519, %v8314, %v8542
      %v8851 = vsel %vm2519, %v8315, %v8544
      %v8855 = vsel %vm2519, %v8316, %v8546
      %v8859 = vsel %vm2519, %v8317, %v8548
      %v8863 = vsel %vm2519, %v8318, %v8550
      %v8867 = vsel %vm2519, %v8319, %v8552
      %v8871 = vsel %vm2519, %v8320, %v8554
      %v8875 = vsel %vm2519, %v8321, %v8556
      %v8879 = vsel %vm2519, %v8322, %v8558
      %v8883 = vsel %vm2519, %v8323, %v8560
      %v8887 = vsel %vm2519, %v8324, %v8562
      %v8891 = vsel %vm2519, %v8325, %v8564
      %v8895 = vsel %vm2519, %v8326, %v8566
      %v8899 = vsel %vm2519, %v8327, %v8568
      %v8903 = vsel %vm2519, %v8328, %v8570
      %v8907 = vsel %vm2519, %v8329, %v8572
      %v8911 = vsel %vm2519, %v8330, %v8574
      %v8915 = vsel %vm2519, %v8331, %v8576
      %v8919 = vsel %vm2519, %v8332, %v8578
      %v8923 = vsel %vm2519, %v8333, %v8580
      %v8927 = vsel %vm2519, %v8334, %v8582
      %v8931 = vsel %vm2519, %v8335, %v8584
      %v8935 = vsel %vm2519, %v8336, %v8586
      %s8937 = scalar_lea.vmem %s1, 192
      %v8938 = vld [vmem:[%s8937] sm:$0xf]
      %v8939 = vld [vmem:[%s8937 + $0x4] sm:$0xf]
      %v8940 = vld [vmem:[%s8937 + $0x8] sm:$0xf]
      %v8941 = vld [vmem:[%s8937 + $0xc] sm:$0xf]
      %v8942 = vld [vmem:[%s8937 + $0x10] sm:$0xf]
      %v8943 = vld [vmem:[%s8937 + $0x14] sm:$0xf]
      %v8944 = vld [vmem:[%s8937 + $0x18] sm:$0xf]
      %v8945 = vld [vmem:[%s8937 + $0x1c] sm:$0xf]
      %v8946 = vld [vmem:[%s8937 + $0x20] sm:$0xf]
      %v8947 = vld [vmem:[%s8937 + $0x24] sm:$0xf]
      %v8948 = vld [vmem:[%s8937 + $0x28] sm:$0xf]
      %v8949 = vld [vmem:[%s8937 + $0x2c] sm:$0xf]
      %v8950 = vld [vmem:[%s8937 + $0x30] sm:$0xf]
      %v8951 = vld [vmem:[%s8937 + $0x34] sm:$0xf]
      %v8952 = vld [vmem:[%s8937 + $0x38] sm:$0xf]
      %v8953 = vld [vmem:[%s8937 + $0x3c] sm:$0xf]
      %v8954 = vld [vmem:[%s8937 + $0x40] sm:$0xf]
      %v8955 = vld [vmem:[%s8937 + $0x44] sm:$0xf]
      %v8956 = vld [vmem:[%s8937 + $0x48] sm:$0xf]
      %v8957 = vld [vmem:[%s8937 + $0x4c] sm:$0xf]
      %v8958 = vld [vmem:[%s8937 + $0x50] sm:$0xf]
      %v8959 = vld [vmem:[%s8937 + $0x54] sm:$0xf]
      %v8960 = vld [vmem:[%s8937 + $0x58] sm:$0xf]
      %v8961 = vld [vmem:[%s8937 + $0x5c] sm:$0xf]
      %v8986 = vunpack.c.l.b16 %v8938
      %v8987 = vunpack.c.l.b16 %v8939
      %v8988 = vunpack.c.l.b16 %v8940
      %v8989 = vunpack.c.l.b16 %v8941
      %v8990 = vunpack.c.l.b16 %v8942
      %v8991 = vunpack.c.l.b16 %v8943
      %v8992 = vunpack.c.l.b16 %v8944
      %v8993 = vunpack.c.l.b16 %v8945
      %v8994 = vunpack.c.l.b16 %v8946
      %v8995 = vunpack.c.l.b16 %v8947
      %v8996 = vunpack.c.l.b16 %v8948
      %v8997 = vunpack.c.l.b16 %v8949
      %v8998 = vunpack.c.l.b16 %v8950
      %v8999 = vunpack.c.l.b16 %v8951
      %v9000 = vunpack.c.l.b16 %v8952
      %v9001 = vunpack.c.l.b16 %v8953
      %v9002 = vunpack.c.l.b16 %v8954
      %v9003 = vunpack.c.l.b16 %v8955
      %v9004 = vunpack.c.l.b16 %v8956
      %v9005 = vunpack.c.l.b16 %v8957
      %v9006 = vunpack.c.l.b16 %v8958
      %v9007 = vunpack.c.l.b16 %v8959
      %v9008 = vunpack.c.l.b16 %v8960
      %v9009 = vunpack.c.l.b16 %v8961
      %v9010 = vpack.c.b16 %v8987, %v8986
      %v9011 = vpack.c.b16 %v8989, %v8988
      %v9012 = vpack.c.b16 %v8991, %v8990
      %v9013 = vpack.c.b16 %v8993, %v8992
      %v9014 = vpack.c.b16 %v8995, %v8994
      %v9015 = vpack.c.b16 %v8997, %v8996
      %v9016 = vpack.c.b16 %v8999, %v8998
      %v9017 = vpack.c.b16 %v9001, %v9000
      %v9018 = vpack.c.b16 %v9003, %v9002
      %v9019 = vpack.c.b16 %v9005, %v9004
      %v9020 = vpack.c.b16 %v9007, %v9006
      %v9021 = vpack.c.b16 %v9009, %v9008
      %v9035 = vsel %vm2519, %v8687, 0
      %v9038 = vsel %vm2519, %v8688, 0
      %v9041 = vsel %vm2519, %v8689, 0
      %v9044 = vsel %vm2519, %v8690, 0
      %v9047 = vsel %vm2519, %v8691, 0
      %v9050 = vsel %vm2519, %v8692, 0
      %v9053 = vsel %vm2519, %v8693, 0
      %v9056 = vsel %vm2519, %v8694, 0
      %v9059 = vsel %vm2519, %v8695, 0
      %v9062 = vsel %vm2519, %v8696, 0
      %v9065 = vsel %vm2519, %v8697, 0
      %v9068 = vsel %vm2519, %v8698, 0
      %v9071 = vsel %vm2519, %v8699, 0
      %v9074 = vsel %vm2519, %v8700, 0
      %v9077 = vsel %vm2519, %v8701, 0
      %v9080 = vsel %vm2519, %v8702, 0
      %v9083 = vsel %vm2519, %v8703, 0
      %v9086 = vsel %vm2519, %v8704, 0
      %v9089 = vsel %vm2519, %v8705, 0
      %v9092 = vsel %vm2519, %v8706, 0
      %v9095 = vsel %vm2519, %v8707, 0
      %v9098 = vsel %vm2519, %v8708, 0
      %v9101 = vsel %vm2519, %v8709, 0
      %v9104 = vsel %vm2519, %v8710, 0
      %v9107 = vsel %vm2519, %v8711, 0
      %v9110 = vsel %vm2519, %v8712, 0
      %v9113 = vsel %vm2519, %v8713, 0
      %v9116 = vsel %vm2519, %v8714, 0
      %v9119 = vsel %vm2519, %v8715, 0
      %v9122 = vsel %vm2519, %v8716, 0
      %v9125 = vsel %vm2519, %v8717, 0
      %v9128 = vsel %vm2519, %v8718, 0
      %v9131 = vsel %vm2519, %v8719, 0
      %v9134 = vsel %vm2519, %v8720, 0
      %v9137 = vsel %vm2519, %v8721, 0
      %v9140 = vsel %vm2519, %v8722, 0
      %v9143 = vsel %vm2519, %v8723, 0
      %v9146 = vsel %vm2519, %v8724, 0
      %v9149 = vsel %vm2519, %v8725, 0
      %v9152 = vsel %vm2519, %v8726, 0
      %v9155 = vsel %vm2519, %v8727, 0
      %v9158 = vsel %vm2519, %v8728, 0
      %v9161 = vsel %vm2519, %v8729, 0
      %v9164 = vsel %vm2519, %v8730, 0
      %v9167 = vsel %vm2519, %v8731, 0
      %v9170 = vsel %vm2519, %v8732, 0
      %v9173 = vsel %vm2519, %v8733, 0
      %v9176 = vsel %vm2519, %v8734, 0
      %v9179 = vsel %vm2519, %v8735, 0
      %v9182 = vsel %vm2519, %v8736, 0
      %9184 = vmatprep.subr.bf16.mxu0 0
      %9185 = vmatpush1.bf16.msra.mxu0 %v9010
      %9186 = vmatprep.subr.bf16.mxu0 0
      %9187 = vmatpush1.bf16.msra.mxu0 %v9011
      %9188 = vmatprep.subr.bf16.mxu0 0
      %9189 = vmatpush1.bf16.msra.mxu0 %v9012
      %9190 = vmatprep.subr.bf16.mxu0 0
      %9191 = vmatpush1.bf16.msra.mxu0 %v9013
      %9192 = vmatprep.subr.bf16.mxu0 0
      %9193 = vmatpush1.bf16.msra.mxu0 %v9014
      %9194 = vmatprep.subr.bf16.mxu0 0
      %9195 = vmatpush1.bf16.msra.mxu0 %v9015
      %9196 = vmatprep.subr.bf16.mxu0 0
      %9197 = vmatpush1.bf16.msra.mxu0 %v9016
      %9198 = vmatprep.subr.bf16.mxu0 0
      %9199 = vmatpush1.bf16.msra.mxu0 %v9017
      %9200 = vmatprep.subr.bf16.mxu0 0
      %9201 = vmatpush1.bf16.msra.mxu0 %v9018
      %9202 = vmatprep.subr.bf16.mxu0 0
      %9203 = vmatpush1.bf16.msra.mxu0 %v9019
      %9204 = vmatprep.subr.bf16.mxu0 0
      %9205 = vmatpush1.bf16.msra.mxu0 %v9020
      %9206 = vmatprep.subr.bf16.mxu0 0
      %9207 = vmatpush1.bf16.msra.mxu0 %v9021
      %9208 = vmatprep.subr.bf16.mxu0 0
      %9209 = vmatpush1.bf16.msra.mxu0 0
      %9210 = vmatprep.subr.bf16.mxu0 0
      %9211 = vmatpush1.bf16.msra.mxu0 0
      %9212 = vmatprep.subr.bf16.mxu0 0
      %9213 = vmatpush1.bf16.msra.mxu0 0
      %9214 = vmatprep.subr.bf16.mxu0 0
      %9215 = vmatpush1.bf16.msra.mxu0 0
      %9216 = vmatprep.mubr.bf16.mxu0 %v9035
      %9217 = vmatmul.mubr.bf16.gmra.mrb[0].mxu0 %v8739
      %v9218 = vpop.f32.mrb[0].mxu0
      %v9219 = vadd.f32 0.0, %v9218
      %v9220 = vpop.f32.mrb[0].mxu0
      %v9221 = vpop.f32.mrb[0].mxu0
      %v9222 = vadd.f32 0.0, %v9221
      %v9223 = vpop.f32.mrb[0].mxu0
      %9224 = vmatprep.mubr.bf16.mxu0 %v9038
      %9225 = vmatmul.mubr.bf16.gmra.mrb[0].mxu0 %v8743
      %v9226 = vpop.f32.mrb[0].mxu0
      %v9227 = vadd.f32 0.0, %v9226
      %v9228 = vpop.f32.mrb[0].mxu0
      %v9229 = vpop.f32.mrb[0].mxu0
      %v9230 = vadd.f32 0.0, %v9229
      %v9231 = vpop.f32.mrb[0].mxu0
      %9232 = vmatprep.mubr.bf16.mxu0 %v9041
      %9233 = vmatmul.mubr.bf16.gmra.mrb[0].mxu0 %v8747
      %v9234 = vpop.f32.mrb[0].mxu0
      %v9235 = vadd.f32 0.0, %v9234
      %v9236 = vpop.f32.mrb[0].mxu0
      %v9237 = vpop.f32.mrb[0].mxu0
      %v9238 = vadd.f32 0.0, %v9237
      %v9239 = vpop.f32.mrb[0].mxu0
      %9240 = vmatprep.mubr.bf16.mxu0 %v9044
      %9241 = vmatmul.mubr.bf16.gmra.mrb[0].mxu0 %v8751
      %v9242 = vpop.f32.mrb[0].mxu0
      %v9243 = vadd.f32 0.0, %v9242
      %v9244 = vpop.f32.mrb[0].mxu0
      %v9245 = vpop.f32.mrb[0].mxu0
      %v9246 = vadd.f32 0.0, %v9245
      %v9247 = vpop.f32.mrb[0].mxu0
      %9248 = vmatprep.mubr.bf16.mxu0 %v9047
      %9249 = vmatmul.mubr.bf16.gmra.mrb[0].mxu0 %v8755
      %v9250 = vpop.f32.mrb[0].mxu0
      %v9251 = vadd.f32 0.0, %v9250
      %v9252 = vpop.f32.mrb[0].mxu0
      %v9253 = vpop.f32.mrb[0].mxu0
      %v9254 = vadd.f32 0.0, %v9253
      %v9255 = vpop.f32.mrb[0].mxu0
      %9256 = vmatprep.mubr.bf16.mxu0 %v9050
      %9257 = vmatmul.mubr.bf16.gmra.mrb[0].mxu0 %v8759
      %v9258 = vpop.f32.mrb[0].mxu0
      %v9259 = vadd.f32 0.0, %v9258
      %v9260 = vpop.f32.mrb[0].mxu0
      %v9261 = vpop.f32.mrb[0].mxu0
      %v9262 = vadd.f32 0.0, %v9261
      %v9263 = vpop.f32.mrb[0].mxu0
      %9264 = vmatprep.mubr.bf16.mxu0 %v9053
      %9265 = vmatmul.mubr.bf16.gmra.mrb[0].mxu0 %v8763
      %v9266 = vpop.f32.mrb[0].mxu0
      %v9267 = vadd.f32 0.0, %v9266
      %v9268 = vpop.f32.mrb[0].mxu0
      %v9269 = vpop.f32.mrb[0].mxu0
      %v9270 = vadd.f32 0.0, %v9269
      %v9271 = vpop.f32.mrb[0].mxu0
      %9272 = vmatprep.mubr.bf16.mxu0 %v9056
      %9273 = vmatmul.mubr.bf16.gmra.mrb[0].mxu0 %v8767
      %v9274 = vpop.f32.mrb[0].mxu0
      %v9275 = vadd.f32 0.0, %v9274
      %v9276 = vpop.f32.mrb[0].mxu0
      %v9277 = vpop.f32.mrb[0].mxu0
      %v9278 = vadd.f32 0.0, %v9277
      %v9279 = vpop.f32.mrb[0].mxu0
      %9280 = vmatprep.mubr.bf16.mxu0 %v9059
      %9281 = vmatmul.mubr.bf16.gmra.mrb[0].mxu0 %v8771
      %v9282 = vpop.f32.mrb[0].mxu0
      %v9283 = vadd.f32 0.0, %v9282
      %v9284 = vpop.f32.mrb[0].mxu0
      %v9285 = vpop.f32.mrb[0].mxu0
      %v9286 = vadd.f32 0.0, %v9285
      %v9287 = vpop.f32.mrb[0].mxu0
      %9288 = vmatprep.mubr.bf16.mxu0 %v9062
      %9289 = vmatmul.mubr.bf16.gmra.mrb[0].mxu0 %v8775
      %v9290 = vpop.f32.mrb[0].mxu0
      %v9291 = vadd.f32 0.0, %v9290
      %v9292 = vpop.f32.mrb[0].mxu0
      %v9293 = vpop.f32.mrb[0].mxu0
      %v9294 = vadd.f32 0.0, %v9293
      %v9295 = vpop.f32.mrb[0].mxu0
      %9296 = vmatprep.mubr.bf16.mxu0 %v9065
      %9297 = vmatmul.mubr.bf16.gmra.mrb[0].mxu0 %v8779
      %v9298 = vpop.f32.mrb[0].mxu0
      %v9299 = vadd.f32 0.0, %v9298
      %v9300 = vpop.f32.mrb[0].mxu0
      %v9301 = vpop.f32.mrb[0].mxu0
      %v9302 = vadd.f32 0.0, %v9301
      %v9303 = vpop.f32.mrb[0].mxu0
      %9304 = vmatprep.mubr.bf16.mxu0 %v9068
      %9305 = vmatmul.mubr.bf16.gmra.mrb[0].mxu0 %v8783
      %v9306 = vpop.f32.mrb[0].mxu0
      %v9307 = vadd.f32 0.0, %v9306
      %v9308 = vpop.f32.mrb[0].mxu0
      %v9309 = vpop.f32.mrb[0].mxu0
      %v9310 = vadd.f32 0.0, %v9309
      %v9311 = vpop.f32.mrb[0].mxu0
      %9312 = vmatprep.mubr.bf16.mxu0 %v9071
      %9313 = vmatmul.mubr.bf16.gmra.mrb[0].mxu0 %v8787
      %v9314 = vpop.f32.mrb[0].mxu0
      %v9315 = vadd.f32 0.0, %v9314
      %v9316 = vpop.f32.mrb[0].mxu0
      %v9317 = vpop.f32.mrb[0].mxu0
      %v9318 = vadd.f32 0.0, %v9317
      %v9319 = vpop.f32.mrb[0].mxu0
      %9320 = vmatprep.mubr.bf16.mxu0 %v9074
      %9321 = vmatmul.mubr.bf16.gmra.mrb[0].mxu0 %v8791
      %v9322 = vpop.f32.mrb[0].mxu0
      %v9323 = vadd.f32 0.0, %v9322
      %v9324 = vpop.f32.mrb[0].mxu0
      %v9325 = vpop.f32.mrb[0].mxu0
      %v9326 = vadd.f32 0.0, %v9325
      %v9327 = vpop.f32.mrb[0].mxu0
      %9328 = vmatprep.mubr.bf16.mxu0 %v9077
      %9329 = vmatmul.mubr.bf16.gmra.mrb[0].mxu0 %v8795
      %v9330 = vpop.f32.mrb[0].mxu0
      %v9331 = vadd.f32 0.0, %v9330
      %v9332 = vpop.f32.mrb[0].mxu0
      %v9333 = vpop.f32.mrb[0].mxu0
      %v9334 = vadd.f32 0.0, %v9333
      %v9335 = vpop.f32.mrb[0].mxu0
      %9336 = vmatprep.mubr.bf16.mxu0 %v9080
      %9337 = vmatmul.mubr.bf16.gmra.mrb[0].mxu0 %v8799
      %v9338 = vpop.f32.mrb[0].mxu0
      %v9339 = vadd.f32 0.0, %v9338
      %v9340 = vpop.f32.mrb[0].mxu0
      %v9341 = vpop.f32.mrb[0].mxu0
      %v9342 = vadd.f32 0.0, %v9341
      %v9343 = vpop.f32.mrb[0].mxu0
      %9344 = vmatprep.mubr.bf16.mxu0 %v9083
      %9345 = vmatmul.mubr.bf16.gmra.mrb[0].mxu0 %v8803
      %v9346 = vpop.f32.mrb[0].mxu0
      %v9347 = vadd.f32 0.0, %v9346
      %v9348 = vpop.f32.mrb[0].mxu0
      %v9349 = vpop.f32.mrb[0].mxu0
      %v9350 = vadd.f32 0.0, %v9349
      %v9351 = vpop.f32.mrb[0].mxu0
      %9352 = vmatprep.mubr.bf16.mxu0 %v9086
      %9353 = vmatmul.mubr.bf16.gmra.mrb[0].mxu0 %v8807
      %v9354 = vpop.f32.mrb[0].mxu0
      %v9355 = vadd.f32 0.0, %v9354
      %v9356 = vpop.f32.mrb[0].mxu0
      %v9357 = vpop.f32.mrb[0].mxu0
      %v9358 = vadd.f32 0.0, %v9357
      %v9359 = vpop.f32.mrb[0].mxu0
      %9360 = vmatprep.mubr.bf16.mxu0 %v9089
      %9361 = vmatmul.mubr.bf16.gmra.mrb[0].mxu0 %v8811
      %v9362 = vpop.f32.mrb[0].mxu0
      %v9363 = vadd.f32 0.0, %v9362
      %v9364 = vpop.f32.mrb[0].mxu0
      %v9365 = vpop.f32.mrb[0].mxu0
      %v9366 = vadd.f32 0.0, %v9365
      %v9367 = vpop.f32.mrb[0].mxu0
      %9368 = vmatprep.mubr.bf16.mxu0 %v9092
      %9369 = vmatmul.mubr.bf16.gmra.mrb[0].mxu0 %v8815
      %v9370 = vpop.f32.mrb[0].mxu0
      %v9371 = vadd.f32 0.0, %v9370
      %v9372 = vpop.f32.mrb[0].mxu0
      %v9373 = vpop.f32.mrb[0].mxu0
      %v9374 = vadd.f32 0.0, %v9373
      %v9375 = vpop.f32.mrb[0].mxu0
      %9376 = vmatprep.mubr.bf16.mxu0 %v9095
      %9377 = vmatmul.mubr.bf16.gmra.mrb[0].mxu0 %v8819
      %v9378 = vpop.f32.mrb[0].mxu0
      %v9379 = vadd.f32 0.0, %v9378
      %v9380 = vpop.f32.mrb[0].mxu0
      %v9381 = vpop.f32.mrb[0].mxu0
      %v9382 = vadd.f32 0.0, %v9381
      %v9383 = vpop.f32.mrb[0].mxu0
      %9384 = vmatprep.mubr.bf16.mxu0 %v9098
      %9385 = vmatmul.mubr.bf16.gmra.mrb[0].mxu0 %v8823
      %v9386 = vpop.f32.mrb[0].mxu0
      %v9387 = vadd.f32 0.0, %v9386
      %v9388 = vpop.f32.mrb[0].mxu0
      %v9389 = vpop.f32.mrb[0].mxu0
      %v9390 = vadd.f32 0.0, %v9389
      %v9391 = vpop.f32.mrb[0].mxu0
      %9392 = vmatprep.mubr.bf16.mxu0 %v9101
      %9393 = vmatmul.mubr.bf16.gmra.mrb[0].mxu0 %v8827
      %v9394 = vpop.f32.mrb[0].mxu0
      %v9395 = vadd.f32 0.0, %v9394
      %v9396 = vpop.f32.mrb[0].mxu0
      %v9397 = vpop.f32.mrb[0].mxu0
      %v9398 = vadd.f32 0.0, %v9397
      %v9399 = vpop.f32.mrb[0].mxu0
      %9400 = vmatprep.mubr.bf16.mxu0 %v9104
      %9401 = vmatmul.mubr.bf16.gmra.mrb[0].mxu0 %v8831
      %v9402 = vpop.f32.mrb[0].mxu0
      %v9403 = vadd.f32 0.0, %v9402
      %v9404 = vpop.f32.mrb[0].mxu0
      %v9405 = vpop.f32.mrb[0].mxu0
      %v9406 = vadd.f32 0.0, %v9405
      %v9407 = vpop.f32.mrb[0].mxu0
      %9408 = vmatprep.mubr.bf16.mxu0 %v9107
      %9409 = vmatmul.mubr.bf16.gmra.mrb[0].mxu0 %v8835
      %v9410 = vpop.f32.mrb[0].mxu0
      %v9411 = vadd.f32 0.0, %v9410
      %v9412 = vpop.f32.mrb[0].mxu0
      %v9413 = vpop.f32.mrb[0].mxu0
      %v9414 = vadd.f32 0.0, %v9413
      %v9415 = vpop.f32.mrb[0].mxu0
      %9416 = vmatprep.mubr.bf16.mxu0 %v9110
      %9417 = vmatmul.mubr.bf16.gmra.mrb[0].mxu0 %v8839
      %v9418 = vpop.f32.mrb[0].mxu0
      %v9419 = vadd.f32 0.0, %v9418
      %v9420 = vpop.f32.mrb[0].mxu0
      %v9421 = vpop.f32.mrb[0].mxu0
      %v9422 = vadd.f32 0.0, %v9421
      %v9423 = vpop.f32.mrb[0].mxu0
      %9424 = vmatprep.mubr.bf16.mxu0 %v9113
      %9425 = vmatmul.mubr.bf16.gmra.mrb[0].mxu0 %v8843
      %v9426 = vpop.f32.mrb[0].mxu0
      %v9427 = vadd.f32 0.0, %v9426
      %v9428 = vpop.f32.mrb[0].mxu0
      %v9429 = vpop.f32.mrb[0].mxu0
      %v9430 = vadd.f32 0.0, %v9429
      %v9431 = vpop.f32.mrb[0].mxu0
      %9432 = vmatprep.mubr.bf16.mxu0 %v9116
      %9433 = vmatmul.mubr.bf16.gmra.mrb[0].mxu0 %v8847
      %v9434 = vpop.f32.mrb[0].mxu0
      %v9435 = vadd.f32 0.0, %v9434
      %v9436 = vpop.f32.mrb[0].mxu0
      %v9437 = vpop.f32.mrb[0].mxu0
      %v9438 = vadd.f32 0.0, %v9437
      %v9439 = vpop.f32.mrb[0].mxu0
      %9440 = vmatprep.mubr.bf16.mxu0 %v9119
      %9441 = vmatmul.mubr.bf16.gmra.mrb[0].mxu0 %v8851
      %v9442 = vpop.f32.mrb[0].mxu0
      %v9443 = vadd.f32 0.0, %v9442
      %v9444 = vpop.f32.mrb[0].mxu0
      %v9445 = vpop.f32.mrb[0].mxu0
      %v9446 = vadd.f32 0.0, %v9445
      %v9447 = vpop.f32.mrb[0].mxu0
      %9448 = vmatprep.mubr.bf16.mxu0 %v9122
      %9449 = vmatmul.mubr.bf16.gmra.mrb[0].mxu0 %v8855
      %v9450 = vpop.f32.mrb[0].mxu0
      %v9451 = vadd.f32 0.0, %v9450
      %v9452 = vpop.f32.mrb[0].mxu0
      %v9453 = vpop.f32.mrb[0].mxu0
      %v9454 = vadd.f32 0.0, %v9453
      %v9455 = vpop.f32.mrb[0].mxu0
      %9456 = vmatprep.mubr.bf16.mxu0 %v9125
      %9457 = vmatmul.mubr.bf16.gmra.mrb[0].mxu0 %v8859
      %v9458 = vpop.f32.mrb[0].mxu0
      %v9459 = vadd.f32 0.0, %v9458
      %v9460 = vpop.f32.mrb[0].mxu0
      %v9461 = vpop.f32.mrb[0].mxu0
      %v9462 = vadd.f32 0.0, %v9461
      %v9463 = vpop.f32.mrb[0].mxu0
      %9464 = vmatprep.mubr.bf16.mxu0 %v9128
      %9465 = vmatmul.mubr.bf16.gmra.mrb[0].mxu0 %v8863
      %v9466 = vpop.f32.mrb[0].mxu0
      %v9467 = vadd.f32 0.0, %v9466
      %v9468 = vpop.f32.mrb[0].mxu0
      %v9469 = vpop.f32.mrb[0].mxu0
      %v9470 = vadd.f32 0.0, %v9469
      %v9471 = vpop.f32.mrb[0].mxu0
      %9472 = vmatprep.mubr.bf16.mxu0 %v9131
      %9473 = vmatmul.mubr.bf16.gmra.mrb[0].mxu0 %v8867
      %v9474 = vpop.f32.mrb[0].mxu0
      %v9475 = vadd.f32 0.0, %v9474
      %v9476 = vpop.f32.mrb[0].mxu0
      %v9477 = vpop.f32.mrb[0].mxu0
      %v9478 = vadd.f32 0.0, %v9477
      %v9479 = vpop.f32.mrb[0].mxu0
      %9480 = vmatprep.mubr.bf16.mxu0 %v9134
      %9481 = vmatmul.mubr.bf16.gmra.mrb[0].mxu0 %v8871
      %v9482 = vpop.f32.mrb[0].mxu0
      %v9483 = vadd.f32 0.0, %v9482
      %v9484 = vpop.f32.mrb[0].mxu0
      %v9485 = vpop.f32.mrb[0].mxu0
      %v9486 = vadd.f32 0.0, %v9485
      %v9487 = vpop.f32.mrb[0].mxu0
      %9488 = vmatprep.mubr.bf16.mxu0 %v9137
      %9489 = vmatmul.mubr.bf16.gmra.mrb[0].mxu0 %v8875
      %v9490 = vpop.f32.mrb[0].mxu0
      %v9491 = vadd.f32 0.0, %v9490
      %v9492 = vpop.f32.mrb[0].mxu0
      %v9493 = vpop.f32.mrb[0].mxu0
      %v9494 = vadd.f32 0.0, %v9493
      %v9495 = vpop.f32.mrb[0].mxu0
      %9496 = vmatprep.mubr.bf16.mxu0 %v9140
      %9497 = vmatmul.mubr.bf16.gmra.mrb[0].mxu0 %v8879
      %v9498 = vpop.f32.mrb[0].mxu0
      %v9499 = vadd.f32 0.0, %v9498
      %v9500 = vpop.f32.mrb[0].mxu0
      %v9501 = vpop.f32.mrb[0].mxu0
      %v9502 = vadd.f32 0.0, %v9501
      %v9503 = vpop.f32.mrb[0].mxu0
      %9504 = vmatprep.mubr.bf16.mxu0 %v9143
      %9505 = vmatmul.mubr.bf16.gmra.mrb[0].mxu0 %v8883
      %v9506 = vpop.f32.mrb[0].mxu0
      %v9507 = vadd.f32 0.0, %v9506
      %v9508 = vpop.f32.mrb[0].mxu0
      %v9509 = vpop.f32.mrb[0].mxu0
      %v9510 = vadd.f32 0.0, %v9509
      %v9511 = vpop.f32.mrb[0].mxu0
      %9512 = vmatprep.mubr.bf16.mxu0 %v9146
      %9513 = vmatmul.mubr.bf16.gmra.mrb[0].mxu0 %v8887
      %v9514 = vpop.f32.mrb[0].mxu0
      %v9515 = vadd.f32 0.0, %v9514
      %v9516 = vpop.f32.mrb[0].mxu0
      %v9517 = vpop.f32.mrb[0].mxu0
      %v9518 = vadd.f32 0.0, %v9517
      %v9519 = vpop.f32.mrb[0].mxu0
      %9520 = vmatprep.mubr.bf16.mxu0 %v9149
      %9521 = vmatmul.mubr.bf16.gmra.mrb[0].mxu0 %v8891
      %v9522 = vpop.f32.mrb[0].mxu0
      %v9523 = vadd.f32 0.0, %v9522
      %v9524 = vpop.f32.mrb[0].mxu0
      %v9525 = vpop.f32.mrb[0].mxu0
      %v9526 = vadd.f32 0.0, %v9525
      %v9527 = vpop.f32.mrb[0].mxu0
      %9528 = vmatprep.mubr.bf16.mxu0 %v9152
      %9529 = vmatmul.mubr.bf16.gmra.mrb[0].mxu0 %v8895
      %v9530 = vpop.f32.mrb[0].mxu0
      %v9531 = vadd.f32 0.0, %v9530
      %v9532 = vpop.f32.mrb[0].mxu0
      %v9533 = vpop.f32.mrb[0].mxu0
      %v9534 = vadd.f32 0.0, %v9533
      %v9535 = vpop.f32.mrb[0].mxu0
      %9536 = vmatprep.mubr.bf16.mxu0 %v9155
      %9537 = vmatmul.mubr.bf16.gmra.mrb[0].mxu0 %v8899
      %v9538 = vpop.f32.mrb[0].mxu0
      %v9539 = vadd.f32 0.0, %v9538
      %v9540 = vpop.f32.mrb[0].mxu0
      %v9541 = vpop.f32.mrb[0].mxu0
      %v9542 = vadd.f32 0.0, %v9541
      %v9543 = vpop.f32.mrb[0].mxu0
      %9544 = vmatprep.mubr.bf16.mxu0 %v9158
      %9545 = vmatmul.mubr.bf16.gmra.mrb[0].mxu0 %v8903
      %v9546 = vpop.f32.mrb[0].mxu0
      %v9547 = vadd.f32 0.0, %v9546
      %v9548 = vpop.f32.mrb[0].mxu0
      %v9549 = vpop.f32.mrb[0].mxu0
      %v9550 = vadd.f32 0.0, %v9549
      %v9551 = vpop.f32.mrb[0].mxu0
      %9552 = vmatprep.mubr.bf16.mxu0 %v9161
      %9553 = vmatmul.mubr.bf16.gmra.mrb[0].mxu0 %v8907
      %v9554 = vpop.f32.mrb[0].mxu0
      %v9555 = vadd.f32 0.0, %v9554
      %v9556 = vpop.f32.mrb[0].mxu0
      %v9557 = vpop.f32.mrb[0].mxu0
      %v9558 = vadd.f32 0.0, %v9557
      %v9559 = vpop.f32.mrb[0].mxu0
      %9560 = vmatprep.mubr.bf16.mxu0 %v9164
      %9561 = vmatmul.mubr.bf16.gmra.mrb[0].mxu0 %v8911
      %v9562 = vpop.f32.mrb[0].mxu0
      %v9563 = vadd.f32 0.0, %v9562
      %v9564 = vpop.f32.mrb[0].mxu0
      %v9565 = vpop.f32.mrb[0].mxu0
      %v9566 = vadd.f32 0.0, %v9565
      %v9567 = vpop.f32.mrb[0].mxu0
      %9568 = vmatprep.mubr.bf16.mxu0 %v9167
      %9569 = vmatmul.mubr.bf16.gmra.mrb[0].mxu0 %v8915
      %v9570 = vpop.f32.mrb[0].mxu0
      %v9571 = vadd.f32 0.0, %v9570
      %v9572 = vpop.f32.mrb[0].mxu0
      %v9573 = vpop.f32.mrb[0].mxu0
      %v9574 = vadd.f32 0.0, %v9573
      %v9575 = vpop.f32.mrb[0].mxu0
      %9576 = vmatprep.mubr.bf16.mxu0 %v9170
      %9577 = vmatmul.mubr.bf16.gmra.mrb[0].mxu0 %v8919
      %v9578 = vpop.f32.mrb[0].mxu0
      %v9579 = vadd.f32 0.0, %v9578
      %v9580 = vpop.f32.mrb[0].mxu0
      %v9581 = vpop.f32.mrb[0].mxu0
      %v9582 = vadd.f32 0.0, %v9581
      %v9583 = vpop.f32.mrb[0].mxu0
      %9584 = vmatprep.mubr.bf16.mxu0 %v9173
      %9585 = vmatmul.mubr.bf16.gmra.mrb[0].mxu0 %v8923
      %v9586 = vpop.f32.mrb[0].mxu0
      %v9587 = vadd.f32 0.0, %v9586
      %v9588 = vpop.f32.mrb[0].mxu0
      %v9589 = vpop.f32.mrb[0].mxu0
      %v9590 = vadd.f32 0.0, %v9589
      %v9591 = vpop.f32.mrb[0].mxu0
      %9592 = vmatprep.mubr.bf16.mxu0 %v9176
      %9593 = vmatmul.mubr.bf16.gmra.mrb[0].mxu0 %v8927
      %v9594 = vpop.f32.mrb[0].mxu0
      %v9595 = vadd.f32 0.0, %v9594
      %v9596 = vpop.f32.mrb[0].mxu0
      %v9597 = vpop.f32.mrb[0].mxu0
      %v9598 = vadd.f32 0.0, %v9597
      %v9599 = vpop.f32.mrb[0].mxu0
      %9600 = vmatprep.mubr.bf16.mxu0 %v9179
      %9601 = vmatmul.mubr.bf16.gmra.mrb[0].mxu0 %v8931
      %v9602 = vpop.f32.mrb[0].mxu0
      %v9603 = vadd.f32 0.0, %v9602
      %v9604 = vpop.f32.mrb[0].mxu0
      %v9605 = vpop.f32.mrb[0].mxu0
      %v9606 = vadd.f32 0.0, %v9605
      %v9607 = vpop.f32.mrb[0].mxu0
      %9608 = vmatprep.mubr.bf16.mxu0 %v9182
      %9609 = vmatmul.mubr.bf16.gmra.mrb[0].mxu0 %v8935
      %v9610 = vpop.f32.mrb[0].mxu0
      %v9611 = vadd.f32 0.0, %v9610
      %v9612 = vpop.f32.mrb[0].mxu0
      %v9613 = vpop.f32.mrb[0].mxu0
      %v9614 = vadd.f32 0.0, %v9613
      %v9615 = vpop.f32.mrb[0].mxu0
      %9616 = vdwg.mxu0
      %v9617 = vadd.f32 %v6110, %v9219
      %v9618 = vadd.f32 %v6113, %v9222
      %v9619 = vadd.f32 %v6118, %v9227
      %v9620 = vadd.f32 %v6121, %v9230
      %v9621 = vadd.f32 %v6126, %v9235
      %v9622 = vadd.f32 %v6129, %v9238
      %v9623 = vadd.f32 %v6134, %v9243
      %v9624 = vadd.f32 %v6137, %v9246
      %v9625 = vadd.f32 %v6142, %v9251
      %v9626 = vadd.f32 %v6145, %v9254
      %v9627 = vadd.f32 %v6150, %v9259
      %v9628 = vadd.f32 %v6153, %v9262
      %v9629 = vadd.f32 %v6158, %v9267
      %v9630 = vadd.f32 %v6161, %v9270
      %v9631 = vadd.f32 %v6166, %v9275
      %v9632 = vadd.f32 %v6169, %v9278
      %v9633 = vadd.f32 %v6174, %v9283
      %v9634 = vadd.f32 %v6177, %v9286
      %v9635 = vadd.f32 %v6182, %v9291
      %v9636 = vadd.f32 %v6185, %v9294
      %v9637 = vadd.f32 %v6190, %v9299
      %v9638 = vadd.f32 %v6193, %v9302
      %v9639 = vadd.f32 %v6198, %v9307
      %v9640 = vadd.f32 %v6201, %v9310
      %v9641 = vadd.f32 %v6206, %v9315
      %v9642 = vadd.f32 %v6209, %v9318
      %v9643 = vadd.f32 %v6214, %v9323
      %v9644 = vadd.f32 %v6217, %v9326
      %v9645 = vadd.f32 %v6222, %v9331
      %v9646 = vadd.f32 %v6225, %v9334
      %v9647 = vadd.f32 %v6230, %v9339
      %v9648 = vadd.f32 %v6233, %v9342
      %v9649 = vadd.f32 %v6238, %v9347
      %v9650 = vadd.f32 %v6241, %v9350
      %v9651 = vadd.f32 %v6246, %v9355
      %v9652 = vadd.f32 %v6249, %v9358
      %v9653 = vadd.f32 %v6254, %v9363
      %v9654 = vadd.f32 %v6257, %v9366
      %v9655 = vadd.f32 %v6262, %v9371
      %v9656 = vadd.f32 %v6265, %v9374
      %v9657 = vadd.f32 %v6270, %v9379
      %v9658 = vadd.f32 %v6273, %v9382
      %v9659 = vadd.f32 %v6278, %v9387
      %v9660 = vadd.f32 %v6281, %v9390
      %v9661 = vadd.f32 %v6286, %v9395
      %v9662 = vadd.f32 %v6289, %v9398
      %v9663 = vadd.f32 %v6294, %v9403
      %v9664 = vadd.f32 %v6297, %v9406
      %v9665 = vadd.f32 %v6302, %v9411
      %v9666 = vadd.f32 %v6305, %v9414
      %v9667 = vadd.f32 %v6310, %v9419
      %v9668 = vadd.f32 %v6313, %v9422
      %v9669 = vadd.f32 %v6318, %v9427
      %v9670 = vadd.f32 %v6321, %v9430
      %v9671 = vadd.f32 %v6326, %v9435
      %v9672 = vadd.f32 %v6329, %v9438
      %v9673 = vadd.f32 %v6334, %v9443
      %v9674 = vadd.f32 %v6337, %v9446
      %v9675 = vadd.f32 %v6342, %v9451
      %v9676 = vadd.f32 %v6345, %v9454
      %v9677 = vadd.f32 %v6350, %v9459
      %v9678 = vadd.f32 %v6353, %v9462
      %v9679 = vadd.f32 %v6358, %v9467
      %v9680 = vadd.f32 %v6361, %v9470
      %v9681 = vadd.f32 %v6366, %v9475
      %v9682 = vadd.f32 %v6369, %v9478
      %v9683 = vadd.f32 %v6374, %v9483
      %v9684 = vadd.f32 %v6377, %v9486
      %v9685 = vadd.f32 %v6382, %v9491
      %v9686 = vadd.f32 %v6385, %v9494
      %v9687 = vadd.f32 %v6390, %v9499
      %v9688 = vadd.f32 %v6393, %v9502
      %v9689 = vadd.f32 %v6398, %v9507
      %v9690 = vadd.f32 %v6401, %v9510
      %v9691 = vadd.f32 %v6406, %v9515
      %v9692 = vadd.f32 %v6409, %v9518
      %v9693 = vadd.f32 %v6414, %v9523
      %v9694 = vadd.f32 %v6417, %v9526
      %v9695 = vadd.f32 %v6422, %v9531
      %v9696 = vadd.f32 %v6425, %v9534
      %v9697 = vadd.f32 %v6430, %v9539
      %v9698 = vadd.f32 %v6433, %v9542
      %v9699 = vadd.f32 %v6438, %v9547
      %v9700 = vadd.f32 %v6441, %v9550
      %v9701 = vadd.f32 %v6446, %v9555
      %v9702 = vadd.f32 %v6449, %v9558
      %v9703 = vadd.f32 %v6454, %v9563
      %v9704 = vadd.f32 %v6457, %v9566
      %v9705 = vadd.f32 %v6462, %v9571
      %v9706 = vadd.f32 %v6465, %v9574
      %v9707 = vadd.f32 %v6470, %v9579
      %v9708 = vadd.f32 %v6473, %v9582
      %v9709 = vadd.f32 %v6478, %v9587
      %v9710 = vadd.f32 %v6481, %v9590
      %v9711 = vadd.f32 %v6486, %v9595
      %v9712 = vadd.f32 %v6489, %v9598
      %v9713 = vadd.f32 %v6494, %v9603
      %v9714 = vadd.f32 %v6497, %v9606
      %v9715 = vadd.f32 %v6502, %v9611
      %v9716 = vadd.f32 %v6505, %v9614
      %s9717 = ssub.s32 25, %s284
      %p9718 = scmp.lt.s32.totalorder %s9717, 25
      %s9719 = scalar_select %p9718, %s9717, 25
      %v9720 = vlaneseq
      %v9721 = vshrl.u32 %v9720, 7
      %v9722 = vadd.s32 %v9721, 8
      %v9723 = vadd.s32 %v9721, 16
      %v9724 = vadd.s32 %v9721, 24
      %v9725 = vadd.s32 %v9721, 32
      %v9726 = vadd.s32 %v9721, 40
      %v9727 = vadd.s32 %v9721, 48
      %v9728 = vadd.s32 %v9721, 56
      %v9729 = vadd.s32 %v9721, 64
      %v9730 = vadd.s32 %v9721, 72
      %v9731 = vadd.s32 %v9721, 80
      %v9732 = vadd.s32 %v9721, 88
      %v9733 = vadd.s32 %v9721, 96
      %v9734 = vadd.s32 %v9721, 104
      %v9735 = vadd.s32 %v9721, 112
      %v9736 = vadd.s32 %v9721, 120
      %v9737 = vadd.s32 %v9721, 128
      %v9738 = vadd.s32 %v9721, 136
      %v9739 = vadd.s32 %v9721, 144
      %v9740 = vadd.s32 %v9721, 152
      %v9741 = vadd.s32 %v9721, 160
      %v9742 = vadd.s32 %v9721, 168
      %v9743 = vadd.s32 %v9721, 176
      %v9744 = vadd.s32 %v9721, 184
      %v9745 = vadd.s32 %v9721, 192
      %v9746 = vadd.s32 %v9721, 200
      %v9747 = vadd.s32 %v9721, 208
      %v9748 = vadd.s32 %v9721, 216
      %v9749 = vadd.s32 %v9721, 224
      %v9750 = vadd.s32 %v9721, 232
      %v9751 = vadd.s32 %v9721, 240
      %v9752 = vadd.s32 %v9721, 248
      %v9753 = vadd.s32 %v9721, 256
      %v9754 = vadd.s32 %v9721, 264
      %v9755 = vadd.s32 %v9721, 272
      %v9756 = vadd.s32 %v9721, 280
      %v9757 = vadd.s32 %v9721, 288
      %v9758 = vadd.s32 %v9721, 296
      %v9759 = vadd.s32 %v9721, 304
      %v9760 = vadd.s32 %v9721, 312
      %v9761 = vadd.s32 %v9721, 320
      %v9762 = vadd.s32 %v9721, 328
      %v9763 = vadd.s32 %v9721, 336
      %v9764 = vadd.s32 %v9721, 344
      %v9765 = vadd.s32 %v9721, 352
      %v9766 = vadd.s32 %v9721, 360
      %v9767 = vadd.s32 %v9721, 368
      %v9768 = vadd.s32 %v9721, 376
      %v9769 = vadd.s32 %v9721, 384
      %v9770 = vadd.s32 %v9721, 392
      %v9771 = vadd.s32 %v9721, 400
      %v9772 = vadd.s32 %v9721, 408
      %v9773 = vadd.s32 %v9721, 416
      %v9774 = vadd.s32 %v9721, 424
      %v9775 = vadd.s32 %v9721, 432
      %v9776 = vadd.s32 %v9721, 440
      %v9777 = vadd.s32 %v9721, 448
      %v9778 = vadd.s32 %v9721, 456
      %v9779 = vadd.s32 %v9721, 464
      %v9780 = vadd.s32 %v9721, 472
      %v9781 = vadd.s32 %v9721, 480
      %v9782 = vadd.s32 %v9721, 488
      %v9783 = vadd.s32 %v9721, 496
      %v9784 = vadd.s32 %v9721, 504
      %v9785 = vadd.s32 %v9721, 512
      %v9786 = vadd.s32 %v9721, 520
      %v9787 = vadd.s32 %v9721, 528
      %v9788 = vadd.s32 %v9721, 536
      %v9789 = vadd.s32 %v9721, 544
      %v9790 = vadd.s32 %v9721, 552
      %v9791 = vadd.s32 %v9721, 560
      %v9792 = vadd.s32 %v9721, 568
      %v9793 = vadd.s32 %v9721, 576
      %v9794 = vadd.s32 %v9721, 584
      %v9795 = vadd.s32 %v9721, 592
      %v9796 = vadd.s32 %v9721, 600
      %v9797 = vadd.s32 %v9721, 608
      %v9798 = vadd.s32 %v9721, 616
      %v9799 = vadd.s32 %v9721, 624
      %v9800 = vadd.s32 %v9721, 632
      %v9801 = vadd.s32 %v9721, 640
      %v9802 = vadd.s32 %v9721, 648
      %v9803 = vadd.s32 %v9721, 656
      %v9804 = vadd.s32 %v9721, 664
      %v9805 = vadd.s32 %v9721, 672
      %v9806 = vadd.s32 %v9721, 680
      %v9807 = vadd.s32 %v9721, 688
      %v9808 = vadd.s32 %v9721, 696
      %v9809 = vadd.s32 %v9721, 704
      %v9810 = vadd.s32 %v9721, 712
      %v9811 = vadd.s32 %v9721, 720
      %v9812 = vadd.s32 %v9721, 728
      %v9813 = vadd.s32 %v9721, 736
      %v9814 = vadd.s32 %v9721, 744
      %v9815 = vadd.s32 %v9721, 752
      %v9816 = vadd.s32 %v9721, 760
      %v9817 = vadd.s32 %v9721, 768
      %v9818 = vadd.s32 %v9721, 776
      %v9819 = vadd.s32 %v9721, 784
      %v9820 = vadd.s32 %v9721, 792
      %s9821 = smul.u32 %s9719, 32
      %v9822 = vstv %s9821
      %vm9823 = vcmp.lt.s32.totalorder %v9721, %v9822
      %vm9824 = vcmp.lt.s32.totalorder %v9722, %v9822
      %vm9825 = vcmp.lt.s32.totalorder %v9723, %v9822
      %vm9826 = vcmp.lt.s32.totalorder %v9724, %v9822
      %vm9827 = vcmp.lt.s32.totalorder %v9725, %v9822
      %vm9828 = vcmp.lt.s32.totalorder %v9726, %v9822
      %vm9829 = vcmp.lt.s32.totalorder %v9727, %v9822
      %vm9830 = vcmp.lt.s32.totalorder %v9728, %v9822
      %vm9831 = vcmp.lt.s32.totalorder %v9729, %v9822
      %vm9832 = vcmp.lt.s32.totalorder %v9730, %v9822
      %vm9833 = vcmp.lt.s32.totalorder %v9731, %v9822
      %vm9834 = vcmp.lt.s32.totalorder %v9732, %v9822
      %vm9835 = vcmp.lt.s32.totalorder %v9733, %v9822
      %vm9836 = vcmp.lt.s32.totalorder %v9734, %v9822
      %vm9837 = vcmp.lt.s32.totalorder %v9735, %v9822
      %vm9838 = vcmp.lt.s32.totalorder %v9736, %v9822
      %vm9839 = vcmp.lt.s32.totalorder %v9737, %v9822
      %vm9840 = vcmp.lt.s32.totalorder %v9738, %v9822
      %vm9841 = vcmp.lt.s32.totalorder %v9739, %v9822
      %vm9842 = vcmp.lt.s32.totalorder %v9740, %v9822
      %vm9843 = vcmp.lt.s32.totalorder %v9741, %v9822
      %vm9844 = vcmp.lt.s32.totalorder %v9742, %v9822
      %vm9845 = vcmp.lt.s32.totalorder %v9743, %v9822
      %vm9846 = vcmp.lt.s32.totalorder %v9744, %v9822
      %vm9847 = vcmp.lt.s32.totalorder %v9745, %v9822
      %vm9848 = vcmp.lt.s32.totalorder %v9746, %v9822
      %vm9849 = vcmp.lt.s32.totalorder %v9747, %v9822
      %vm9850 = vcmp.lt.s32.totalorder %v9748, %v9822
      %vm9851 = vcmp.lt.s32.totalorder %v9749, %v9822
      %vm9852 = vcmp.lt.s32.totalorder %v9750, %v9822
      %vm9853 = vcmp.lt.s32.totalorder %v9751, %v9822
      %vm9854 = vcmp.lt.s32.totalorder %v9752, %v9822
      %vm9855 = vcmp.lt.s32.totalorder %v9753, %v9822
      %vm9856 = vcmp.lt.s32.totalorder %v9754, %v9822
      %vm9857 = vcmp.lt.s32.totalorder %v9755, %v9822
      %vm9858 = vcmp.lt.s32.totalorder %v9756, %v9822
      %vm9859 = vcmp.lt.s32.totalorder %v9757, %v9822
      %vm9860 = vcmp.lt.s32.totalorder %v9758, %v9822
      %vm9861 = vcmp.lt.s32.totalorder %v9759, %v9822
      %vm9862 = vcmp.lt.s32.totalorder %v9760, %v9822
      %vm9863 = vcmp.lt.s32.totalorder %v9761, %v9822
      %vm9864 = vcmp.lt.s32.totalorder %v9762, %v9822
      %vm9865 = vcmp.lt.s32.totalorder %v9763, %v9822
      %vm9866 = vcmp.lt.s32.totalorder %v9764, %v9822
      %vm9867 = vcmp.lt.s32.totalorder %v9765, %v9822
      %vm9868 = vcmp.lt.s32.totalorder %v9766, %v9822
      %vm9869 = vcmp.lt.s32.totalorder %v9767, %v9822
      %vm9870 = vcmp.lt.s32.totalorder %v9768, %v9822
      %vm9871 = vcmp.lt.s32.totalorder %v9769, %v9822
      %vm9872 = vcmp.lt.s32.totalorder %v9770, %v9822
      %vm9873 = vcmp.lt.s32.totalorder %v9771, %v9822
      %vm9874 = vcmp.lt.s32.totalorder %v9772, %v9822
      %vm9875 = vcmp.lt.s32.totalorder %v9773, %v9822
      %vm9876 = vcmp.lt.s32.totalorder %v9774, %v9822
      %vm9877 = vcmp.lt.s32.totalorder %v9775, %v9822
      %vm9878 = vcmp.lt.s32.totalorder %v9776, %v9822
      %vm9879 = vcmp.lt.s32.totalorder %v9777, %v9822
      %vm9880 = vcmp.lt.s32.totalorder %v9778, %v9822
      %vm9881 = vcmp.lt.s32.totalorder %v9779, %v9822
      %vm9882 = vcmp.lt.s32.totalorder %v9780, %v9822
      %vm9883 = vcmp.lt.s32.totalorder %v9781, %v9822
      %vm9884 = vcmp.lt.s32.totalorder %v9782, %v9822
      %vm9885 = vcmp.lt.s32.totalorder %v9783, %v9822
      %vm9886 = vcmp.lt.s32.totalorder %v9784, %v9822
      %vm9887 = vcmp.lt.s32.totalorder %v9785, %v9822
      %vm9888 = vcmp.lt.s32.totalorder %v9786, %v9822
      %vm9889 = vcmp.lt.s32.totalorder %v9787, %v9822
      %vm9890 = vcmp.lt.s32.totalorder %v9788, %v9822
      %vm9891 = vcmp.lt.s32.totalorder %v9789, %v9822
      %vm9892 = vcmp.lt.s32.totalorder %v9790, %v9822
      %vm9893 = vcmp.lt.s32.totalorder %v9791, %v9822
      %vm9894 = vcmp.lt.s32.totalorder %v9792, %v9822
      %vm9895 = vcmp.lt.s32.totalorder %v9793, %v9822
      %vm9896 = vcmp.lt.s32.totalorder %v9794, %v9822
      %vm9897 = vcmp.lt.s32.totalorder %v9795, %v9822
      %vm9898 = vcmp.lt.s32.totalorder %v9796, %v9822
      %vm9899 = vcmp.lt.s32.totalorder %v9797, %v9822
      %vm9900 = vcmp.lt.s32.totalorder %v9798, %v9822
      %vm9901 = vcmp.lt.s32.totalorder %v9799, %v9822
      %vm9902 = vcmp.lt.s32.totalorder %v9800, %v9822
      %vm9903 = vcmp.lt.s32.totalorder %v9801, %v9822
      %vm9904 = vcmp.lt.s32.totalorder %v9802, %v9822
      %vm9905 = vcmp.lt.s32.totalorder %v9803, %v9822
      %vm9906 = vcmp.lt.s32.totalorder %v9804, %v9822
      %vm9907 = vcmp.lt.s32.totalorder %v9805, %v9822
      %vm9908 = vcmp.lt.s32.totalorder %v9806, %v9822
      %vm9909 = vcmp.lt.s32.totalorder %v9807, %v9822
      %vm9910 = vcmp.lt.s32.totalorder %v9808, %v9822
      %vm9911 = vcmp.lt.s32.totalorder %v9809, %v9822
      %vm9912 = vcmp.lt.s32.totalorder %v9810, %v9822
      %vm9913 = vcmp.lt.s32.totalorder %v9811, %v9822
      %vm9914 = vcmp.lt.s32.totalorder %v9812, %v9822
      %vm9915 = vcmp.lt.s32.totalorder %v9813, %v9822
      %vm9916 = vcmp.lt.s32.totalorder %v9814, %v9822
      %vm9917 = vcmp.lt.s32.totalorder %v9815, %v9822
      %vm9918 = vcmp.lt.s32.totalorder %v9816, %v9822
      %vm9919 = vcmp.lt.s32.totalorder %v9817, %v9822
      %vm9920 = vcmp.lt.s32.totalorder %v9818, %v9822
      %vm9921 = vcmp.lt.s32.totalorder %v9819, %v9822
      %vm9922 = vcmp.lt.s32.totalorder %v9820, %v9822
      %v9923 = vsel %vm9823, 1, 0
      %v9924 = vsel %vm9824, 1, 0
      %v9925 = vsel %vm9825, 1, 0
      %v9926 = vsel %vm9826, 1, 0
      %v9927 = vsel %vm9827, 1, 0
      %v9928 = vsel %vm9828, 1, 0
      %v9929 = vsel %vm9829, 1, 0
      %v9930 = vsel %vm9830, 1, 0
      %v9931 = vsel %vm9831, 1, 0
      %v9932 = vsel %vm9832, 1, 0
      %v9933 = vsel %vm9833, 1, 0
      %v9934 = vsel %vm9834, 1, 0
      %v9935 = vsel %vm9835, 1, 0
      %v9936 = vsel %vm9836, 1, 0
      %v9937 = vsel %vm9837, 1, 0
      %v9938 = vsel %vm9838, 1, 0
      %v9939 = vsel %vm9839, 1, 0
      %v9940 = vsel %vm9840, 1, 0
      %v9941 = vsel %vm9841, 1, 0
      %v9942 = vsel %vm9842, 1, 0
      %v9943 = vsel %vm9843, 1, 0
      %v9944 = vsel %vm9844, 1, 0
      %v9945 = vsel %vm9845, 1, 0
      %v9946 = vsel %vm9846, 1, 0
      %v9947 = vsel %vm9847, 1, 0
      %v9948 = vsel %vm9848, 1, 0
      %v9949 = vsel %vm9849, 1, 0
      %v9950 = vsel %vm9850, 1, 0
      %v9951 = vsel %vm9851, 1, 0
      %v9952 = vsel %vm9852, 1, 0
      %v9953 = vsel %vm9853, 1, 0
      %v9954 = vsel %vm9854, 1, 0
      %v9955 = vsel %vm9855, 1, 0
      %v9956 = vsel %vm9856, 1, 0
      %v9957 = vsel %vm9857, 1, 0
      %v9958 = vsel %vm9858, 1, 0
      %v9959 = vsel %vm9859, 1, 0
      %v9960 = vsel %vm9860, 1, 0
      %v9961 = vsel %vm9861, 1, 0
      %v9962 = vsel %vm9862, 1, 0
      %v9963 = vsel %vm9863, 1, 0
      %v9964 = vsel %vm9864, 1, 0
      %v9965 = vsel %vm9865, 1, 0
      %v9966 = vsel %vm9866, 1, 0
      %v9967 = vsel %vm9867, 1, 0
      %v9968 = vsel %vm9868, 1, 0
      %v9969 = vsel %vm9869, 1, 0
      %v9970 = vsel %vm9870, 1, 0
      %v9971 = vsel %vm9871, 1, 0
      %v9972 = vsel %vm9872, 1, 0
      %v9973 = vsel %vm9873, 1, 0
      %v9974 = vsel %vm9874, 1, 0
      %v9975 = vsel %vm9875, 1, 0
      %v9976 = vsel %vm9876, 1, 0
      %v9977 = vsel %vm9877, 1, 0
      %v9978 = vsel %vm9878, 1, 0
      %v9979 = vsel %vm9879, 1, 0
      %v9980 = vsel %vm9880, 1, 0
      %v9981 = vsel %vm9881, 1, 0
      %v9982 = vsel %vm9882, 1, 0
      %v9983 = vsel %vm9883, 1, 0
      %v9984 = vsel %vm9884, 1, 0
      %v9985 = vsel %vm9885, 1, 0
      %v9986 = vsel %vm9886, 1, 0
      %v9987 = vsel %vm9887, 1, 0
      %v9988 = vsel %vm9888, 1, 0
      %v9989 = vsel %vm9889, 1, 0
      %v9990 = vsel %vm9890, 1, 0
      %v9991 = vsel %vm9891, 1, 0
      %v9992 = vsel %vm9892, 1, 0
      %v9993 = vsel %vm9893, 1, 0
      %v9994 = vsel %vm9894, 1, 0
      %v9995 = vsel %vm9895, 1, 0
      %v9996 = vsel %vm9896, 1, 0
      %v9997 = vsel %vm9897, 1, 0
      %v9998 = vsel %vm9898, 1, 0
      %v9999 = vsel %vm9899, 1, 0
      %v10000 = vsel %vm9900, 1, 0
      %v10001 = vsel %vm9901, 1, 0
      %v10002 = vsel %vm9902, 1, 0
      %v10003 = vsel %vm9903, 1, 0
      %v10004 = vsel %vm9904, 1, 0
      %v10005 = vsel %vm9905, 1, 0
      %v10006 = vsel %vm9906, 1, 0
      %v10007 = vsel %vm9907, 1, 0
      %v10008 = vsel %vm9908, 1, 0
      %v10009 = vsel %vm9909, 1, 0
      %v10010 = vsel %vm9910, 1, 0
      %v10011 = vsel %vm9911, 1, 0
      %v10012 = vsel %vm9912, 1, 0
      %v10013 = vsel %vm9913, 1, 0
      %v10014 = vsel %vm9914, 1, 0
      %v10015 = vsel %vm9915, 1, 0
      %v10016 = vsel %vm9916, 1, 0
      %v10017 = vsel %vm9917, 1, 0
      %v10018 = vsel %vm9918, 1, 0
      %v10019 = vsel %vm9919, 1, 0
      %v10020 = vsel %vm9920, 1, 0
      %v10021 = vsel %vm9921, 1, 0
      %v10022 = vsel %vm9922, 1, 0
      %v10023 = vcvt.s32.f32 %v9923
      %v10024 = vcvt.s32.f32 %v9924
      %v10025 = vcvt.s32.f32 %v9925
      %v10026 = vcvt.s32.f32 %v9926
      %v10027 = vcvt.s32.f32 %v9927
      %v10028 = vcvt.s32.f32 %v9928
      %v10029 = vcvt.s32.f32 %v9929
      %v10030 = vcvt.s32.f32 %v9930
      %v10031 = vcvt.s32.f32 %v9931
      %v10032 = vcvt.s32.f32 %v9932
      %v10033 = vcvt.s32.f32 %v9933
      %v10034 = vcvt.s32.f32 %v9934
      %v10035 = vcvt.s32.f32 %v9935
      %v10036 = vcvt.s32.f32 %v9936
      %v10037 = vcvt.s32.f32 %v9937
      %v10038 = vcvt.s32.f32 %v9938
      %v10039 = vcvt.s32.f32 %v9939
      %v10040 = vcvt.s32.f32 %v9940
      %v10041 = vcvt.s32.f32 %v9941
      %v10042 = vcvt.s32.f32 %v9942
      %v10043 = vcvt.s32.f32 %v9943
      %v10044 = vcvt.s32.f32 %v9944
      %v10045 = vcvt.s32.f32 %v9945
      %v10046 = vcvt.s32.f32 %v9946
      %v10047 = vcvt.s32.f32 %v9947
      %v10048 = vcvt.s32.f32 %v9948
      %v10049 = vcvt.s32.f32 %v9949
      %v10050 = vcvt.s32.f32 %v9950
      %v10051 = vcvt.s32.f32 %v9951
      %v10052 = vcvt.s32.f32 %v9952
      %v10053 = vcvt.s32.f32 %v9953
      %v10054 = vcvt.s32.f32 %v9954
      %v10055 = vcvt.s32.f32 %v9955
      %v10056 = vcvt.s32.f32 %v9956
      %v10057 = vcvt.s32.f32 %v9957
      %v10058 = vcvt.s32.f32 %v9958
      %v10059 = vcvt.s32.f32 %v9959
      %v10060 = vcvt.s32.f32 %v9960
      %v10061 = vcvt.s32.f32 %v9961
      %v10062 = vcvt.s32.f32 %v9962
      %v10063 = vcvt.s32.f32 %v9963
      %v10064 = vcvt.s32.f32 %v9964
      %v10065 = vcvt.s32.f32 %v9965
      %v10066 = vcvt.s32.f32 %v9966
      %v10067 = vcvt.s32.f32 %v9967
      %v10068 = vcvt.s32.f32 %v9968
      %v10069 = vcvt.s32.f32 %v9969
      %v10070 = vcvt.s32.f32 %v9970
      %v10071 = vcvt.s32.f32 %v9971
      %v10072 = vcvt.s32.f32 %v9972
      %v10073 = vcvt.s32.f32 %v9973
      %v10074 = vcvt.s32.f32 %v9974
      %v10075 = vcvt.s32.f32 %v9975
      %v10076 = vcvt.s32.f32 %v9976
      %v10077 = vcvt.s32.f32 %v9977
      %v10078 = vcvt.s32.f32 %v9978
      %v10079 = vcvt.s32.f32 %v9979
      %v10080 = vcvt.s32.f32 %v9980
      %v10081 = vcvt.s32.f32 %v9981
      %v10082 = vcvt.s32.f32 %v9982
      %v10083 = vcvt.s32.f32 %v9983
      %v10084 = vcvt.s32.f32 %v9984
      %v10085 = vcvt.s32.f32 %v9985
      %v10086 = vcvt.s32.f32 %v9986
      %v10087 = vcvt.s32.f32 %v9987
      %v10088 = vcvt.s32.f32 %v9988
      %v10089 = vcvt.s32.f32 %v9989
      %v10090 = vcvt.s32.f32 %v9990
      %v10091 = vcvt.s32.f32 %v9991
      %v10092 = vcvt.s32.f32 %v9992
      %v10093 = vcvt.s32.f32 %v9993
      %v10094 = vcvt.s32.f32 %v9994
      %v10095 = vcvt.s32.f32 %v9995
      %v10096 = vcvt.s32.f32 %v9996
      %v10097 = vcvt.s32.f32 %v9997
      %v10098 = vcvt.s32.f32 %v9998
      %v10099 = vcvt.s32.f32 %v9999
      %v10100 = vcvt.s32.f32 %v10000
      %v10101 = vcvt.s32.f32 %v10001
      %v10102 = vcvt.s32.f32 %v10002
      %v10103 = vcvt.s32.f32 %v10003
      %v10104 = vcvt.s32.f32 %v10004
      %v10105 = vcvt.s32.f32 %v10005
      %v10106 = vcvt.s32.f32 %v10006
      %v10107 = vcvt.s32.f32 %v10007
      %v10108 = vcvt.s32.f32 %v10008
      %v10109 = vcvt.s32.f32 %v10009
      %v10110 = vcvt.s32.f32 %v10010
      %v10111 = vcvt.s32.f32 %v10011
      %v10112 = vcvt.s32.f32 %v10012
      %v10113 = vcvt.s32.f32 %v10013
      %v10114 = vcvt.s32.f32 %v10014
      %v10115 = vcvt.s32.f32 %v10015
      %v10116 = vcvt.s32.f32 %v10016
      %v10117 = vcvt.s32.f32 %v10017
      %v10118 = vcvt.s32.f32 %v10018
      %v10119 = vcvt.s32.f32 %v10019
      %v10120 = vcvt.s32.f32 %v10020
      %v10121 = vcvt.s32.f32 %v10021
      %v10122 = vcvt.s32.f32 %v10022
      %v10123 = vld [vmem:[%s2] sm:$0xff]
      %v10124 = vld [vmem:[%s2 + $0x8] sm:$0xff]
      %v10125 = vld [vmem:[%s2 + $0x10] sm:$0xff]
      %v10126 = vld [vmem:[%s2 + $0x18] sm:$0xff]
      %v10127 = vld [vmem:[%s2 + $0x20] sm:$0xff]
      %v10128 = vld [vmem:[%s2 + $0x28] sm:$0xff]
      %v10129 = vld [vmem:[%s2 + $0x30] sm:$0xff]
      %v10130 = vld [vmem:[%s2 + $0x38] sm:$0xff]
      %v10131 = vld [vmem:[%s2 + $0x40] sm:$0xff]
      %v10132 = vld [vmem:[%s2 + $0x48] sm:$0xff]
      %v10133 = vld [vmem:[%s2 + $0x50] sm:$0xff]
      %v10134 = vld [vmem:[%s2 + $0x58] sm:$0xff]
      %v10135 = vld [vmem:[%s2 + $0x60] sm:$0xff]
      %v10136 = vld [vmem:[%s2 + $0x68] sm:$0xff]
      %v10137 = vld [vmem:[%s2 + $0x70] sm:$0xff]
      %v10138 = vld [vmem:[%s2 + $0x78] sm:$0xff]
      %v10139 = vld [vmem:[%s2 + $0x80] sm:$0xff]
      %v10140 = vld [vmem:[%s2 + $0x88] sm:$0xff]
      %v10141 = vld [vmem:[%s2 + $0x90] sm:$0xff]
      %v10142 = vld [vmem:[%s2 + $0x98] sm:$0xff]
      %v10143 = vld [vmem:[%s2 + $0xa0] sm:$0xff]
      %v10144 = vld [vmem:[%s2 + $0xa8] sm:$0xff]
      %v10145 = vld [vmem:[%s2 + $0xb0] sm:$0xff]
      %v10146 = vld [vmem:[%s2 + $0xb8] sm:$0xff]
      %v10147 = vld [vmem:[%s2 + $0xc0] sm:$0xff]
      %v10148 = vld [vmem:[%s2 + $0xc8] sm:$0xff]
      %v10149 = vld [vmem:[%s2 + $0xd0] sm:$0xff]
      %v10150 = vld [vmem:[%s2 + $0xd8] sm:$0xff]
      %v10151 = vld [vmem:[%s2 + $0xe0] sm:$0xff]
      %v10152 = vld [vmem:[%s2 + $0xe8] sm:$0xff]
      %v10153 = vld [vmem:[%s2 + $0xf0] sm:$0xff]
      %v10154 = vld [vmem:[%s2 + $0xf8] sm:$0xff]
      %v10155 = vld [vmem:[%s2 + $0x100] sm:$0xff]
      %v10156 = vld [vmem:[%s2 + $0x108] sm:$0xff]
      %v10157 = vld [vmem:[%s2 + $0x110] sm:$0xff]
      %v10158 = vld [vmem:[%s2 + $0x118] sm:$0xff]
      %v10159 = vld [vmem:[%s2 + $0x120] sm:$0xff]
      %v10160 = vld [vmem:[%s2 + $0x128] sm:$0xff]
      %v10161 = vld [vmem:[%s2 + $0x130] sm:$0xff]
      %v10162 = vld [vmem:[%s2 + $0x138] sm:$0xff]
      %v10163 = vld [vmem:[%s2 + $0x140] sm:$0xff]
      %v10164 = vld [vmem:[%s2 + $0x148] sm:$0xff]
      %v10165 = vld [vmem:[%s2 + $0x150] sm:$0xff]
      %v10166 = vld [vmem:[%s2 + $0x158] sm:$0xff]
      %v10167 = vld [vmem:[%s2 + $0x160] sm:$0xff]
      %v10168 = vld [vmem:[%s2 + $0x168] sm:$0xff]
      %v10169 = vld [vmem:[%s2 + $0x170] sm:$0xff]
      %v10170 = vld [vmem:[%s2 + $0x178] sm:$0xff]
      %v10171 = vld [vmem:[%s2 + $0x180] sm:$0xff]
      %v10172 = vld [vmem:[%s2 + $0x188] sm:$0xff]
      %v10173 = vld [vmem:[%s2 + $0x190] sm:$0xff]
      %v10174 = vld [vmem:[%s2 + $0x198] sm:$0xff]
      %v10175 = vld [vmem:[%s2 + $0x1a0] sm:$0xff]
      %v10176 = vld [vmem:[%s2 + $0x1a8] sm:$0xff]
      %v10177 = vld [vmem:[%s2 + $0x1b0] sm:$0xff]
      %v10178 = vld [vmem:[%s2 + $0x1b8] sm:$0xff]
      %v10179 = vld [vmem:[%s2 + $0x1c0] sm:$0xff]
      %v10180 = vld [vmem:[%s2 + $0x1c8] sm:$0xff]
      %v10181 = vld [vmem:[%s2 + $0x1d0] sm:$0xff]
      %v10182 = vld [vmem:[%s2 + $0x1d8] sm:$0xff]
      %v10183 = vld [vmem:[%s2 + $0x1e0] sm:$0xff]
      %v10184 = vld [vmem:[%s2 + $0x1e8] sm:$0xff]
      %v10185 = vld [vmem:[%s2 + $0x1f0] sm:$0xff]
      %v10186 = vld [vmem:[%s2 + $0x1f8] sm:$0xff]
      %v10187 = vld [vmem:[%s2 + $0x200] sm:$0xff]
      %v10188 = vld [vmem:[%s2 + $0x208] sm:$0xff]
      %v10189 = vld [vmem:[%s2 + $0x210] sm:$0xff]
      %v10190 = vld [vmem:[%s2 + $0x218] sm:$0xff]
      %v10191 = vld [vmem:[%s2 + $0x220] sm:$0xff]
      %v10192 = vld [vmem:[%s2 + $0x228] sm:$0xff]
      %v10193 = vld [vmem:[%s2 + $0x230] sm:$0xff]
      %v10194 = vld [vmem:[%s2 + $0x238] sm:$0xff]
      %v10195 = vld [vmem:[%s2 + $0x240] sm:$0xff]
      %v10196 = vld [vmem:[%s2 + $0x248] sm:$0xff]
      %v10197 = vld [vmem:[%s2 + $0x250] sm:$0xff]
      %v10198 = vld [vmem:[%s2 + $0x258] sm:$0xff]
      %v10199 = vld [vmem:[%s2 + $0x260] sm:$0xff]
      %v10200 = vld [vmem:[%s2 + $0x268] sm:$0xff]
      %v10201 = vld [vmem:[%s2 + $0x270] sm:$0xff]
      %v10202 = vld [vmem:[%s2 + $0x278] sm:$0xff]
      %v10203 = vld [vmem:[%s2 + $0x280] sm:$0xff]
      %v10204 = vld [vmem:[%s2 + $0x288] sm:$0xff]
      %v10205 = vld [vmem:[%s2 + $0x290] sm:$0xff]
      %v10206 = vld [vmem:[%s2 + $0x298] sm:$0xff]
      %v10207 = vld [vmem:[%s2 + $0x2a0] sm:$0xff]
      %v10208 = vld [vmem:[%s2 + $0x2a8] sm:$0xff]
      %v10209 = vld [vmem:[%s2 + $0x2b0] sm:$0xff]
      %v10210 = vld [vmem:[%s2 + $0x2b8] sm:$0xff]
      %v10211 = vld [vmem:[%s2 + $0x2c0] sm:$0xff]
      %v10212 = vld [vmem:[%s2 + $0x2c8] sm:$0xff]
      %v10213 = vld [vmem:[%s2 + $0x2d0] sm:$0xff]
      %v10214 = vld [vmem:[%s2 + $0x2d8] sm:$0xff]
      %v10215 = vld [vmem:[%s2 + $0x2e0] sm:$0xff]
      %v10216 = vld [vmem:[%s2 + $0x2e8] sm:$0xff]
      %v10217 = vld [vmem:[%s2 + $0x2f0] sm:$0xff]
      %v10218 = vld [vmem:[%s2 + $0x2f8] sm:$0xff]
      %v10219 = vld [vmem:[%s2 + $0x300] sm:$0xff]
      %v10220 = vld [vmem:[%s2 + $0x308] sm:$0xff]
      %v10221 = vld [vmem:[%s2 + $0x310] sm:$0xff]
      %v10222 = vld [vmem:[%s2 + $0x318] sm:$0xff]
      %v10223 = vmul.f32 %v10023, %v10123
      %v10224 = vmul.f32 %v10024, %v10124
      %v10225 = vmul.f32 %v10025, %v10125
      %v10226 = vmul.f32 %v10026, %v10126
      %v10227 = vmul.f32 %v10027, %v10127
      %v10228 = vmul.f32 %v10028, %v10128
      %v10229 = vmul.f32 %v10029, %v10129
      %v10230 = vmul.f32 %v10030, %v10130
      %v10231 = vmul.f32 %v10031, %v10131
      %v10232 = vmul.f32 %v10032, %v10132
      %v10233 = vmul.f32 %v10033, %v10133
      %v10234 = vmul.f32 %v10034, %v10134
      %v10235 = vmul.f32 %v10035, %v10135
      %v10236 = vmul.f32 %v10036, %v10136
      %v10237 = vmul.f32 %v10037, %v10137
      %v10238 = vmul.f32 %v10038, %v10138
      %v10239 = vmul.f32 %v10039, %v10139
      %v10240 = vmul.f32 %v10040, %v10140
      %v10241 = vmul.f32 %v10041, %v10141
      %v10242 = vmul.f32 %v10042, %v10142
      %v10243 = vmul.f32 %v10043, %v10143
      %v10244 = vmul.f32 %v10044, %v10144
      %v10245 = vmul.f32 %v10045, %v10145
      %v10246 = vmul.f32 %v10046, %v10146
      %v10247 = vmul.f32 %v10047, %v10147
      %v10248 = vmul.f32 %v10048, %v10148
      %v10249 = vmul.f32 %v10049, %v10149
      %v10250 = vmul.f32 %v10050, %v10150
      %v10251 = vmul.f32 %v10051, %v10151
      %v10252 = vmul.f32 %v10052, %v10152
      %v10253 = vmul.f32 %v10053, %v10153
      %v10254 = vmul.f32 %v10054, %v10154
      %v10255 = vmul.f32 %v10055, %v10155
      %v10256 = vmul.f32 %v10056, %v10156
      %v10257 = vmul.f32 %v10057, %v10157
      %v10258 = vmul.f32 %v10058, %v10158
      %v10259 = vmul.f32 %v10059, %v10159
      %v10260 = vmul.f32 %v10060, %v10160
      %v10261 = vmul.f32 %v10061, %v10161
      %v10262 = vmul.f32 %v10062, %v10162
      %v10263 = vmul.f32 %v10063, %v10163
      %v10264 = vmul.f32 %v10064, %v10164
      %v10265 = vmul.f32 %v10065, %v10165
      %v10266 = vmul.f32 %v10066, %v10166
      %v10267 = vmul.f32 %v10067, %v10167
      %v10268 = vmul.f32 %v10068, %v10168
      %v10269 = vmul.f32 %v10069, %v10169
      %v10270 = vmul.f32 %v10070, %v10170
      %v10271 = vmul.f32 %v10071, %v10171
      %v10272 = vmul.f32 %v10072, %v10172
      %v10273 = vmul.f32 %v10073, %v10173
      %v10274 = vmul.f32 %v10074, %v10174
      %v10275 = vmul.f32 %v10075, %v10175
      %v10276 = vmul.f32 %v10076, %v10176
      %v10277 = vmul.f32 %v10077, %v10177
      %v10278 = vmul.f32 %v10078, %v10178
      %v10279 = vmul.f32 %v10079, %v10179
      %v10280 = vmul.f32 %v10080, %v10180
      %v10281 = vmul.f32 %v10081, %v10181
      %v10282 = vmul.f32 %v10082, %v10182
      %v10283 = vmul.f32 %v10083, %v10183
      %v10284 = vmul.f32 %v10084, %v10184
      %v10285 = vmul.f32 %v10085, %v10185
      %v10286 = vmul.f32 %v10086, %v10186
      %v10287 = vmul.f32 %v10087, %v10187
      %v10288 = vmul.f32 %v10088, %v10188
      %v10289 = vmul.f32 %v10089, %v10189
      %v10290 = vmul.f32 %v10090, %v10190
      %v10291 = vmul.f32 %v10091, %v10191
      %v10292 = vmul.f32 %v10092, %v10192
      %v10293 = vmul.f32 %v10093, %v10193
      %v10294 = vmul.f32 %v10094, %v10194
      %v10295 = vmul.f32 %v10095, %v10195
      %v10296 = vmul.f32 %v10096, %v10196
      %v10297 = vmul.f32 %v10097, %v10197
      %v10298 = vmul.f32 %v10098, %v10198
      %v10299 = vmul.f32 %v10099, %v10199
      %v10300 = vmul.f32 %v10100, %v10200
      %v10301 = vmul.f32 %v10101, %v10201
      %v10302 = vmul.f32 %v10102, %v10202
      %v10303 = vmul.f32 %v10103, %v10203
      %v10304 = vmul.f32 %v10104, %v10204
      %v10305 = vmul.f32 %v10105, %v10205
      %v10306 = vmul.f32 %v10106, %v10206
      %v10307 = vmul.f32 %v10107, %v10207
      %v10308 = vmul.f32 %v10108, %v10208
      %v10309 = vmul.f32 %v10109, %v10209
      %v10310 = vmul.f32 %v10110, %v10210
      %v10311 = vmul.f32 %v10111, %v10211
      %v10312 = vmul.f32 %v10112, %v10212
      %v10313 = vmul.f32 %v10113, %v10213
      %v10314 = vmul.f32 %v10114, %v10214
      %v10315 = vmul.f32 %v10115, %v10215
      %v10316 = vmul.f32 %v10116, %v10216
      %v10317 = vmul.f32 %v10117, %v10217
      %v10318 = vmul.f32 %v10118, %v10218
      %v10319 = vmul.f32 %v10119, %v10219
      %v10320 = vmul.f32 %v10120, %v10220
      %v10321 = vmul.f32 %v10121, %v10221
      %v10322 = vmul.f32 %v10122, %v10222
      %10324 = vset.pattern.permute.xlu0 0
      %10325 = vperm.xlu0 %10324, %v10223
      %v10326 = vpop.permute.xlu0 %10325
      %10329 = vset.pattern.permute.xlu0 0
      %10330 = vperm.xlu0 %10329, %v10224
      %v10331 = vpop.permute.xlu0 %10330
      %10334 = vset.pattern.permute.xlu0 0
      %10335 = vperm.xlu0 %10334, %v10225
      %v10336 = vpop.permute.xlu0 %10335
      %10339 = vset.pattern.permute.xlu0 0
      %10340 = vperm.xlu0 %10339, %v10226
      %v10341 = vpop.permute.xlu0 %10340
      %10344 = vset.pattern.permute.xlu0 0
      %10345 = vperm.xlu0 %10344, %v10227
      %v10346 = vpop.permute.xlu0 %10345
      %10349 = vset.pattern.permute.xlu0 0
      %10350 = vperm.xlu0 %10349, %v10228
      %v10351 = vpop.permute.xlu0 %10350
      %10354 = vset.pattern.permute.xlu0 0
      %10355 = vperm.xlu0 %10354, %v10229
      %v10356 = vpop.permute.xlu0 %10355
      %10359 = vset.pattern.permute.xlu0 0
      %10360 = vperm.xlu0 %10359, %v10230
      %v10361 = vpop.permute.xlu0 %10360
      %10364 = vset.pattern.permute.xlu0 0
      %10365 = vperm.xlu0 %10364, %v10231
      %v10366 = vpop.permute.xlu0 %10365
      %10369 = vset.pattern.permute.xlu0 0
      %10370 = vperm.xlu0 %10369, %v10232
      %v10371 = vpop.permute.xlu0 %10370
      %10374 = vset.pattern.permute.xlu0 0
      %10375 = vperm.xlu0 %10374, %v10233
      %v10376 = vpop.permute.xlu0 %10375
      %10379 = vset.pattern.permute.xlu0 0
      %10380 = vperm.xlu0 %10379, %v10234
      %v10381 = vpop.permute.xlu0 %10380
      %10384 = vset.pattern.permute.xlu0 0
      %10385 = vperm.xlu0 %10384, %v10235
      %v10386 = vpop.permute.xlu0 %10385
      %10389 = vset.pattern.permute.xlu0 0
      %10390 = vperm.xlu0 %10389, %v10236
      %v10391 = vpop.permute.xlu0 %10390
      %10394 = vset.pattern.permute.xlu0 0
      %10395 = vperm.xlu0 %10394, %v10237
      %v10396 = vpop.permute.xlu0 %10395
      %10399 = vset.pattern.permute.xlu0 0
      %10400 = vperm.xlu0 %10399, %v10238
      %v10401 = vpop.permute.xlu0 %10400
      %10404 = vset.pattern.permute.xlu0 0
      %10405 = vperm.xlu0 %10404, %v10239
      %v10406 = vpop.permute.xlu0 %10405
      %10409 = vset.pattern.permute.xlu0 0
      %10410 = vperm.xlu0 %10409, %v10240
      %v10411 = vpop.permute.xlu0 %10410
      %10414 = vset.pattern.permute.xlu0 0
      %10415 = vperm.xlu0 %10414, %v10241
      %v10416 = vpop.permute.xlu0 %10415
      %10419 = vset.pattern.permute.xlu0 0
      %10420 = vperm.xlu0 %10419, %v10242
      %v10421 = vpop.permute.xlu0 %10420
      %10424 = vset.pattern.permute.xlu0 0
      %10425 = vperm.xlu0 %10424, %v10243
      %v10426 = vpop.permute.xlu0 %10425
      %10429 = vset.pattern.permute.xlu0 0
      %10430 = vperm.xlu0 %10429, %v10244
      %v10431 = vpop.permute.xlu0 %10430
      %10434 = vset.pattern.permute.xlu0 0
      %10435 = vperm.xlu0 %10434, %v10245
      %v10436 = vpop.permute.xlu0 %10435
      %10439 = vset.pattern.permute.xlu0 0
      %10440 = vperm.xlu0 %10439, %v10246
      %v10441 = vpop.permute.xlu0 %10440
      %10444 = vset.pattern.permute.xlu0 0
      %10445 = vperm.xlu0 %10444, %v10247
      %v10446 = vpop.permute.xlu0 %10445
      %10449 = vset.pattern.permute.xlu0 0
      %10450 = vperm.xlu0 %10449, %v10248
      %v10451 = vpop.permute.xlu0 %10450
      %10454 = vset.pattern.permute.xlu0 0
      %10455 = vperm.xlu0 %10454, %v10249
      %v10456 = vpop.permute.xlu0 %10455
      %10459 = vset.pattern.permute.xlu0 0
      %10460 = vperm.xlu0 %10459, %v10250
      %v10461 = vpop.permute.xlu0 %10460
      %10464 = vset.pattern.permute.xlu0 0
      %10465 = vperm.xlu0 %10464, %v10251
      %v10466 = vpop.permute.xlu0 %10465
      %10469 = vset.pattern.permute.xlu0 0
      %10470 = vperm.xlu0 %10469, %v10252
      %v10471 = vpop.permute.xlu0 %10470
      %10474 = vset.pattern.permute.xlu0 0
      %10475 = vperm.xlu0 %10474, %v10253
      %v10476 = vpop.permute.xlu0 %10475
      %10479 = vset.pattern.permute.xlu0 0
      %10480 = vperm.xlu0 %10479, %v10254
      %v10481 = vpop.permute.xlu0 %10480
      %10484 = vset.pattern.permute.xlu0 0
      %10485 = vperm.xlu0 %10484, %v10255
      %v10486 = vpop.permute.xlu0 %10485
      %10489 = vset.pattern.permute.xlu0 0
      %10490 = vperm.xlu0 %10489, %v10256
      %v10491 = vpop.permute.xlu0 %10490
      %10494 = vset.pattern.permute.xlu0 0
      %10495 = vperm.xlu0 %10494, %v10257
      %v10496 = vpop.permute.xlu0 %10495
      %10499 = vset.pattern.permute.xlu0 0
      %10500 = vperm.xlu0 %10499, %v10258
      %v10501 = vpop.permute.xlu0 %10500
      %10504 = vset.pattern.permute.xlu0 0
      %10505 = vperm.xlu0 %10504, %v10259
      %v10506 = vpop.permute.xlu0 %10505
      %10509 = vset.pattern.permute.xlu0 0
      %10510 = vperm.xlu0 %10509, %v10260
      %v10511 = vpop.permute.xlu0 %10510
      %10514 = vset.pattern.permute.xlu0 0
      %10515 = vperm.xlu0 %10514, %v10261
      %v10516 = vpop.permute.xlu0 %10515
      %10519 = vset.pattern.permute.xlu0 0
      %10520 = vperm.xlu0 %10519, %v10262
      %v10521 = vpop.permute.xlu0 %10520
      %10524 = vset.pattern.permute.xlu0 0
      %10525 = vperm.xlu0 %10524, %v10263
      %v10526 = vpop.permute.xlu0 %10525
      %10529 = vset.pattern.permute.xlu0 0
      %10530 = vperm.xlu0 %10529, %v10264
      %v10531 = vpop.permute.xlu0 %10530
      %10534 = vset.pattern.permute.xlu0 0
      %10535 = vperm.xlu0 %10534, %v10265
      %v10536 = vpop.permute.xlu0 %10535
      %10539 = vset.pattern.permute.xlu0 0
      %10540 = vperm.xlu0 %10539, %v10266
      %v10541 = vpop.permute.xlu0 %10540
      %10544 = vset.pattern.permute.xlu0 0
      %10545 = vperm.xlu0 %10544, %v10267
      %v10546 = vpop.permute.xlu0 %10545
      %10549 = vset.pattern.permute.xlu0 0
      %10550 = vperm.xlu0 %10549, %v10268
      %v10551 = vpop.permute.xlu0 %10550
      %10554 = vset.pattern.permute.xlu0 0
      %10555 = vperm.xlu0 %10554, %v10269
      %v10556 = vpop.permute.xlu0 %10555
      %10559 = vset.pattern.permute.xlu0 0
      %10560 = vperm.xlu0 %10559, %v10270
      %v10561 = vpop.permute.xlu0 %10560
      %10564 = vset.pattern.permute.xlu0 0
      %10565 = vperm.xlu0 %10564, %v10271
      %v10566 = vpop.permute.xlu0 %10565
      %10569 = vset.pattern.permute.xlu0 0
      %10570 = vperm.xlu0 %10569, %v10272
      %v10571 = vpop.permute.xlu0 %10570
      %10574 = vset.pattern.permute.xlu0 0
      %10575 = vperm.xlu0 %10574, %v10273
      %v10576 = vpop.permute.xlu0 %10575
      %10579 = vset.pattern.permute.xlu0 0
      %10580 = vperm.xlu0 %10579, %v10274
      %v10581 = vpop.permute.xlu0 %10580
      %10584 = vset.pattern.permute.xlu0 0
      %10585 = vperm.xlu0 %10584, %v10275
      %v10586 = vpop.permute.xlu0 %10585
      %10589 = vset.pattern.permute.xlu0 0
      %10590 = vperm.xlu0 %10589, %v10276
      %v10591 = vpop.permute.xlu0 %10590
      %10594 = vset.pattern.permute.xlu0 0
      %10595 = vperm.xlu0 %10594, %v10277
      %v10596 = vpop.permute.xlu0 %10595
      %10599 = vset.pattern.permute.xlu0 0
      %10600 = vperm.xlu0 %10599, %v10278
      %v10601 = vpop.permute.xlu0 %10600
      %10604 = vset.pattern.permute.xlu0 0
      %10605 = vperm.xlu0 %10604, %v10279
      %v10606 = vpop.permute.xlu0 %10605
      %10609 = vset.pattern.permute.xlu0 0
      %10610 = vperm.xlu0 %10609, %v10280
      %v10611 = vpop.permute.xlu0 %10610
      %10614 = vset.pattern.permute.xlu0 0
      %10615 = vperm.xlu0 %10614, %v10281
      %v10616 = vpop.permute.xlu0 %10615
      %10619 = vset.pattern.permute.xlu0 0
      %10620 = vperm.xlu0 %10619, %v10282
      %v10621 = vpop.permute.xlu0 %10620
      %10624 = vset.pattern.permute.xlu0 0
      %10625 = vperm.xlu0 %10624, %v10283
      %v10626 = vpop.permute.xlu0 %10625
      %10629 = vset.pattern.permute.xlu0 0
      %10630 = vperm.xlu0 %10629, %v10284
      %v10631 = vpop.permute.xlu0 %10630
      %10634 = vset.pattern.permute.xlu0 0
      %10635 = vperm.xlu0 %10634, %v10285
      %v10636 = vpop.permute.xlu0 %10635
      %10639 = vset.pattern.permute.xlu0 0
      %10640 = vperm.xlu0 %10639, %v10286
      %v10641 = vpop.permute.xlu0 %10640
      %10644 = vset.pattern.permute.xlu0 0
      %10645 = vperm.xlu0 %10644, %v10287
      %v10646 = vpop.permute.xlu0 %10645
      %10649 = vset.pattern.permute.xlu0 0
      %10650 = vperm.xlu0 %10649, %v10288
      %v10651 = vpop.permute.xlu0 %10650
      %10654 = vset.pattern.permute.xlu0 0
      %10655 = vperm.xlu0 %10654, %v10289
      %v10656 = vpop.permute.xlu0 %10655
      %10659 = vset.pattern.permute.xlu0 0
      %10660 = vperm.xlu0 %10659, %v10290
      %v10661 = vpop.permute.xlu0 %10660
      %10664 = vset.pattern.permute.xlu0 0
      %10665 = vperm.xlu0 %10664, %v10291
      %v10666 = vpop.permute.xlu0 %10665
      %10669 = vset.pattern.permute.xlu0 0
      %10670 = vperm.xlu0 %10669, %v10292
      %v10671 = vpop.permute.xlu0 %10670
      %10674 = vset.pattern.permute.xlu0 0
      %10675 = vperm.xlu0 %10674, %v10293
      %v10676 = vpop.permute.xlu0 %10675
      %10679 = vset.pattern.permute.xlu0 0
      %10680 = vperm.xlu0 %10679, %v10294
      %v10681 = vpop.permute.xlu0 %10680
      %10684 = vset.pattern.permute.xlu0 0
      %10685 = vperm.xlu0 %10684, %v10295
      %v10686 = vpop.permute.xlu0 %10685
      %10689 = vset.pattern.permute.xlu0 0
      %10690 = vperm.xlu0 %10689, %v10296
      %v10691 = vpop.permute.xlu0 %10690
      %10694 = vset.pattern.permute.xlu0 0
      %10695 = vperm.xlu0 %10694, %v10297
      %v10696 = vpop.permute.xlu0 %10695
      %10699 = vset.pattern.permute.xlu0 0
      %10700 = vperm.xlu0 %10699, %v10298
      %v10701 = vpop.permute.xlu0 %10700
      %10704 = vset.pattern.permute.xlu0 0
      %10705 = vperm.xlu0 %10704, %v10299
      %v10706 = vpop.permute.xlu0 %10705
      %10709 = vset.pattern.permute.xlu0 0
      %10710 = vperm.xlu0 %10709, %v10300
      %v10711 = vpop.permute.xlu0 %10710
      %10714 = vset.pattern.permute.xlu0 0
      %10715 = vperm.xlu0 %10714, %v10301
      %v10716 = vpop.permute.xlu0 %10715
      %10719 = vset.pattern.permute.xlu0 0
      %10720 = vperm.xlu0 %10719, %v10302
      %v10721 = vpop.permute.xlu0 %10720
      %10724 = vset.pattern.permute.xlu0 0
      %10725 = vperm.xlu0 %10724, %v10303
      %v10726 = vpop.permute.xlu0 %10725
      %10729 = vset.pattern.permute.xlu0 0
      %10730 = vperm.xlu0 %10729, %v10304
      %v10731 = vpop.permute.xlu0 %10730
      %10734 = vset.pattern.permute.xlu0 0
      %10735 = vperm.xlu0 %10734, %v10305
      %v10736 = vpop.permute.xlu0 %10735
      %10739 = vset.pattern.permute.xlu0 0
      %10740 = vperm.xlu0 %10739, %v10306
      %v10741 = vpop.permute.xlu0 %10740
      %10744 = vset.pattern.permute.xlu0 0
      %10745 = vperm.xlu0 %10744, %v10307
      %v10746 = vpop.permute.xlu0 %10745
      %10749 = vset.pattern.permute.xlu0 0
      %10750 = vperm.xlu0 %10749, %v10308
      %v10751 = vpop.permute.xlu0 %10750
      %10754 = vset.pattern.permute.xlu0 0
      %10755 = vperm.xlu0 %10754, %v10309
      %v10756 = vpop.permute.xlu0 %10755
      %10759 = vset.pattern.permute.xlu0 0
      %10760 = vperm.xlu0 %10759, %v10310
      %v10761 = vpop.permute.xlu0 %10760
      %10764 = vset.pattern.permute.xlu0 0
      %10765 = vperm.xlu0 %10764, %v10311
      %v10766 = vpop.permute.xlu0 %10765
      %10769 = vset.pattern.permute.xlu0 0
      %10770 = vperm.xlu0 %10769, %v10312
      %v10771 = vpop.permute.xlu0 %10770
      %10774 = vset.pattern.permute.xlu0 0
      %10775 = vperm.xlu0 %10774, %v10313
      %v10776 = vpop.permute.xlu0 %10775
      %10779 = vset.pattern.permute.xlu0 0
      %10780 = vperm.xlu0 %10779, %v10314
      %v10781 = vpop.permute.xlu0 %10780
      %10784 = vset.pattern.permute.xlu0 0
      %10785 = vperm.xlu0 %10784, %v10315
      %v10786 = vpop.permute.xlu0 %10785
      %10789 = vset.pattern.permute.xlu0 0
      %10790 = vperm.xlu0 %10789, %v10316
      %v10791 = vpop.permute.xlu0 %10790
      %10794 = vset.pattern.permute.xlu0 0
      %10795 = vperm.xlu0 %10794, %v10317
      %v10796 = vpop.permute.xlu0 %10795
      %10799 = vset.pattern.permute.xlu0 0
      %10800 = vperm.xlu0 %10799, %v10318
      %v10801 = vpop.permute.xlu0 %10800
      %10804 = vset.pattern.permute.xlu0 0
      %10805 = vperm.xlu0 %10804, %v10319
      %v10806 = vpop.permute.xlu0 %10805
      %10809 = vset.pattern.permute.xlu0 0
      %10810 = vperm.xlu0 %10809, %v10320
      %v10811 = vpop.permute.xlu0 %10810
      %10814 = vset.pattern.permute.xlu0 0
      %10815 = vperm.xlu0 %10814, %v10321
      %v10816 = vpop.permute.xlu0 %10815
      %10819 = vset.pattern.permute.xlu0 0
      %10820 = vperm.xlu0 %10819, %v10322
      %v10821 = vpop.permute.xlu0 %10820
      %v10823 = vmul.f32 %v9617, %v10326
      %v10824 = vmul.f32 %v9618, %v10331
      %v10825 = vmul.f32 %v9619, %v10336
      %v10826 = vmul.f32 %v9620, %v10341
      %v10827 = vmul.f32 %v9621, %v10346
      %v10828 = vmul.f32 %v9622, %v10351
      %v10829 = vmul.f32 %v9623, %v10356
      %v10830 = vmul.f32 %v9624, %v10361
      %v10831 = vmul.f32 %v9625, %v10366
      %v10832 = vmul.f32 %v9626, %v10371
      %v10833 = vmul.f32 %v9627, %v10376
      %v10834 = vmul.f32 %v9628, %v10381
      %v10835 = vmul.f32 %v9629, %v10386
      %v10836 = vmul.f32 %v9630, %v10391
      %v10837 = vmul.f32 %v9631, %v10396
      %v10838 = vmul.f32 %v9632, %v10401
      %v10839 = vmul.f32 %v9633, %v10406
      %v10840 = vmul.f32 %v9634, %v10411
      %v10841 = vmul.f32 %v9635, %v10416
      %v10842 = vmul.f32 %v9636, %v10421
      %v10843 = vmul.f32 %v9637, %v10426
      %v10844 = vmul.f32 %v9638, %v10431
      %v10845 = vmul.f32 %v9639, %v10436
      %v10846 = vmul.f32 %v9640, %v10441
      %v10847 = vmul.f32 %v9641, %v10446
      %v10848 = vmul.f32 %v9642, %v10451
      %v10849 = vmul.f32 %v9643, %v10456
      %v10850 = vmul.f32 %v9644, %v10461
      %v10851 = vmul.f32 %v9645, %v10466
      %v10852 = vmul.f32 %v9646, %v10471
      %v10853 = vmul.f32 %v9647, %v10476
      %v10854 = vmul.f32 %v9648, %v10481
      %v10855 = vmul.f32 %v9649, %v10486
      %v10856 = vmul.f32 %v9650, %v10491
      %v10857 = vmul.f32 %v9651, %v10496
      %v10858 = vmul.f32 %v9652, %v10501
      %v10859 = vmul.f32 %v9653, %v10506
      %v10860 = vmul.f32 %v9654, %v10511
      %v10861 = vmul.f32 %v9655, %v10516
      %v10862 = vmul.f32 %v9656, %v10521
      %v10863 = vmul.f32 %v9657, %v10526
      %v10864 = vmul.f32 %v9658, %v10531
      %v10865 = vmul.f32 %v9659, %v10536
      %v10866 = vmul.f32 %v9660, %v10541
      %v10867 = vmul.f32 %v9661, %v10546
      %v10868 = vmul.f32 %v9662, %v10551
      %v10869 = vmul.f32 %v9663, %v10556
      %v10870 = vmul.f32 %v9664, %v10561
      %v10871 = vmul.f32 %v9665, %v10566
      %v10872 = vmul.f32 %v9666, %v10571
      %v10873 = vmul.f32 %v9667, %v10576
      %v10874 = vmul.f32 %v9668, %v10581
      %v10875 = vmul.f32 %v9669, %v10586
      %v10876 = vmul.f32 %v9670, %v10591
      %v10877 = vmul.f32 %v9671, %v10596
      %v10878 = vmul.f32 %v9672, %v10601
      %v10879 = vmul.f32 %v9673, %v10606
      %v10880 = vmul.f32 %v9674, %v10611
      %v10881 = vmul.f32 %v9675, %v10616
      %v10882 = vmul.f32 %v9676, %v10621
      %v10883 = vmul.f32 %v9677, %v10626
      %v10884 = vmul.f32 %v9678, %v10631
      %v10885 = vmul.f32 %v9679, %v10636
      %v10886 = vmul.f32 %v9680, %v10641
      %v10887 = vmul.f32 %v9681, %v10646
      %v10888 = vmul.f32 %v9682, %v10651
      %v10889 = vmul.f32 %v9683, %v10656
      %v10890 = vmul.f32 %v9684, %v10661
      %v10891 = vmul.f32 %v9685, %v10666
      %v10892 = vmul.f32 %v9686, %v10671
      %v10893 = vmul.f32 %v9687, %v10676
      %v10894 = vmul.f32 %v9688, %v10681
      %v10895 = vmul.f32 %v9689, %v10686
      %v10896 = vmul.f32 %v9690, %v10691
      %v10897 = vmul.f32 %v9691, %v10696
      %v10898 = vmul.f32 %v9692, %v10701
      %v10899 = vmul.f32 %v9693, %v10706
      %v10900 = vmul.f32 %v9694, %v10711
      %v10901 = vmul.f32 %v9695, %v10716
      %v10902 = vmul.f32 %v9696, %v10721
      %v10903 = vmul.f32 %v9697, %v10726
      %v10904 = vmul.f32 %v9698, %v10731
      %v10905 = vmul.f32 %v9699, %v10736
      %v10906 = vmul.f32 %v9700, %v10741
      %v10907 = vmul.f32 %v9701, %v10746
      %v10908 = vmul.f32 %v9702, %v10751
      %v10909 = vmul.f32 %v9703, %v10756
      %v10910 = vmul.f32 %v9704, %v10761
      %v10911 = vmul.f32 %v9705, %v10766
      %v10912 = vmul.f32 %v9706, %v10771
      %v10913 = vmul.f32 %v9707, %v10776
      %v10914 = vmul.f32 %v9708, %v10781
      %v10915 = vmul.f32 %v9709, %v10786
      %v10916 = vmul.f32 %v9710, %v10791
      %v10917 = vmul.f32 %v9711, %v10796
      %v10918 = vmul.f32 %v9712, %v10801
      %v10919 = vmul.f32 %v9713, %v10806
      %v10920 = vmul.f32 %v9714, %v10811
      %v10921 = vmul.f32 %v9715, %v10816
      %v10922 = vmul.f32 %v9716, %v10821
      %10923 = vst [vmem:[%s269] sm:$0xff] %v10823
      %10924 = vst [vmem:[%s269 + $0x8] sm:$0xff] %v10824
      %10925 = vst [vmem:[%s269 + $0x10] sm:$0xff] %v10825
      %10926 = vst [vmem:[%s269 + $0x18] sm:$0xff] %v10826
      %10927 = vst [vmem:[%s269 + $0x20] sm:$0xff] %v10827
      %10928 = vst [vmem:[%s269 + $0x28] sm:$0xff] %v10828
      %10929 = vst [vmem:[%s269 + $0x30] sm:$0xff] %v10829
      %10930 = vst [vmem:[%s269 + $0x38] sm:$0xff] %v10830
      %10931 = vst [vmem:[%s269 + $0x40] sm:$0xff] %v10831
      %10932 = vst [vmem:[%s269 + $0x48] sm:$0xff] %v10832
      %10933 = vst [vmem:[%s269 + $0x50] sm:$0xff] %v10833
      %10934 = vst [vmem:[%s269 + $0x58] sm:$0xff] %v10834
      %10935 = vst [vmem:[%s269 + $0x60] sm:$0xff] %v10835
      %10936 = vst [vmem:[%s269 + $0x68] sm:$0xff] %v10836
      %10937 = vst [vmem:[%s269 + $0x70] sm:$0xff] %v10837
      %10938 = vst [vmem:[%s269 + $0x78] sm:$0xff] %v10838
      %10939 = vst [vmem:[%s269 + $0x80] sm:$0xff] %v10839
      %10940 = vst [vmem:[%s269 + $0x88] sm:$0xff] %v10840
      %10941 = vst [vmem:[%s269 + $0x90] sm:$0xff] %v10841
      %10942 = vst [vmem:[%s269 + $0x98] sm:$0xff] %v10842
      %10943 = vst [vmem:[%s269 + $0xa0] sm:$0xff] %v10843
      %10944 = vst [vmem:[%s269 + $0xa8] sm:$0xff] %v10844
      %10945 = vst [vmem:[%s269 + $0xb0] sm:$0xff] %v10845
      %10946 = vst [vmem:[%s269 + $0xb8] sm:$0xff] %v10846
      %10947 = vst [vmem:[%s269 + $0xc0] sm:$0xff] %v10847
      %10948 = vst [vmem:[%s269 + $0xc8] sm:$0xff] %v10848
      %10949 = vst [vmem:[%s269 + $0xd0] sm:$0xff] %v10849
      %10950 = vst [vmem:[%s269 + $0xd8] sm:$0xff] %v10850
      %10951 = vst [vmem:[%s269 + $0xe0] sm:$0xff] %v10851
      %10952 = vst [vmem:[%s269 + $0xe8] sm:$0xff] %v10852
      %10953 = vst [vmem:[%s269 + $0xf0] sm:$0xff] %v10853
      %10954 = vst [vmem:[%s269 + $0xf8] sm:$0xff] %v10854
      %10955 = vst [vmem:[%s269 + $0x100] sm:$0xff] %v10855
      %10956 = vst [vmem:[%s269 + $0x108] sm:$0xff] %v10856
      %10957 = vst [vmem:[%s269 + $0x110] sm:$0xff] %v10857
      %10958 = vst [vmem:[%s269 + $0x118] sm:$0xff] %v10858
      %10959 = vst [vmem:[%s269 + $0x120] sm:$0xff] %v10859
      %10960 = vst [vmem:[%s269 + $0x128] sm:$0xff] %v10860
      %10961 = vst [vmem:[%s269 + $0x130] sm:$0xff] %v10861
      %10962 = vst [vmem:[%s269 + $0x138] sm:$0xff] %v10862
      %10963 = vst [vmem:[%s269 + $0x140] sm:$0xff] %v10863
      %10964 = vst [vmem:[%s269 + $0x148] sm:$0xff] %v10864
      %10965 = vst [vmem:[%s269 + $0x150] sm:$0xff] %v10865
      %10966 = vst [vmem:[%s269 + $0x158] sm:$0xff] %v10866
      %10967 = vst [vmem:[%s269 + $0x160] sm:$0xff] %v10867
      %10968 = vst [vmem:[%s269 + $0x168] sm:$0xff] %v10868
      %10969 = vst [vmem:[%s269 + $0x170] sm:$0xff] %v10869
      %10970 = vst [vmem:[%s269 + $0x178] sm:$0xff] %v10870
      %10971 = vst [vmem:[%s269 + $0x180] sm:$0xff] %v10871
      %10972 = vst [vmem:[%s269 + $0x188] sm:$0xff] %v10872
      %10973 = vst [vmem:[%s269 + $0x190] sm:$0xff] %v10873
      %10974 = vst [vmem:[%s269 + $0x198] sm:$0xff] %v10874
      %10975 = vst [vmem:[%s269 + $0x1a0] sm:$0xff] %v10875
      %10976 = vst [vmem:[%s269 + $0x1a8] sm:$0xff] %v10876
      %10977 = vst [vmem:[%s269 + $0x1b0] sm:$0xff] %v10877
      %10978 = vst [vmem:[%s269 + $0x1b8] sm:$0xff] %v10878
      %10979 = vst [vmem:[%s269 + $0x1c0] sm:$0xff] %v10879
      %10980 = vst [vmem:[%s269 + $0x1c8] sm:$0xff] %v10880
      %10981 = vst [vmem:[%s269 + $0x1d0] sm:$0xff] %v10881
      %10982 = vst [vmem:[%s269 + $0x1d8] sm:$0xff] %v10882
      %10983 = vst [vmem:[%s269 + $0x1e0] sm:$0xff] %v10883
      %10984 = vst [vmem:[%s269 + $0x1e8] sm:$0xff] %v10884
      %10985 = vst [vmem:[%s269 + $0x1f0] sm:$0xff] %v10885
      %10986 = vst [vmem:[%s269 + $0x1f8] sm:$0xff] %v10886
      %10987 = vst [vmem:[%s269 + $0x200] sm:$0xff] %v10887
      %10988 = vst [vmem:[%s269 + $0x208] sm:$0xff] %v10888
      %10989 = vst [vmem:[%s269 + $0x210] sm:$0xff] %v10889
      %10990 = vst [vmem:[%s269 + $0x218] sm:$0xff] %v10890
      %10991 = vst [vmem:[%s269 + $0x220] sm:$0xff] %v10891
      %10992 = vst [vmem:[%s269 + $0x228] sm:$0xff] %v10892
      %10993 = vst [vmem:[%s269 + $0x230] sm:$0xff] %v10893
      %10994 = vst [vmem:[%s269 + $0x238] sm:$0xff] %v10894
      %10995 = vst [vmem:[%s269 + $0x240] sm:$0xff] %v10895
      %10996 = vst [vmem:[%s269 + $0x248] sm:$0xff] %v10896
      %10997 = vst [vmem:[%s269 + $0x250] sm:$0xff] %v10897
      %10998 = vst [vmem:[%s269 + $0x258] sm:$0xff] %v10898
      %10999 = vst [vmem:[%s269 + $0x260] sm:$0xff] %v10899
      %11000 = vst [vmem:[%s269 + $0x268] sm:$0xff] %v10900
      %11001 = vst [vmem:[%s269 + $0x270] sm:$0xff] %v10901
      %11002 = vst [vmem:[%s269 + $0x278] sm:$0xff] %v10902
      %11003 = vst [vmem:[%s269 + $0x280] sm:$0xff] %v10903
      %11004 = vst [vmem:[%s269 + $0x288] sm:$0xff] %v10904
      %11005 = vst [vmem:[%s269 + $0x290] sm:$0xff] %v10905
      %11006 = vst [vmem:[%s269 + $0x298] sm:$0xff] %v10906
      %11007 = vst [vmem:[%s269 + $0x2a0] sm:$0xff] %v10907
      %11008 = vst [vmem:[%s269 + $0x2a8] sm:$0xff] %v10908
      %11009 = vst [vmem:[%s269 + $0x2b0] sm:$0xff] %v10909
      %11010 = vst [vmem:[%s269 + $0x2b8] sm:$0xff] %v10910
      %11011 = vst [vmem:[%s269 + $0x2c0] sm:$0xff] %v10911
      %11012 = vst [vmem:[%s269 + $0x2c8] sm:$0xff] %v10912
      %11013 = vst [vmem:[%s269 + $0x2d0] sm:$0xff] %v10913
      %11014 = vst [vmem:[%s269 + $0x2d8] sm:$0xff] %v10914
      %11015 = vst [vmem:[%s269 + $0x2e0] sm:$0xff] %v10915
      %11016 = vst [vmem:[%s269 + $0x2e8] sm:$0xff] %v10916
      %11017 = vst [vmem:[%s269 + $0x2f0] sm:$0xff] %v10917
      %11018 = vst [vmem:[%s269 + $0x2f8] sm:$0xff] %v10918
      %11019 = vst [vmem:[%s269 + $0x300] sm:$0xff] %v10919
      %11020 = vst [vmem:[%s269 + $0x308] sm:$0xff] %v10920
      %11021 = vst [vmem:[%s269 + $0x310] sm:$0xff] %v10921
      %11022 = vst [vmem:[%s269 + $0x318] sm:$0xff] %v10922
      %s11023 = smul.u32 %s9719, 25
      %s11024 = scvt.s32.f32 %s11023
      %v11025 = vadd.f32 %v10823, %v10824
      %v11026 = vadd.f32 %v11025, %v10825
      %v11027 = vadd.f32 %v11026, %v10826
      %v11028 = vadd.f32 %v11027, %v10827
      %v11029 = vadd.f32 %v11028, %v10828
      %v11030 = vadd.f32 %v11029, %v10829
      %v11031 = vadd.f32 %v11030, %v10830
      %v11032 = vadd.f32 %v11031, %v10831
      %v11033 = vadd.f32 %v11032, %v10832
      %v11034 = vadd.f32 %v11033, %v10833
      %v11035 = vadd.f32 %v11034, %v10834
      %v11036 = vadd.f32 %v11035, %v10835
      %v11037 = vadd.f32 %v11036, %v10836
      %v11038 = vadd.f32 %v11037, %v10837
      %v11039 = vadd.f32 %v11038, %v10838
      %v11040 = vadd.f32 %v11039, %v10839
      %v11041 = vadd.f32 %v11040, %v10840
      %v11042 = vadd.f32 %v11041, %v10841
      %v11043 = vadd.f32 %v11042, %v10842
      %v11044 = vadd.f32 %v11043, %v10843
      %v11045 = vadd.f32 %v11044, %v10844
      %v11046 = vadd.f32 %v11045, %v10845
      %v11047 = vadd.f32 %v11046, %v10846
      %v11048 = vadd.f32 %v11047, %v10847
      %v11049 = vadd.f32 %v11048, %v10848
      %v11050 = vadd.f32 %v11049, %v10849
      %v11051 = vadd.f32 %v11050, %v10850
      %v11052 = vadd.f32 %v11051, %v10851
      %v11053 = vadd.f32 %v11052, %v10852
      %v11054 = vadd.f32 %v11053, %v10853
      %v11055 = vadd.f32 %v11054, %v10854
      %v11056 = vadd.f32 %v11055, %v10855
      %v11057 = vadd.f32 %v11056, %v10856
      %v11058 = vadd.f32 %v11057, %v10857
      %v11059 = vadd.f32 %v11058, %v10858
      %v11060 = vadd.f32 %v11059, %v10859
      %v11061 = vadd.f32 %v11060, %v10860
      %v11062 = vadd.f32 %v11061, %v10861
      %v11063 = vadd.f32 %v11062, %v10862
      %v11064 = vadd.f32 %v11063, %v10863
      %v11065 = vadd.f32 %v11064, %v10864
      %v11066 = vadd.f32 %v11065, %v10865
      %v11067 = vadd.f32 %v11066, %v10866
      %v11068 = vadd.f32 %v11067, %v10867
      %v11069 = vadd.f32 %v11068, %v10868
      %v11070 = vadd.f32 %v11069, %v10869
      %v11071 = vadd.f32 %v11070, %v10870
      %v11072 = vadd.f32 %v11071, %v10871
      %v11073 = vadd.f32 %v11072, %v10872
      %v11074 = vadd.f32 %v11073, %v10873
      %v11075 = vadd.f32 %v11074, %v10874
      %v11076 = vadd.f32 %v11075, %v10875
      %v11077 = vadd.f32 %v11076, %v10876
      %v11078 = vadd.f32 %v11077, %v10877
      %v11079 = vadd.f32 %v11078, %v10878
      %v11080 = vadd.f32 %v11079, %v10879
      %v11081 = vadd.f32 %v11080, %v10880
      %v11082 = vadd.f32 %v11081, %v10881
      %v11083 = vadd.f32 %v11082, %v10882
      %v11084 = vadd.f32 %v11083, %v10883
      %v11085 = vadd.f32 %v11084, %v10884
      %v11086 = vadd.f32 %v11085, %v10885
      %v11087 = vadd.f32 %v11086, %v10886
      %v11088 = vadd.f32 %v11087, %v10887
      %v11089 = vadd.f32 %v11088, %v10888
      %v11090 = vadd.f32 %v11089, %v10889
      %v11091 = vadd.f32 %v11090, %v10890
      %v11092 = vadd.f32 %v11091, %v10891
      %v11093 = vadd.f32 %v11092, %v10892
      %v11094 = vadd.f32 %v11093, %v10893
      %v11095 = vadd.f32 %v11094, %v10894
      %v11096 = vadd.f32 %v11095, %v10895
      %v11097 = vadd.f32 %v11096, %v10896
      %v11098 = vadd.f32 %v11097, %v10897
      %v11099 = vadd.f32 %v11098, %v10898
      %v11100 = vadd.f32 %v11099, %v10899
      %v11101 = vadd.f32 %v11100, %v10900
      %v11102 = vadd.f32 %v11101, %v10901
      %v11103 = vadd.f32 %v11102, %v10902
      %v11104 = vadd.f32 %v11103, %v10903
      %v11105 = vadd.f32 %v11104, %v10904
      %v11106 = vadd.f32 %v11105, %v10905
      %v11107 = vadd.f32 %v11106, %v10906
      %v11108 = vadd.f32 %v11107, %v10907
      %v11109 = vadd.f32 %v11108, %v10908
      %v11110 = vadd.f32 %v11109, %v10909
      %v11111 = vadd.f32 %v11110, %v10910
      %v11112 = vadd.f32 %v11111, %v10911
      %v11113 = vadd.f32 %v11112, %v10912
      %v11114 = vadd.f32 %v11113, %v10913
      %v11115 = vadd.f32 %v11114, %v10914
      %v11116 = vadd.f32 %v11115, %v10915
      %v11117 = vadd.f32 %v11116, %v10916
      %v11118 = vadd.f32 %v11117, %v10917
      %v11119 = vadd.f32 %v11118, %v10918
      %v11120 = vadd.f32 %v11119, %v10919
      %v11121 = vadd.f32 %v11120, %v10920
      %v11122 = vadd.f32 %v11121, %v10921
      %v11123 = vadd.f32 %v11122, %v10922
      %v11124 = vrot.slane %v11123, 4
      %v11125 = vadd.f32 %v11123, %v11124
      %v11126 = vrot.slane %v11125, 2
      %v11127 = vadd.f32 %v11125, %v11126
      %v11128 = vrot.slane %v11127, 1
      %v11129 = vadd.f32 %v11127, %v11128
      %v11130 = vstv %s11024
      %v11131 = vrcp.pop %v11130
      %s11132 = vtos %v11131
      %v11133 = vstv %s11132
      %v11134 = vmul.f32 %v11129, %v11133
      %v11135 = vsub.f32 %v10823, %v11134
      %v11136 = vsub.f32 %v10824, %v11134
      %v11137 = vsub.f32 %v10825, %v11134
      %v11138 = vsub.f32 %v10826, %v11134
      %v11139 = vsub.f32 %v10827, %v11134
      %v11140 = vsub.f32 %v10828, %v11134
      %v11141 = vsub.f32 %v10829, %v11134
      %v11142 = vsub.f32 %v10830, %v11134
      %v11143 = vsub.f32 %v10831, %v11134
      %v11144 = vsub.f32 %v10832, %v11134
      %v11145 = vsub.f32 %v10833, %v11134
      %v11146 = vsub.f32 %v10834, %v11134
      %v11147 = vsub.f32 %v10835, %v11134
      %v11148 = vsub.f32 %v10836, %v11134
      %v11149 = vsub.f32 %v10837, %v11134
      %v11150 = vsub.f32 %v10838, %v11134
      %v11151 = vsub.f32 %v10839, %v11134
      %v11152 = vsub.f32 %v10840, %v11134
      %v11153 = vsub.f32 %v10841, %v11134
      %v11154 = vsub.f32 %v10842, %v11134
      %v11155 = vsub.f32 %v10843, %v11134
      %v11156 = vsub.f32 %v10844, %v11134
      %v11157 = vsub.f32 %v10845, %v11134
      %v11158 = vsub.f32 %v10846, %v11134
      %v11159 = vsub.f32 %v10847, %v11134
      %v11160 = vsub.f32 %v10848, %v11134
      %v11161 = vsub.f32 %v10849, %v11134
      %v11162 = vsub.f32 %v10850, %v11134
      %v11163 = vsub.f32 %v10851, %v11134
      %v11164 = vsub.f32 %v10852, %v11134
      %v11165 = vsub.f32 %v10853, %v11134
      %v11166 = vsub.f32 %v10854, %v11134
      %v11167 = vsub.f32 %v10855, %v11134
      %v11168 = vsub.f32 %v10856, %v11134
      %v11169 = vsub.f32 %v10857, %v11134
      %v11170 = vsub.f32 %v10858, %v11134
      %v11171 = vsub.f32 %v10859, %v11134
      %v11172 = vsub.f32 %v10860, %v11134
      %v11173 = vsub.f32 %v10861, %v11134
      %v11174 = vsub.f32 %v10862, %v11134
      %v11175 = vsub.f32 %v10863, %v11134
      %v11176 = vsub.f32 %v10864, %v11134
      %v11177 = vsub.f32 %v10865, %v11134
      %v11178 = vsub.f32 %v10866, %v11134
      %v11179 = vsub.f32 %v10867, %v11134
      %v11180 = vsub.f32 %v10868, %v11134
      %v11181 = vsub.f32 %v10869, %v11134
      %v11182 = vsub.f32 %v10870, %v11134
      %v11183 = vsub.f32 %v10871, %v11134
      %v11184 = vsub.f32 %v10872, %v11134
      %v11185 = vsub.f32 %v10873, %v11134
      %v11186 = vsub.f32 %v10874, %v11134
      %v11187 = vsub.f32 %v10875, %v11134
      %v11188 = vsub.f32 %v10876, %v11134
      %v11189 = vsub.f32 %v10877, %v11134
      %v11190 = vsub.f32 %v10878, %v11134
      %v11191 = vsub.f32 %v10879, %v11134
      %v11192 = vsub.f32 %v10880, %v11134
      %v11193 = vsub.f32 %v10881, %v11134
      %v11194 = vsub.f32 %v10882, %v11134
      %v11195 = vsub.f32 %v10883, %v11134
      %v11196 = vsub.f32 %v10884, %v11134
      %v11197 = vsub.f32 %v10885, %v11134
      %v11198 = vsub.f32 %v10886, %v11134
      %v11199 = vsub.f32 %v10887, %v11134
      %v11200 = vsub.f32 %v10888, %v11134
      %v11201 = vsub.f32 %v10889, %v11134
      %v11202 = vsub.f32 %v10890, %v11134
      %v11203 = vsub.f32 %v10891, %v11134
      %v11204 = vsub.f32 %v10892, %v11134
      %v11205 = vsub.f32 %v10893, %v11134
      %v11206 = vsub.f32 %v10894, %v11134
      %v11207 = vsub.f32 %v10895, %v11134
      %v11208 = vsub.f32 %v10896, %v11134
      %v11209 = vsub.f32 %v10897, %v11134
      %v11210 = vsub.f32 %v10898, %v11134
      %v11211 = vsub.f32 %v10899, %v11134
      %v11212 = vsub.f32 %v10900, %v11134
      %v11213 = vsub.f32 %v10901, %v11134
      %v11214 = vsub.f32 %v10902, %v11134
      %v11215 = vsub.f32 %v10903, %v11134
      %v11216 = vsub.f32 %v10904, %v11134
      %v11217 = vsub.f32 %v10905, %v11134
      %v11218 = vsub.f32 %v10906, %v11134
      %v11219 = vsub.f32 %v10907, %v11134
      %v11220 = vsub.f32 %v10908, %v11134
      %v11221 = vsub.f32 %v10909, %v11134
      %v11222 = vsub.f32 %v10910, %v11134
      %v11223 = vsub.f32 %v10911, %v11134
      %v11224 = vsub.f32 %v10912, %v11134
      %v11225 = vsub.f32 %v10913, %v11134
      %v11226 = vsub.f32 %v10914, %v11134
      %v11227 = vsub.f32 %v10915, %v11134
      %v11228 = vsub.f32 %v10916, %v11134
      %v11229 = vsub.f32 %v10917, %v11134
      %v11230 = vsub.f32 %v10918, %v11134
      %v11231 = vsub.f32 %v10919, %v11134
      %v11232 = vsub.f32 %v10920, %v11134
      %v11233 = vsub.f32 %v10921, %v11134
      %v11234 = vsub.f32 %v10922, %v11134
      %v11235 = vmul.f32 %v11135, %v10326
      %v11236 = vmul.f32 %v11136, %v10331
      %v11237 = vmul.f32 %v11137, %v10336
      %v11238 = vmul.f32 %v11138, %v10341
      %v11239 = vmul.f32 %v11139, %v10346
      %v11240 = vmul.f32 %v11140, %v10351
      %v11241 = vmul.f32 %v11141, %v10356
      %v11242 = vmul.f32 %v11142, %v10361
      %v11243 = vmul.f32 %v11143, %v10366
      %v11244 = vmul.f32 %v11144, %v10371
      %v11245 = vmul.f32 %v11145, %v10376
      %v11246 = vmul.f32 %v11146, %v10381
      %v11247 = vmul.f32 %v11147, %v10386
      %v11248 = vmul.f32 %v11148, %v10391
      %v11249 = vmul.f32 %v11149, %v10396
      %v11250 = vmul.f32 %v11150, %v10401
      %v11251 = vmul.f32 %v11151, %v10406
      %v11252 = vmul.f32 %v11152, %v10411
      %v11253 = vmul.f32 %v11153, %v10416
      %v11254 = vmul.f32 %v11154, %v10421
      %v11255 = vmul.f32 %v11155, %v10426
      %v11256 = vmul.f32 %v11156, %v10431
      %v11257 = vmul.f32 %v11157, %v10436
      %v11258 = vmul.f32 %v11158, %v10441
      %v11259 = vmul.f32 %v11159, %v10446
      %v11260 = vmul.f32 %v11160, %v10451
      %v11261 = vmul.f32 %v11161, %v10456
      %v11262 = vmul.f32 %v11162, %v10461
      %v11263 = vmul.f32 %v11163, %v10466
      %v11264 = vmul.f32 %v11164, %v10471
      %v11265 = vmul.f32 %v11165, %v10476
      %v11266 = vmul.f32 %v11166, %v10481
      %v11267 = vmul.f32 %v11167, %v10486
      %v11268 = vmul.f32 %v11168, %v10491
      %v11269 = vmul.f32 %v11169, %v10496
      %v11270 = vmul.f32 %v11170, %v10501
      %v11271 = vmul.f32 %v11171, %v10506
      %v11272 = vmul.f32 %v11172, %v10511
      %v11273 = vmul.f32 %v11173, %v10516
      %v11274 = vmul.f32 %v11174, %v10521
      %v11275 = vmul.f32 %v11175, %v10526
      %v11276 = vmul.f32 %v11176, %v10531
      %v11277 = vmul.f32 %v11177, %v10536
      %v11278 = vmul.f32 %v11178, %v10541
      %v11279 = vmul.f32 %v11179, %v10546
      %v11280 = vmul.f32 %v11180, %v10551
      %v11281 = vmul.f32 %v11181, %v10556
      %v11282 = vmul.f32 %v11182, %v10561
      %v11283 = vmul.f32 %v11183, %v10566
      %v11284 = vmul.f32 %v11184, %v10571
      %v11285 = vmul.f32 %v11185, %v10576
      %v11286 = vmul.f32 %v11186, %v10581
      %v11287 = vmul.f32 %v11187, %v10586
      %v11288 = vmul.f32 %v11188, %v10591
      %v11289 = vmul.f32 %v11189, %v10596
      %v11290 = vmul.f32 %v11190, %v10601
      %v11291 = vmul.f32 %v11191, %v10606
      %v11292 = vmul.f32 %v11192, %v10611
      %v11293 = vmul.f32 %v11193, %v10616
      %v11294 = vmul.f32 %v11194, %v10621
      %v11295 = vmul.f32 %v11195, %v10626
      %v11296 = vmul.f32 %v11196, %v10631
      %v11297 = vmul.f32 %v11197, %v10636
      %v11298 = vmul.f32 %v11198, %v10641
      %v11299 = vmul.f32 %v11199, %v10646
      %v11300 = vmul.f32 %v11200, %v10651
      %v11301 = vmul.f32 %v11201, %v10656
      %v11302 = vmul.f32 %v11202, %v10661
      %v11303 = vmul.f32 %v11203, %v10666
      %v11304 = vmul.f32 %v11204, %v10671
      %v11305 = vmul.f32 %v11205, %v10676
      %v11306 = vmul.f32 %v11206, %v10681
      %v11307 = vmul.f32 %v11207, %v10686
      %v11308 = vmul.f32 %v11208, %v10691
      %v11309 = vmul.f32 %v11209, %v10696
      %v11310 = vmul.f32 %v11210, %v10701
      %v11311 = vmul.f32 %v11211, %v10706
      %v11312 = vmul.f32 %v11212, %v10711
      %v11313 = vmul.f32 %v11213, %v10716
      %v11314 = vmul.f32 %v11214, %v10721
      %v11315 = vmul.f32 %v11215, %v10726
      %v11316 = vmul.f32 %v11216, %v10731
      %v11317 = vmul.f32 %v11217, %v10736
      %v11318 = vmul.f32 %v11218, %v10741
      %v11319 = vmul.f32 %v11219, %v10746
      %v11320 = vmul.f32 %v11220, %v10751
      %v11321 = vmul.f32 %v11221, %v10756
      %v11322 = vmul.f32 %v11222, %v10761
      %v11323 = vmul.f32 %v11223, %v10766
      %v11324 = vmul.f32 %v11224, %v10771
      %v11325 = vmul.f32 %v11225, %v10776
      %v11326 = vmul.f32 %v11226, %v10781
      %v11327 = vmul.f32 %v11227, %v10786
      %v11328 = vmul.f32 %v11228, %v10791
      %v11329 = vmul.f32 %v11229, %v10796
      %v11330 = vmul.f32 %v11230, %v10801
      %v11331 = vmul.f32 %v11231, %v10806
      %v11332 = vmul.f32 %v11232, %v10811
      %v11333 = vmul.f32 %v11233, %v10816
      %v11334 = vmul.f32 %v11234, %v10821
      %11335 = vst [vmem:[%s276] sm:$0x1] %v11129
      %v11336 = vmul.f32 %v11235, %v11235
      %v11337 = vmul.f32 %v11236, %v11236
      %v11338 = vmul.f32 %v11237, %v11237
      %v11339 = vmul.f32 %v11238, %v11238
      %v11340 = vmul.f32 %v11239, %v11239
      %v11341 = vmul.f32 %v11240, %v11240
      %v11342 = vmul.f32 %v11241, %v11241
      %v11343 = vmul.f32 %v11242, %v11242
      %v11344 = vmul.f32 %v11243, %v11243
      %v11345 = vmul.f32 %v11244, %v11244
      %v11346 = vmul.f32 %v11245, %v11245
      %v11347 = vmul.f32 %v11246, %v11246
      %v11348 = vmul.f32 %v11247, %v11247
      %v11349 = vmul.f32 %v11248, %v11248
      %v11350 = vmul.f32 %v11249, %v11249
      %v11351 = vmul.f32 %v11250, %v11250
      %v11352 = vmul.f32 %v11251, %v11251
      %v11353 = vmul.f32 %v11252, %v11252
      %v11354 = vmul.f32 %v11253, %v11253
      %v11355 = vmul.f32 %v11254, %v11254
      %v11356 = vmul.f32 %v11255, %v11255
      %v11357 = vmul.f32 %v11256, %v11256
      %v11358 = vmul.f32 %v11257, %v11257
      %v11359 = vmul.f32 %v11258, %v11258
      %v11360 = vmul.f32 %v11259, %v11259
      %v11361 = vmul.f32 %v11260, %v11260
      %v11362 = vmul.f32 %v11261, %v11261
      %v11363 = vmul.f32 %v11262, %v11262
      %v11364 = vmul.f32 %v11263, %v11263
      %v11365 = vmul.f32 %v11264, %v11264
      %v11366 = vmul.f32 %v11265, %v11265
      %v11367 = vmul.f32 %v11266, %v11266
      %v11368 = vmul.f32 %v11267, %v11267
      %v11369 = vmul.f32 %v11268, %v11268
      %v11370 = vmul.f32 %v11269, %v11269
      %v11371 = vmul.f32 %v11270, %v11270
      %v11372 = vmul.f32 %v11271, %v11271
      %v11373 = vmul.f32 %v11272, %v11272
      %v11374 = vmul.f32 %v11273, %v11273
      %v11375 = vmul.f32 %v11274, %v11274
      %v11376 = vmul.f32 %v11275, %v11275
      %v11377 = vmul.f32 %v11276, %v11276
      %v11378 = vmul.f32 %v11277, %v11277
      %v11379 = vmul.f32 %v11278, %v11278
      %v11380 = vmul.f32 %v11279, %v11279
      %v11381 = vmul.f32 %v11280, %v11280
      %v11382 = vmul.f32 %v11281, %v11281
      %v11383 = vmul.f32 %v11282, %v11282
      %v11384 = vmul.f32 %v11283, %v11283
      %v11385 = vmul.f32 %v11284, %v11284
      %v11386 = vmul.f32 %v11285, %v11285
      %v11387 = vmul.f32 %v11286, %v11286
      %v11388 = vmul.f32 %v11287, %v11287
      %v11389 = vmul.f32 %v11288, %v11288
      %v11390 = vmul.f32 %v11289, %v11289
      %v11391 = vmul.f32 %v11290, %v11290
      %v11392 = vmul.f32 %v11291, %v11291
      %v11393 = vmul.f32 %v11292, %v11292
      %v11394 = vmul.f32 %v11293, %v11293
      %v11395 = vmul.f32 %v11294, %v11294
      %v11396 = vmul.f32 %v11295, %v11295
      %v11397 = vmul.f32 %v11296, %v11296
      %v11398 = vmul.f32 %v11297, %v11297
      %v11399 = vmul.f32 %v11298, %v11298
      %v11400 = vmul.f32 %v11299, %v11299
      %v11401 = vmul.f32 %v11300, %v11300
      %v11402 = vmul.f32 %v11301, %v11301
      %v11403 = vmul.f32 %v11302, %v11302
      %v11404 = vmul.f32 %v11303, %v11303
      %v11405 = vmul.f32 %v11304, %v11304
      %v11406 = vmul.f32 %v11305, %v11305
      %v11407 = vmul.f32 %v11306, %v11306
      %v11408 = vmul.f32 %v11307, %v11307
      %v11409 = vmul.f32 %v11308, %v11308
      %v11410 = vmul.f32 %v11309, %v11309
      %v11411 = vmul.f32 %v11310, %v11310
      %v11412 = vmul.f32 %v11311, %v11311
      %v11413 = vmul.f32 %v11312, %v11312
      %v11414 = vmul.f32 %v11313, %v11313
      %v11415 = vmul.f32 %v11314, %v11314
      %v11416 = vmul.f32 %v11315, %v11315
      %v11417 = vmul.f32 %v11316, %v11316
      %v11418 = vmul.f32 %v11317, %v11317
      %v11419 = vmul.f32 %v11318, %v11318
      %v11420 = vmul.f32 %v11319, %v11319
      %v11421 = vmul.f32 %v11320, %v11320
      %v11422 = vmul.f32 %v11321, %v11321
      %v11423 = vmul.f32 %v11322, %v11322
      %v11424 = vmul.f32 %v11323, %v11323
      %v11425 = vmul.f32 %v11324, %v11324
      %v11426 = vmul.f32 %v11325, %v11325
      %v11427 = vmul.f32 %v11326, %v11326
      %v11428 = vmul.f32 %v11327, %v11327
      %v11429 = vmul.f32 %v11328, %v11328
      %v11430 = vmul.f32 %v11329, %v11329
      %v11431 = vmul.f32 %v11330, %v11330
      %v11432 = vmul.f32 %v11331, %v11331
      %v11433 = vmul.f32 %v11332, %v11332
      %v11434 = vmul.f32 %v11333, %v11333
      %v11435 = vmul.f32 %v11334, %v11334
      %v11436 = vadd.f32 %v11336, %v11337
      %v11437 = vadd.f32 %v11436, %v11338
      %v11438 = vadd.f32 %v11437, %v11339
      %v11439 = vadd.f32 %v11438, %v11340
      %v11440 = vadd.f32 %v11439, %v11341
      %v11441 = vadd.f32 %v11440, %v11342
      %v11442 = vadd.f32 %v11441, %v11343
      %v11443 = vadd.f32 %v11442, %v11344
      %v11444 = vadd.f32 %v11443, %v11345
      %v11445 = vadd.f32 %v11444, %v11346
      %v11446 = vadd.f32 %v11445, %v11347
      %v11447 = vadd.f32 %v11446, %v11348
      %v11448 = vadd.f32 %v11447, %v11349
      %v11449 = vadd.f32 %v11448, %v11350
      %v11450 = vadd.f32 %v11449, %v11351
      %v11451 = vadd.f32 %v11450, %v11352
      %v11452 = vadd.f32 %v11451, %v11353
      %v11453 = vadd.f32 %v11452, %v11354
      %v11454 = vadd.f32 %v11453, %v11355
      %v11455 = vadd.f32 %v11454, %v11356
      %v11456 = vadd.f32 %v11455, %v11357
      %v11457 = vadd.f32 %v11456, %v11358
      %v11458 = vadd.f32 %v11457, %v11359
      %v11459 = vadd.f32 %v11458, %v11360
      %v11460 = vadd.f32 %v11459, %v11361
      %v11461 = vadd.f32 %v11460, %v11362
      %v11462 = vadd.f32 %v11461, %v11363
      %v11463 = vadd.f32 %v11462, %v11364
      %v11464 = vadd.f32 %v11463, %v11365
      %v11465 = vadd.f32 %v11464, %v11366
      %v11466 = vadd.f32 %v11465, %v11367
      %v11467 = vadd.f32 %v11466, %v11368
      %v11468 = vadd.f32 %v11467, %v11369
      %v11469 = vadd.f32 %v11468, %v11370
      %v11470 = vadd.f32 %v11469, %v11371
      %v11471 = vadd.f32 %v11470, %v11372
      %v11472 = vadd.f32 %v11471, %v11373
      %v11473 = vadd.f32 %v11472, %v11374
      %v11474 = vadd.f32 %v11473, %v11375
      %v11475 = vadd.f32 %v11474, %v11376
      %v11476 = vadd.f32 %v11475, %v11377
      %v11477 = vadd.f32 %v11476, %v11378
      %v11478 = vadd.f32 %v11477, %v11379
      %v11479 = vadd.f32 %v11478, %v11380
      %v11480 = vadd.f32 %v11479, %v11381
      %v11481 = vadd.f32 %v11480, %v11382
      %v11482 = vadd.f32 %v11481, %v11383
      %v11483 = vadd.f32 %v11482, %v11384
      %v11484 = vadd.f32 %v11483, %v11385
      %v11485 = vadd.f32 %v11484, %v11386
      %v11486 = vadd.f32 %v11485, %v11387
      %v11487 = vadd.f32 %v11486, %v11388
      %v11488 = vadd.f32 %v11487, %v11389
      %v11489 = vadd.f32 %v11488, %v11390
      %v11490 = vadd.f32 %v11489, %v11391
      %v11491 = vadd.f32 %v11490, %v11392
      %v11492 = vadd.f32 %v11491, %v11393
      %v11493 = vadd.f32 %v11492, %v11394
      %v11494 = vadd.f32 %v11493, %v11395
      %v11495 = vadd.f32 %v11494, %v11396
      %v11496 = vadd.f32 %v11495, %v11397
      %v11497 = vadd.f32 %v11496, %v11398
      %v11498 = vadd.f32 %v11497, %v11399
      %v11499 = vadd.f32 %v11498, %v11400
      %v11500 = vadd.f32 %v11499, %v11401
      %v11501 = vadd.f32 %v11500, %v11402
      %v11502 = vadd.f32 %v11501, %v11403
      %v11503 = vadd.f32 %v11502, %v11404
      %v11504 = vadd.f32 %v11503, %v11405
      %v11505 = vadd.f32 %v11504, %v11406
      %v11506 = vadd.f32 %v11505, %v11407
      %v11507 = vadd.f32 %v11506, %v11408
      %v11508 = vadd.f32 %v11507, %v11409
      %v11509 = vadd.f32 %v11508, %v11410
      %v11510 = vadd.f32 %v11509, %v11411
      %v11511 = vadd.f32 %v11510, %v11412
      %v11512 = vadd.f32 %v11511, %v11413
      %v11513 = vadd.f32 %v11512, %v11414
      %v11514 = vadd.f32 %v11513, %v11415
      %v11515 = vadd.f32 %v11514, %v11416
      %v11516 = vadd.f32 %v11515, %v11417
      %v11517 = vadd.f32 %v11516, %v11418
      %v11518 = vadd.f32 %v11517, %v11419
      %v11519 = vadd.f32 %v11518, %v11420
      %v11520 = vadd.f32 %v11519, %v11421
      %v11521 = vadd.f32 %v11520, %v11422
      %v11522 = vadd.f32 %v11521, %v11423
      %v11523 = vadd.f32 %v11522, %v11424
      %v11524 = vadd.f32 %v11523, %v11425
      %v11525 = vadd.f32 %v11524, %v11426
      %v11526 = vadd.f32 %v11525, %v11427
      %v11527 = vadd.f32 %v11526, %v11428
      %v11528 = vadd.f32 %v11527, %v11429
      %v11529 = vadd.f32 %v11528, %v11430
      %v11530 = vadd.f32 %v11529, %v11431
      %v11531 = vadd.f32 %v11530, %v11432
      %v11532 = vadd.f32 %v11531, %v11433
      %v11533 = vadd.f32 %v11532, %v11434
      %v11534 = vadd.f32 %v11533, %v11435
      %v11535 = vrot.slane %v11534, 4
      %v11536 = vadd.f32 %v11534, %v11535
      %v11537 = vrot.slane %v11536, 2
      %v11538 = vadd.f32 %v11536, %v11537
      %v11539 = vrot.slane %v11538, 1
      %v11540 = vadd.f32 %v11538, %v11539
      %11541 = vst [vmem:[%s282] sm:$0x1] %v11540
      %s11542 = smul.u32 25, %s22
      %p11543 = scmp.lt.s32.totalorder %s21, 1
      %s11544 = scalar_select %p11543, %s21, 1
      %p11545 = scmp.lt.s32.totalorder %s11542, 24
      %s11546 = scalar_select %p11545, %s11542, 24
      %s11547 = smul.addr %s11546, 4
      %s11548 = smul.addr %s11544, 100
      %s11549 = sadd.s32 %s11547, %s11548
      %s11550 = smul.addr %s11549, 8
      %s11551 = scalar_lea.vmem %s3, %s11550
      %p11552 = scmp.lt.s32.totalorder %s21, 1
      %s11553 = scalar_select %p11552, %s21, 1
      %p11554 = scmp.lt.s32.totalorder %s22, 0
      %s11555 = scalar_select %p11554, %s22, 0
      %s11556 = sadd.s32 %s11555, %s11553
      %s11557 = scalar_lea.vmem %s4, %s11556
      %p11558 = scmp.lt.s32.totalorder %s21, 1
      %s11559 = scalar_select %p11558, %s21, 1
      %p11560 = scmp.lt.s32.totalorder %s22, 0
      %s11561 = scalar_select %p11560, %s22, 0
      %s11562 = sadd.s32 %s11561, %s11559
      %s11563 = scalar_lea.vmem %s5, %s11562
      // Predicated region
      $region33: #{conv2d_batchnorm.1} parent=31 // pred_check
        %p11564 = pneg %p117
      $region34: #{conv2d_batchnorm.1} parent=31 // pred_check_branch
        %11566 = sbr.rel (%p11564) target = $region36
      $region35: #{conv2d_batchnorm.1} parent=31 // pred_region
        %s11567 = smul.u32 25, %s22
      $region36: #{conv2d_batchnorm.1} parent=31 // pred_fallthru
        _
      // Predicated region
      $region37: #{conv2d_batchnorm.1} parent=31 // pred_check
        %p11568 = pneg %p145
      $region38: #{conv2d_batchnorm.1} parent=31 // pred_check_branch
        %11570 = sbr.rel (%p11568) target = $region40
      $region39: #{conv2d_batchnorm.1} parent=31 // pred_region
        _
      $region40: #{conv2d_batchnorm.1} parent=31 // pred_fallthru
        _
      // Predicated region
      $region41: #{conv2d_batchnorm.1} parent=31 // pred_check
        %p11571 = pneg %p173
      $region42: #{conv2d_batchnorm.1} parent=31 // pred_check_branch
        %11573 = sbr.rel (%p11571) target = $region44
      $region43: #{conv2d_batchnorm.1} parent=31 // pred_region
        _
      $region44: #{conv2d_batchnorm.1} parent=31 // pred_fallthru
        _
    $region32: #{conv2d_batchnorm.1} parent=5 // pred_fallthru
      _
    %p11574 = scmp.le.s32.totalorder 2, %s12
    // Predicated region
    $region45: #{conv2d_batchnorm.1} parent=5 // pred_check
      %p11575 = pneg %p11574
    $region46: #{conv2d_batchnorm.1} parent=5 // pred_check_branch
      %11577 = sbr.rel (%p11575) target = $region48
    $region47: #{conv2d_batchnorm.1} parent=5 // pred_region
      %s11578 = ssub.s32 %s12, 2
      // Predicated region
      $region49: #{conv2d_batchnorm.1} parent=47 // pred_check
        %p11579 = pneg %p123
      $region50: #{conv2d_batchnorm.1} parent=47 // pred_check_branch
        %11581 = sbr.rel (%p11579) target = $region52
      $region51: #{conv2d_batchnorm.1} parent=47 // pred_region
        %s11582 = smul.u32 25, %s24
        %p11583 = scmp.lt.s32.totalorder %s23, 1
        %s11584 = scalar_select %p11583, %s23, 1
        %p11585 = scmp.lt.s32.totalorder %s11582, 24
        %s11586 = scalar_select %p11585, %s11582, 24
        %s11587 = smul.addr %s11586, 4
        %s11588 = smul.addr %s11584, 100
        %s11589 = sadd.s32 %s11587, %s11588
        %s11590 = smul.addr %s11589, 8
        %s11591 = scalar_lea.vmem %s3, %s11590
      $region52: #{conv2d_batchnorm.1} parent=47 // pred_fallthru
        _
      // Predicated region
      $region53: #{conv2d_batchnorm.1} parent=47 // pred_check
        %p11592 = pneg %p151
      $region54: #{conv2d_batchnorm.1} parent=47 // pred_check_branch
        %11594 = sbr.rel (%p11592) target = $region56
      $region55: #{conv2d_batchnorm.1} parent=47 // pred_region
        %p11595 = scmp.lt.s32.totalorder %s23, 1
        %s11596 = scalar_select %p11595, %s23, 1
        %p11597 = scmp.lt.s32.totalorder %s24, 0
        %s11598 = scalar_select %p11597, %s24, 0
        %s11599 = sadd.s32 %s11598, %s11596
        %s11600 = scalar_lea.vmem %s4, %s11599
      $region56: #{conv2d_batchnorm.1} parent=47 // pred_fallthru
        _
      // Predicated region
      $region57: #{conv2d_batchnorm.1} parent=47 // pred_check
        %p11601 = pneg %p179
      $region58: #{conv2d_batchnorm.1} parent=47 // pred_check_branch
        %11603 = sbr.rel (%p11601) target = $region60
      $region59: #{conv2d_batchnorm.1} parent=47 // pred_region
        %p11604 = scmp.lt.s32.totalorder %s23, 1
        %s11605 = scalar_select %p11604, %s23, 1
        %p11606 = scmp.lt.s32.totalorder %s24, 0
        %s11607 = scalar_select %p11606, %s24, 0
        %s11608 = sadd.s32 %s11607, %s11605
        %s11609 = scalar_lea.vmem %s5, %s11608
      $region60: #{conv2d_batchnorm.1} parent=47 // pred_fallthru
        _
    $region48: #{conv2d_batchnorm.1} parent=5 // pred_fallthru
      _
  $region6: #{conv2d_batchnorm.1} parent=0 // loop_footer
    %s16 = sadd.s32 1, %s12
  $region7: #{conv2d_batchnorm.1} parent=0 // loop_footer_branch
    %11 = sbr.rel target = $region3
  $region8: #{conv2d_batchnorm.1} parent=0 // loop_exit
    _

</llo_original>
